<compile_context>
chip_gen: v7x
topology: tpu7x:2x2x1
jax: 0.10.0
libtpu: 0.0.40
codegen_flags: <defaults>
</compile_context>

<pallas_src>
import functools
import math

import jax
import jax.numpy as jnp
import numpy as np
from jax import lax
from jax.experimental import pallas as pl
from jax.experimental.pallas import tpu as pltpu

POOL_OUT = 64        # nn.AdaptiveAvgPool1d(64) inside Multi_CNN
NUM_SCALES = 4


# ---------------------------------------------------------------------------
# Host-side constant matrices (static shapes only; folded into the jit)
# ---------------------------------------------------------------------------
def _adaptive_avg_pool_matrix(lin, lout):
    """nn.AdaptiveAvgPool1d(lout) over a length-lin axis as a (lout, lin) matrix."""
    p = np.zeros((lout, lin), dtype=np.float32)
    for i in range(lout):
        s = (i * lin) // lout
        e = -((-(i + 1) * lin) // lout)          # ceil((i+1)*lin/lout)
        p[i, s:e] = 1.0 / (e - s)
    return p


def _window_mean_matrix(L, seq_size):
    """Row t averages the trailing window [max(0, t-seq+1), t]; matches the
    F.conv1d(ones, padding=seq-1) + divide construction in TemEnc.forward."""
    m = np.zeros((L, L), dtype=np.float32)
    for t in range(L):
        s = max(0, t - seq_size + 1)
        m[t, s:t + 1] = 1.0 / (t + 1 - s)
    return m


def _mcnn_matrices(T, bt, len1, len2, len3, ksize):
    """Host matrices for the fused Multi_CNN kernel.

    All four scale branches of one batch element are stacked into a single run
    of R rows; per-batch time-axis maps are block-diagonal over the batch tile
    so conv / fc weights stay shared across the M dimension.
    Returns (Mbuild_bd, S1_bd, Savg, R, R2).
    """
    k1 = ksize - 1
    seg_len = [len1, POOL_OUT, POOL_OUT, POOL_OUT]
    R = sum(seg_len)

    # branch builder (R, T): [x[-len1:], P2 @ x[-len2:], P3 @ x[-len3:], P4 @ x]
    A = np.zeros((R, T), dtype=np.float32)
    A[np.arange(len1), T - len1 + np.arange(len1)] = 1.0
    A[len1:len1 + POOL_OUT, T - len2:T] = _adaptive_avg_pool_matrix(len2, POOL_OUT)
    A[len1 + POOL_OUT:len1 + 2 * POOL_OUT, T - len3:T] = _adaptive_avg_pool_matrix(len3, POOL_OUT)
    A[len1 + 2 * POOL_OUT:, :] = _adaptive_avg_pool_matrix(T, POOL_OUT)

    seg_off = list(np.cumsum([0] + seg_len[:-1]))
    l1 = [s - k1 for s in seg_len]            # conv1 valid lengths
    p1 = [v // 2 for v in l1]                 # after MaxPool1d(2)
    l2 = [v - k1 for v in p1]                 # conv2 valid lengths
    lp = [v // 2 for v in l2]                 # after MaxPool1d(2)
    assert min(lp) >= 1, (
        "scale / win_size too small for two Conv1d(k=%d)+MaxPool(2) stages" % ksize)

    # S1: picks the MaxPool1d(2) rows (even offsets of each valid conv1 segment)
    # from the pairwise-max array and drops cross-segment garbage rows.
    R2 = sum(p1)
    S1 = np.zeros((R2, R), dtype=np.float32)
    r = 0
    off2 = []
    for o, p in zip(seg_off, p1):
        off2.append(r)
        for j in range(p):
            S1[r, int(o) + 2 * j] = 1.0
            r += 1

    # Savg: MaxPool1d(2) + AdaptiveConcatPool1d (== [avg, avg] in this module)
    # of the conv2 output folded into one averaging row per (branch, batch);
    # rows are branch-major so the alpha combine becomes contiguous row slices.
    Savg = np.zeros((NUM_SCALES * bt, bt * R2), dtype=np.float32)
    for i in range(NUM_SCALES):
        for b in range(bt):
            row = i * bt + b
            for j in range(lp[i]):
                Savg[row, b * R2 + off2[i] + 2 * j] = 1.0 / lp[i]

    eye = np.eye(bt, dtype=np.float32)
    # TODO(synk): the block-diagonal build/select matrices scale as bt^2 * T;
    # for large win_size switch the build stage to a lanes-batched (T, bt*C)
    # matmul and the score to a prefix-sum formulation.
    return (jnp.asarray(np.kron(eye, A)),
            jnp.asarray(np.kron(eye, S1)),
            jnp.asarray(Savg), R, R2)


def _pick_batch_tile(B):
    # Keep >=2 grid steps when B allows (v7x megacore) while keeping block
    # sublane dims either 8-aligned or equal to the full batch dimension.
    return 8 if B % 8 == 0 else B


def _compiler_params(block_shapes):
    blk = sum(int(np.prod(s)) for s in block_shapes) * 4
    limit = int(min(max(4 * blk + (16 << 20), 32 << 20), 64 << 20))
    return pltpu.CompilerParams(dimension_semantics=("parallel",),
                                vmem_limit_bytes=limit)


# ---------------------------------------------------------------------------
# Kernel 1: DataEmbedding (circular conv k=3 + positional emb) fused with the
# windowed mean/variance score, batched over a batch tile.
# ---------------------------------------------------------------------------
def _emb_score_kernel(x_ref, wcat_ref, pos_ref, wm_ref, ex_ref, sc_ref, *, bt, L, D):
    # circular Conv1d(k=3) as ONE im2col matmul over the whole batch tile.
    pieces = []
    for b in range(bt):                               # static loop, XLU-only work
        xb = x_ref[b]                                 # (L, C)
        xm1 = pltpu.roll(xb, shift=1, axis=0)         # x[t-1] (circular)
        xp1 = pltpu.roll(xb, shift=L - 1, axis=0)     # x[t+1] (circular)
        pieces.append(jnp.concatenate([xm1, xb, xp1], axis=-1))
    xcat = pieces[0] if bt == 1 else jnp.concatenate(pieces, axis=0)   # (bt*L, 3C)
    pos = pos_ref[...]
    posb = pos if bt == 1 else jnp.concatenate([pos] * bt, axis=0)     # (bt*L, D)
    exf = jnp.dot(xcat, wcat_ref[...], preferred_element_type=jnp.float32) + posb
    ex_ref[...] = exf                                                  # (bt*L, D)

    # windowed mean / variance score: single fused banded matmul on [ex, ex^2].
    exc = jnp.concatenate([exf, exf * exf], axis=-1)                   # (bt*L, 2D)
    ms = jnp.dot(wm_ref[...], exc, preferred_element_type=jnp.float32)
    mean = ms[:, :D]
    var = ms[:, D:] - mean * mean
    sv = jnp.sum(var, axis=-1, keepdims=True)
    sm = jnp.sum(mean, axis=-1, keepdims=True)
    sc_ref[...] = sv / sm                                              # (bt*L, 1)


def embed_and_score(x, w_emb, pos, seq_size):
    B, L, C = x.shape
    D = w_emb.shape[2]
    bt = _pick_batch_tile(B)
    nb = B // bt

    wcat = w_emb.reshape(3 * C, D)                      # taps folded for one dot
    wm_bd = jnp.asarray(np.kron(np.eye(bt, dtype=np.float32),
                                _window_mean_matrix(L, seq_size)))
    # TODO(synk): single-buffer the constant operands (pipeline_mode) and use a
    # prefix-sum score instead of the (L, L) banded matrix before scaling L.

    blocks = [(bt, L, C), (3 * C, D), (L, D), (bt * L, bt * L),
              (bt * L, D), (bt * L, 1)]
    ex_flat, score_flat = pl.pallas_call(
        functools.partial(_emb_score_kernel, bt=bt, L=L, D=D),
        out_shape=(jax.ShapeDtypeStruct((B * L, D), jnp.float32),
                   jax.ShapeDtypeStruct((B * L, 1), jnp.float32)),
        grid=(nb,),
        in_specs=[
            pl.BlockSpec((bt, L, C), lambda i: (i, 0, 0)),
            # constant operands (block index fixed at 0 across the grid)
            pl.BlockSpec((3 * C, D), lambda i: (0, 0)),
            pl.BlockSpec((L, D), lambda i: (0, 0)),
            pl.BlockSpec((bt * L, bt * L), lambda i: (0, 0)),
        ],
        out_specs=(pl.BlockSpec((bt * L, D), lambda i: (i, 0)),
                   pl.BlockSpec((bt * L, 1), lambda i: (i, 0))),
        compiler_params=_compiler_params(blocks),
    )(x, wcat, pos, wm_bd)
    return ex_flat.reshape(B, L, D), score_flat.reshape(B, L)


# ---------------------------------------------------------------------------
# Kernel 2: fused Multi_CNN (all 4 scale branches + alpha combine) over a
# batch tile, optionally with the whole `pro` head fused on top.
# ---------------------------------------------------------------------------
def _mcnn_kernel(alphas_ref, x_ref, mb_ref, s1_ref, sav_ref,
                 w1_ref, b1_ref, w2_ref, b2_ref,
                 wf1_ref, bf1_ref, wf2_ref, bf2_ref,
                 *rest, bt, ksize, with_proj):
    if with_proj:
        wp1_ref, bp1_ref, wp2_ref, bp2_ref, comb_ref, rec_ref = rest
    else:
        (comb_ref,) = rest

    # Branch building: scale slicing + AdaptiveAvgPool1d(64), all four branches
    # and all batch rows stacked onto M in one matmul.
    xs = jnp.dot(mb_ref[...], x_ref[...], preferred_element_type=jnp.float32)

    def conv_relu(v, wcat_ref_, b_ref_):
        # Conv1d(k=ksize, stride=1) as ONE im2col matmul; rows whose window
        # crosses a segment boundary are garbage and dropped by the next
        # selection matrix.
        n = v.shape[0]
        cols = [v] + [pltpu.roll(v, shift=n - k, axis=0) for k in range(1, ksize)]
        vcat = jnp.concatenate(cols, axis=-1)
        h = jnp.dot(vcat, wcat_ref_[...], preferred_element_type=jnp.float32) + b_ref_[...]
        return jnp.maximum(h, 0.0)

    h1 = conv_relu(xs, w1_ref, b1_ref)                               # (bt*R, ch1)
    h1m = jnp.maximum(h1, pltpu.roll(h1, shift=h1.shape[0] - 1, axis=0))
    ph = jnp.dot(s1_ref[...], h1m, preferred_element_type=jnp.float32)   # (bt*R2, ch1)
    h2 = conv_relu(ph, w2_ref, b2_ref)                               # (bt*R2, ch2)
    h2m = jnp.maximum(h2, pltpu.roll(h2, shift=h2.shape[0] - 1, axis=0))

    # MaxPool1d(2) + AdaptiveConcatPool1d([avg, avg]) folded into one matmul;
    # rows are branch-major: [scale1 x bt, scale2 x bt, scale3 x bt, scale4 x bt].
    avg = jnp.dot(sav_ref[...], h2m, preferred_element_type=jnp.float32)  # (4*bt, ch2)

    # fc1 (AdaptiveConcatPool folded into wf1) + ReLU; Dropout == identity at eval.
    z = jnp.maximum(jnp.dot(avg, wf1_ref[...], preferred_element_type=jnp.float32)
                    + bf1_ref[...], 0.0)

    a = [alphas_ref[i] for i in range(NUM_SCALES)]
    zc = (a[0] * z[0 * bt:1 * bt] + a[1] * z[1 * bt:2 * bt]
          + a[2] * z[2 * bt:3 * bt] + a[3] * z[3 * bt:4 * bt])
    # sum_i a_i (z_i @ wf2 + bf2) == (sum_i a_i z_i) @ wf2 + (sum_i a_i) * bf2
    comb = (jnp.dot(zc, wf2_ref[...], preferred_element_type=jnp.float32)
            + (a[0] + a[1] + a[2] + a[3]) * bf2_ref[...])
    comb_ref[...] = comb                                              # (bt, nf)

    if with_proj:
        # pro head fused: Linear -> GELU -> Linear -> Sigmoid (EUP ops are free).
        h = jnp.dot(comb, wp1_ref[...], preferred_element_type=jnp.float32) + bp1_ref[...]
        # TODO(synk): switch to exact-erf GELU once Mosaic erf lowering is confirmed.
        g = jax.nn.gelu(h, approximate=True)
        rec = jax.nn.sigmoid(
            jnp.dot(g, wp2_ref[...], preferred_element_type=jnp.float32) + bp2_ref[...])
        rec_ref[...] = rec                                            # (bt, d_model)


def multi_cnn_fused(x, p, *, scale1, scale2, scale3, ksize, proj=None):
    """Fused Multi_CNN forward on a (B, T, C) input.

    Returns (combined (B, nf), rec (B, dp) or None): `combined` is the alpha-
    weighted sum of the per-scale fc outputs; `rec` is the fused pro head
    (enc path only).
    """
    B, T, C = x.shape
    ch1, ch2 = p["w1"].shape[2], p["w2"].shape[2]
    nf = p["wf2"].shape[1]
    bt = _pick_batch_tile(B)
    nb = B // bt

    len1, len2, len3 = min(scale1, T), min(scale2, T), min(scale3, T)
    mb, s1, sav, R, R2 = _mcnn_matrices(T, bt, len1, len2, len3, ksize)

    w1cat = p["w1"].reshape(ksize * C, ch1)         # im2col-folded conv taps
    w2cat = p["w2"].reshape(ksize * ch1, ch2)
    wf1f = p["wf1"][:ch2] + p["wf1"][ch2:]          # AdaptiveConcatPool1d == [avg, avg]

    xf = x.reshape(B * T, C)
    with_proj = proj is not None

    inputs = [p["alphas"], xf, mb, s1, sav,
              w1cat, p["b1"], w2cat, p["b2"], wf1f, p["bf1"], p["wf2"], p["bf2"]]
    in_specs = [
        pl.BlockSpec(memory_space=pltpu.MemorySpace.SMEM),            # alphas (scalars)
        pl.BlockSpec((bt * T, C), lambda i: (i, 0)),                  # batch tile
        # constant operands (block index fixed at 0 across the grid)
        pl.BlockSpec((bt * R, bt * T), lambda i: (0, 0)),
        pl.BlockSpec((bt * R2, bt * R), lambda i: (0, 0)),
        pl.BlockSpec((NUM_SCALES * bt, bt * R2), lambda i: (0, 0)),
        pl.BlockSpec((ksize * C, ch1), lambda i: (0, 0)),
        pl.BlockSpec((1, ch1), lambda i: (0, 0)),
        pl.BlockSpec((ksize * ch1, ch2), lambda i: (0, 0)),
        pl.BlockSpec((1, ch2), lambda i: (0, 0)),
        pl.BlockSpec((ch2, ch2), lambda i: (0, 0)),
        pl.BlockSpec((1, ch2), lambda i: (0, 0)),
        pl.BlockSpec((ch2, nf), lambda i: (0, 0)),
        pl.BlockSpec((1, nf), lambda i: (0, 0)),
    ]
    out_shape = [jax.ShapeDtypeStruct((B, nf), jnp.float32)]
    out_specs = [pl.BlockSpec((bt, nf), lambda i: (i, 0))]
    blocks = [(bt * T, C), (bt * R, bt * T), (bt * R2, bt * R),
              (NUM_SCALES * bt, bt * R2), (ksize * C, ch1), (ksize * ch1, ch2),
              (ch2, ch2), (ch2, nf), (bt, nf)]
    if with_proj:
        wp1, bp1, wp2, bp2 = proj
        dp = wp2.shape[1]
        inputs += [wp1, bp1, wp2, bp2]
        in_specs += [pl.BlockSpec((nf, wp1.shape[1]), lambda i: (0, 0)),
                     pl.BlockSpec((1, wp1.shape[1]), lambda i: (0, 0)),
                     pl.BlockSpec((wp2.shape[0], dp), lambda i: (0, 0)),
                     pl.BlockSpec((1, dp), lambda i: (0, 0))]
        out_shape.append(jax.ShapeDtypeStruct((B, dp), jnp.float32))
        out_specs.append(pl.BlockSpec((bt, dp), lambda i: (i, 0)))
        blocks += [(nf, wp1.shape[1]), (wp2.shape[0], dp), (bt, dp)]

    kern = functools.partial(_mcnn_kernel, bt=bt, ksize=ksize, with_proj=with_proj)
    outs = pl.pallas_call(
        kern,
        out_shape=tuple(out_shape),
        grid=(nb,),
        in_specs=in_specs,
        out_specs=tuple(out_specs),
        compiler_params=_compiler_params(blocks),
    )(*inputs)
    if with_proj:
        comb, rec = outs
        return comb, rec
    (comb,) = outs
    return comb, None


# ---------------------------------------------------------------------------
# TemEnc forward
# ---------------------------------------------------------------------------
def tem_enc_forward(x, params, *, seq_size, tr_count,
                    scale1, scale2, scale3, ksize):
    B, L, c_in = x.shape

    ex, score = embed_and_score(x, params["w_emb"], params["pos"], seq_size)

    # TODO(synk): torch.topk(sorted=False) index ordering is implementation-
    # defined; lax.top_k ordering is used here (parity risk for the gathered
    # token order feeding the Conv1d).
    _, unmasked_idx = lax.top_k(-score, L - tr_count)
    # TODO(synk): fold this gather into the enc kernel via scalar-prefetch index
    # maps to avoid the HBM round trip of the unmasked-token tensor.
    unmasked_tokens = jnp.take_along_axis(ex, unmasked_idx[:, :, None], axis=1)

    # enc Multi_CNN fused with the full pro head (Linear+GELU+Linear+Sigmoid).
    _, rec = multi_cnn_fused(
        unmasked_tokens, params["enc"],
        scale1=scale1, scale2=scale2, scale3=scale3, ksize=ksize,
        proj=(params["pro_w1"], params["pro_b1"], params["pro_w2"], params["pro_b2"]))
    att = [rec[:, None, :]]                            # (B, 1, d_model)

    comb2, _ = multi_cnn_fused(
        x, params["enc2"],
        scale1=scale1, scale2=scale2, scale3=scale3, ksize=ksize)
    output = comb2[None, :, :]                         # (1, B, c_in)
    return att, output


# ---------------------------------------------------------------------------
# Deterministic synthetic parameters
# ---------------------------------------------------------------------------
def make_params(key, c_in, d_model, L, num_channel, ksize, init_alpha):
    ch1, ch2 = num_channel[1], num_channel[2]

    def nrm(k, shape, scale=0.1):
        return scale * jax.random.normal(k, shape, dtype=jnp.float32)

    def mcnn_params(keys, c, nf):
        return {
            "w1": nrm(keys[0], (ksize, c, ch1)),     # Conv1d(c, ch1, 4) taps
            "b1": nrm(keys[1], (1, ch1)),
            "w2": nrm(keys[2], (ksize, ch1, ch2)),   # Conv1d(ch1, ch2, 4) taps
            "b2": nrm(keys[3], (1, ch2)),
            "wf1": nrm(keys[4], (2 * ch2, ch2)),     # Linear(2*ch2, ch2)
            "bf1": nrm(keys[5], (1, ch2)),
            "wf2": nrm(keys[6], (ch2, nf)),          # Linear(ch2, n_features)
            "bf2": nrm(keys[7], (1, nf)),
            "alphas": jnp.full((4,), init_alpha, dtype=jnp.float32),
        }

    # sinusoidal positional embedding (PositionalEmbedding)
    pos = np.zeros((L, d_model), dtype=np.float32)
    position = np.arange(L, dtype=np.float32)[:, None]
    div = np.exp(np.arange(0, d_model, 2, dtype=np.float32)
                 * -(math.log(10000.0) / d_model))
    pos[:, 0::2] = np.sin(position * div)
    pos[:, 1::2] = np.cos(position * div)

    keys = jax.random.split(key, 21)
    return {
        "w_emb": nrm(keys[0], (3, c_in, d_model)),   # TokenEmbedding circular conv taps
        "pos": jnp.asarray(pos),
        "enc": mcnn_params(keys[1:9], d_model, d_model),
        "enc2": mcnn_params(keys[9:17], c_in, c_in),
        "pro_w1": nrm(keys[17], (d_model, d_model)),
        "pro_b1": nrm(keys[18], (1, d_model)),
        "pro_w2": nrm(keys[19], (d_model, d_model)),
        "pro_b2": nrm(keys[20], (1, d_model)),
    }


if __name__ == "__main__":
    # Small config consistent with TemEnc(c_in, d_model, e_layers, win_size,
    # seq_size, tr, scale1, scale2, scale3); scales shrunk so conv paths stay
    # valid at small sequence lengths.
    B, L, c_in, d_model = 2, 32, 4, 32
    seq_size = 8
    tr = 0.25
    tr_count = int(tr * L)                           # self.tr = int(tr * win_size)
    scale1, scale2, scale3 = 16, 24, 28
    num_channel = [32, 32, 40]
    ksize = 4

    key = jax.random.PRNGKey(0)
    kx, kp = jax.random.split(key)
    x = jax.random.normal(kx, (B, L, c_in), dtype=jnp.float32)
    params = make_params(kp, c_in, d_model, L, num_channel, ksize, init_alpha=1.0)

    fwd = jax.jit(functools.partial(
        tem_enc_forward, seq_size=seq_size, tr_count=tr_count,
        scale1=scale1, scale2=scale2, scale3=scale3, ksize=ksize))

    att, output = fwd(x, params)
    jax.block_until_ready(att[0])
    jax.block_until_ready(output)

    assert att[0].shape == (B, 1, d_model)
    assert output.shape == (1, B, c_in)
    assert bool(jnp.all(jnp.isfinite(att[0]))) and bool(jnp.all(jnp.isfinite(output)))
    print("KERNEL_OK")
</pallas_src>

<mosaic_0001>
module attributes {stable_mosaic.version = 11 : i64} {
  func.func @_emb_score_kernel(%arg0: i32, %arg1: memref<2x32x4xf32, #tpu.memory_space<vmem>>, %arg2: memref<12x32xf32, #tpu.memory_space<vmem>>, %arg3: memref<32x32xf32, #tpu.memory_space<vmem>>, %arg4: memref<64x64xf32, #tpu.memory_space<vmem>>, %arg5: memref<64x32xf32, #tpu.memory_space<vmem>>, %arg6: memref<64x1xf32, #tpu.memory_space<vmem>>) attributes {dimension_semantics = [#tpu.dimension_semantics<parallel>], iteration_bounds = array<i64: 1>, scalar_prefetch = 0 : i64, scratch_operands = 0 : i64, tpu.core_type = #tpu.core_type<tc>, window_params = [{transform_indices = @transform_0, window_bounds = array<i64: 2, 32, 4>}, {pipeline_mode = #tpu.pipeline_mode<synchronous>, transform_indices = @transform_1, window_bounds = array<i64: 12, 32>}, {pipeline_mode = #tpu.pipeline_mode<synchronous>, transform_indices = @transform_2, window_bounds = array<i64: 32, 32>}, {pipeline_mode = #tpu.pipeline_mode<synchronous>, transform_indices = @transform_3, window_bounds = array<i64: 64, 64>}, {transform_indices = @transform_4, window_bounds = array<i64: 64, 32>}, {transform_indices = @transform_5, window_bounds = array<i64: 64, 1>}]} {
    %c0 = arith.constant 0 : index
    %c0_0 = arith.constant 0 : index
    %c0_1 = arith.constant 0 : index
    %0 = vector.load %arg1[%c0, %c0_0, %c0_1] : memref<2x32x4xf32, #tpu.memory_space<vmem>>, vector<1x32x4xf32>
    %1 = vector.shape_cast %0 : vector<1x32x4xf32> to vector<32x4xf32>
    %c1_i32 = arith.constant 1 : i32
    %2 = tpu.dynamic_rotate %1 by %c1_i32 dim 0 : vector<32x4xf32>, i32 -> vector<32x4xf32>
    %c31_i32 = arith.constant 31 : i32
    %3 = tpu.dynamic_rotate %1 by %c31_i32 dim 0 : vector<32x4xf32>, i32 -> vector<32x4xf32>
    %4 = tpu.concatenate %2, %1, %3 in 1 : vector<32x4xf32>, vector<32x4xf32>, vector<32x4xf32> -> vector<32x12xf32>
    %c1 = arith.constant 1 : index
    %c0_2 = arith.constant 0 : index
    %c0_3 = arith.constant 0 : index
    %5 = vector.load %arg1[%c1, %c0_2, %c0_3] : memref<2x32x4xf32, #tpu.memory_space<vmem>>, vector<1x32x4xf32>
    %6 = vector.shape_cast %5 : vector<1x32x4xf32> to vector<32x4xf32>
    %c1_i32_4 = arith.constant 1 : i32
    %7 = tpu.dynamic_rotate %6 by %c1_i32_4 dim 0 : vector<32x4xf32>, i32 -> vector<32x4xf32>
    %c31_i32_5 = arith.constant 31 : i32
    %8 = tpu.dynamic_rotate %6 by %c31_i32_5 dim 0 : vector<32x4xf32>, i32 -> vector<32x4xf32>
    %9 = tpu.concatenate %7, %6, %8 in 1 : vector<32x4xf32>, vector<32x4xf32>, vector<32x4xf32> -> vector<32x12xf32>
    %10 = tpu.concatenate %4, %9 in 0 : vector<32x12xf32>, vector<32x12xf32> -> vector<64x12xf32>
    %c0_6 = arith.constant 0 : index
    %c0_7 = arith.constant 0 : index
    %11 = vector.load %arg3[%c0_6, %c0_7] : memref<32x32xf32, #tpu.memory_space<vmem>>, vector<32x32xf32>
    %12 = tpu.concatenate %11, %11 in 0 : vector<32x32xf32>, vector<32x32xf32> -> vector<64x32xf32>
    %c0_8 = arith.constant 0 : index
    %c0_9 = arith.constant 0 : index
    %13 = vector.load %arg2[%c0_8, %c0_9] : memref<12x32xf32, #tpu.memory_space<vmem>>, vector<12x32xf32>
    %cst = arith.constant dense<0.000000e+00> : vector<64x32xf32>
    %14 = tpu.matmul %10, %13, %cst {dimension_numbers = #tpu.dot_dimension_numbers<[1], [0], [0], [1], [0, 0, 1, 1], [], []>} : vector<64x12xf32>, vector<12x32xf32>, vector<64x32xf32> -> vector<64x32xf32>
    %15 = arith.addf %14, %12 : vector<64x32xf32>
    %c0_10 = arith.constant 0 : index
    %c0_11 = arith.constant 0 : index
    %16 = vector.load %arg5[%c0_10, %c0_11] : memref<64x32xf32, #tpu.memory_space<vmem>>, vector<64x32xf32>
    tpu.vector_store %arg5[%c0_10, %c0_11], %15 {strides = array<i32>} : memref<64x32xf32, #tpu.memory_space<vmem>>, vector<64x32xf32>,
    %17 = arith.mulf %15, %15 : vector<64x32xf32>
    %18 = tpu.concatenate %15, %17 in 1 : vector<64x32xf32>, vector<64x32xf32> -> vector<64x64xf32>
    %c0_12 = arith.constant 0 : index
    %c0_13 = arith.constant 0 : index
    %19 = vector.load %arg4[%c0_12, %c0_13] : memref<64x64xf32, #tpu.memory_space<vmem>>, vector<64x64xf32>
    %cst_14 = arith.constant dense<0.000000e+00> : vector<64x64xf32>
    %20 = tpu.matmul %19, %18, %cst_14 {dimension_numbers = #tpu.dot_dimension_numbers<[1], [0], [0], [1], [0, 0, 1, 1], [], []>} : vector<64x64xf32>, vector<64x64xf32>, vector<64x64xf32> -> vector<64x64xf32>
    %21 = vector.extract_strided_slice %20 {offsets = [0, 0], sizes = [64, 32], strides = [1, 1]} : vector<64x64xf32> to vector<64x32xf32>
    %22 = vector.extract_strided_slice %20 {offsets = [0, 32], sizes = [64, 32], strides = [1, 1]} : vector<64x64xf32> to vector<64x32xf32>
    %23 = arith.mulf %21, %21 : vector<64x32xf32>
    %24 = arith.subf %22, %23 : vector<64x32xf32>
    %cst_15 = arith.constant dense<0.000000e+00> : vector<64xf32>
    %25 = vector.multi_reduction <add>, %24, %cst_15 [1] : vector<64x32xf32> to vector<64xf32>
    %26 = vector.shape_cast %25 : vector<64xf32> to vector<64x1xf32>
    %cst_16 = arith.constant dense<0.000000e+00> : vector<64xf32>
    %27 = vector.multi_reduction <add>, %21, %cst_16 [1] : vector<64x32xf32> to vector<64xf32>
    %28 = vector.shape_cast %27 : vector<64xf32> to vector<64x1xf32>
    %29 = arith.divf %26, %28 : vector<64x1xf32>
    %c0_17 = arith.constant 0 : index
    %c0_18 = arith.constant 0 : index
    %30 = vector.load %arg6[%c0_17, %c0_18] : memref<64x1xf32, #tpu.memory_space<vmem>>, vector<64x1xf32>
    tpu.vector_store %arg6[%c0_17, %c0_18], %29 {strides = array<i32>} : memref<64x1xf32, #tpu.memory_space<vmem>>, vector<64x1xf32>,
    return
  }
  func.func @transform_0(%arg0: i32) -> (i32, i32, i32) {
    %c0_i32 = arith.constant 0 : i32
    %c0_i32_0 = arith.constant 0 : i32
    %c0_i32_1 = arith.constant 0 : i32
    return %arg0, %c0_i32, %c0_i32_0 : i32, i32, i32
  }
  func.func @transform_1(%arg0: i32) -> (i32, i32) {
    %c0_i32 = arith.constant 0 : i32
    %c0_i32_0 = arith.constant 0 : i32
    %c0_i32_1 = arith.constant 0 : i32
    return %c0_i32, %c0_i32_0 : i32, i32
  }
  func.func @transform_2(%arg0: i32) -> (i32, i32) {
    %c0_i32 = arith.constant 0 : i32
    %c0_i32_0 = arith.constant 0 : i32
    %c0_i32_1 = arith.constant 0 : i32
    return %c0_i32, %c0_i32_0 : i32, i32
  }
  func.func @transform_3(%arg0: i32) -> (i32, i32) {
    %c0_i32 = arith.constant 0 : i32
    %c0_i32_0 = arith.constant 0 : i32
    %c0_i32_1 = arith.constant 0 : i32
    return %c0_i32, %c0_i32_0 : i32, i32
  }
  func.func @transform_4(%arg0: i32) -> (i32, i32) {
    %c0_i32 = arith.constant 0 : i32
    %c0_i32_0 = arith.constant 0 : i32
    return %arg0, %c0_i32 : i32, i32
  }
  func.func @transform_5(%arg0: i32) -> (i32, i32) {
    %c0_i32 = arith.constant 0 : i32
    %c0_i32_0 = arith.constant 0 : i32
    return %arg0, %c0_i32 : i32, i32
  }
}

module attributes {stable_mosaic.version = 11 : i64} {
  func.func @_mcnn_kernel(%arg0: i32, %arg1: memref<4xf32, #tpu.memory_space<smem>>, %arg2: memref<48x32xf32, #tpu.memory_space<vmem>>, %arg3: memref<416x48xf32, #tpu.memory_space<vmem>>, %arg4: memref<192x416xf32, #tpu.memory_space<vmem>>, %arg5: memref<8x192xf32, #tpu.memory_space<vmem>>, %arg6: memref<128x32xf32, #tpu.memory_space<vmem>>, %arg7: memref<1x32xf32, #tpu.memory_space<vmem>>, %arg8: memref<128x40xf32, #tpu.memory_space<vmem>>, %arg9: memref<1x40xf32, #tpu.memory_space<vmem>>, %arg10: memref<40x40xf32, #tpu.memory_space<vmem>>, %arg11: memref<1x40xf32, #tpu.memory_space<vmem>>, %arg12: memref<40x32xf32, #tpu.memory_space<vmem>>, %arg13: memref<1x32xf32, #tpu.memory_space<vmem>>, %arg14: memref<32x32xf32, #tpu.memory_space<vmem>>, %arg15: memref<1x32xf32, #tpu.memory_space<vmem>>, %arg16: memref<32x32xf32, #tpu.memory_space<vmem>>, %arg17: memref<1x32xf32, #tpu.memory_space<vmem>>, %arg18: memref<2x32xf32, #tpu.memory_space<vmem>>, %arg19: memref<2x32xf32, #tpu.memory_space<vmem>>) attributes {dimension_semantics = [#tpu.dimension_semantics<parallel>], iteration_bounds = array<i64: 1>, scalar_prefetch = 0 : i64, scratch_operands = 0 : i64, tpu.core_type = #tpu.core_type<tc>, window_params = [{transform_indices = @transform_0, window_bounds = array<i64: 4>}, {transform_indices = @transform_1, window_bounds = array<i64: 48, 32>}, {pipeline_mode = #tpu.pipeline_mode<synchronous>, transform_indices = @transform_2, window_bounds = array<i64: 416, 48>}, {pipeline_mode = #tpu.pipeline_mode<synchronous>, transform_indices = @transform_3, window_bounds = array<i64: 192, 416>}, {pipeline_mode = #tpu.pipeline_mode<synchronous>, transform_indices = @transform_4, window_bounds = array<i64: 8, 192>}, {pipeline_mode = #tpu.pipeline_mode<synchronous>, transform_indices = @transform_5, window_bounds = array<i64: 128, 32>}, {pipeline_mode = #tpu.pipeline_mode<synchronous>, transform_indices = @transform_6, window_bounds = array<i64: 1, 32>}, {pipeline_mode = #tpu.pipeline_mode<synchronous>, transform_indices = @transform_7, window_bounds = array<i64: 128, 40>}, {pipeline_mode = #tpu.pipeline_mode<synchronous>, transform_indices = @transform_8, window_bounds = array<i64: 1, 40>}, {pipeline_mode = #tpu.pipeline_mode<synchronous>, transform_indices = @transform_9, window_bounds = array<i64: 40, 40>}, {pipeline_mode = #tpu.pipeline_mode<synchronous>, transform_indices = @transform_10, window_bounds = array<i64: 1, 40>}, {pipeline_mode = #tpu.pipeline_mode<synchronous>, transform_indices = @transform_11, window_bounds = array<i64: 40, 32>}, {pipeline_mode = #tpu.pipeline_mode<synchronous>, transform_indices = @transform_12, window_bounds = array<i64: 1, 32>}, {pipeline_mode = #tpu.pipeline_mode<synchronous>, transform_indices = @transform_13, window_bounds = array<i64: 32, 32>}, {pipeline_mode = #tpu.pipeline_mode<synchronous>, transform_indices = @transform_14, window_bounds = array<i64: 1, 32>}, {pipeline_mode = #tpu.pipeline_mode<synchronous>, transform_indices = @transform_15, window_bounds = array<i64: 32, 32>}, {pipeline_mode = #tpu.pipeline_mode<synchronous>, transform_indices = @transform_16, window_bounds = array<i64: 1, 32>}, {transform_indices = @transform_17, window_bounds = array<i64: 2, 32>}, {transform_indices = @transform_18, window_bounds = array<i64: 2, 32>}]} {
    %c0 = arith.constant 0 : index
    %c0_0 = arith.constant 0 : index
    %0 = vector.load %arg3[%c0, %c0_0] : memref<416x48xf32, #tpu.memory_space<vmem>>, vector<416x48xf32>
    %c0_1 = arith.constant 0 : index
    %c0_2 = arith.constant 0 : index
    %1 = vector.load %arg2[%c0_1, %c0_2] : memref<48x32xf32, #tpu.memory_space<vmem>>, vector<48x32xf32>
    %cst = arith.constant dense<0.000000e+00> : vector<416x32xf32>
    %2 = tpu.matmul %0, %1, %cst {dimension_numbers = #tpu.dot_dimension_numbers<[1], [0], [0], [1], [0, 0, 1, 1], [], []>} : vector<416x48xf32>, vector<48x32xf32>, vector<416x32xf32> -> vector<416x32xf32>
    %c415_i32 = arith.constant 415 : i32
    %3 = tpu.dynamic_rotate %2 by %c415_i32 dim 0 : vector<416x32xf32>, i32 -> vector<416x32xf32>
    %c414_i32 = arith.constant 414 : i32
    %4 = tpu.dynamic_rotate %2 by %c414_i32 dim 0 : vector<416x32xf32>, i32 -> vector<416x32xf32>
    %c413_i32 = arith.constant 413 : i32
    %5 = tpu.dynamic_rotate %2 by %c413_i32 dim 0 : vector<416x32xf32>, i32 -> vector<416x32xf32>
    %6 = tpu.concatenate %2, %3, %4, %5 in 1 : vector<416x32xf32>, vector<416x32xf32>, vector<416x32xf32>, vector<416x32xf32> -> vector<416x128xf32>
    %c0_3 = arith.constant 0 : index
    %c0_4 = arith.constant 0 : index
    %7 = vector.load %arg6[%c0_3, %c0_4] : memref<128x32xf32, #tpu.memory_space<vmem>>, vector<128x32xf32>
    %cst_5 = arith.constant dense<0.000000e+00> : vector<416x32xf32>
    %8 = tpu.matmul %6, %7, %cst_5 {dimension_numbers = #tpu.dot_dimension_numbers<[1], [0], [0], [1], [0, 0, 1, 1], [], []>} : vector<416x128xf32>, vector<128x32xf32>, vector<416x32xf32> -> vector<416x32xf32>
    %c0_6 = arith.constant 0 : index
    %c0_7 = arith.constant 0 : index
    %9 = vector.load %arg7[%c0_6, %c0_7] : memref<1x32xf32, #tpu.memory_space<vmem>>, vector<1x32xf32>
    %10 = vector.broadcast %9 : vector<1x32xf32> to vector<416x32xf32>
    %11 = arith.addf %8, %10 : vector<416x32xf32>
    %cst_8 = arith.constant 0.000000e+00 : f32
    %12 = vector.broadcast %cst_8 : f32 to vector<416x32xf32>
    %13 = arith.maximumf %11, %12 : vector<416x32xf32>
    %c415_i32_9 = arith.constant 415 : i32
    %14 = tpu.dynamic_rotate %13 by %c415_i32_9 dim 0 : vector<416x32xf32>, i32 -> vector<416x32xf32>
    %15 = arith.maximumf %13, %14 : vector<416x32xf32>
    %c0_10 = arith.constant 0 : index
    %c0_11 = arith.constant 0 : index
    %16 = vector.load %arg4[%c0_10, %c0_11] : memref<192x416xf32, #tpu.memory_space<vmem>>, vector<192x416xf32>
    %cst_12 = arith.constant dense<0.000000e+00> : vector<192x32xf32>
    %17 = tpu.matmul %16, %15, %cst_12 {dimension_numbers = #tpu.dot_dimension_numbers<[1], [0], [0], [1], [0, 0, 1, 1], [], []>} : vector<192x416xf32>, vector<416x32xf32>, vector<192x32xf32> -> vector<192x32xf32>
    %c191_i32 = arith.constant 191 : i32
    %18 = tpu.dynamic_rotate %17 by %c191_i32 dim 0 : vector<192x32xf32>, i32 -> vector<192x32xf32>
    %c190_i32 = arith.constant 190 : i32
    %19 = tpu.dynamic_rotate %17 by %c190_i32 dim 0 : vector<192x32xf32>, i32 -> vector<192x32xf32>
    %c189_i32 = arith.constant 189 : i32
    %20 = tpu.dynamic_rotate %17 by %c189_i32 dim 0 : vector<192x32xf32>, i32 -> vector<192x32xf32>
    %21 = tpu.concatenate %17, %18, %19, %20 in 1 : vector<192x32xf32>, vector<192x32xf32>, vector<192x32xf32>, vector<192x32xf32> -> vector<192x128xf32>
    %c0_13 = arith.constant 0 : index
    %c0_14 = arith.constant 0 : index
    %22 = vector.load %arg8[%c0_13, %c0_14] : memref<128x40xf32, #tpu.memory_space<vmem>>, vector<128x40xf32>
    %cst_15 = arith.constant dense<0.000000e+00> : vector<192x40xf32>
    %23 = tpu.matmul %21, %22, %cst_15 {dimension_numbers = #tpu.dot_dimension_numbers<[1], [0], [0], [1], [0, 0, 1, 1], [], []>} : vector<192x128xf32>, vector<128x40xf32>, vector<192x40xf32> -> vector<192x40xf32>
    %c0_16 = arith.constant 0 : index
    %c0_17 = arith.constant 0 : index
    %24 = vector.load %arg9[%c0_16, %c0_17] : memref<1x40xf32, #tpu.memory_space<vmem>>, vector<1x40xf32>
    %25 = vector.broadcast %24 : vector<1x40xf32> to vector<192x40xf32>
    %26 = arith.addf %23, %25 : vector<192x40xf32>
    %cst_18 = arith.constant 0.000000e+00 : f32
    %27 = vector.broadcast %cst_18 : f32 to vector<192x40xf32>
    %28 = arith.maximumf %26, %27 : vector<192x40xf32>
    %c191_i32_19 = arith.constant 191 : i32
    %29 = tpu.dynamic_rotate %28 by %c191_i32_19 dim 0 : vector<192x40xf32>, i32 -> vector<192x40xf32>
    %30 = arith.maximumf %28, %29 : vector<192x40xf32>
    %c0_20 = arith.constant 0 : index
    %c0_21 = arith.constant 0 : index
    %31 = vector.load %arg5[%c0_20, %c0_21] : memref<8x192xf32, #tpu.memory_space<vmem>>, vector<8x192xf32>
    %cst_22 = arith.constant dense<0.000000e+00> : vector<8x40xf32>
    %32 = tpu.matmul %31, %30, %cst_22 {dimension_numbers = #tpu.dot_dimension_numbers<[1], [0], [0], [1], [0, 0, 1, 1], [], []>} : vector<8x192xf32>, vector<192x40xf32>, vector<8x40xf32> -> vector<8x40xf32>
    %c0_23 = arith.constant 0 : index
    %c0_24 = arith.constant 0 : index
    %33 = vector.load %arg10[%c0_23, %c0_24] : memref<40x40xf32, #tpu.memory_space<vmem>>, vector<40x40xf32>
    %cst_25 = arith.constant dense<0.000000e+00> : vector<8x40xf32>
    %34 = tpu.matmul %32, %33, %cst_25 {dimension_numbers = #tpu.dot_dimension_numbers<[1], [0], [0], [1], [0, 0, 1, 1], [], []>} : vector<8x40xf32>, vector<40x40xf32>, vector<8x40xf32> -> vector<8x40xf32>
    %c0_26 = arith.constant 0 : index
    %c0_27 = arith.constant 0 : index
    %35 = vector.load %arg11[%c0_26, %c0_27] : memref<1x40xf32, #tpu.memory_space<vmem>>, vector<1x40xf32>
    %36 = vector.broadcast %35 : vector<1x40xf32> to vector<8x40xf32>
    %37 = arith.addf %34, %36 : vector<8x40xf32>
    %cst_28 = arith.constant 0.000000e+00 : f32
    %38 = vector.broadcast %cst_28 : f32 to vector<8x40xf32>
    %39 = arith.maximumf %37, %38 : vector<8x40xf32>
    %c0_29 = arith.constant 0 : index
    %40 = memref.load %arg1[%c0_29] : memref<4xf32, #tpu.memory_space<smem>>
    %c1 = arith.constant 1 : index
    %41 = memref.load %arg1[%c1] : memref<4xf32, #tpu.memory_space<smem>>
    %c2 = arith.constant 2 : index
    %42 = memref.load %arg1[%c2] : memref<4xf32, #tpu.memory_space<smem>>
    %c3 = arith.constant 3 : index
    %43 = memref.load %arg1[%c3] : memref<4xf32, #tpu.memory_space<smem>>
    %44 = vector.extract_strided_slice %39 {offsets = [0, 0], sizes = [2, 40], strides = [1, 1]} : vector<8x40xf32> to vector<2x40xf32>
    %45 = vector.broadcast %40 : f32 to vector<2x40xf32>
    %46 = arith.mulf %45, %44 : vector<2x40xf32>
    %47 = vector.extract_strided_slice %39 {offsets = [2, 0], sizes = [2, 40], strides = [1, 1]} : vector<8x40xf32> to vector<2x40xf32>
    %48 = vector.broadcast %41 : f32 to vector<2x40xf32>
    %49 = arith.mulf %48, %47 : vector<2x40xf32>
    %50 = arith.addf %46, %49 : vector<2x40xf32>
    %51 = vector.extract_strided_slice %39 {offsets = [4, 0], sizes = [2, 40], strides = [1, 1]} : vector<8x40xf32> to vector<2x40xf32>
    %52 = vector.broadcast %42 : f32 to vector<2x40xf32>
    %53 = arith.mulf %52, %51 : vector<2x40xf32>
    %54 = arith.addf %50, %53 : vector<2x40xf32>
    %55 = vector.extract_strided_slice %39 {offsets = [6, 0], sizes = [2, 40], strides = [1, 1]} : vector<8x40xf32> to vector<2x40xf32>
    %56 = vector.broadcast %43 : f32 to vector<2x40xf32>
    %57 = arith.mulf %56, %55 : vector<2x40xf32>
    %58 = arith.addf %54, %57 : vector<2x40xf32>
    %c0_30 = arith.constant 0 : index
    %c0_31 = arith.constant 0 : index
    %59 = vector.load %arg12[%c0_30, %c0_31] : memref<40x32xf32, #tpu.memory_space<vmem>>, vector<40x32xf32>
    %cst_32 = arith.constant dense<0.000000e+00> : vector<2x32xf32>
    %60 = tpu.matmul %58, %59, %cst_32 {dimension_numbers = #tpu.dot_dimension_numbers<[1], [0], [0], [1], [0, 0, 1, 1], [], []>} : vector<2x40xf32>, vector<40x32xf32>, vector<2x32xf32> -> vector<2x32xf32>
    %61 = arith.addf %40, %41 : f32
    %62 = arith.addf %61, %42 : f32
    %63 = arith.addf %62, %43 : f32
    %c0_33 = arith.constant 0 : index
    %c0_34 = arith.constant 0 : index
    %64 = vector.load %arg13[%c0_33, %c0_34] : memref<1x32xf32, #tpu.memory_space<vmem>>, vector<1x32xf32>
    %65 = vector.broadcast %63 : f32 to vector<1x32xf32>
    %66 = arith.mulf %65, %64 : vector<1x32xf32>
    %67 = vector.broadcast %66 : vector<1x32xf32> to vector<2x32xf32>
    %68 = arith.addf %60, %67 : vector<2x32xf32>
    %c0_35 = arith.constant 0 : index
    %c0_36 = arith.constant 0 : index
    %69 = vector.load %arg18[%c0_35, %c0_36] : memref<2x32xf32, #tpu.memory_space<vmem>>, vector<2x32xf32>
    tpu.vector_store %arg18[%c0_35, %c0_36], %68 {strides = array<i32>} : memref<2x32xf32, #tpu.memory_space<vmem>>, vector<2x32xf32>,
    %c0_37 = arith.constant 0 : index
    %c0_38 = arith.constant 0 : index
    %70 = vector.load %arg14[%c0_37, %c0_38] : memref<32x32xf32, #tpu.memory_space<vmem>>, vector<32x32xf32>
    %cst_39 = arith.constant dense<0.000000e+00> : vector<2x32xf32>
    %71 = tpu.matmul %68, %70, %cst_39 {dimension_numbers = #tpu.dot_dimension_numbers<[1], [0], [0], [1], [0, 0, 1, 1], [], []>} : vector<2x32xf32>, vector<32x32xf32>, vector<2x32xf32> -> vector<2x32xf32>
    %c0_40 = arith.constant 0 : index
    %c0_41 = arith.constant 0 : index
    %72 = vector.load %arg15[%c0_40, %c0_41] : memref<1x32xf32, #tpu.memory_space<vmem>>, vector<1x32xf32>
    %73 = vector.broadcast %72 : vector<1x32xf32> to vector<2x32xf32>
    %74 = arith.addf %71, %73 : vector<2x32xf32>
    %75 = arith.mulf %74, %74 : vector<2x32xf32>
    %76 = arith.mulf %74, %75 : vector<2x32xf32>
    %cst_42 = arith.constant 4.471500e-02 : f32
    %77 = vector.broadcast %cst_42 : f32 to vector<2x32xf32>
    %78 = arith.mulf %77, %76 : vector<2x32xf32>
    %79 = arith.addf %74, %78 : vector<2x32xf32>
    %cst_43 = arith.constant 0.797884583 : f32
    %80 = vector.broadcast %cst_43 : f32 to vector<2x32xf32>
    %81 = arith.mulf %80, %79 : vector<2x32xf32>
    %82 = math.tanh %81 : vector<2x32xf32>
    %cst_44 = arith.constant 1.000000e+00 : f32
    %83 = vector.broadcast %cst_44 : f32 to vector<2x32xf32>
    %84 = arith.addf %83, %82 : vector<2x32xf32>
    %cst_45 = arith.constant 5.000000e-01 : f32
    %85 = vector.broadcast %cst_45 : f32 to vector<2x32xf32>
    %86 = arith.mulf %85, %84 : vector<2x32xf32>
    %87 = arith.mulf %74, %86 : vector<2x32xf32>
    %c0_46 = arith.constant 0 : index
    %c0_47 = arith.constant 0 : index
    %88 = vector.load %arg16[%c0_46, %c0_47] : memref<32x32xf32, #tpu.memory_space<vmem>>, vector<32x32xf32>
    %cst_48 = arith.constant dense<0.000000e+00> : vector<2x32xf32>
    %89 = tpu.matmul %87, %88, %cst_48 {dimension_numbers = #tpu.dot_dimension_numbers<[1], [0], [0], [1], [0, 0, 1, 1], [], []>} : vector<2x32xf32>, vector<32x32xf32>, vector<2x32xf32> -> vector<2x32xf32>
    %c0_49 = arith.constant 0 : index
    %c0_50 = arith.constant 0 : index
    %90 = vector.load %arg17[%c0_49, %c0_50] : memref<1x32xf32, #tpu.memory_space<vmem>>, vector<1x32xf32>
    %91 = vector.broadcast %90 : vector<1x32xf32> to vector<2x32xf32>
    %92 = arith.addf %89, %91 : vector<2x32xf32>
    %93 = arith.negf %92 : vector<2x32xf32>
    %94 = math.exp %93 : vector<2x32xf32>
    %cst_51 = arith.constant 1.000000e+00 : f32
    %95 = vector.broadcast %cst_51 : f32 to vector<2x32xf32>
    %96 = arith.addf %95, %94 : vector<2x32xf32>
    %97 = arith.divf %95, %96 : vector<2x32xf32>
    %c0_52 = arith.constant 0 : index
    %c0_53 = arith.constant 0 : index
    %98 = vector.load %arg19[%c0_52, %c0_53] : memref<2x32xf32, #tpu.memory_space<vmem>>, vector<2x32xf32>
    tpu.vector_store %arg19[%c0_52, %c0_53], %97 {strides = array<i32>} : memref<2x32xf32, #tpu.memory_space<vmem>>, vector<2x32xf32>,
    return
  }
  func.func @transform_0(%arg0: i32) -> i32 {
    %c0_i32 = arith.constant 0 : i32
    %c0_i32_0 = arith.constant 0 : i32
    return %c0_i32 : i32
  }
  func.func @transform_1(%arg0: i32) -> (i32, i32) {
    %c0_i32 = arith.constant 0 : i32
    %c0_i32_0 = arith.constant 0 : i32
    return %arg0, %c0_i32 : i32, i32
  }
  func.func @transform_2(%arg0: i32) -> (i32, i32) {
    %c0_i32 = arith.constant 0 : i32
    %c0_i32_0 = arith.constant 0 : i32
    %c0_i32_1 = arith.constant 0 : i32
    return %c0_i32, %c0_i32_0 : i32, i32
  }
  func.func @transform_3(%arg0: i32) -> (i32, i32) {
    %c0_i32 = arith.constant 0 : i32
    %c0_i32_0 = arith.constant 0 : i32
    %c0_i32_1 = arith.constant 0 : i32
    return %c0_i32, %c0_i32_0 : i32, i32
  }
  func.func @transform_4(%arg0: i32) -> (i32, i32) {
    %c0_i32 = arith.constant 0 : i32
    %c0_i32_0 = arith.constant 0 : i32
    %c0_i32_1 = arith.constant 0 : i32
    return %c0_i32, %c0_i32_0 : i32, i32
  }
  func.func @transform_5(%arg0: i32) -> (i32, i32) {
    %c0_i32 = arith.constant 0 : i32
    %c0_i32_0 = arith.constant 0 : i32
    %c0_i32_1 = arith.constant 0 : i32
    return %c0_i32, %c0_i32_0 : i32, i32
  }
  func.func @transform_6(%arg0: i32) -> (i32, i32) {
    %c0_i32 = arith.constant 0 : i32
    %c0_i32_0 = arith.constant 0 : i32
    %c0_i32_1 = arith.constant 0 : i32
    return %c0_i32, %c0_i32_0 : i32, i32
  }
  func.func @transform_7(%arg0: i32) -> (i32, i32) {
    %c0_i32 = arith.constant 0 : i32
    %c0_i32_0 = arith.constant 0 : i32
    %c0_i32_1 = arith.constant 0 : i32
    return %c0_i32, %c0_i32_0 : i32, i32
  }
  func.func @transform_8(%arg0: i32) -> (i32, i32) {
    %c0_i32 = arith.constant 0 : i32
    %c0_i32_0 = arith.constant 0 : i32
    %c0_i32_1 = arith.constant 0 : i32
    return %c0_i32, %c0_i32_0 : i32, i32
  }
  func.func @transform_9(%arg0: i32) -> (i32, i32) {
    %c0_i32 = arith.constant 0 : i32
    %c0_i32_0 = arith.constant 0 : i32
    %c0_i32_1 = arith.constant 0 : i32
    return %c0_i32, %c0_i32_0 : i32, i32
  }
  func.func @transform_10(%arg0: i32) -> (i32, i32) {
    %c0_i32 = arith.constant 0 : i32
    %c0_i32_0 = arith.constant 0 : i32
    %c0_i32_1 = arith.constant 0 : i32
    return %c0_i32, %c0_i32_0 : i32, i32
  }
  func.func @transform_11(%arg0: i32) -> (i32, i32) {
    %c0_i32 = arith.constant 0 : i32
    %c0_i32_0 = arith.constant 0 : i32
    %c0_i32_1 = arith.constant 0 : i32
    return %c0_i32, %c0_i32_0 : i32, i32
  }
  func.func @transform_12(%arg0: i32) -> (i32, i32) {
    %c0_i32 = arith.constant 0 : i32
    %c0_i32_0 = arith.constant 0 : i32
    %c0_i32_1 = arith.constant 0 : i32
    return %c0_i32, %c0_i32_0 : i32, i32
  }
  func.func @transform_13(%arg0: i32) -> (i32, i32) {
    %c0_i32 = arith.constant 0 : i32
    %c0_i32_0 = arith.constant 0 : i32
    %c0_i32_1 = arith.constant 0 : i32
    return %c0_i32, %c0_i32_0 : i32, i32
  }
  func.func @transform_14(%arg0: i32) -> (i32, i32) {
    %c0_i32 = arith.constant 0 : i32
    %c0_i32_0 = arith.constant 0 : i32
    %c0_i32_1 = arith.constant 0 : i32
    return %c0_i32, %c0_i32_0 : i32, i32
  }
  func.func @transform_15(%arg0: i32) -> (i32, i32) {
    %c0_i32 = arith.constant 0 : i32
    %c0_i32_0 = arith.constant 0 : i32
    %c0_i32_1 = arith.constant 0 : i32
    return %c0_i32, %c0_i32_0 : i32, i32
  }
  func.func @transform_16(%arg0: i32) -> (i32, i32) {
    %c0_i32 = arith.constant 0 : i32
    %c0_i32_0 = arith.constant 0 : i32
    %c0_i32_1 = arith.constant 0 : i32
    return %c0_i32, %c0_i32_0 : i32, i32
  }
  func.func @transform_17(%arg0: i32) -> (i32, i32) {
    %c0_i32 = arith.constant 0 : i32
    %c0_i32_0 = arith.constant 0 : i32
    return %arg0, %c0_i32 : i32, i32
  }
  func.func @transform_18(%arg0: i32) -> (i32, i32) {
    %c0_i32 = arith.constant 0 : i32
    %c0_i32_0 = arith.constant 0 : i32
    return %arg0, %c0_i32 : i32, i32
  }
}

module attributes {stable_mosaic.version = 11 : i64} {
  func.func @_mcnn_kernel(%arg0: i32, %arg1: memref<4xf32, #tpu.memory_space<smem>>, %arg2: memref<64x4xf32, #tpu.memory_space<vmem>>, %arg3: memref<416x64xf32, #tpu.memory_space<vmem>>, %arg4: memref<192x416xf32, #tpu.memory_space<vmem>>, %arg5: memref<8x192xf32, #tpu.memory_space<vmem>>, %arg6: memref<16x32xf32, #tpu.memory_space<vmem>>, %arg7: memref<1x32xf32, #tpu.memory_space<vmem>>, %arg8: memref<128x40xf32, #tpu.memory_space<vmem>>, %arg9: memref<1x40xf32, #tpu.memory_space<vmem>>, %arg10: memref<40x40xf32, #tpu.memory_space<vmem>>, %arg11: memref<1x40xf32, #tpu.memory_space<vmem>>, %arg12: memref<40x4xf32, #tpu.memory_space<vmem>>, %arg13: memref<1x4xf32, #tpu.memory_space<vmem>>, %arg14: memref<2x4xf32, #tpu.memory_space<vmem>>) attributes {dimension_semantics = [#tpu.dimension_semantics<parallel>], iteration_bounds = array<i64: 1>, scalar_prefetch = 0 : i64, scratch_operands = 0 : i64, tpu.core_type = #tpu.core_type<tc>, window_params = [{transform_indices = @transform_0, window_bounds = array<i64: 4>}, {transform_indices = @transform_1, window_bounds = array<i64: 64, 4>}, {pipeline_mode = #tpu.pipeline_mode<synchronous>, transform_indices = @transform_2, window_bounds = array<i64: 416, 64>}, {pipeline_mode = #tpu.pipeline_mode<synchronous>, transform_indices = @transform_3, window_bounds = array<i64: 192, 416>}, {pipeline_mode = #tpu.pipeline_mode<synchronous>, transform_indices = @transform_4, window_bounds = array<i64: 8, 192>}, {pipeline_mode = #tpu.pipeline_mode<synchronous>, transform_indices = @transform_5, window_bounds = array<i64: 16, 32>}, {pipeline_mode = #tpu.pipeline_mode<synchronous>, transform_indices = @transform_6, window_bounds = array<i64: 1, 32>}, {pipeline_mode = #tpu.pipeline_mode<synchronous>, transform_indices = @transform_7, window_bounds = array<i64: 128, 40>}, {pipeline_mode = #tpu.pipeline_mode<synchronous>, transform_indices = @transform_8, window_bounds = array<i64: 1, 40>}, {pipeline_mode = #tpu.pipeline_mode<synchronous>, transform_indices = @transform_9, window_bounds = array<i64: 40, 40>}, {pipeline_mode = #tpu.pipeline_mode<synchronous>, transform_indices = @transform_10, window_bounds = array<i64: 1, 40>}, {pipeline_mode = #tpu.pipeline_mode<synchronous>, transform_indices = @transform_11, window_bounds = array<i64: 40, 4>}, {pipeline_mode = #tpu.pipeline_mode<synchronous>, transform_indices = @transform_12, window_bounds = array<i64: 1, 4>}, {transform_indices = @transform_13, window_bounds = array<i64: 2, 4>}]} {
    %c0 = arith.constant 0 : index
    %c0_0 = arith.constant 0 : index
    %0 = vector.load %arg3[%c0, %c0_0] : memref<416x64xf32, #tpu.memory_space<vmem>>, vector<416x64xf32>
    %c0_1 = arith.constant 0 : index
    %c0_2 = arith.constant 0 : index
    %1 = vector.load %arg2[%c0_1, %c0_2] : memref<64x4xf32, #tpu.memory_space<vmem>>, vector<64x4xf32>
    %cst = arith.constant dense<0.000000e+00> : vector<416x4xf32>
    %2 = tpu.matmul %0, %1, %cst {dimension_numbers = #tpu.dot_dimension_numbers<[1], [0], [0], [1], [0, 0, 1, 1], [], []>} : vector<416x64xf32>, vector<64x4xf32>, vector<416x4xf32> -> vector<416x4xf32>
    %c415_i32 = arith.constant 415 : i32
    %3 = tpu.dynamic_rotate %2 by %c415_i32 dim 0 : vector<416x4xf32>, i32 -> vector<416x4xf32>
    %c414_i32 = arith.constant 414 : i32
    %4 = tpu.dynamic_rotate %2 by %c414_i32 dim 0 : vector<416x4xf32>, i32 -> vector<416x4xf32>
    %c413_i32 = arith.constant 413 : i32
    %5 = tpu.dynamic_rotate %2 by %c413_i32 dim 0 : vector<416x4xf32>, i32 -> vector<416x4xf32>
    %6 = tpu.concatenate %2, %3, %4, %5 in 1 : vector<416x4xf32>, vector<416x4xf32>, vector<416x4xf32>, vector<416x4xf32> -> vector<416x16xf32>
    %c0_3 = arith.constant 0 : index
    %c0_4 = arith.constant 0 : index
    %7 = vector.load %arg6[%c0_3, %c0_4] : memref<16x32xf32, #tpu.memory_space<vmem>>, vector<16x32xf32>
    %cst_5 = arith.constant dense<0.000000e+00> : vector<416x32xf32>
    %8 = tpu.matmul %6, %7, %cst_5 {dimension_numbers = #tpu.dot_dimension_numbers<[1], [0], [0], [1], [0, 0, 1, 1], [], []>} : vector<416x16xf32>, vector<16x32xf32>, vector<416x32xf32> -> vector<416x32xf32>
    %c0_6 = arith.constant 0 : index
    %c0_7 = arith.constant 0 : index
    %9 = vector.load %arg7[%c0_6, %c0_7] : memref<1x32xf32, #tpu.memory_space<vmem>>, vector<1x32xf32>
    %10 = vector.broadcast %9 : vector<1x32xf32> to vector<416x32xf32>
    %11 = arith.addf %8, %10 : vector<416x32xf32>
    %cst_8 = arith.constant 0.000000e+00 : f32
    %12 = vector.broadcast %cst_8 : f32 to vector<416x32xf32>
    %13 = arith.maximumf %11, %12 : vector<416x32xf32>
    %c415_i32_9 = arith.constant 415 : i32
    %14 = tpu.dynamic_rotate %13 by %c415_i32_9 dim 0 : vector<416x32xf32>, i32 -> vector<416x32xf32>
    %15 = arith.maximumf %13, %14 : vector<416x32xf32>
    %c0_10 = arith.constant 0 : index
    %c0_11 = arith.constant 0 : index
    %16 = vector.load %arg4[%c0_10, %c0_11] : memref<192x416xf32, #tpu.memory_space<vmem>>, vector<192x416xf32>
    %cst_12 = arith.constant dense<0.000000e+00> : vector<192x32xf32>
    %17 = tpu.matmul %16, %15, %cst_12 {dimension_numbers = #tpu.dot_dimension_numbers<[1], [0], [0], [1], [0, 0, 1, 1], [], []>} : vector<192x416xf32>, vector<416x32xf32>, vector<192x32xf32> -> vector<192x32xf32>
    %c191_i32 = arith.constant 191 : i32
    %18 = tpu.dynamic_rotate %17 by %c191_i32 dim 0 : vector<192x32xf32>, i32 -> vector<192x32xf32>
    %c190_i32 = arith.constant 190 : i32
    %19 = tpu.dynamic_rotate %17 by %c190_i32 dim 0 : vector<192x32xf32>, i32 -> vector<192x32xf32>
    %c189_i32 = arith.constant 189 : i32
    %20 = tpu.dynamic_rotate %17 by %c189_i32 dim 0 : vector<192x32xf32>, i32 -> vector<192x32xf32>
    %21 = tpu.concatenate %17, %18, %19, %20 in 1 : vector<192x32xf32>, vector<192x32xf32>, vector<192x32xf32>, vector<192x32xf32> -> vector<192x128xf32>
    %c0_13 = arith.constant 0 : index
    %c0_14 = arith.constant 0 : index
    %22 = vector.load %arg8[%c0_13, %c0_14] : memref<128x40xf32, #tpu.memory_space<vmem>>, vector<128x40xf32>
    %cst_15 = arith.constant dense<0.000000e+00> : vector<192x40xf32>
    %23 = tpu.matmul %21, %22, %cst_15 {dimension_numbers = #tpu.dot_dimension_numbers<[1], [0], [0], [1], [0, 0, 1, 1], [], []>} : vector<192x128xf32>, vector<128x40xf32>, vector<192x40xf32> -> vector<192x40xf32>
    %c0_16 = arith.constant 0 : index
    %c0_17 = arith.constant 0 : index
    %24 = vector.load %arg9[%c0_16, %c0_17] : memref<1x40xf32, #tpu.memory_space<vmem>>, vector<1x40xf32>
    %25 = vector.broadcast %24 : vector<1x40xf32> to vector<192x40xf32>
    %26 = arith.addf %23, %25 : vector<192x40xf32>
    %cst_18 = arith.constant 0.000000e+00 : f32
    %27 = vector.broadcast %cst_18 : f32 to vector<192x40xf32>
    %28 = arith.maximumf %26, %27 : vector<192x40xf32>
    %c191_i32_19 = arith.constant 191 : i32
    %29 = tpu.dynamic_rotate %28 by %c191_i32_19 dim 0 : vector<192x40xf32>, i32 -> vector<192x40xf32>
    %30 = arith.maximumf %28, %29 : vector<192x40xf32>
    %c0_20 = arith.constant 0 : index
    %c0_21 = arith.constant 0 : index
    %31 = vector.load %arg5[%c0_20, %c0_21] : memref<8x192xf32, #tpu.memory_space<vmem>>, vector<8x192xf32>
    %cst_22 = arith.constant dense<0.000000e+00> : vector<8x40xf32>
    %32 = tpu.matmul %31, %30, %cst_22 {dimension_numbers = #tpu.dot_dimension_numbers<[1], [0], [0], [1], [0, 0, 1, 1], [], []>} : vector<8x192xf32>, vector<192x40xf32>, vector<8x40xf32> -> vector<8x40xf32>
    %c0_23 = arith.constant 0 : index
    %c0_24 = arith.constant 0 : index
    %33 = vector.load %arg10[%c0_23, %c0_24] : memref<40x40xf32, #tpu.memory_space<vmem>>, vector<40x40xf32>
    %cst_25 = arith.constant dense<0.000000e+00> : vector<8x40xf32>
    %34 = tpu.matmul %32, %33, %cst_25 {dimension_numbers = #tpu.dot_dimension_numbers<[1], [0], [0], [1], [0, 0, 1, 1], [], []>} : vector<8x40xf32>, vector<40x40xf32>, vector<8x40xf32> -> vector<8x40xf32>
    %c0_26 = arith.constant 0 : index
    %c0_27 = arith.constant 0 : index
    %35 = vector.load %arg11[%c0_26, %c0_27] : memref<1x40xf32, #tpu.memory_space<vmem>>, vector<1x40xf32>
    %36 = vector.broadcast %35 : vector<1x40xf32> to vector<8x40xf32>
    %37 = arith.addf %34, %36 : vector<8x40xf32>
    %cst_28 = arith.constant 0.000000e+00 : f32
    %38 = vector.broadcast %cst_28 : f32 to vector<8x40xf32>
    %39 = arith.maximumf %37, %38 : vector<8x40xf32>
    %c0_29 = arith.constant 0 : index
    %40 = memref.load %arg1[%c0_29] : memref<4xf32, #tpu.memory_space<smem>>
    %c1 = arith.constant 1 : index
    %41 = memref.load %arg1[%c1] : memref<4xf32, #tpu.memory_space<smem>>
    %c2 = arith.constant 2 : index
    %42 = memref.load %arg1[%c2] : memref<4xf32, #tpu.memory_space<smem>>
    %c3 = arith.constant 3 : index
    %43 = memref.load %arg1[%c3] : memref<4xf32, #tpu.memory_space<smem>>
    %44 = vector.extract_strided_slice %39 {offsets = [0, 0], sizes = [2, 40], strides = [1, 1]} : vector<8x40xf32> to vector<2x40xf32>
    %45 = vector.broadcast %40 : f32 to vector<2x40xf32>
    %46 = arith.mulf %45, %44 : vector<2x40xf32>
    %47 = vector.extract_strided_slice %39 {offsets = [2, 0], sizes = [2, 40], strides = [1, 1]} : vector<8x40xf32> to vector<2x40xf32>
    %48 = vector.broadcast %41 : f32 to vector<2x40xf32>
    %49 = arith.mulf %48, %47 : vector<2x40xf32>
    %50 = arith.addf %46, %49 : vector<2x40xf32>
    %51 = vector.extract_strided_slice %39 {offsets = [4, 0], sizes = [2, 40], strides = [1, 1]} : vector<8x40xf32> to vector<2x40xf32>
    %52 = vector.broadcast %42 : f32 to vector<2x40xf32>
    %53 = arith.mulf %52, %51 : vector<2x40xf32>
    %54 = arith.addf %50, %53 : vector<2x40xf32>
    %55 = vector.extract_strided_slice %39 {offsets = [6, 0], sizes = [2, 40], strides = [1, 1]} : vector<8x40xf32> to vector<2x40xf32>
    %56 = vector.broadcast %43 : f32 to vector<2x40xf32>
    %57 = arith.mulf %56, %55 : vector<2x40xf32>
    %58 = arith.addf %54, %57 : vector<2x40xf32>
    %c0_30 = arith.constant 0 : index
    %c0_31 = arith.constant 0 : index
    %59 = vector.load %arg12[%c0_30, %c0_31] : memref<40x4xf32, #tpu.memory_space<vmem>>, vector<40x4xf32>
    %cst_32 = arith.constant dense<0.000000e+00> : vector<2x4xf32>
    %60 = tpu.matmul %58, %59, %cst_32 {dimension_numbers = #tpu.dot_dimension_numbers<[1], [0], [0], [1], [0, 0, 1, 1], [], []>} : vector<2x40xf32>, vector<40x4xf32>, vector<2x4xf32> -> vector<2x4xf32>
    %61 = arith.addf %40, %41 : f32
    %62 = arith.addf %61, %42 : f32
    %63 = arith.addf %62, %43 : f32
    %c0_33 = arith.constant 0 : index
    %c0_34 = arith.constant 0 : index
    %64 = vector.load %arg13[%c0_33, %c0_34] : memref<1x4xf32, #tpu.memory_space<vmem>>, vector<1x4xf32>
    %65 = vector.broadcast %63 : f32 to vector<1x4xf32>
    %66 = arith.mulf %65, %64 : vector<1x4xf32>
    %67 = vector.broadcast %66 : vector<1x4xf32> to vector<2x4xf32>
    %68 = arith.addf %60, %67 : vector<2x4xf32>
    %c0_35 = arith.constant 0 : index
    %c0_36 = arith.constant 0 : index
    %69 = vector.load %arg14[%c0_35, %c0_36] : memref<2x4xf32, #tpu.memory_space<vmem>>, vector<2x4xf32>
    tpu.vector_store %arg14[%c0_35, %c0_36], %68 {strides = array<i32>} : memref<2x4xf32, #tpu.memory_space<vmem>>, vector<2x4xf32>,
    return
  }
  func.func @transform_0(%arg0: i32) -> i32 {
    %c0_i32 = arith.constant 0 : i32
    %c0_i32_0 = arith.constant 0 : i32
    return %c0_i32 : i32
  }
  func.func @transform_1(%arg0: i32) -> (i32, i32) {
    %c0_i32 = arith.constant 0 : i32
    %c0_i32_0 = arith.constant 0 : i32
    return %arg0, %c0_i32 : i32, i32
  }
  func.func @transform_2(%arg0: i32) -> (i32, i32) {
    %c0_i32 = arith.constant 0 : i32
    %c0_i32_0 = arith.constant 0 : i32
    %c0_i32_1 = arith.constant 0 : i32
    return %c0_i32, %c0_i32_0 : i32, i32
  }
  func.func @transform_3(%arg0: i32) -> (i32, i32) {
    %c0_i32 = arith.constant 0 : i32
    %c0_i32_0 = arith.constant 0 : i32
    %c0_i32_1 = arith.constant 0 : i32
    return %c0_i32, %c0_i32_0 : i32, i32
  }
  func.func @transform_4(%arg0: i32) -> (i32, i32) {
    %c0_i32 = arith.constant 0 : i32
    %c0_i32_0 = arith.constant 0 : i32
    %c0_i32_1 = arith.constant 0 : i32
    return %c0_i32, %c0_i32_0 : i32, i32
  }
  func.func @transform_5(%arg0: i32) -> (i32, i32) {
    %c0_i32 = arith.constant 0 : i32
    %c0_i32_0 = arith.constant 0 : i32
    %c0_i32_1 = arith.constant 0 : i32
    return %c0_i32, %c0_i32_0 : i32, i32
  }
  func.func @transform_6(%arg0: i32) -> (i32, i32) {
    %c0_i32 = arith.constant 0 : i32
    %c0_i32_0 = arith.constant 0 : i32
    %c0_i32_1 = arith.constant 0 : i32
    return %c0_i32, %c0_i32_0 : i32, i32
  }
  func.func @transform_7(%arg0: i32) -> (i32, i32) {
    %c0_i32 = arith.constant 0 : i32
    %c0_i32_0 = arith.constant 0 : i32
    %c0_i32_1 = arith.constant 0 : i32
    return %c0_i32, %c0_i32_0 : i32, i32
  }
  func.func @transform_8(%arg0: i32) -> (i32, i32) {
    %c0_i32 = arith.constant 0 : i32
    %c0_i32_0 = arith.constant 0 : i32
    %c0_i32_1 = arith.constant 0 : i32
    return %c0_i32, %c0_i32_0 : i32, i32
  }
  func.func @transform_9(%arg0: i32) -> (i32, i32) {
    %c0_i32 = arith.constant 0 : i32
    %c0_i32_0 = arith.constant 0 : i32
    %c0_i32_1 = arith.constant 0 : i32
    return %c0_i32, %c0_i32_0 : i32, i32
  }
  func.func @transform_10(%arg0: i32) -> (i32, i32) {
    %c0_i32 = arith.constant 0 : i32
    %c0_i32_0 = arith.constant 0 : i32
    %c0_i32_1 = arith.constant 0 : i32
    return %c0_i32, %c0_i32_0 : i32, i32
  }
  func.func @transform_11(%arg0: i32) -> (i32, i32) {
    %c0_i32 = arith.constant 0 : i32
    %c0_i32_0 = arith.constant 0 : i32
    %c0_i32_1 = arith.constant 0 : i32
    return %c0_i32, %c0_i32_0 : i32, i32
  }
  func.func @transform_12(%arg0: i32) -> (i32, i32) {
    %c0_i32 = arith.constant 0 : i32
    %c0_i32_0 = arith.constant 0 : i32
    %c0_i32_1 = arith.constant 0 : i32
    return %c0_i32, %c0_i32_0 : i32, i32
  }
  func.func @transform_13(%arg0: i32) -> (i32, i32) {
    %c0_i32 = arith.constant 0 : i32
    %c0_i32_0 = arith.constant 0 : i32
    return %arg0, %c0_i32 : i32, i32
  }
}

</mosaic_0001>

<llo_original>
// kernel: tem_enc_forward.3
$region0: #{tem_enc_forward.3}
  #allocation0 [shape = 'u32[]', space=smem, size = 0x4, offset = 0x4, fixed_abs, tag = 'smem constant byte address 0x4 - core index']
  #allocation1 [shape = 'u32[144,128]{1,0:T(1,128)}', space=vmem, size = 0x12000, scoped, tag = 'internal scratch']
  %s0 = inlined_call_operand.vmem [shape: f32[2,32,4], index: 0, kind: input, shape index: {}]
  %s1 = inlined_call_operand.vmem [shape: f32[12,32], index: 1, kind: input, shape index: {}]
  %s2 = inlined_call_operand.vmem [shape: f32[32,32], index: 2, kind: input, shape index: {}]
  %s3 = inlined_call_operand.vmem [shape: f32[64,64], index: 3, kind: input, shape index: {}]
  %s4 = inlined_call_operand.vmem [shape: f32[64,32], index: 4, kind: output, shape index: {0}]
  %s5 = inlined_call_operand.vmem [shape: f32[64,1], index: 5, kind: output, shape index: {1}]
  %6 = xla_tuple %s4, %s5
  %s7 = sld [smem:[#allocation0]]
  $region34: #{tem_enc_forward.3} parent=0
    _
  %s9 = ssub.s32 1, %s7
  %s10 = scalar_select 0, %s9, %s7
  // Predicated region
  $region2: #{tem_enc_forward.3} parent=0 // pred_check
    _
  $region3: #{tem_enc_forward.3} parent=0 // pred_check_branch
    %12 = sbr.rel (0) target = $region5
  $region4: #{tem_enc_forward.3} parent=0 // pred_region
    _
  $region5: #{tem_enc_forward.3} parent=0 // pred_fallthru
    _
  // Predicated region
  $region6: #{tem_enc_forward.3} parent=0 // pred_check
    _
  $region7: #{tem_enc_forward.3} parent=0 // pred_check_branch
    %14 = sbr.rel (0) target = $region9
  $region8: #{tem_enc_forward.3} parent=0 // pred_region
    _
  $region9: #{tem_enc_forward.3} parent=0 // pred_fallthru
    _
  // Predicated region
  $region10: #{tem_enc_forward.3} parent=0 // pred_check
    _
  $region11: #{tem_enc_forward.3} parent=0 // pred_check_branch
    %16 = sbr.rel (0) target = $region13
  $region12: #{tem_enc_forward.3} parent=0 // pred_region
    _
  $region13: #{tem_enc_forward.3} parent=0 // pred_fallthru
    _
  // Predicated region
  $region14: #{tem_enc_forward.3} parent=0 // pred_check
    _
  $region15: #{tem_enc_forward.3} parent=0 // pred_check_branch
    %18 = sbr.rel (0) target = $region17
  $region16: #{tem_enc_forward.3} parent=0 // pred_region
    _
  $region17: #{tem_enc_forward.3} parent=0 // pred_fallthru
    _
  %v19 = vld [vmem:[%s0] sm:$0xff]
  %v20 = vld [vmem:[%s0 + $0x8] sm:$0xff]
  %v21 = vld [vmem:[%s0 + $0x10] sm:$0xff]
  %v22 = vld [vmem:[%s0 + $0x18] sm:$0xff]
  %v23 = vrot.slane %v19, 7
  %v24 = vrot.slane %v20, 7
  %v25 = vrot.slane %v21, 7
  %v26 = vrot.slane %v22, 7
  %v27 = vlaneseq
  %v28 = vshrl.u32 %v27, 7
  %vm29 = vcmp.lt.s32.totalorder %v28, 1
  %v30 = vsel %vm29, %v25, %v26
  %v31 = vsel %vm29, %v24, %v25
  %v32 = vsel %vm29, %v23, %v24
  %v33 = vsel %vm29, %v26, %v23
  %v34 = vrot.slane %v19, 1
  %v35 = vrot.slane %v20, 1
  %v36 = vrot.slane %v21, 1
  %v37 = vrot.slane %v22, 1
  %vm38 = vcmp.lt.s32.totalorder %v28, 7
  %v39 = vsel %vm38, %v36, %v37
  %v40 = vsel %vm38, %v35, %v36
  %v41 = vsel %vm38, %v34, %v35
  %v42 = vsel %vm38, %v37, %v34
  %47 = vrot.lane.b32.xlu0 %v19, 4
  %v48 = vpop.permute.xlu0 %47
  %49 = vrot.lane.b32.xlu0 %v20, 4
  %v50 = vpop.permute.xlu0 %49
  %51 = vrot.lane.b32.xlu0 %v21, 4
  %v52 = vpop.permute.xlu0 %51
  %53 = vrot.lane.b32.xlu0 %v22, 4
  %v54 = vpop.permute.xlu0 %53
  %63 = vrot.lane.b32.xlu0 %v41, 8
  %v64 = vpop.permute.xlu0 %63
  %65 = vrot.lane.b32.xlu0 %v40, 8
  %v66 = vpop.permute.xlu0 %65
  %67 = vrot.lane.b32.xlu0 %v39, 8
  %v68 = vpop.permute.xlu0 %67
  %69 = vrot.lane.b32.xlu0 %v42, 8
  %v70 = vpop.permute.xlu0 %69
  %vm75 = vcmask 31744
  %v76 = vsel %vm75, %v33, %v48
  %v77 = vsel %vm75, %v32, %v50
  %v78 = vsel %vm75, %v31, %v52
  %v79 = vsel %vm75, %v30, %v54
  %vm80 = vcmask 64512
  %v81 = vsel %vm80, %v76, %v64
  %v82 = vsel %vm80, %v77, %v66
  %v83 = vsel %vm80, %v78, %v68
  %v84 = vsel %vm80, %v79, %v70
  %s85 = scalar_lea.vmem %s0, 32
  %v86 = vld [vmem:[%s85] sm:$0xff]
  %v87 = vld [vmem:[%s85 + $0x8] sm:$0xff]
  %v88 = vld [vmem:[%s85 + $0x10] sm:$0xff]
  %v89 = vld [vmem:[%s85 + $0x18] sm:$0xff]
  %v90 = vrot.slane %v86, 7
  %v91 = vrot.slane %v87, 7
  %v92 = vrot.slane %v88, 7
  %v93 = vrot.slane %v89, 7
  %v94 = vsel %vm29, %v92, %v93
  %v95 = vsel %vm29, %v91, %v92
  %v96 = vsel %vm29, %v90, %v91
  %v97 = vsel %vm29, %v93, %v90
  %v98 = vrot.slane %v86, 1
  %v99 = vrot.slane %v87, 1
  %v100 = vrot.slane %v88, 1
  %v101 = vrot.slane %v89, 1
  %v102 = vsel %vm38, %v100, %v101
  %v103 = vsel %vm38, %v99, %v100
  %v104 = vsel %vm38, %v98, %v99
  %v105 = vsel %vm38, %v101, %v98
  %110 = vrot.lane.b32.xlu0 %v86, 4
  %v111 = vpop.permute.xlu0 %110
  %112 = vrot.lane.b32.xlu0 %v87, 4
  %v113 = vpop.permute.xlu0 %112
  %114 = vrot.lane.b32.xlu0 %v88, 4
  %v115 = vpop.permute.xlu0 %114
  %116 = vrot.lane.b32.xlu0 %v89, 4
  %v117 = vpop.permute.xlu0 %116
  %126 = vrot.lane.b32.xlu0 %v104, 8
  %v127 = vpop.permute.xlu0 %126
  %128 = vrot.lane.b32.xlu0 %v103, 8
  %v129 = vpop.permute.xlu0 %128
  %130 = vrot.lane.b32.xlu0 %v102, 8
  %v131 = vpop.permute.xlu0 %130
  %132 = vrot.lane.b32.xlu0 %v105, 8
  %v133 = vpop.permute.xlu0 %132
  %v138 = vsel %vm75, %v97, %v111
  %v139 = vsel %vm75, %v96, %v113
  %v140 = vsel %vm75, %v95, %v115
  %v141 = vsel %vm75, %v94, %v117
  %v142 = vsel %vm80, %v138, %v127
  %v143 = vsel %vm80, %v139, %v129
  %v144 = vsel %vm80, %v140, %v131
  %v145 = vsel %vm80, %v141, %v133
  %v146 = vld [vmem:[%s2] sm:$0xff]
  %v147 = vld [vmem:[%s2 + $0x8] sm:$0xff]
  %v148 = vld [vmem:[%s2 + $0x10] sm:$0xff]
  %v149 = vld [vmem:[%s2 + $0x18] sm:$0xff]
  %v150 = vld [vmem:[%s1] sm:$0xff]
  %v151 = vld [vmem:[%s1 + $0x8] sm:$0xf]
  %vm152 = vcmask 97280
  %v154 = vsel %vm152, %v81, 0
  %v157 = vsel %vm152, %v82, 0
  %v160 = vsel %vm152, %v83, 0
  %v163 = vsel %vm152, %v84, 0
  %v166 = vsel %vm152, %v142, 0
  %v169 = vsel %vm152, %v143, 0
  %v172 = vsel %vm152, %v144, 0
  %v175 = vsel %vm152, %v145, 0
  %vm177 = vcmask 1043456
  %v179 = vsel %vm177, %v151, 0
  %181 = vmatprep.subr.mxu0 0.0
  %182 = vmatpush1.msra.mxu0 %v150
  %183 = vmatprep.subr.mxu0 0.0
  %184 = vmatpush1.msra.mxu0 %v179
  %185 = vmatprep.subr.mxu0 0.0
  %186 = vmatpush1.msra.mxu0 0.0
  %187 = vmatprep.subr.mxu0 0.0
  %188 = vmatpush1.msra.mxu0 0.0
  %189 = vmatprep.subr.mxu0 0.0
  %190 = vmatpush1.msra.mxu0 0.0
  %191 = vmatprep.subr.mxu0 0.0
  %192 = vmatpush1.msra.mxu0 0.0
  %193 = vmatprep.subr.mxu0 0.0
  %194 = vmatpush1.msra.mxu0 0.0
  %195 = vmatprep.subr.mxu0 0.0
  %196 = vmatpush1.msra.mxu0 0.0
  %197 = vmatprep.subr.mxu0 0.0
  %198 = vmatpush1.msra.mxu0 0.0
  %199 = vmatprep.subr.mxu0 0.0
  %200 = vmatpush1.msra.mxu0 0.0
  %201 = vmatprep.subr.mxu0 0.0
  %202 = vmatpush1.msra.mxu0 0.0
  %203 = vmatprep.subr.mxu0 0.0
  %204 = vmatpush1.msra.mxu0 0.0
  %205 = vmatprep.subr.mxu0 0.0
  %206 = vmatpush1.msra.mxu0 0.0
  %207 = vmatprep.subr.mxu0 0.0
  %208 = vmatpush1.msra.mxu0 0.0
  %209 = vmatprep.subr.mxu0 0.0
  %210 = vmatpush1.msra.mxu0 0.0
  %211 = vmatprep.subr.mxu0 0.0
  %212 = vmatpush1.msra.mxu0 0.0
  %213 = vmatprep.subr.mxu0 0.0
  %214 = vmatpush1.msra.mxu0 0.0
  %215 = vmatprep.subr.mxu0 0.0
  %216 = vmatpush1.msra.mxu0 0.0
  %217 = vmatprep.subr.mxu0 0.0
  %218 = vmatpush1.msra.mxu0 0.0
  %219 = vmatprep.subr.mxu0 0.0
  %220 = vmatpush1.msra.mxu0 0.0
  %221 = vmatprep.subr.mxu0 0.0
  %222 = vmatpush1.msra.mxu0 0.0
  %223 = vmatprep.subr.mxu0 0.0
  %224 = vmatpush1.msra.mxu0 0.0
  %225 = vmatprep.subr.mxu0 0.0
  %226 = vmatpush1.msra.mxu0 0.0
  %227 = vmatprep.subr.mxu0 0.0
  %228 = vmatpush1.msra.mxu0 0.0
  %229 = vmatprep.subr.mxu0 0.0
  %230 = vmatpush1.msra.mxu0 0.0
  %231 = vmatprep.subr.mxu0 0.0
  %232 = vmatpush1.msra.mxu0 0.0
  %233 = vmatprep.subr.mxu0 0.0
  %234 = vmatpush1.msra.mxu0 0.0
  %235 = vmatprep.subr.mxu0 0.0
  %236 = vmatpush1.msra.mxu0 0.0
  %237 = vmatprep.subr.mxu0 0.0
  %238 = vmatpush1.msra.mxu0 0.0
  %239 = vmatprep.subr.mxu0 0.0
  %240 = vmatpush1.msra.mxu0 0.0
  %241 = vmatprep.subr.mxu0 0.0
  %242 = vmatpush1.msra.mxu0 0.0
  %243 = vmatprep.subr.mxu0 0.0
  %244 = vmatpush1.msra.mxu0 0.0
  %245 = vmatprep.mubr.f32.mxu0 0.0
  %246 = vmatmul.mubr.f32.gmra.mrb[0].mxu0 %v154
  %v247 = vpop.f32.mrb[0].mxu0
  %v248 = vadd.f32 %v146, %v247
  %v249 = vpop.f32.mrb[0].mxu0
  %250 = vmatprep.mubr.f32.mxu0 0.0
  %251 = vmatmul.mubr.f32.gmra.mrb[0].mxu0 %v157
  %v252 = vpop.f32.mrb[0].mxu0
  %v253 = vadd.f32 %v147, %v252
  %v254 = vpop.f32.mrb[0].mxu0
  %255 = vmatprep.mubr.f32.mxu0 0.0
  %256 = vmatmul.mubr.f32.gmra.mrb[0].mxu0 %v160
  %v257 = vpop.f32.mrb[0].mxu0
  %v258 = vadd.f32 %v148, %v257
  %v259 = vpop.f32.mrb[0].mxu0
  %260 = vmatprep.mubr.f32.mxu0 0.0
  %261 = vmatmul.mubr.f32.gmra.mrb[0].mxu0 %v163
  %v262 = vpop.f32.mrb[0].mxu0
  %v263 = vadd.f32 %v149, %v262
  %v264 = vpop.f32.mrb[0].mxu0
  %265 = vmatprep.mubr.f32.mxu0 0.0
  %266 = vmatmul.mubr.f32.gmra.mrb[0].mxu0 %v166
  %v267 = vpop.f32.mrb[0].mxu0
  %v268 = vadd.f32 %v146, %v267
  %v269 = vpop.f32.mrb[0].mxu0
  %270 = vmatprep.mubr.f32.mxu0 0.0
  %271 = vmatmul.mubr.f32.gmra.mrb[0].mxu0 %v169
  %v272 = vpop.f32.mrb[0].mxu0
  %v273 = vadd.f32 %v147, %v272
  %v274 = vpop.f32.mrb[0].mxu0
  %275 = vmatprep.mubr.f32.mxu0 0.0
  %276 = vmatmul.mubr.f32.gmra.mrb[0].mxu0 %v172
  %v277 = vpop.f32.mrb[0].mxu0
  %v278 = vadd.f32 %v148, %v277
  %v279 = vpop.f32.mrb[0].mxu0
  %280 = vmatprep.mubr.f32.mxu0 0.0
  %281 = vmatmul.mubr.f32.gmra.mrb[0].mxu0 %v175
  %v282 = vpop.f32.mrb[0].mxu0
  %v283 = vadd.f32 %v149, %v282
  %v284 = vpop.f32.mrb[0].mxu0
  %285 = vdwg.mxu0
  %vm286 = vcmask 261120
  %287 = vst.msk [vmem:[%s4] sm:$0xff] %vm286, %v248
  %288 = vst.msk [vmem:[%s4 + $0x8] sm:$0xff] %vm286, %v253
  %289 = vst.msk [vmem:[%s4 + $0x10] sm:$0xff] %vm286, %v258
  %290 = vst.msk [vmem:[%s4 + $0x18] sm:$0xff] %vm286, %v263
  %291 = vst.msk [vmem:[%s4 + $0x20] sm:$0xff] %vm286, %v268
  %292 = vst.msk [vmem:[%s4 + $0x28] sm:$0xff] %vm286, %v273
  %293 = vst.msk [vmem:[%s4 + $0x30] sm:$0xff] %vm286, %v278
  %294 = vst.msk [vmem:[%s4 + $0x38] sm:$0xff] %vm286, %v283
  %v295 = vmul.f32 %v248, %v248
  %v296 = vmul.f32 %v253, %v253
  %v297 = vmul.f32 %v258, %v258
  %v298 = vmul.f32 %v263, %v263
  %v299 = vmul.f32 %v268, %v268
  %v300 = vmul.f32 %v273, %v273
  %v301 = vmul.f32 %v278, %v278
  %v302 = vmul.f32 %v283, %v283
  %311 = vrot.lane.b32.xlu0 %v295, 32
  %v312 = vpop.permute.xlu0 %311
  %313 = vrot.lane.b32.xlu0 %v296, 32
  %v314 = vpop.permute.xlu0 %313
  %315 = vrot.lane.b32.xlu0 %v297, 32
  %v316 = vpop.permute.xlu0 %315
  %317 = vrot.lane.b32.xlu0 %v298, 32
  %v318 = vpop.permute.xlu0 %317
  %319 = vrot.lane.b32.xlu0 %v299, 32
  %v320 = vpop.permute.xlu0 %319
  %321 = vrot.lane.b32.xlu0 %v300, 32
  %v322 = vpop.permute.xlu0 %321
  %323 = vrot.lane.b32.xlu0 %v301, 32
  %v324 = vpop.permute.xlu0 %323
  %325 = vrot.lane.b32.xlu0 %v302, 32
  %v326 = vpop.permute.xlu0 %325
  %v335 = vsel %vm286, %v248, %v312
  %v336 = vsel %vm286, %v253, %v314
  %v337 = vsel %vm286, %v258, %v316
  %v338 = vsel %vm286, %v263, %v318
  %v339 = vsel %vm286, %v268, %v320
  %v340 = vsel %vm286, %v273, %v322
  %v341 = vsel %vm286, %v278, %v324
  %v342 = vsel %vm286, %v283, %v326
  %v343 = vld [vmem:[%s3] sm:$0xff]
  %v344 = vld [vmem:[%s3 + $0x8] sm:$0xff]
  %v345 = vld [vmem:[%s3 + $0x10] sm:$0xff]
  %v346 = vld [vmem:[%s3 + $0x18] sm:$0xff]
  %v347 = vld [vmem:[%s3 + $0x20] sm:$0xff]
  %v348 = vld [vmem:[%s3 + $0x28] sm:$0xff]
  %v349 = vld [vmem:[%s3 + $0x30] sm:$0xff]
  %v350 = vld [vmem:[%s3 + $0x38] sm:$0xff]
  %vm351 = vcmask 523264
  %v353 = vsel %vm351, %v343, 0
  %v356 = vsel %vm351, %v344, 0
  %v359 = vsel %vm351, %v345, 0
  %v362 = vsel %vm351, %v346, 0
  %v365 = vsel %vm351, %v347, 0
  %v368 = vsel %vm351, %v348, 0
  %v371 = vsel %vm351, %v349, 0
  %v374 = vsel %vm351, %v350, 0
  %376 = vmatprep.subr.mxu0 0.0
  %377 = vmatpush1.msra.mxu0 %v335
  %378 = vmatprep.subr.mxu0 0.0
  %379 = vmatpush1.msra.mxu0 %v336
  %380 = vmatprep.subr.mxu0 0.0
  %381 = vmatpush1.msra.mxu0 %v337
  %382 = vmatprep.subr.mxu0 0.0
  %383 = vmatpush1.msra.mxu0 %v338
  %384 = vmatprep.subr.mxu0 0.0
  %385 = vmatpush1.msra.mxu0 %v339
  %386 = vmatprep.subr.mxu0 0.0
  %387 = vmatpush1.msra.mxu0 %v340
  %388 = vmatprep.subr.mxu0 0.0
  %389 = vmatpush1.msra.mxu0 %v341
  %390 = vmatprep.subr.mxu0 0.0
  %391 = vmatpush1.msra.mxu0 %v342
  %392 = vmatprep.subr.mxu0 0.0
  %393 = vmatpush1.msra.mxu0 0.0
  %394 = vmatprep.subr.mxu0 0.0
  %395 = vmatpush1.msra.mxu0 0.0
  %396 = vmatprep.subr.mxu0 0.0
  %397 = vmatpush1.msra.mxu0 0.0
  %398 = vmatprep.subr.mxu0 0.0
  %399 = vmatpush1.msra.mxu0 0.0
  %400 = vmatprep.subr.mxu0 0.0
  %401 = vmatpush1.msra.mxu0 0.0
  %402 = vmatprep.subr.mxu0 0.0
  %403 = vmatpush1.msra.mxu0 0.0
  %404 = vmatprep.subr.mxu0 0.0
  %405 = vmatpush1.msra.mxu0 0.0
  %406 = vmatprep.subr.mxu0 0.0
  %407 = vmatpush1.msra.mxu0 0.0
  %408 = vmatprep.subr.mxu0 0.0
  %409 = vmatpush1.msra.mxu0 0.0
  %410 = vmatprep.subr.mxu0 0.0
  %411 = vmatpush1.msra.mxu0 0.0
  %412 = vmatprep.subr.mxu0 0.0
  %413 = vmatpush1.msra.mxu0 0.0
  %414 = vmatprep.subr.mxu0 0.0
  %415 = vmatpush1.msra.mxu0 0.0
  %416 = vmatprep.subr.mxu0 0.0
  %417 = vmatpush1.msra.mxu0 0.0
  %418 = vmatprep.subr.mxu0 0.0
  %419 = vmatpush1.msra.mxu0 0.0
  %420 = vmatprep.subr.mxu0 0.0
  %421 = vmatpush1.msra.mxu0 0.0
  %422 = vmatprep.subr.mxu0 0.0
  %423 = vmatpush1.msra.mxu0 0.0
  %424 = vmatprep.subr.mxu0 0.0
  %425 = vmatpush1.msra.mxu0 0.0
  %426 = vmatprep.subr.mxu0 0.0
  %427 = vmatpush1.msra.mxu0 0.0
  %428 = vmatprep.subr.mxu0 0.0
  %429 = vmatpush1.msra.mxu0 0.0
  %430 = vmatprep.subr.mxu0 0.0
  %431 = vmatpush1.msra.mxu0 0.0
  %432 = vmatprep.subr.mxu0 0.0
  %433 = vmatpush1.msra.mxu0 0.0
  %434 = vmatprep.subr.mxu0 0.0
  %435 = vmatpush1.msra.mxu0 0.0
  %436 = vmatprep.subr.mxu0 0.0
  %437 = vmatpush1.msra.mxu0 0.0
  %438 = vmatprep.subr.mxu0 0.0
  %439 = vmatpush1.msra.mxu0 0.0
  %440 = vmatprep.mubr.f32.mxu0 0.0
  %441 = vmatmul.mubr.f32.gmra.mrb[0].mxu0 %v353
  %v442 = vpop.f32.mrb[0].mxu0
  %v443 = vadd.f32 0.0, %v442
  %v444 = vpop.f32.mrb[0].mxu0
  %445 = vmatprep.mubr.f32.mxu0 0.0
  %446 = vmatmul.mubr.f32.gmra.mrb[0].mxu0 %v356
  %v447 = vpop.f32.mrb[0].mxu0
  %v448 = vadd.f32 0.0, %v447
  %v449 = vpop.f32.mrb[0].mxu0
  %450 = vmatprep.mubr.f32.mxu0 0.0
  %451 = vmatmul.mubr.f32.gmra.mrb[0].mxu0 %v359
  %v452 = vpop.f32.mrb[0].mxu0
  %v453 = vadd.f32 0.0, %v452
  %v454 = vpop.f32.mrb[0].mxu0
  %455 = vmatprep.mubr.f32.mxu0 0.0
  %456 = vmatmul.mubr.f32.gmra.mrb[0].mxu0 %v362
  %v457 = vpop.f32.mrb[0].mxu0
  %v458 = vadd.f32 0.0, %v457
  %v459 = vpop.f32.mrb[0].mxu0
  %460 = vmatprep.mubr.f32.mxu0 0.0
  %461 = vmatmul.mubr.f32.gmra.mrb[0].mxu0 %v365
  %v462 = vpop.f32.mrb[0].mxu0
  %v463 = vadd.f32 0.0, %v462
  %v464 = vpop.f32.mrb[0].mxu0
  %465 = vmatprep.mubr.f32.mxu0 0.0
  %466 = vmatmul.mubr.f32.gmra.mrb[0].mxu0 %v368
  %v467 = vpop.f32.mrb[0].mxu0
  %v468 = vadd.f32 0.0, %v467
  %v469 = vpop.f32.mrb[0].mxu0
  %470 = vmatprep.mubr.f32.mxu0 0.0
  %471 = vmatmul.mubr.f32.gmra.mrb[0].mxu0 %v371
  %v472 = vpop.f32.mrb[0].mxu0
  %v473 = vadd.f32 0.0, %v472
  %v474 = vpop.f32.mrb[0].mxu0
  %475 = vmatprep.mubr.f32.mxu0 0.0
  %476 = vmatmul.mubr.f32.gmra.mrb[0].mxu0 %v374
  %v477 = vpop.f32.mrb[0].mxu0
  %v478 = vadd.f32 0.0, %v477
  %v479 = vpop.f32.mrb[0].mxu0
  %480 = vdwg.mxu0
  %v481 = vmul.f32 %v443, %v443
  %v482 = vmul.f32 %v448, %v448
  %v483 = vmul.f32 %v453, %v453
  %v484 = vmul.f32 %v458, %v458
  %v485 = vmul.f32 %v463, %v463
  %v486 = vmul.f32 %v468, %v468
  %v487 = vmul.f32 %v473, %v473
  %v488 = vmul.f32 %v478, %v478
  %497 = vrot.lane.b32.xlu0 %v481, 32
  %v498 = vpop.permute.xlu0 %497
  %499 = vrot.lane.b32.xlu0 %v482, 32
  %v500 = vpop.permute.xlu0 %499
  %501 = vrot.lane.b32.xlu0 %v483, 32
  %v502 = vpop.permute.xlu0 %501
  %503 = vrot.lane.b32.xlu0 %v484, 32
  %v504 = vpop.permute.xlu0 %503
  %505 = vrot.lane.b32.xlu0 %v485, 32
  %v506 = vpop.permute.xlu0 %505
  %507 = vrot.lane.b32.xlu0 %v486, 32
  %v508 = vpop.permute.xlu0 %507
  %509 = vrot.lane.b32.xlu0 %v487, 32
  %v510 = vpop.permute.xlu0 %509
  %511 = vrot.lane.b32.xlu0 %v488, 32
  %v512 = vpop.permute.xlu0 %511
  %v521 = vsub.f32 %v443, %v498
  %v522 = vsub.f32 %v448, %v500
  %v523 = vsub.f32 %v453, %v502
  %v524 = vsub.f32 %v458, %v504
  %v525 = vsub.f32 %v463, %v506
  %v526 = vsub.f32 %v468, %v508
  %v527 = vsub.f32 %v473, %v510
  %v528 = vsub.f32 %v478, %v512
  %537 = vrot.lane.b32.xlu0 %v521, 96
  %v538 = vpop.permute.xlu0 %537
  %539 = vrot.lane.b32.xlu0 %v522, 96
  %v540 = vpop.permute.xlu0 %539
  %541 = vrot.lane.b32.xlu0 %v523, 96
  %v542 = vpop.permute.xlu0 %541
  %543 = vrot.lane.b32.xlu0 %v524, 96
  %v544 = vpop.permute.xlu0 %543
  %545 = vrot.lane.b32.xlu0 %v525, 96
  %v546 = vpop.permute.xlu0 %545
  %547 = vrot.lane.b32.xlu0 %v526, 96
  %v548 = vpop.permute.xlu0 %547
  %549 = vrot.lane.b32.xlu0 %v527, 96
  %v550 = vpop.permute.xlu0 %549
  %551 = vrot.lane.b32.xlu0 %v528, 96
  %v552 = vpop.permute.xlu0 %551
  %v561 = vsel %vm286, %v538, 0.0
  %562 = vadd.xlane.f32.xlu0 %v561
  %v563 = vpop.xlane.xlu0 %562
  %v564 = vsel %vm286, %v540, 0.0
  %565 = vadd.xlane.f32.xlu0 %v564
  %v566 = vpop.xlane.xlu0 %565
  %v567 = vsel %vm286, %v542, 0.0
  %568 = vadd.xlane.f32.xlu0 %v567
  %v569 = vpop.xlane.xlu0 %568
  %v570 = vsel %vm286, %v544, 0.0
  %571 = vadd.xlane.f32.xlu0 %v570
  %v572 = vpop.xlane.xlu0 %571
  %v573 = vsel %vm286, %v546, 0.0
  %574 = vadd.xlane.f32.xlu0 %v573
  %v575 = vpop.xlane.xlu0 %574
  %v576 = vsel %vm286, %v548, 0.0
  %577 = vadd.xlane.f32.xlu0 %v576
  %v578 = vpop.xlane.xlu0 %577
  %v579 = vsel %vm286, %v550, 0.0
  %580 = vadd.xlane.f32.xlu0 %v579
  %v581 = vpop.xlane.xlu0 %580
  %v582 = vsel %vm286, %v552, 0.0
  %583 = vadd.xlane.f32.xlu0 %v582
  %v584 = vpop.xlane.xlu0 %583
  %v585 = vsel %vm286, %v443, 0.0
  %586 = vadd.xlane.f32.xlu0 %v585
  %v587 = vpop.xlane.xlu0 %586
  %v588 = vsel %vm286, %v448, 0.0
  %589 = vadd.xlane.f32.xlu0 %v588
  %v590 = vpop.xlane.xlu0 %589
  %v591 = vsel %vm286, %v453, 0.0
  %592 = vadd.xlane.f32.xlu0 %v591
  %v593 = vpop.xlane.xlu0 %592
  %v594 = vsel %vm286, %v458, 0.0
  %595 = vadd.xlane.f32.xlu0 %v594
  %v596 = vpop.xlane.xlu0 %595
  %v597 = vsel %vm286, %v463, 0.0
  %598 = vadd.xlane.f32.xlu0 %v597
  %v599 = vpop.xlane.xlu0 %598
  %v600 = vsel %vm286, %v468, 0.0
  %601 = vadd.xlane.f32.xlu0 %v600
  %v602 = vpop.xlane.xlu0 %601
  %v603 = vsel %vm286, %v473, 0.0
  %604 = vadd.xlane.f32.xlu0 %v603
  %v605 = vpop.xlane.xlu0 %604
  %v606 = vsel %vm286, %v478, 0.0
  %607 = vadd.xlane.f32.xlu0 %v606
  %v608 = vpop.xlane.xlu0 %607
  %v609 = vrcp.pop %v587
  %v610 = vmul.f32 %v563, %v609
  %v611 = vrcp.pop %v590
  %v612 = vmul.f32 %v566, %v611
  %v613 = vrcp.pop %v593
  %v614 = vmul.f32 %v569, %v613
  %v615 = vrcp.pop %v596
  %v616 = vmul.f32 %v572, %v615
  %v617 = vrcp.pop %v599
  %v618 = vmul.f32 %v575, %v617
  %v619 = vrcp.pop %v602
  %v620 = vmul.f32 %v578, %v619
  %v621 = vrcp.pop %v605
  %v622 = vmul.f32 %v581, %v621
  %v623 = vrcp.pop %v608
  %v624 = vmul.f32 %v584, %v623
  %vm625 = vcmask 7168
  %626 = vst.msk [vmem:[%s5] sm:$0xff] %vm625, %v610
  %627 = vst.msk [vmem:[%s5 + $0x8] sm:$0xff] %vm625, %v612
  %628 = vst.msk [vmem:[%s5 + $0x10] sm:$0xff] %vm625, %v614
  %629 = vst.msk [vmem:[%s5 + $0x18] sm:$0xff] %vm625, %v616
  %630 = vst.msk [vmem:[%s5 + $0x20] sm:$0xff] %vm625, %v618
  %631 = vst.msk [vmem:[%s5 + $0x28] sm:$0xff] %vm625, %v620
  %632 = vst.msk [vmem:[%s5 + $0x30] sm:$0xff] %vm625, %v622
  %633 = vst.msk [vmem:[%s5 + $0x38] sm:$0xff] %vm625, %v624
  // Predicated region
  $region18: #{tem_enc_forward.3} parent=0 // pred_check
    _
  $region19: #{tem_enc_forward.3} parent=0 // pred_check_branch
    %635 = sbr.rel (0) target = $region21
  $region20: #{tem_enc_forward.3} parent=0 // pred_region
    _
  $region21: #{tem_enc_forward.3} parent=0 // pred_fallthru
    _
  // Predicated region
  $region22: #{tem_enc_forward.3} parent=0 // pred_check
    _
  $region23: #{tem_enc_forward.3} parent=0 // pred_check_branch
    %637 = sbr.rel (0) target = $region25
  $region24: #{tem_enc_forward.3} parent=0 // pred_region
    _
  $region25: #{tem_enc_forward.3} parent=0 // pred_fallthru
    _
  // Predicated region
  $region26: #{tem_enc_forward.3} parent=0 // pred_check
    _
  $region27: #{tem_enc_forward.3} parent=0 // pred_check_branch
    %639 = sbr.rel (0) target = $region29
  $region28: #{tem_enc_forward.3} parent=0 // pred_region
    _
  $region29: #{tem_enc_forward.3} parent=0 // pred_fallthru
    _
  // Predicated region
  $region30: #{tem_enc_forward.3} parent=0 // pred_check
    _
  $region31: #{tem_enc_forward.3} parent=0 // pred_check_branch
    %641 = sbr.rel (0) target = $region33
  $region32: #{tem_enc_forward.3} parent=0 // pred_region
    _
  $region33: #{tem_enc_forward.3} parent=0 // pred_fallthru
    _

// kernel: tem_enc_forward.4
$region0: #{tem_enc_forward.4}
  #allocation0 [shape = 'u32[]', space=smem, size = 0x4, offset = 0x4, fixed_abs, tag = 'smem constant byte address 0x4 - core index']
  #allocation1 [shape = 'u32[144,128]{1,0:T(1,128)}', space=vmem, size = 0x12000, scoped, tag = 'internal scratch']
  %s0 = inlined_call_operand.vmem [shape: f32[4], index: 0, kind: input, shape index: {}]
  %s1 = inlined_call_operand.vmem [shape: f32[48,32], index: 1, kind: input, shape index: {}]
  %s2 = inlined_call_operand.vmem [shape: f32[416,48], index: 2, kind: input, shape index: {}]
  %s3 = inlined_call_operand.vmem [shape: f32[192,416], index: 3, kind: input, shape index: {}]
  %s4 = inlined_call_operand.vmem [shape: f32[8,192], index: 4, kind: input, shape index: {}]
  %s5 = inlined_call_operand.vmem [shape: f32[128,32], index: 5, kind: input, shape index: {}]
  %s6 = inlined_call_operand.vmem [shape: f32[1,32], index: 6, kind: input, shape index: {}]
  %s7 = inlined_call_operand.vmem [shape: f32[128,40], index: 7, kind: input, shape index: {}]
  %s8 = inlined_call_operand.vmem [shape: f32[1,40], index: 8, kind: input, shape index: {}]
  %s9 = inlined_call_operand.vmem [shape: f32[40,40], index: 9, kind: input, shape index: {}]
  %s10 = inlined_call_operand.vmem [shape: f32[1,40], index: 10, kind: input, shape index: {}]
  %s11 = inlined_call_operand.vmem [shape: f32[40,32], index: 11, kind: input, shape index: {}]
  %s12 = inlined_call_operand.vmem [shape: f32[1,32], index: 12, kind: input, shape index: {}]
  %s13 = inlined_call_operand.vmem [shape: f32[32,32], index: 13, kind: input, shape index: {}]
  %s14 = inlined_call_operand.vmem [shape: f32[1,32], index: 14, kind: input, shape index: {}]
  %s15 = inlined_call_operand.vmem [shape: f32[32,32], index: 15, kind: input, shape index: {}]
  %s16 = inlined_call_operand.vmem [shape: f32[1,32], index: 16, kind: input, shape index: {}]
  %s17 = inlined_call_operand.hbm [shape: f32[2,32], index: 17, kind: output, shape index: {0}]
  %s18 = inlined_call_operand.hbm [shape: f32[2,32], index: 18, kind: output, shape index: {1}]
  %19 = xla_tuple %s17, %s18
  %s20 = sld [smem:[#allocation0]]
  $region90: #{tem_enc_forward.4} parent=0
    _
  %s22 = ssub.s32 1, %s20
  %s23 = scalar_select 0, %s22, %s20
  $region1: #{tem_enc_forward.4} parent=0
    #allocation2 [shape = 'u8[512]{0}', space=smem, size = 0x200, scoped, tag = 'input window, operand 0, single buffered']
    #allocation3 [shape = 's32[1]{0}', space=sflag, size = 0x4, scoped, tag = 'scoped memory for tem_enc_forward.4']
    #allocation4 [shape = 's32[1]{0}', space=sflag, size = 0x4, scoped, tag = 'scoped memory for tem_enc_forward.4']
    #allocation5 [shape = 'u8[1024]{0}', space=vmem, size = 0x400, scoped, tag = 'output window, operand 0, single buffered']
    #allocation6 [shape = 'u8[1024]{0}', space=vmem, size = 0x400, scoped, tag = 'output window, operand 1, single buffered']
    #allocation7 [shape = 's32[1]{0}', space=sflag, size = 0x4, scoped, tag = 'scoped memory for tem_enc_forward.4']
    %24 = vsyncpa [#allocation4], 0
    %25 = vsyncpa [#allocation3], 0
    %26 = vsyncpa [#allocation7], 0
    // Predicated region
    $region2: #{tem_enc_forward.4} parent=1 // pred_check
      _
    $region3: #{tem_enc_forward.4} parent=1 // pred_check_branch
      %28 = sbr.rel (0) target = $region5
    $region4: #{tem_enc_forward.4} parent=1 // pred_region
      %s30 = ssub.s32 16, 16
      %31 = vsyncadd [#allocation4], %s30
      %s33 = sshll.u32 %s0, 4
      %s34 = int_to_ptr.vmem [resolvable:$true] %s33
      %36 = dma.vmem_to_smem %s34, 16, [#allocation2], [#allocation4]
    $region5: #{tem_enc_forward.4} parent=1 // pred_fallthru
      _
    // Predicated region
    $region6: #{tem_enc_forward.4} parent=1 // pred_check
      _
    $region7: #{tem_enc_forward.4} parent=1 // pred_check_branch
      %38 = sbr.rel (0) target = $region9
    $region8: #{tem_enc_forward.4} parent=1 // pred_region
      _
    $region9: #{tem_enc_forward.4} parent=1 // pred_fallthru
      _
    // Predicated region
    $region10: #{tem_enc_forward.4} parent=1 // pred_check
      _
    $region11: #{tem_enc_forward.4} parent=1 // pred_check_branch
      %40 = sbr.rel (0) target = $region13
    $region12: #{tem_enc_forward.4} parent=1 // pred_region
      _
    $region13: #{tem_enc_forward.4} parent=1 // pred_fallthru
      _
    // Predicated region
    $region14: #{tem_enc_forward.4} parent=1 // pred_check
      _
    $region15: #{tem_enc_forward.4} parent=1 // pred_check_branch
      %42 = sbr.rel (0) target = $region17
    $region16: #{tem_enc_forward.4} parent=1 // pred_region
      _
    $region17: #{tem_enc_forward.4} parent=1 // pred_fallthru
      _
    // Predicated region
    $region18: #{tem_enc_forward.4} parent=1 // pred_check
      _
    $region19: #{tem_enc_forward.4} parent=1 // pred_check_branch
      %44 = sbr.rel (0) target = $region21
    $region20: #{tem_enc_forward.4} parent=1 // pred_region
      _
    $region21: #{tem_enc_forward.4} parent=1 // pred_fallthru
      _
    // Predicated region
    $region22: #{tem_enc_forward.4} parent=1 // pred_check
      _
    $region23: #{tem_enc_forward.4} parent=1 // pred_check_branch
      %46 = sbr.rel (0) target = $region25
    $region24: #{tem_enc_forward.4} parent=1 // pred_region
      _
    $region25: #{tem_enc_forward.4} parent=1 // pred_fallthru
      _
    // Predicated region
    $region26: #{tem_enc_forward.4} parent=1 // pred_check
      _
    $region27: #{tem_enc_forward.4} parent=1 // pred_check_branch
      %48 = sbr.rel (0) target = $region29
    $region28: #{tem_enc_forward.4} parent=1 // pred_region
      _
    $region29: #{tem_enc_forward.4} parent=1 // pred_fallthru
      _
    // Predicated region
    $region30: #{tem_enc_forward.4} parent=1 // pred_check
      _
    $region31: #{tem_enc_forward.4} parent=1 // pred_check_branch
      %50 = sbr.rel (0) target = $region33
    $region32: #{tem_enc_forward.4} parent=1 // pred_region
      _
    $region33: #{tem_enc_forward.4} parent=1 // pred_fallthru
      _
    // Predicated region
    $region34: #{tem_enc_forward.4} parent=1 // pred_check
      _
    $region35: #{tem_enc_forward.4} parent=1 // pred_check_branch
      %52 = sbr.rel (0) target = $region37
    $region36: #{tem_enc_forward.4} parent=1 // pred_region
      _
    $region37: #{tem_enc_forward.4} parent=1 // pred_fallthru
      _
    // Predicated region
    $region38: #{tem_enc_forward.4} parent=1 // pred_check
      _
    $region39: #{tem_enc_forward.4} parent=1 // pred_check_branch
      %54 = sbr.rel (0) target = $region41
    $region40: #{tem_enc_forward.4} parent=1 // pred_region
      _
    $region41: #{tem_enc_forward.4} parent=1 // pred_fallthru
      _
    // Predicated region
    $region42: #{tem_enc_forward.4} parent=1 // pred_check
      _
    $region43: #{tem_enc_forward.4} parent=1 // pred_check_branch
      %56 = sbr.rel (0) target = $region45
    $region44: #{tem_enc_forward.4} parent=1 // pred_region
      _
    $region45: #{tem_enc_forward.4} parent=1 // pred_fallthru
      _
    // Predicated region
    $region46: #{tem_enc_forward.4} parent=1 // pred_check
      _
    $region47: #{tem_enc_forward.4} parent=1 // pred_check_branch
      %58 = sbr.rel (0) target = $region49
    $region48: #{tem_enc_forward.4} parent=1 // pred_region
      _
    $region49: #{tem_enc_forward.4} parent=1 // pred_fallthru
      _
    // Predicated region
    $region50: #{tem_enc_forward.4} parent=1 // pred_check
      _
    $region51: #{tem_enc_forward.4} parent=1 // pred_check_branch
      %60 = sbr.rel (0) target = $region53
    $region52: #{tem_enc_forward.4} parent=1 // pred_region
      _
    $region53: #{tem_enc_forward.4} parent=1 // pred_fallthru
      _
    // Predicated region
    $region54: #{tem_enc_forward.4} parent=1 // pred_check
      _
    $region55: #{tem_enc_forward.4} parent=1 // pred_check_branch
      %62 = sbr.rel (0) target = $region57
    $region56: #{tem_enc_forward.4} parent=1 // pred_region
      _
    $region57: #{tem_enc_forward.4} parent=1 // pred_fallthru
      _
    // Predicated region
    $region58: #{tem_enc_forward.4} parent=1 // pred_check
      _
    $region59: #{tem_enc_forward.4} parent=1 // pred_check_branch
      %64 = sbr.rel (0) target = $region61
    $region60: #{tem_enc_forward.4} parent=1 // pred_region
      _
    $region61: #{tem_enc_forward.4} parent=1 // pred_fallthru
      _
    // Predicated region
    $region62: #{tem_enc_forward.4} parent=1 // pred_check
      _
    $region63: #{tem_enc_forward.4} parent=1 // pred_check_branch
      %66 = sbr.rel (0) target = $region65
    $region64: #{tem_enc_forward.4} parent=1 // pred_region
      _
    $region65: #{tem_enc_forward.4} parent=1 // pred_fallthru
      _
    // Predicated region
    $region66: #{tem_enc_forward.4} parent=1 // pred_check
      _
    $region67: #{tem_enc_forward.4} parent=1 // pred_check_branch
      %68 = sbr.rel (0) target = $region69
    $region68: #{tem_enc_forward.4} parent=1 // pred_region
      _
    $region69: #{tem_enc_forward.4} parent=1 // pred_fallthru
      _
    // Predicated region
    $region70: #{tem_enc_forward.4} parent=1 // pred_check
      _
    $region71: #{tem_enc_forward.4} parent=1 // pred_check_branch
      %70 = sbr.rel (0) target = $region73
    $region72: #{tem_enc_forward.4} parent=1 // pred_region
      %71 = dma.done [#allocation4], 16
    $region73: #{tem_enc_forward.4} parent=1 // pred_fallthru
      _
    %72 = sfence
    %v73 = vld [vmem:[%s2] sm:$0xff]
    %v74 = vld [vmem:[%s2 + $0x8] sm:$0xff]
    %v75 = vld [vmem:[%s2 + $0x10] sm:$0xff]
    %v76 = vld [vmem:[%s2 + $0x18] sm:$0xff]
    %v77 = vld [vmem:[%s2 + $0x20] sm:$0xff]
    %v78 = vld [vmem:[%s2 + $0x28] sm:$0xff]
    %v79 = vld [vmem:[%s2 + $0x30] sm:$0xff]
    %v80 = vld [vmem:[%s2 + $0x38] sm:$0xff]
    %v81 = vld [vmem:[%s2 + $0x40] sm:$0xff]
    %v82 = vld [vmem:[%s2 + $0x48] sm:$0xff]
    %v83 = vld [vmem:[%s2 + $0x50] sm:$0xff]
    %v84 = vld [vmem:[%s2 + $0x58] sm:$0xff]
    %v85 = vld [vmem:[%s2 + $0x60] sm:$0xff]
    %v86 = vld [vmem:[%s2 + $0x68] sm:$0xff]
    %v87 = vld [vmem:[%s2 + $0x70] sm:$0xff]
    %v88 = vld [vmem:[%s2 + $0x78] sm:$0xff]
    %v89 = vld [vmem:[%s2 + $0x80] sm:$0xff]
    %v90 = vld [vmem:[%s2 + $0x88] sm:$0xff]
    %v91 = vld [vmem:[%s2 + $0x90] sm:$0xff]
    %v92 = vld [vmem:[%s2 + $0x98] sm:$0xff]
    %v93 = vld [vmem:[%s2 + $0xa0] sm:$0xff]
    %v94 = vld [vmem:[%s2 + $0xa8] sm:$0xff]
    %v95 = vld [vmem:[%s2 + $0xb0] sm:$0xff]
    %v96 = vld [vmem:[%s2 + $0xb8] sm:$0xff]
    %v97 = vld [vmem:[%s2 + $0xc0] sm:$0xff]
    %v98 = vld [vmem:[%s2 + $0xc8] sm:$0xff]
    %v99 = vld [vmem:[%s2 + $0xd0] sm:$0xff]
    %v100 = vld [vmem:[%s2 + $0xd8] sm:$0xff]
    %v101 = vld [vmem:[%s2 + $0xe0] sm:$0xff]
    %v102 = vld [vmem:[%s2 + $0xe8] sm:$0xff]
    %v103 = vld [vmem:[%s2 + $0xf0] sm:$0xff]
    %v104 = vld [vmem:[%s2 + $0xf8] sm:$0xff]
    %v105 = vld [vmem:[%s2 + $0x100] sm:$0xff]
    %v106 = vld [vmem:[%s2 + $0x108] sm:$0xff]
    %v107 = vld [vmem:[%s2 + $0x110] sm:$0xff]
    %v108 = vld [vmem:[%s2 + $0x118] sm:$0xff]
    %v109 = vld [vmem:[%s2 + $0x120] sm:$0xff]
    %v110 = vld [vmem:[%s2 + $0x128] sm:$0xff]
    %v111 = vld [vmem:[%s2 + $0x130] sm:$0xff]
    %v112 = vld [vmem:[%s2 + $0x138] sm:$0xff]
    %v113 = vld [vmem:[%s2 + $0x140] sm:$0xff]
    %v114 = vld [vmem:[%s2 + $0x148] sm:$0xff]
    %v115 = vld [vmem:[%s2 + $0x150] sm:$0xff]
    %v116 = vld [vmem:[%s2 + $0x158] sm:$0xff]
    %v117 = vld [vmem:[%s2 + $0x160] sm:$0xff]
    %v118 = vld [vmem:[%s2 + $0x168] sm:$0xff]
    %v119 = vld [vmem:[%s2 + $0x170] sm:$0xff]
    %v120 = vld [vmem:[%s2 + $0x178] sm:$0xff]
    %v121 = vld [vmem:[%s2 + $0x180] sm:$0xff]
    %v122 = vld [vmem:[%s2 + $0x188] sm:$0xff]
    %v123 = vld [vmem:[%s2 + $0x190] sm:$0xff]
    %v124 = vld [vmem:[%s2 + $0x198] sm:$0xff]
    %v125 = vld [vmem:[%s1] sm:$0xff]
    %v126 = vld [vmem:[%s1 + $0x8] sm:$0xff]
    %v127 = vld [vmem:[%s1 + $0x10] sm:$0xff]
    %v128 = vld [vmem:[%s1 + $0x18] sm:$0xff]
    %v129 = vld [vmem:[%s1 + $0x20] sm:$0xff]
    %v130 = vld [vmem:[%s1 + $0x28] sm:$0xff]
    %vm131 = vcmask 392192
    %v133 = vsel %vm131, %v73, 0
    %v136 = vsel %vm131, %v74, 0
    %v139 = vsel %vm131, %v75, 0
    %v142 = vsel %vm131, %v76, 0
    %v145 = vsel %vm131, %v77, 0
    %v148 = vsel %vm131, %v78, 0
    %v151 = vsel %vm131, %v79, 0
    %v154 = vsel %vm131, %v80, 0
    %v157 = vsel %vm131, %v81, 0
    %v160 = vsel %vm131, %v82, 0
    %v163 = vsel %vm131, %v83, 0
    %v166 = vsel %vm131, %v84, 0
    %v169 = vsel %vm131, %v85, 0
    %v172 = vsel %vm131, %v86, 0
    %v175 = vsel %vm131, %v87, 0
    %v178 = vsel %vm131, %v88, 0
    %v181 = vsel %vm131, %v89, 0
    %v184 = vsel %vm131, %v90, 0
    %v187 = vsel %vm131, %v91, 0
    %v190 = vsel %vm131, %v92, 0
    %v193 = vsel %vm131, %v93, 0
    %v196 = vsel %vm131, %v94, 0
    %v199 = vsel %vm131, %v95, 0
    %v202 = vsel %vm131, %v96, 0
    %v205 = vsel %vm131, %v97, 0
    %v208 = vsel %vm131, %v98, 0
    %v211 = vsel %vm131, %v99, 0
    %v214 = vsel %vm131, %v100, 0
    %v217 = vsel %vm131, %v101, 0
    %v220 = vsel %vm131, %v102, 0
    %v223 = vsel %vm131, %v103, 0
    %v226 = vsel %vm131, %v104, 0
    %v229 = vsel %vm131, %v105, 0
    %v232 = vsel %vm131, %v106, 0
    %v235 = vsel %vm131, %v107, 0
    %v238 = vsel %vm131, %v108, 0
    %v241 = vsel %vm131, %v109, 0
    %v244 = vsel %vm131, %v110, 0
    %v247 = vsel %vm131, %v111, 0
    %v250 = vsel %vm131, %v112, 0
    %v253 = vsel %vm131, %v113, 0
    %v256 = vsel %vm131, %v114, 0
    %v259 = vsel %vm131, %v115, 0
    %v262 = vsel %vm131, %v116, 0
    %v265 = vsel %vm131, %v117, 0
    %v268 = vsel %vm131, %v118, 0
    %v271 = vsel %vm131, %v119, 0
    %v274 = vsel %vm131, %v120, 0
    %v277 = vsel %vm131, %v121, 0
    %v280 = vsel %vm131, %v122, 0
    %v283 = vsel %vm131, %v123, 0
    %v286 = vsel %vm131, %v124, 0
    %288 = vmatprep.subr.mxu0 0.0
    %289 = vmatpush1.msra.mxu0 %v125
    %290 = vmatprep.subr.mxu0 0.0
    %291 = vmatpush1.msra.mxu0 %v126
    %292 = vmatprep.subr.mxu0 0.0
    %293 = vmatpush1.msra.mxu0 %v127
    %294 = vmatprep.subr.mxu0 0.0
    %295 = vmatpush1.msra.mxu0 %v128
    %296 = vmatprep.subr.mxu0 0.0
    %297 = vmatpush1.msra.mxu0 %v129
    %298 = vmatprep.subr.mxu0 0.0
    %299 = vmatpush1.msra.mxu0 %v130
    %300 = vmatprep.subr.mxu0 0.0
    %301 = vmatpush1.msra.mxu0 0.0
    %302 = vmatprep.subr.mxu0 0.0
    %303 = vmatpush1.msra.mxu0 0.0
    %304 = vmatprep.subr.mxu0 0.0
    %305 = vmatpush1.msra.mxu0 0.0
    %306 = vmatprep.subr.mxu0 0.0
    %307 = vmatpush1.msra.mxu0 0.0
    %308 = vmatprep.subr.mxu0 0.0
    %309 = vmatpush1.msra.mxu0 0.0
    %310 = vmatprep.subr.mxu0 0.0
    %311 = vmatpush1.msra.mxu0 0.0
    %312 = vmatprep.subr.mxu0 0.0
    %313 = vmatpush1.msra.mxu0 0.0
    %314 = vmatprep.subr.mxu0 0.0
    %315 = vmatpush1.msra.mxu0 0.0
    %316 = vmatprep.subr.mxu0 0.0
    %317 = vmatpush1.msra.mxu0 0.0
    %318 = vmatprep.subr.mxu0 0.0
    %319 = vmatpush1.msra.mxu0 0.0
    %320 = vmatprep.subr.mxu0 0.0
    %321 = vmatpush1.msra.mxu0 0.0
    %322 = vmatprep.subr.mxu0 0.0
    %323 = vmatpush1.msra.mxu0 0.0
    %324 = vmatprep.subr.mxu0 0.0
    %325 = vmatpush1.msra.mxu0 0.0
    %326 = vmatprep.subr.mxu0 0.0
    %327 = vmatpush1.msra.mxu0 0.0
    %328 = vmatprep.subr.mxu0 0.0
    %329 = vmatpush1.msra.mxu0 0.0
    %330 = vmatprep.subr.mxu0 0.0
    %331 = vmatpush1.msra.mxu0 0.0
    %332 = vmatprep.subr.mxu0 0.0
    %333 = vmatpush1.msra.mxu0 0.0
    %334 = vmatprep.subr.mxu0 0.0
    %335 = vmatpush1.msra.mxu0 0.0
    %336 = vmatprep.subr.mxu0 0.0
    %337 = vmatpush1.msra.mxu0 0.0
    %338 = vmatprep.subr.mxu0 0.0
    %339 = vmatpush1.msra.mxu0 0.0
    %340 = vmatprep.subr.mxu0 0.0
    %341 = vmatpush1.msra.mxu0 0.0
    %342 = vmatprep.subr.mxu0 0.0
    %343 = vmatpush1.msra.mxu0 0.0
    %344 = vmatprep.subr.mxu0 0.0
    %345 = vmatpush1.msra.mxu0 0.0
    %346 = vmatprep.subr.mxu0 0.0
    %347 = vmatpush1.msra.mxu0 0.0
    %348 = vmatprep.subr.mxu0 0.0
    %349 = vmatpush1.msra.mxu0 0.0
    %350 = vmatprep.subr.mxu0 0.0
    %351 = vmatpush1.msra.mxu0 0.0
    %352 = vmatprep.mubr.f32.mxu0 0.0
    %353 = vmatmul.mubr.f32.gmra.mrb[0].mxu0 %v133
    %v354 = vpop.f32.mrb[0].mxu0
    %v355 = vadd.f32 0.0, %v354
    %v356 = vpop.f32.mrb[0].mxu0
    %357 = vmatprep.mubr.f32.mxu0 0.0
    %358 = vmatmul.mubr.f32.gmra.mrb[0].mxu0 %v136
    %v359 = vpop.f32.mrb[0].mxu0
    %v360 = vadd.f32 0.0, %v359
    %v361 = vpop.f32.mrb[0].mxu0
    %362 = vmatprep.mubr.f32.mxu0 0.0
    %363 = vmatmul.mubr.f32.gmra.mrb[0].mxu0 %v139
    %v364 = vpop.f32.mrb[0].mxu0
    %v365 = vadd.f32 0.0, %v364
    %v366 = vpop.f32.mrb[0].mxu0
    %367 = vmatprep.mubr.f32.mxu0 0.0
    %368 = vmatmul.mubr.f32.gmra.mrb[0].mxu0 %v142
    %v369 = vpop.f32.mrb[0].mxu0
    %v370 = vadd.f32 0.0, %v369
    %v371 = vpop.f32.mrb[0].mxu0
    %372 = vmatprep.mubr.f32.mxu0 0.0
    %373 = vmatmul.mubr.f32.gmra.mrb[0].mxu0 %v145
    %v374 = vpop.f32.mrb[0].mxu0
    %v375 = vadd.f32 0.0, %v374
    %v376 = vpop.f32.mrb[0].mxu0
    %377 = vmatprep.mubr.f32.mxu0 0.0
    %378 = vmatmul.mubr.f32.gmra.mrb[0].mxu0 %v148
    %v379 = vpop.f32.mrb[0].mxu0
    %v380 = vadd.f32 0.0, %v379
    %v381 = vpop.f32.mrb[0].mxu0
    %382 = vmatprep.mubr.f32.mxu0 0.0
    %383 = vmatmul.mubr.f32.gmra.mrb[0].mxu0 %v151
    %v384 = vpop.f32.mrb[0].mxu0
    %v385 = vadd.f32 0.0, %v384
    %v386 = vpop.f32.mrb[0].mxu0
    %387 = vmatprep.mubr.f32.mxu0 0.0
    %388 = vmatmul.mubr.f32.gmra.mrb[0].mxu0 %v154
    %v389 = vpop.f32.mrb[0].mxu0
    %v390 = vadd.f32 0.0, %v389
    %v391 = vpop.f32.mrb[0].mxu0
    %392 = vmatprep.mubr.f32.mxu0 0.0
    %393 = vmatmul.mubr.f32.gmra.mrb[0].mxu0 %v157
    %v394 = vpop.f32.mrb[0].mxu0
    %v395 = vadd.f32 0.0, %v394
    %v396 = vpop.f32.mrb[0].mxu0
    %397 = vmatprep.mubr.f32.mxu0 0.0
    %398 = vmatmul.mubr.f32.gmra.mrb[0].mxu0 %v160
    %v399 = vpop.f32.mrb[0].mxu0
    %v400 = vadd.f32 0.0, %v399
    %v401 = vpop.f32.mrb[0].mxu0
    %402 = vmatprep.mubr.f32.mxu0 0.0
    %403 = vmatmul.mubr.f32.gmra.mrb[0].mxu0 %v163
    %v404 = vpop.f32.mrb[0].mxu0
    %v405 = vadd.f32 0.0, %v404
    %v406 = vpop.f32.mrb[0].mxu0
    %407 = vmatprep.mubr.f32.mxu0 0.0
    %408 = vmatmul.mubr.f32.gmra.mrb[0].mxu0 %v166
    %v409 = vpop.f32.mrb[0].mxu0
    %v410 = vadd.f32 0.0, %v409
    %v411 = vpop.f32.mrb[0].mxu0
    %412 = vmatprep.mubr.f32.mxu0 0.0
    %413 = vmatmul.mubr.f32.gmra.mrb[0].mxu0 %v169
    %v414 = vpop.f32.mrb[0].mxu0
    %v415 = vadd.f32 0.0, %v414
    %v416 = vpop.f32.mrb[0].mxu0
    %417 = vmatprep.mubr.f32.mxu0 0.0
    %418 = vmatmul.mubr.f32.gmra.mrb[0].mxu0 %v172
    %v419 = vpop.f32.mrb[0].mxu0
    %v420 = vadd.f32 0.0, %v419
    %v421 = vpop.f32.mrb[0].mxu0
    %422 = vmatprep.mubr.f32.mxu0 0.0
    %423 = vmatmul.mubr.f32.gmra.mrb[0].mxu0 %v175
    %v424 = vpop.f32.mrb[0].mxu0
    %v425 = vadd.f32 0.0, %v424
    %v426 = vpop.f32.mrb[0].mxu0
    %427 = vmatprep.mubr.f32.mxu0 0.0
    %428 = vmatmul.mubr.f32.gmra.mrb[0].mxu0 %v178
    %v429 = vpop.f32.mrb[0].mxu0
    %v430 = vadd.f32 0.0, %v429
    %v431 = vpop.f32.mrb[0].mxu0
    %432 = vmatprep.mubr.f32.mxu0 0.0
    %433 = vmatmul.mubr.f32.gmra.mrb[0].mxu0 %v181
    %v434 = vpop.f32.mrb[0].mxu0
    %v435 = vadd.f32 0.0, %v434
    %v436 = vpop.f32.mrb[0].mxu0
    %437 = vmatprep.mubr.f32.mxu0 0.0
    %438 = vmatmul.mubr.f32.gmra.mrb[0].mxu0 %v184
    %v439 = vpop.f32.mrb[0].mxu0
    %v440 = vadd.f32 0.0, %v439
    %v441 = vpop.f32.mrb[0].mxu0
    %442 = vmatprep.mubr.f32.mxu0 0.0
    %443 = vmatmul.mubr.f32.gmra.mrb[0].mxu0 %v187
    %v444 = vpop.f32.mrb[0].mxu0
    %v445 = vadd.f32 0.0, %v444
    %v446 = vpop.f32.mrb[0].mxu0
    %447 = vmatprep.mubr.f32.mxu0 0.0
    %448 = vmatmul.mubr.f32.gmra.mrb[0].mxu0 %v190
    %v449 = vpop.f32.mrb[0].mxu0
    %v450 = vadd.f32 0.0, %v449
    %v451 = vpop.f32.mrb[0].mxu0
    %452 = vmatprep.mubr.f32.mxu0 0.0
    %453 = vmatmul.mubr.f32.gmra.mrb[0].mxu0 %v193
    %v454 = vpop.f32.mrb[0].mxu0
    %v455 = vadd.f32 0.0, %v454
    %v456 = vpop.f32.mrb[0].mxu0
    %457 = vmatprep.mubr.f32.mxu0 0.0
    %458 = vmatmul.mubr.f32.gmra.mrb[0].mxu0 %v196
    %v459 = vpop.f32.mrb[0].mxu0
    %v460 = vadd.f32 0.0, %v459
    %v461 = vpop.f32.mrb[0].mxu0
    %462 = vmatprep.mubr.f32.mxu0 0.0
    %463 = vmatmul.mubr.f32.gmra.mrb[0].mxu0 %v199
    %v464 = vpop.f32.mrb[0].mxu0
    %v465 = vadd.f32 0.0, %v464
    %v466 = vpop.f32.mrb[0].mxu0
    %467 = vmatprep.mubr.f32.mxu0 0.0
    %468 = vmatmul.mubr.f32.gmra.mrb[0].mxu0 %v202
    %v469 = vpop.f32.mrb[0].mxu0
    %v470 = vadd.f32 0.0, %v469
    %v471 = vpop.f32.mrb[0].mxu0
    %472 = vmatprep.mubr.f32.mxu0 0.0
    %473 = vmatmul.mubr.f32.gmra.mrb[0].mxu0 %v205
    %v474 = vpop.f32.mrb[0].mxu0
    %v475 = vadd.f32 0.0, %v474
    %v476 = vpop.f32.mrb[0].mxu0
    %477 = vmatprep.mubr.f32.mxu0 0.0
    %478 = vmatmul.mubr.f32.gmra.mrb[0].mxu0 %v208
    %v479 = vpop.f32.mrb[0].mxu0
    %v480 = vadd.f32 0.0, %v479
    %v481 = vpop.f32.mrb[0].mxu0
    %482 = vmatprep.mubr.f32.mxu0 0.0
    %483 = vmatmul.mubr.f32.gmra.mrb[0].mxu0 %v211
    %v484 = vpop.f32.mrb[0].mxu0
    %v485 = vadd.f32 0.0, %v484
    %v486 = vpop.f32.mrb[0].mxu0
    %487 = vmatprep.mubr.f32.mxu0 0.0
    %488 = vmatmul.mubr.f32.gmra.mrb[0].mxu0 %v214
    %v489 = vpop.f32.mrb[0].mxu0
    %v490 = vadd.f32 0.0, %v489
    %v491 = vpop.f32.mrb[0].mxu0
    %492 = vmatprep.mubr.f32.mxu0 0.0
    %493 = vmatmul.mubr.f32.gmra.mrb[0].mxu0 %v217
    %v494 = vpop.f32.mrb[0].mxu0
    %v495 = vadd.f32 0.0, %v494
    %v496 = vpop.f32.mrb[0].mxu0
    %497 = vmatprep.mubr.f32.mxu0 0.0
    %498 = vmatmul.mubr.f32.gmra.mrb[0].mxu0 %v220
    %v499 = vpop.f32.mrb[0].mxu0
    %v500 = vadd.f32 0.0, %v499
    %v501 = vpop.f32.mrb[0].mxu0
    %502 = vmatprep.mubr.f32.mxu0 0.0
    %503 = vmatmul.mubr.f32.gmra.mrb[0].mxu0 %v223
    %v504 = vpop.f32.mrb[0].mxu0
    %v505 = vadd.f32 0.0, %v504
    %v506 = vpop.f32.mrb[0].mxu0
    %507 = vmatprep.mubr.f32.mxu0 0.0
    %508 = vmatmul.mubr.f32.gmra.mrb[0].mxu0 %v226
    %v509 = vpop.f32.mrb[0].mxu0
    %v510 = vadd.f32 0.0, %v509
    %v511 = vpop.f32.mrb[0].mxu0
    %512 = vmatprep.mubr.f32.mxu0 0.0
    %513 = vmatmul.mubr.f32.gmra.mrb[0].mxu0 %v229
    %v514 = vpop.f32.mrb[0].mxu0
    %v515 = vadd.f32 0.0, %v514
    %v516 = vpop.f32.mrb[0].mxu0
    %517 = vmatprep.mubr.f32.mxu0 0.0
    %518 = vmatmul.mubr.f32.gmra.mrb[0].mxu0 %v232
    %v519 = vpop.f32.mrb[0].mxu0
    %v520 = vadd.f32 0.0, %v519
    %v521 = vpop.f32.mrb[0].mxu0
    %522 = vmatprep.mubr.f32.mxu0 0.0
    %523 = vmatmul.mubr.f32.gmra.mrb[0].mxu0 %v235
    %v524 = vpop.f32.mrb[0].mxu0
    %v525 = vadd.f32 0.0, %v524
    %v526 = vpop.f32.mrb[0].mxu0
    %527 = vmatprep.mubr.f32.mxu0 0.0
    %528 = vmatmul.mubr.f32.gmra.mrb[0].mxu0 %v238
    %v529 = vpop.f32.mrb[0].mxu0
    %v530 = vadd.f32 0.0, %v529
    %v531 = vpop.f32.mrb[0].mxu0
    %532 = vmatprep.mubr.f32.mxu0 0.0
    %533 = vmatmul.mubr.f32.gmra.mrb[0].mxu0 %v241
    %v534 = vpop.f32.mrb[0].mxu0
    %v535 = vadd.f32 0.0, %v534
    %v536 = vpop.f32.mrb[0].mxu0
    %537 = vmatprep.mubr.f32.mxu0 0.0
    %538 = vmatmul.mubr.f32.gmra.mrb[0].mxu0 %v244
    %v539 = vpop.f32.mrb[0].mxu0
    %v540 = vadd.f32 0.0, %v539
    %v541 = vpop.f32.mrb[0].mxu0
    %542 = vmatprep.mubr.f32.mxu0 0.0
    %543 = vmatmul.mubr.f32.gmra.mrb[0].mxu0 %v247
    %v544 = vpop.f32.mrb[0].mxu0
    %v545 = vadd.f32 0.0, %v544
    %v546 = vpop.f32.mrb[0].mxu0
    %547 = vmatprep.mubr.f32.mxu0 0.0
    %548 = vmatmul.mubr.f32.gmra.mrb[0].mxu0 %v250
    %v549 = vpop.f32.mrb[0].mxu0
    %v550 = vadd.f32 0.0, %v549
    %v551 = vpop.f32.mrb[0].mxu0
    %552 = vmatprep.mubr.f32.mxu0 0.0
    %553 = vmatmul.mubr.f32.gmra.mrb[0].mxu0 %v253
    %v554 = vpop.f32.mrb[0].mxu0
    %v555 = vadd.f32 0.0, %v554
    %v556 = vpop.f32.mrb[0].mxu0
    %557 = vmatprep.mubr.f32.mxu0 0.0
    %558 = vmatmul.mubr.f32.gmra.mrb[0].mxu0 %v256
    %v559 = vpop.f32.mrb[0].mxu0
    %v560 = vadd.f32 0.0, %v559
    %v561 = vpop.f32.mrb[0].mxu0
    %562 = vmatprep.mubr.f32.mxu0 0.0
    %563 = vmatmul.mubr.f32.gmra.mrb[0].mxu0 %v259
    %v564 = vpop.f32.mrb[0].mxu0
    %v565 = vadd.f32 0.0, %v564
    %v566 = vpop.f32.mrb[0].mxu0
    %567 = vmatprep.mubr.f32.mxu0 0.0
    %568 = vmatmul.mubr.f32.gmra.mrb[0].mxu0 %v262
    %v569 = vpop.f32.mrb[0].mxu0
    %v570 = vadd.f32 0.0, %v569
    %v571 = vpop.f32.mrb[0].mxu0
    %572 = vmatprep.mubr.f32.mxu0 0.0
    %573 = vmatmul.mubr.f32.gmra.mrb[0].mxu0 %v265
    %v574 = vpop.f32.mrb[0].mxu0
    %v575 = vadd.f32 0.0, %v574
    %v576 = vpop.f32.mrb[0].mxu0
    %577 = vmatprep.mubr.f32.mxu0 0.0
    %578 = vmatmul.mubr.f32.gmra.mrb[0].mxu0 %v268
    %v579 = vpop.f32.mrb[0].mxu0
    %v580 = vadd.f32 0.0, %v579
    %v581 = vpop.f32.mrb[0].mxu0
    %582 = vmatprep.mubr.f32.mxu0 0.0
    %583 = vmatmul.mubr.f32.gmra.mrb[0].mxu0 %v271
    %v584 = vpop.f32.mrb[0].mxu0
    %v585 = vadd.f32 0.0, %v584
    %v586 = vpop.f32.mrb[0].mxu0
    %587 = vmatprep.mubr.f32.mxu0 0.0
    %588 = vmatmul.mubr.f32.gmra.mrb[0].mxu0 %v274
    %v589 = vpop.f32.mrb[0].mxu0
    %v590 = vadd.f32 0.0, %v589
    %v591 = vpop.f32.mrb[0].mxu0
    %592 = vmatprep.mubr.f32.mxu0 0.0
    %593 = vmatmul.mubr.f32.gmra.mrb[0].mxu0 %v277
    %v594 = vpop.f32.mrb[0].mxu0
    %v595 = vadd.f32 0.0, %v594
    %v596 = vpop.f32.mrb[0].mxu0
    %597 = vmatprep.mubr.f32.mxu0 0.0
    %598 = vmatmul.mubr.f32.gmra.mrb[0].mxu0 %v280
    %v599 = vpop.f32.mrb[0].mxu0
    %v600 = vadd.f32 0.0, %v599
    %v601 = vpop.f32.mrb[0].mxu0
    %602 = vmatprep.mubr.f32.mxu0 0.0
    %603 = vmatmul.mubr.f32.gmra.mrb[0].mxu0 %v283
    %v604 = vpop.f32.mrb[0].mxu0
    %v605 = vadd.f32 0.0, %v604
    %v606 = vpop.f32.mrb[0].mxu0
    %607 = vmatprep.mubr.f32.mxu0 0.0
    %608 = vmatmul.mubr.f32.gmra.mrb[0].mxu0 %v286
    %v609 = vpop.f32.mrb[0].mxu0
    %v610 = vadd.f32 0.0, %v609
    %v611 = vpop.f32.mrb[0].mxu0
    %612 = vdwg.mxu0
    %v613 = vrot.slane %v355, 1
    %v614 = vrot.slane %v360, 1
    %v615 = vrot.slane %v365, 1
    %v616 = vrot.slane %v370, 1
    %v617 = vrot.slane %v375, 1
    %v618 = vrot.slane %v380, 1
    %v619 = vrot.slane %v385, 1
    %v620 = vrot.slane %v390, 1
    %v621 = vrot.slane %v395, 1
    %v622 = vrot.slane %v400, 1
    %v623 = vrot.slane %v405, 1
    %v624 = vrot.slane %v410, 1
    %v625 = vrot.slane %v415, 1
    %v626 = vrot.slane %v420, 1
    %v627 = vrot.slane %v425, 1
    %v628 = vrot.slane %v430, 1
    %v629 = vrot.slane %v435, 1
    %v630 = vrot.slane %v440, 1
    %v631 = vrot.slane %v445, 1
    %v632 = vrot.slane %v450, 1
    %v633 = vrot.slane %v455, 1
    %v634 = vrot.slane %v460, 1
    %v635 = vrot.slane %v465, 1
    %v636 = vrot.slane %v470, 1
    %v637 = vrot.slane %v475, 1
    %v638 = vrot.slane %v480, 1
    %v639 = vrot.slane %v485, 1
    %v640 = vrot.slane %v490, 1
    %v641 = vrot.slane %v495, 1
    %v642 = vrot.slane %v500, 1
    %v643 = vrot.slane %v505, 1
    %v644 = vrot.slane %v510, 1
    %v645 = vrot.slane %v515, 1
    %v646 = vrot.slane %v520, 1
    %v647 = vrot.slane %v525, 1
    %v648 = vrot.slane %v530, 1
    %v649 = vrot.slane %v535, 1
    %v650 = vrot.slane %v540, 1
    %v651 = vrot.slane %v545, 1
    %v652 = vrot.slane %v550, 1
    %v653 = vrot.slane %v555, 1
    %v654 = vrot.slane %v560, 1
    %v655 = vrot.slane %v565, 1
    %v656 = vrot.slane %v570, 1
    %v657 = vrot.slane %v575, 1
    %v658 = vrot.slane %v580, 1
    %v659 = vrot.slane %v585, 1
    %v660 = vrot.slane %v590, 1
    %v661 = vrot.slane %v595, 1
    %v662 = vrot.slane %v600, 1
    %v663 = vrot.slane %v605, 1
    %v664 = vrot.slane %v610, 1
    %v665 = vlaneseq
    %v666 = vshrl.u32 %v665, 7
    %vm667 = vcmp.lt.s32.totalorder %v666, 7
    %v668 = vsel %vm667, %v663, %v664
    %v669 = vsel %vm667, %v662, %v663
    %v670 = vsel %vm667, %v661, %v662
    %v671 = vsel %vm667, %v660, %v661
    %v672 = vsel %vm667, %v659, %v660
    %v673 = vsel %vm667, %v658, %v659
    %v674 = vsel %vm667, %v657, %v658
    %v675 = vsel %vm667, %v656, %v657
    %v676 = vsel %vm667, %v655, %v656
    %v677 = vsel %vm667, %v654, %v655
    %v678 = vsel %vm667, %v653, %v654
    %v679 = vsel %vm667, %v652, %v653
    %v680 = vsel %vm667, %v651, %v652
    %v681 = vsel %vm667, %v650, %v651
    %v682 = vsel %vm667, %v649, %v650
    %v683 = vsel %vm667, %v648, %v649
    %v684 = vsel %vm667, %v647, %v648
    %v685 = vsel %vm667, %v646, %v647
    %v686 = vsel %vm667, %v645, %v646
    %v687 = vsel %vm667, %v644, %v645
    %v688 = vsel %vm667, %v643, %v644
    %v689 = vsel %vm667, %v642, %v643
    %v690 = vsel %vm667, %v641, %v642
    %v691 = vsel %vm667, %v640, %v641
    %v692 = vsel %vm667, %v639, %v640
    %v693 = vsel %vm667, %v638, %v639
    %v694 = vsel %vm667, %v637, %v638
    %v695 = vsel %vm667, %v636, %v637
    %v696 = vsel %vm667, %v635, %v636
    %v697 = vsel %vm667, %v634, %v635
    %v698 = vsel %vm667, %v633, %v634
    %v699 = vsel %vm667, %v632, %v633
    %v700 = vsel %vm667, %v631, %v632
    %v701 = vsel %vm667, %v630, %v631
    %v702 = vsel %vm667, %v629, %v630
    %v703 = vsel %vm667, %v628, %v629
    %v704 = vsel %vm667, %v627, %v628
    %v705 = vsel %vm667, %v626, %v627
    %v706 = vsel %vm667, %v625, %v626
    %v707 = vsel %vm667, %v624, %v625
    %v708 = vsel %vm667, %v623, %v624
    %v709 = vsel %vm667, %v622, %v623
    %v710 = vsel %vm667, %v621, %v622
    %v711 = vsel %vm667, %v620, %v621
    %v712 = vsel %vm667, %v619, %v620
    %v713 = vsel %vm667, %v618, %v619
    %v714 = vsel %vm667, %v617, %v618
    %v715 = vsel %vm667, %v616, %v617
    %v716 = vsel %vm667, %v615, %v616
    %v717 = vsel %vm667, %v614, %v615
    %v718 = vsel %vm667, %v613, %v614
    %v719 = vsel %vm667, %v664, %v613
    %v720 = vrot.slane %v355, 2
    %v721 = vrot.slane %v360, 2
    %v722 = vrot.slane %v365, 2
    %v723 = vrot.slane %v370, 2
    %v724 = vrot.slane %v375, 2
    %v725 = vrot.slane %v380, 2
    %v726 = vrot.slane %v385, 2
    %v727 = vrot.slane %v390, 2
    %v728 = vrot.slane %v395, 2
    %v729 = vrot.slane %v400, 2
    %v730 = vrot.slane %v405, 2
    %v731 = vrot.slane %v410, 2
    %v732 = vrot.slane %v415, 2
    %v733 = vrot.slane %v420, 2
    %v734 = vrot.slane %v425, 2
    %v735 = vrot.slane %v430, 2
    %v736 = vrot.slane %v435, 2
    %v737 = vrot.slane %v440, 2
    %v738 = vrot.slane %v445, 2
    %v739 = vrot.slane %v450, 2
    %v740 = vrot.slane %v455, 2
    %v741 = vrot.slane %v460, 2
    %v742 = vrot.slane %v465, 2
    %v743 = vrot.slane %v470, 2
    %v744 = vrot.slane %v475, 2
    %v745 = vrot.slane %v480, 2
    %v746 = vrot.slane %v485, 2
    %v747 = vrot.slane %v490, 2
    %v748 = vrot.slane %v495, 2
    %v749 = vrot.slane %v500, 2
    %v750 = vrot.slane %v505, 2
    %v751 = vrot.slane %v510, 2
    %v752 = vrot.slane %v515, 2
    %v753 = vrot.slane %v520, 2
    %v754 = vrot.slane %v525, 2
    %v755 = vrot.slane %v530, 2
    %v756 = vrot.slane %v535, 2
    %v757 = vrot.slane %v540, 2
    %v758 = vrot.slane %v545, 2
    %v759 = vrot.slane %v550, 2
    %v760 = vrot.slane %v555, 2
    %v761 = vrot.slane %v560, 2
    %v762 = vrot.slane %v565, 2
    %v763 = vrot.slane %v570, 2
    %v764 = vrot.slane %v575, 2
    %v765 = vrot.slane %v580, 2
    %v766 = vrot.slane %v585, 2
    %v767 = vrot.slane %v590, 2
    %v768 = vrot.slane %v595, 2
    %v769 = vrot.slane %v600, 2
    %v770 = vrot.slane %v605, 2
    %v771 = vrot.slane %v610, 2
    %vm772 = vcmp.lt.s32.totalorder %v666, 6
    %v773 = vsel %vm772, %v770, %v771
    %v774 = vsel %vm772, %v769, %v770
    %v775 = vsel %vm772, %v768, %v769
    %v776 = vsel %vm772, %v767, %v768
    %v777 = vsel %vm772, %v766, %v767
    %v778 = vsel %vm772, %v765, %v766
    %v779 = vsel %vm772, %v764, %v765
    %v780 = vsel %vm772, %v763, %v764
    %v781 = vsel %vm772, %v762, %v763
    %v782 = vsel %vm772, %v761, %v762
    %v783 = vsel %vm772, %v760, %v761
    %v784 = vsel %vm772, %v759, %v760
    %v785 = vsel %vm772, %v758, %v759
    %v786 = vsel %vm772, %v757, %v758
    %v787 = vsel %vm772, %v756, %v757
    %v788 = vsel %vm772, %v755, %v756
    %v789 = vsel %vm772, %v754, %v755
    %v790 = vsel %vm772, %v753, %v754
    %v791 = vsel %vm772, %v752, %v753
    %v792 = vsel %vm772, %v751, %v752
    %v793 = vsel %vm772, %v750, %v751
    %v794 = vsel %vm772, %v749, %v750
    %v795 = vsel %vm772, %v748, %v749
    %v796 = vsel %vm772, %v747, %v748
    %v797 = vsel %vm772, %v746, %v747
    %v798 = vsel %vm772, %v745, %v746
    %v799 = vsel %vm772, %v744, %v745
    %v800 = vsel %vm772, %v743, %v744
    %v801 = vsel %vm772, %v742, %v743
    %v802 = vsel %vm772, %v741, %v742
    %v803 = vsel %vm772, %v740, %v741
    %v804 = vsel %vm772, %v739, %v740
    %v805 = vsel %vm772, %v738, %v739
    %v806 = vsel %vm772, %v737, %v738
    %v807 = vsel %vm772, %v736, %v737
    %v808 = vsel %vm772, %v735, %v736
    %v809 = vsel %vm772, %v734, %v735
    %v810 = vsel %vm772, %v733, %v734
    %v811 = vsel %vm772, %v732, %v733
    %v812 = vsel %vm772, %v731, %v732
    %v813 = vsel %vm772, %v730, %v731
    %v814 = vsel %vm772, %v729, %v730
    %v815 = vsel %vm772, %v728, %v729
    %v816 = vsel %vm772, %v727, %v728
    %v817 = vsel %vm772, %v726, %v727
    %v818 = vsel %vm772, %v725, %v726
    %v819 = vsel %vm772, %v724, %v725
    %v820 = vsel %vm772, %v723, %v724
    %v821 = vsel %vm772, %v722, %v723
    %v822 = vsel %vm772, %v721, %v722
    %v823 = vsel %vm772, %v720, %v721
    %v824 = vsel %vm772, %v771, %v720
    %v825 = vrot.slane %v355, 3
    %v826 = vrot.slane %v360, 3
    %v827 = vrot.slane %v365, 3
    %v828 = vrot.slane %v370, 3
    %v829 = vrot.slane %v375, 3
    %v830 = vrot.slane %v380, 3
    %v831 = vrot.slane %v385, 3
    %v832 = vrot.slane %v390, 3
    %v833 = vrot.slane %v395, 3
    %v834 = vrot.slane %v400, 3
    %v835 = vrot.slane %v405, 3
    %v836 = vrot.slane %v410, 3
    %v837 = vrot.slane %v415, 3
    %v838 = vrot.slane %v420, 3
    %v839 = vrot.slane %v425, 3
    %v840 = vrot.slane %v430, 3
    %v841 = vrot.slane %v435, 3
    %v842 = vrot.slane %v440, 3
    %v843 = vrot.slane %v445, 3
    %v844 = vrot.slane %v450, 3
    %v845 = vrot.slane %v455, 3
    %v846 = vrot.slane %v460, 3
    %v847 = vrot.slane %v465, 3
    %v848 = vrot.slane %v470, 3
    %v849 = vrot.slane %v475, 3
    %v850 = vrot.slane %v480, 3
    %v851 = vrot.slane %v485, 3
    %v852 = vrot.slane %v490, 3
    %v853 = vrot.slane %v495, 3
    %v854 = vrot.slane %v500, 3
    %v855 = vrot.slane %v505, 3
    %v856 = vrot.slane %v510, 3
    %v857 = vrot.slane %v515, 3
    %v858 = vrot.slane %v520, 3
    %v859 = vrot.slane %v525, 3
    %v860 = vrot.slane %v530, 3
    %v861 = vrot.slane %v535, 3
    %v862 = vrot.slane %v540, 3
    %v863 = vrot.slane %v545, 3
    %v864 = vrot.slane %v550, 3
    %v865 = vrot.slane %v555, 3
    %v866 = vrot.slane %v560, 3
    %v867 = vrot.slane %v565, 3
    %v868 = vrot.slane %v570, 3
    %v869 = vrot.slane %v575, 3
    %v870 = vrot.slane %v580, 3
    %v871 = vrot.slane %v585, 3
    %v872 = vrot.slane %v590, 3
    %v873 = vrot.slane %v595, 3
    %v874 = vrot.slane %v600, 3
    %v875 = vrot.slane %v605, 3
    %v876 = vrot.slane %v610, 3
    %vm877 = vcmp.lt.s32.totalorder %v666, 5
    %v878 = vsel %vm877, %v875, %v876
    %v879 = vsel %vm877, %v874, %v875
    %v880 = vsel %vm877, %v873, %v874
    %v881 = vsel %vm877, %v872, %v873
    %v882 = vsel %vm877, %v871, %v872
    %v883 = vsel %vm877, %v870, %v871
    %v884 = vsel %vm877, %v869, %v870
    %v885 = vsel %vm877, %v868, %v869
    %v886 = vsel %vm877, %v867, %v868
    %v887 = vsel %vm877, %v866, %v867
    %v888 = vsel %vm877, %v865, %v866
    %v889 = vsel %vm877, %v864, %v865
    %v890 = vsel %vm877, %v863, %v864
    %v891 = vsel %vm877, %v862, %v863
    %v892 = vsel %vm877, %v861, %v862
    %v893 = vsel %vm877, %v860, %v861
    %v894 = vsel %vm877, %v859, %v860
    %v895 = vsel %vm877, %v858, %v859
    %v896 = vsel %vm877, %v857, %v858
    %v897 = vsel %vm877, %v856, %v857
    %v898 = vsel %vm877, %v855, %v856
    %v899 = vsel %vm877, %v854, %v855
    %v900 = vsel %vm877, %v853, %v854
    %v901 = vsel %vm877, %v852, %v853
    %v902 = vsel %vm877, %v851, %v852
    %v903 = vsel %vm877, %v850, %v851
    %v904 = vsel %vm877, %v849, %v850
    %v905 = vsel %vm877, %v848, %v849
    %v906 = vsel %vm877, %v847, %v848
    %v907 = vsel %vm877, %v846, %v847
    %v908 = vsel %vm877, %v845, %v846
    %v909 = vsel %vm877, %v844, %v845
    %v910 = vsel %vm877, %v843, %v844
    %v911 = vsel %vm877, %v842, %v843
    %v912 = vsel %vm877, %v841, %v842
    %v913 = vsel %vm877, %v840, %v841
    %v914 = vsel %vm877, %v839, %v840
    %v915 = vsel %vm877, %v838, %v839
    %v916 = vsel %vm877, %v837, %v838
    %v917 = vsel %vm877, %v836, %v837
    %v918 = vsel %vm877, %v835, %v836
    %v919 = vsel %vm877, %v834, %v835
    %v920 = vsel %vm877, %v833, %v834
    %v921 = vsel %vm877, %v832, %v833
    %v922 = vsel %vm877, %v831, %v832
    %v923 = vsel %vm877, %v830, %v831
    %v924 = vsel %vm877, %v829, %v830
    %v925 = vsel %vm877, %v828, %v829
    %v926 = vsel %vm877, %v827, %v828
    %v927 = vsel %vm877, %v826, %v827
    %v928 = vsel %vm877, %v825, %v826
    %v929 = vsel %vm877, %v876, %v825
    %982 = vrot.lane.b32.xlu0 %v718, 32
    %v983 = vpop.permute.xlu0 %982
    %984 = vrot.lane.b32.xlu0 %v717, 32
    %v985 = vpop.permute.xlu0 %984
    %986 = vrot.lane.b32.xlu0 %v716, 32
    %v987 = vpop.permute.xlu0 %986
    %988 = vrot.lane.b32.xlu0 %v715, 32
    %v989 = vpop.permute.xlu0 %988
    %990 = vrot.lane.b32.xlu0 %v714, 32
    %v991 = vpop.permute.xlu0 %990
    %992 = vrot.lane.b32.xlu0 %v713, 32
    %v993 = vpop.permute.xlu0 %992
    %994 = vrot.lane.b32.xlu0 %v712, 32
    %v995 = vpop.permute.xlu0 %994
    %996 = vrot.lane.b32.xlu0 %v711, 32
    %v997 = vpop.permute.xlu0 %996
    %998 = vrot.lane.b32.xlu0 %v710, 32
    %v999 = vpop.permute.xlu0 %998
    %1000 = vrot.lane.b32.xlu0 %v709, 32
    %v1001 = vpop.permute.xlu0 %1000
    %1002 = vrot.lane.b32.xlu0 %v708, 32
    %v1003 = vpop.permute.xlu0 %1002
    %1004 = vrot.lane.b32.xlu0 %v707, 32
    %v1005 = vpop.permute.xlu0 %1004
    %1006 = vrot.lane.b32.xlu0 %v706, 32
    %v1007 = vpop.permute.xlu0 %1006
    %1008 = vrot.lane.b32.xlu0 %v705, 32
    %v1009 = vpop.permute.xlu0 %1008
    %1010 = vrot.lane.b32.xlu0 %v704, 32
    %v1011 = vpop.permute.xlu0 %1010
    %1012 = vrot.lane.b32.xlu0 %v703, 32
    %v1013 = vpop.permute.xlu0 %1012
    %1014 = vrot.lane.b32.xlu0 %v702, 32
    %v1015 = vpop.permute.xlu0 %1014
    %1016 = vrot.lane.b32.xlu0 %v701, 32
    %v1017 = vpop.permute.xlu0 %1016
    %1018 = vrot.lane.b32.xlu0 %v700, 32
    %v1019 = vpop.permute.xlu0 %1018
    %1020 = vrot.lane.b32.xlu0 %v699, 32
    %v1021 = vpop.permute.xlu0 %1020
    %1022 = vrot.lane.b32.xlu0 %v698, 32
    %v1023 = vpop.permute.xlu0 %1022
    %1024 = vrot.lane.b32.xlu0 %v697, 32
    %v1025 = vpop.permute.xlu0 %1024
    %1026 = vrot.lane.b32.xlu0 %v696, 32
    %v1027 = vpop.permute.xlu0 %1026
    %1028 = vrot.lane.b32.xlu0 %v695, 32
    %v1029 = vpop.permute.xlu0 %1028
    %1030 = vrot.lane.b32.xlu0 %v694, 32
    %v1031 = vpop.permute.xlu0 %1030
    %1032 = vrot.lane.b32.xlu0 %v693, 32
    %v1033 = vpop.permute.xlu0 %1032
    %1034 = vrot.lane.b32.xlu0 %v692, 32
    %v1035 = vpop.permute.xlu0 %1034
    %1036 = vrot.lane.b32.xlu0 %v691, 32
    %v1037 = vpop.permute.xlu0 %1036
    %1038 = vrot.lane.b32.xlu0 %v690, 32
    %v1039 = vpop.permute.xlu0 %1038
    %1040 = vrot.lane.b32.xlu0 %v689, 32
    %v1041 = vpop.permute.xlu0 %1040
    %1042 = vrot.lane.b32.xlu0 %v688, 32
    %v1043 = vpop.permute.xlu0 %1042
    %1044 = vrot.lane.b32.xlu0 %v687, 32
    %v1045 = vpop.permute.xlu0 %1044
    %1046 = vrot.lane.b32.xlu0 %v686, 32
    %v1047 = vpop.permute.xlu0 %1046
    %1048 = vrot.lane.b32.xlu0 %v685, 32
    %v1049 = vpop.permute.xlu0 %1048
    %1050 = vrot.lane.b32.xlu0 %v684, 32
    %v1051 = vpop.permute.xlu0 %1050
    %1052 = vrot.lane.b32.xlu0 %v683, 32
    %v1053 = vpop.permute.xlu0 %1052
    %1054 = vrot.lane.b32.xlu0 %v682, 32
    %v1055 = vpop.permute.xlu0 %1054
    %1056 = vrot.lane.b32.xlu0 %v681, 32
    %v1057 = vpop.permute.xlu0 %1056
    %1058 = vrot.lane.b32.xlu0 %v680, 32
    %v1059 = vpop.permute.xlu0 %1058
    %1060 = vrot.lane.b32.xlu0 %v679, 32
    %v1061 = vpop.permute.xlu0 %1060
    %1062 = vrot.lane.b32.xlu0 %v678, 32
    %v1063 = vpop.permute.xlu0 %1062
    %1064 = vrot.lane.b32.xlu0 %v677, 32
    %v1065 = vpop.permute.xlu0 %1064
    %1066 = vrot.lane.b32.xlu0 %v676, 32
    %v1067 = vpop.permute.xlu0 %1066
    %1068 = vrot.lane.b32.xlu0 %v675, 32
    %v1069 = vpop.permute.xlu0 %1068
    %1070 = vrot.lane.b32.xlu0 %v674, 32
    %v1071 = vpop.permute.xlu0 %1070
    %1072 = vrot.lane.b32.xlu0 %v673, 32
    %v1073 = vpop.permute.xlu0 %1072
    %1074 = vrot.lane.b32.xlu0 %v672, 32
    %v1075 = vpop.permute.xlu0 %1074
    %1076 = vrot.lane.b32.xlu0 %v671, 32
    %v1077 = vpop.permute.xlu0 %1076
    %1078 = vrot.lane.b32.xlu0 %v670, 32
    %v1079 = vpop.permute.xlu0 %1078
    %1080 = vrot.lane.b32.xlu0 %v669, 32
    %v1081 = vpop.permute.xlu0 %1080
    %1082 = vrot.lane.b32.xlu0 %v668, 32
    %v1083 = vpop.permute.xlu0 %1082
    %1084 = vrot.lane.b32.xlu0 %v719, 32
    %v1085 = vpop.permute.xlu0 %1084
    %1190 = vrot.lane.b32.xlu0 %v823, 64
    %v1191 = vpop.permute.xlu0 %1190
    %1192 = vrot.lane.b32.xlu0 %v822, 64
    %v1193 = vpop.permute.xlu0 %1192
    %1194 = vrot.lane.b32.xlu0 %v821, 64
    %v1195 = vpop.permute.xlu0 %1194
    %1196 = vrot.lane.b32.xlu0 %v820, 64
    %v1197 = vpop.permute.xlu0 %1196
    %1198 = vrot.lane.b32.xlu0 %v819, 64
    %v1199 = vpop.permute.xlu0 %1198
    %1200 = vrot.lane.b32.xlu0 %v818, 64
    %v1201 = vpop.permute.xlu0 %1200
    %1202 = vrot.lane.b32.xlu0 %v817, 64
    %v1203 = vpop.permute.xlu0 %1202
    %1204 = vrot.lane.b32.xlu0 %v816, 64
    %v1205 = vpop.permute.xlu0 %1204
    %1206 = vrot.lane.b32.xlu0 %v815, 64
    %v1207 = vpop.permute.xlu0 %1206
    %1208 = vrot.lane.b32.xlu0 %v814, 64
    %v1209 = vpop.permute.xlu0 %1208
    %1210 = vrot.lane.b32.xlu0 %v813, 64
    %v1211 = vpop.permute.xlu0 %1210
    %1212 = vrot.lane.b32.xlu0 %v812, 64
    %v1213 = vpop.permute.xlu0 %1212
    %1214 = vrot.lane.b32.xlu0 %v811, 64
    %v1215 = vpop.permute.xlu0 %1214
    %1216 = vrot.lane.b32.xlu0 %v810, 64
    %v1217 = vpop.permute.xlu0 %1216
    %1218 = vrot.lane.b32.xlu0 %v809, 64
    %v1219 = vpop.permute.xlu0 %1218
    %1220 = vrot.lane.b32.xlu0 %v808, 64
    %v1221 = vpop.permute.xlu0 %1220
    %1222 = vrot.lane.b32.xlu0 %v807, 64
    %v1223 = vpop.permute.xlu0 %1222
    %1224 = vrot.lane.b32.xlu0 %v806, 64
    %v1225 = vpop.permute.xlu0 %1224
    %1226 = vrot.lane.b32.xlu0 %v805, 64
    %v1227 = vpop.permute.xlu0 %1226
    %1228 = vrot.lane.b32.xlu0 %v804, 64
    %v1229 = vpop.permute.xlu0 %1228
    %1230 = vrot.lane.b32.xlu0 %v803, 64
    %v1231 = vpop.permute.xlu0 %1230
    %1232 = vrot.lane.b32.xlu0 %v802, 64
    %v1233 = vpop.permute.xlu0 %1232
    %1234 = vrot.lane.b32.xlu0 %v801, 64
    %v1235 = vpop.permute.xlu0 %1234
    %1236 = vrot.lane.b32.xlu0 %v800, 64
    %v1237 = vpop.permute.xlu0 %1236
    %1238 = vrot.lane.b32.xlu0 %v799, 64
    %v1239 = vpop.permute.xlu0 %1238
    %1240 = vrot.lane.b32.xlu0 %v798, 64
    %v1241 = vpop.permute.xlu0 %1240
    %1242 = vrot.lane.b32.xlu0 %v797, 64
    %v1243 = vpop.permute.xlu0 %1242
    %1244 = vrot.lane.b32.xlu0 %v796, 64
    %v1245 = vpop.permute.xlu0 %1244
    %1246 = vrot.lane.b32.xlu0 %v795, 64
    %v1247 = vpop.permute.xlu0 %1246
    %1248 = vrot.lane.b32.xlu0 %v794, 64
    %v1249 = vpop.permute.xlu0 %1248
    %1250 = vrot.lane.b32.xlu0 %v793, 64
    %v1251 = vpop.permute.xlu0 %1250
    %1252 = vrot.lane.b32.xlu0 %v792, 64
    %v1253 = vpop.permute.xlu0 %1252
    %1254 = vrot.lane.b32.xlu0 %v791, 64
    %v1255 = vpop.permute.xlu0 %1254
    %1256 = vrot.lane.b32.xlu0 %v790, 64
    %v1257 = vpop.permute.xlu0 %1256
    %1258 = vrot.lane.b32.xlu0 %v789, 64
    %v1259 = vpop.permute.xlu0 %1258
    %1260 = vrot.lane.b32.xlu0 %v788, 64
    %v1261 = vpop.permute.xlu0 %1260
    %1262 = vrot.lane.b32.xlu0 %v787, 64
    %v1263 = vpop.permute.xlu0 %1262
    %1264 = vrot.lane.b32.xlu0 %v786, 64
    %v1265 = vpop.permute.xlu0 %1264
    %1266 = vrot.lane.b32.xlu0 %v785, 64
    %v1267 = vpop.permute.xlu0 %1266
    %1268 = vrot.lane.b32.xlu0 %v784, 64
    %v1269 = vpop.permute.xlu0 %1268
    %1270 = vrot.lane.b32.xlu0 %v783, 64
    %v1271 = vpop.permute.xlu0 %1270
    %1272 = vrot.lane.b32.xlu0 %v782, 64
    %v1273 = vpop.permute.xlu0 %1272
    %1274 = vrot.lane.b32.xlu0 %v781, 64
    %v1275 = vpop.permute.xlu0 %1274
    %1276 = vrot.lane.b32.xlu0 %v780, 64
    %v1277 = vpop.permute.xlu0 %1276
    %1278 = vrot.lane.b32.xlu0 %v779, 64
    %v1279 = vpop.permute.xlu0 %1278
    %1280 = vrot.lane.b32.xlu0 %v778, 64
    %v1281 = vpop.permute.xlu0 %1280
    %1282 = vrot.lane.b32.xlu0 %v777, 64
    %v1283 = vpop.permute.xlu0 %1282
    %1284 = vrot.lane.b32.xlu0 %v776, 64
    %v1285 = vpop.permute.xlu0 %1284
    %1286 = vrot.lane.b32.xlu0 %v775, 64
    %v1287 = vpop.permute.xlu0 %1286
    %1288 = vrot.lane.b32.xlu0 %v774, 64
    %v1289 = vpop.permute.xlu0 %1288
    %1290 = vrot.lane.b32.xlu0 %v773, 64
    %v1291 = vpop.permute.xlu0 %1290
    %1292 = vrot.lane.b32.xlu0 %v824, 64
    %v1293 = vpop.permute.xlu0 %1292
    %1398 = vrot.lane.b32.xlu0 %v928, 96
    %v1399 = vpop.permute.xlu0 %1398
    %1400 = vrot.lane.b32.xlu0 %v927, 96
    %v1401 = vpop.permute.xlu0 %1400
    %1402 = vrot.lane.b32.xlu0 %v926, 96
    %v1403 = vpop.permute.xlu0 %1402
    %1404 = vrot.lane.b32.xlu0 %v925, 96
    %v1405 = vpop.permute.xlu0 %1404
    %1406 = vrot.lane.b32.xlu0 %v924, 96
    %v1407 = vpop.permute.xlu0 %1406
    %1408 = vrot.lane.b32.xlu0 %v923, 96
    %v1409 = vpop.permute.xlu0 %1408
    %1410 = vrot.lane.b32.xlu0 %v922, 96
    %v1411 = vpop.permute.xlu0 %1410
    %1412 = vrot.lane.b32.xlu0 %v921, 96
    %v1413 = vpop.permute.xlu0 %1412
    %1414 = vrot.lane.b32.xlu0 %v920, 96
    %v1415 = vpop.permute.xlu0 %1414
    %1416 = vrot.lane.b32.xlu0 %v919, 96
    %v1417 = vpop.permute.xlu0 %1416
    %1418 = vrot.lane.b32.xlu0 %v918, 96
    %v1419 = vpop.permute.xlu0 %1418
    %1420 = vrot.lane.b32.xlu0 %v917, 96
    %v1421 = vpop.permute.xlu0 %1420
    %1422 = vrot.lane.b32.xlu0 %v916, 96
    %v1423 = vpop.permute.xlu0 %1422
    %1424 = vrot.lane.b32.xlu0 %v915, 96
    %v1425 = vpop.permute.xlu0 %1424
    %1426 = vrot.lane.b32.xlu0 %v914, 96
    %v1427 = vpop.permute.xlu0 %1426
    %1428 = vrot.lane.b32.xlu0 %v913, 96
    %v1429 = vpop.permute.xlu0 %1428
    %1430 = vrot.lane.b32.xlu0 %v912, 96
    %v1431 = vpop.permute.xlu0 %1430
    %1432 = vrot.lane.b32.xlu0 %v911, 96
    %v1433 = vpop.permute.xlu0 %1432
    %1434 = vrot.lane.b32.xlu0 %v910, 96
    %v1435 = vpop.permute.xlu0 %1434
    %1436 = vrot.lane.b32.xlu0 %v909, 96
    %v1437 = vpop.permute.xlu0 %1436
    %1438 = vrot.lane.b32.xlu0 %v908, 96
    %v1439 = vpop.permute.xlu0 %1438
    %1440 = vrot.lane.b32.xlu0 %v907, 96
    %v1441 = vpop.permute.xlu0 %1440
    %1442 = vrot.lane.b32.xlu0 %v906, 96
    %v1443 = vpop.permute.xlu0 %1442
    %1444 = vrot.lane.b32.xlu0 %v905, 96
    %v1445 = vpop.permute.xlu0 %1444
    %1446 = vrot.lane.b32.xlu0 %v904, 96
    %v1447 = vpop.permute.xlu0 %1446
    %1448 = vrot.lane.b32.xlu0 %v903, 96
    %v1449 = vpop.permute.xlu0 %1448
    %1450 = vrot.lane.b32.xlu0 %v902, 96
    %v1451 = vpop.permute.xlu0 %1450
    %1452 = vrot.lane.b32.xlu0 %v901, 96
    %v1453 = vpop.permute.xlu0 %1452
    %1454 = vrot.lane.b32.xlu0 %v900, 96
    %v1455 = vpop.permute.xlu0 %1454
    %1456 = vrot.lane.b32.xlu0 %v899, 96
    %v1457 = vpop.permute.xlu0 %1456
    %1458 = vrot.lane.b32.xlu0 %v898, 96
    %v1459 = vpop.permute.xlu0 %1458
    %1460 = vrot.lane.b32.xlu0 %v897, 96
    %v1461 = vpop.permute.xlu0 %1460
    %1462 = vrot.lane.b32.xlu0 %v896, 96
    %v1463 = vpop.permute.xlu0 %1462
    %1464 = vrot.lane.b32.xlu0 %v895, 96
    %v1465 = vpop.permute.xlu0 %1464
    %1466 = vrot.lane.b32.xlu0 %v894, 96
    %v1467 = vpop.permute.xlu0 %1466
    %1468 = vrot.lane.b32.xlu0 %v893, 96
    %v1469 = vpop.permute.xlu0 %1468
    %1470 = vrot.lane.b32.xlu0 %v892, 96
    %v1471 = vpop.permute.xlu0 %1470
    %1472 = vrot.lane.b32.xlu0 %v891, 96
    %v1473 = vpop.permute.xlu0 %1472
    %1474 = vrot.lane.b32.xlu0 %v890, 96
    %v1475 = vpop.permute.xlu0 %1474
    %1476 = vrot.lane.b32.xlu0 %v889, 96
    %v1477 = vpop.permute.xlu0 %1476
    %1478 = vrot.lane.b32.xlu0 %v888, 96
    %v1479 = vpop.permute.xlu0 %1478
    %1480 = vrot.lane.b32.xlu0 %v887, 96
    %v1481 = vpop.permute.xlu0 %1480
    %1482 = vrot.lane.b32.xlu0 %v886, 96
    %v1483 = vpop.permute.xlu0 %1482
    %1484 = vrot.lane.b32.xlu0 %v885, 96
    %v1485 = vpop.permute.xlu0 %1484
    %1486 = vrot.lane.b32.xlu0 %v884, 96
    %v1487 = vpop.permute.xlu0 %1486
    %1488 = vrot.lane.b32.xlu0 %v883, 96
    %v1489 = vpop.permute.xlu0 %1488
    %1490 = vrot.lane.b32.xlu0 %v882, 96
    %v1491 = vpop.permute.xlu0 %1490
    %1492 = vrot.lane.b32.xlu0 %v881, 96
    %v1493 = vpop.permute.xlu0 %1492
    %1494 = vrot.lane.b32.xlu0 %v880, 96
    %v1495 = vpop.permute.xlu0 %1494
    %1496 = vrot.lane.b32.xlu0 %v879, 96
    %v1497 = vpop.permute.xlu0 %1496
    %1498 = vrot.lane.b32.xlu0 %v878, 96
    %v1499 = vpop.permute.xlu0 %1498
    %1500 = vrot.lane.b32.xlu0 %v929, 96
    %v1501 = vpop.permute.xlu0 %1500
    %vm1554 = vcmask 261120
    %v1555 = vsel %vm1554, %v355, %v983
    %v1556 = vsel %vm1554, %v360, %v985
    %v1557 = vsel %vm1554, %v365, %v987
    %v1558 = vsel %vm1554, %v370, %v989
    %v1559 = vsel %vm1554, %v375, %v991
    %v1560 = vsel %vm1554, %v380, %v993
    %v1561 = vsel %vm1554, %v385, %v995
    %v1562 = vsel %vm1554, %v390, %v997
    %v1563 = vsel %vm1554, %v395, %v999
    %v1564 = vsel %vm1554, %v400, %v1001
    %v1565 = vsel %vm1554, %v405, %v1003
    %v1566 = vsel %vm1554, %v410, %v1005
    %v1567 = vsel %vm1554, %v415, %v1007
    %v1568 = vsel %vm1554, %v420, %v1009
    %v1569 = vsel %vm1554, %v425, %v1011
    %v1570 = vsel %vm1554, %v430, %v1013
    %v1571 = vsel %vm1554, %v435, %v1015
    %v1572 = vsel %vm1554, %v440, %v1017
    %v1573 = vsel %vm1554, %v445, %v1019
    %v1574 = vsel %vm1554, %v450, %v1021
    %v1575 = vsel %vm1554, %v455, %v1023
    %v1576 = vsel %vm1554, %v460, %v1025
    %v1577 = vsel %vm1554, %v465, %v1027
    %v1578 = vsel %vm1554, %v470, %v1029
    %v1579 = vsel %vm1554, %v475, %v1031
    %v1580 = vsel %vm1554, %v480, %v1033
    %v1581 = vsel %vm1554, %v485, %v1035
    %v1582 = vsel %vm1554, %v490, %v1037
    %v1583 = vsel %vm1554, %v495, %v1039
    %v1584 = vsel %vm1554, %v500, %v1041
    %v1585 = vsel %vm1554, %v505, %v1043
    %v1586 = vsel %vm1554, %v510, %v1045
    %v1587 = vsel %vm1554, %v515, %v1047
    %v1588 = vsel %vm1554, %v520, %v1049
    %v1589 = vsel %vm1554, %v525, %v1051
    %v1590 = vsel %vm1554, %v530, %v1053
    %v1591 = vsel %vm1554, %v535, %v1055
    %v1592 = vsel %vm1554, %v540, %v1057
    %v1593 = vsel %vm1554, %v545, %v1059
    %v1594 = vsel %vm1554, %v550, %v1061
    %v1595 = vsel %vm1554, %v555, %v1063
    %v1596 = vsel %vm1554, %v560, %v1065
    %v1597 = vsel %vm1554, %v565, %v1067
    %v1598 = vsel %vm1554, %v570, %v1069
    %v1599 = vsel %vm1554, %v575, %v1071
    %v1600 = vsel %vm1554, %v580, %v1073
    %v1601 = vsel %vm1554, %v585, %v1075
    %v1602 = vsel %vm1554, %v590, %v1077
    %v1603 = vsel %vm1554, %v595, %v1079
    %v1604 = vsel %vm1554, %v600, %v1081
    %v1605 = vsel %vm1554, %v605, %v1083
    %v1606 = vsel %vm1554, %v610, %v1085
    %vm1607 = vcmask 523264
    %v1608 = vsel %vm1607, %v1555, %v1191
    %v1609 = vsel %vm1607, %v1556, %v1193
    %v1610 = vsel %vm1607, %v1557, %v1195
    %v1611 = vsel %vm1607, %v1558, %v1197
    %v1612 = vsel %vm1607, %v1559, %v1199
    %v1613 = vsel %vm1607, %v1560, %v1201
    %v1614 = vsel %vm1607, %v1561, %v1203
    %v1615 = vsel %vm1607, %v1562, %v1205
    %v1616 = vsel %vm1607, %v1563, %v1207
    %v1617 = vsel %vm1607, %v1564, %v1209
    %v1618 = vsel %vm1607, %v1565, %v1211
    %v1619 = vsel %vm1607, %v1566, %v1213
    %v1620 = vsel %vm1607, %v1567, %v1215
    %v1621 = vsel %vm1607, %v1568, %v1217
    %v1622 = vsel %vm1607, %v1569, %v1219
    %v1623 = vsel %vm1607, %v1570, %v1221
    %v1624 = vsel %vm1607, %v1571, %v1223
    %v1625 = vsel %vm1607, %v1572, %v1225
    %v1626 = vsel %vm1607, %v1573, %v1227
    %v1627 = vsel %vm1607, %v1574, %v1229
    %v1628 = vsel %vm1607, %v1575, %v1231
    %v1629 = vsel %vm1607, %v1576, %v1233
    %v1630 = vsel %vm1607, %v1577, %v1235
    %v1631 = vsel %vm1607, %v1578, %v1237
    %v1632 = vsel %vm1607, %v1579, %v1239
    %v1633 = vsel %vm1607, %v1580, %v1241
    %v1634 = vsel %vm1607, %v1581, %v1243
    %v1635 = vsel %vm1607, %v1582, %v1245
    %v1636 = vsel %vm1607, %v1583, %v1247
    %v1637 = vsel %vm1607, %v1584, %v1249
    %v1638 = vsel %vm1607, %v1585, %v1251
    %v1639 = vsel %vm1607, %v1586, %v1253
    %v1640 = vsel %vm1607, %v1587, %v1255
    %v1641 = vsel %vm1607, %v1588, %v1257
    %v1642 = vsel %vm1607, %v1589, %v1259
    %v1643 = vsel %vm1607, %v1590, %v1261
    %v1644 = vsel %vm1607, %v1591, %v1263
    %v1645 = vsel %vm1607, %v1592, %v1265
    %v1646 = vsel %vm1607, %v1593, %v1267
    %v1647 = vsel %vm1607, %v1594, %v1269
    %v1648 = vsel %vm1607, %v1595, %v1271
    %v1649 = vsel %vm1607, %v1596, %v1273
    %v1650 = vsel %vm1607, %v1597, %v1275
    %v1651 = vsel %vm1607, %v1598, %v1277
    %v1652 = vsel %vm1607, %v1599, %v1279
    %v1653 = vsel %vm1607, %v1600, %v1281
    %v1654 = vsel %vm1607, %v1601, %v1283
    %v1655 = vsel %vm1607, %v1602, %v1285
    %v1656 = vsel %vm1607, %v1603, %v1287
    %v1657 = vsel %vm1607, %v1604, %v1289
    %v1658 = vsel %vm1607, %v1605, %v1291
    %v1659 = vsel %vm1607, %v1606, %v1293
    %vm1660 = vcmask 785408
    %v1661 = vsel %vm1660, %v1608, %v1399
    %v1662 = vsel %vm1660, %v1609, %v1401
    %v1663 = vsel %vm1660, %v1610, %v1403
    %v1664 = vsel %vm1660, %v1611, %v1405
    %v1665 = vsel %vm1660, %v1612, %v1407
    %v1666 = vsel %vm1660, %v1613, %v1409
    %v1667 = vsel %vm1660, %v1614, %v1411
    %v1668 = vsel %vm1660, %v1615, %v1413
    %v1669 = vsel %vm1660, %v1616, %v1415
    %v1670 = vsel %vm1660, %v1617, %v1417
    %v1671 = vsel %vm1660, %v1618, %v1419
    %v1672 = vsel %vm1660, %v1619, %v1421
    %v1673 = vsel %vm1660, %v1620, %v1423
    %v1674 = vsel %vm1660, %v1621, %v1425
    %v1675 = vsel %vm1660, %v1622, %v1427
    %v1676 = vsel %vm1660, %v1623, %v1429
    %v1677 = vsel %vm1660, %v1624, %v1431
    %v1678 = vsel %vm1660, %v1625, %v1433
    %v1679 = vsel %vm1660, %v1626, %v1435
    %v1680 = vsel %vm1660, %v1627, %v1437
    %v1681 = vsel %vm1660, %v1628, %v1439
    %v1682 = vsel %vm1660, %v1629, %v1441
    %v1683 = vsel %vm1660, %v1630, %v1443
    %v1684 = vsel %vm1660, %v1631, %v1445
    %v1685 = vsel %vm1660, %v1632, %v1447
    %v1686 = vsel %vm1660, %v1633, %v1449
    %v1687 = vsel %vm1660, %v1634, %v1451
    %v1688 = vsel %vm1660, %v1635, %v1453
    %v1689 = vsel %vm1660, %v1636, %v1455
    %v1690 = vsel %vm1660, %v1637, %v1457
    %v1691 = vsel %vm1660, %v1638, %v1459
    %v1692 = vsel %vm1660, %v1639, %v1461
    %v1693 = vsel %vm1660, %v1640, %v1463
    %v1694 = vsel %vm1660, %v1641, %v1465
    %v1695 = vsel %vm1660, %v1642, %v1467
    %v1696 = vsel %vm1660, %v1643, %v1469
    %v1697 = vsel %vm1660, %v1644, %v1471
    %v1698 = vsel %vm1660, %v1645, %v1473
    %v1699 = vsel %vm1660, %v1646, %v1475
    %v1700 = vsel %vm1660, %v1647, %v1477
    %v1701 = vsel %vm1660, %v1648, %v1479
    %v1702 = vsel %vm1660, %v1649, %v1481
    %v1703 = vsel %vm1660, %v1650, %v1483
    %v1704 = vsel %vm1660, %v1651, %v1485
    %v1705 = vsel %vm1660, %v1652, %v1487
    %v1706 = vsel %vm1660, %v1653, %v1489
    %v1707 = vsel %vm1660, %v1654, %v1491
    %v1708 = vsel %vm1660, %v1655, %v1493
    %v1709 = vsel %vm1660, %v1656, %v1495
    %v1710 = vsel %vm1660, %v1657, %v1497
    %v1711 = vsel %vm1660, %v1658, %v1499
    %v1712 = vsel %vm1660, %v1659, %v1501
    %v1713 = vld [vmem:[%s5] sm:$0xff]
    %v1714 = vld [vmem:[%s5 + $0x8] sm:$0xff]
    %v1715 = vld [vmem:[%s5 + $0x10] sm:$0xff]
    %v1716 = vld [vmem:[%s5 + $0x18] sm:$0xff]
    %v1717 = vld [vmem:[%s5 + $0x20] sm:$0xff]
    %v1718 = vld [vmem:[%s5 + $0x28] sm:$0xff]
    %v1719 = vld [vmem:[%s5 + $0x30] sm:$0xff]
    %v1720 = vld [vmem:[%s5 + $0x38] sm:$0xff]
    %v1721 = vld [vmem:[%s5 + $0x40] sm:$0xff]
    %v1722 = vld [vmem:[%s5 + $0x48] sm:$0xff]
    %v1723 = vld [vmem:[%s5 + $0x50] sm:$0xff]
    %v1724 = vld [vmem:[%s5 + $0x58] sm:$0xff]
    %v1725 = vld [vmem:[%s5 + $0x60] sm:$0xff]
    %v1726 = vld [vmem:[%s5 + $0x68] sm:$0xff]
    %v1727 = vld [vmem:[%s5 + $0x70] sm:$0xff]
    %v1728 = vld [vmem:[%s5 + $0x78] sm:$0xff]
    %v1729 = vld [vmem:[%s6] sm:$0x1]
    %v1731 = vlaneseq
    %v1732 = vshrl.u32 %v1731, 7
    %v1733 = vsub.s32 0, %v1732
    %v1734 = vrot.slane %v1729, %v1733
    %1736 = vmatprep.subr.mxu0 0.0
    %1737 = vmatpush1.msra.mxu0 %v1713
    %1738 = vmatprep.subr.mxu0 0.0
    %1739 = vmatpush1.msra.mxu0 %v1714
    %1740 = vmatprep.subr.mxu0 0.0
    %1741 = vmatpush1.msra.mxu0 %v1715
    %1742 = vmatprep.subr.mxu0 0.0
    %1743 = vmatpush1.msra.mxu0 %v1716
    %1744 = vmatprep.subr.mxu0 0.0
    %1745 = vmatpush1.msra.mxu0 %v1717
    %1746 = vmatprep.subr.mxu0 0.0
    %1747 = vmatpush1.msra.mxu0 %v1718
    %1748 = vmatprep.subr.mxu0 0.0
    %1749 = vmatpush1.msra.mxu0 %v1719
    %1750 = vmatprep.subr.mxu0 0.0
    %1751 = vmatpush1.msra.mxu0 %v1720
    %1752 = vmatprep.subr.mxu0 0.0
    %1753 = vmatpush1.msra.mxu0 %v1721
    %1754 = vmatprep.subr.mxu0 0.0
    %1755 = vmatpush1.msra.mxu0 %v1722
    %1756 = vmatprep.subr.mxu0 0.0
    %1757 = vmatpush1.msra.mxu0 %v1723
    %1758 = vmatprep.subr.mxu0 0.0
    %1759 = vmatpush1.msra.mxu0 %v1724
    %1760 = vmatprep.subr.mxu0 0.0
    %1761 = vmatpush1.msra.mxu0 %v1725
    %1762 = vmatprep.subr.mxu0 0.0
    %1763 = vmatpush1.msra.mxu0 %v1726
    %1764 = vmatprep.subr.mxu0 0.0
    %1765 = vmatpush1.msra.mxu0 %v1727
    %1766 = vmatprep.subr.mxu0 0.0
    %1767 = vmatpush1.msra.mxu0 %v1728
    %1768 = vmatprep.subr.mxu0 0.0
    %1769 = vmatpush1.msra.mxu0 0.0
    %1770 = vmatprep.subr.mxu0 0.0
    %1771 = vmatpush1.msra.mxu0 0.0
    %1772 = vmatprep.subr.mxu0 0.0
    %1773 = vmatpush1.msra.mxu0 0.0
    %1774 = vmatprep.subr.mxu0 0.0
    %1775 = vmatpush1.msra.mxu0 0.0
    %1776 = vmatprep.subr.mxu0 0.0
    %1777 = vmatpush1.msra.mxu0 0.0
    %1778 = vmatprep.subr.mxu0 0.0
    %1779 = vmatpush1.msra.mxu0 0.0
    %1780 = vmatprep.subr.mxu0 0.0
    %1781 = vmatpush1.msra.mxu0 0.0
    %1782 = vmatprep.subr.mxu0 0.0
    %1783 = vmatpush1.msra.mxu0 0.0
    %1784 = vmatprep.subr.mxu0 0.0
    %1785 = vmatpush1.msra.mxu0 0.0
    %1786 = vmatprep.subr.mxu0 0.0
    %1787 = vmatpush1.msra.mxu0 0.0
    %1788 = vmatprep.subr.mxu0 0.0
    %1789 = vmatpush1.msra.mxu0 0.0
    %1790 = vmatprep.subr.mxu0 0.0
    %1791 = vmatpush1.msra.mxu0 0.0
    %1792 = vmatprep.subr.mxu0 0.0
    %1793 = vmatpush1.msra.mxu0 0.0
    %1794 = vmatprep.subr.mxu0 0.0
    %1795 = vmatpush1.msra.mxu0 0.0
    %1796 = vmatprep.subr.mxu0 0.0
    %1797 = vmatpush1.msra.mxu0 0.0
    %1798 = vmatprep.subr.mxu0 0.0
    %1799 = vmatpush1.msra.mxu0 0.0
    %1800 = vmatprep.mubr.f32.mxu0 0.0
    %1801 = vmatmul.mubr.f32.gmra.mrb[0].mxu0 %v1661
    %v1802 = vpop.f32.mrb[0].mxu0
    %v1803 = vadd.f32 %v1734, %v1802
    %v1804 = vpop.f32.mrb[0].mxu0
    %1805 = vmatprep.mubr.f32.mxu0 0.0
    %1806 = vmatmul.mubr.f32.gmra.mrb[0].mxu0 %v1662
    %v1807 = vpop.f32.mrb[0].mxu0
    %v1808 = vadd.f32 %v1734, %v1807
    %v1809 = vpop.f32.mrb[0].mxu0
    %1810 = vmatprep.mubr.f32.mxu0 0.0
    %1811 = vmatmul.mubr.f32.gmra.mrb[0].mxu0 %v1663
    %v1812 = vpop.f32.mrb[0].mxu0
    %v1813 = vadd.f32 %v1734, %v1812
    %v1814 = vpop.f32.mrb[0].mxu0
    %1815 = vmatprep.mubr.f32.mxu0 0.0
    %1816 = vmatmul.mubr.f32.gmra.mrb[0].mxu0 %v1664
    %v1817 = vpop.f32.mrb[0].mxu0
    %v1818 = vadd.f32 %v1734, %v1817
    %v1819 = vpop.f32.mrb[0].mxu0
    %1820 = vmatprep.mubr.f32.mxu0 0.0
    %1821 = vmatmul.mubr.f32.gmra.mrb[0].mxu0 %v1665
    %v1822 = vpop.f32.mrb[0].mxu0
    %v1823 = vadd.f32 %v1734, %v1822
    %v1824 = vpop.f32.mrb[0].mxu0
    %1825 = vmatprep.mubr.f32.mxu0 0.0
    %1826 = vmatmul.mubr.f32.gmra.mrb[0].mxu0 %v1666
    %v1827 = vpop.f32.mrb[0].mxu0
    %v1828 = vadd.f32 %v1734, %v1827
    %v1829 = vpop.f32.mrb[0].mxu0
    %1830 = vmatprep.mubr.f32.mxu0 0.0
    %1831 = vmatmul.mubr.f32.gmra.mrb[0].mxu0 %v1667
    %v1832 = vpop.f32.mrb[0].mxu0
    %v1833 = vadd.f32 %v1734, %v1832
    %v1834 = vpop.f32.mrb[0].mxu0
    %1835 = vmatprep.mubr.f32.mxu0 0.0
    %1836 = vmatmul.mubr.f32.gmra.mrb[0].mxu0 %v1668
    %v1837 = vpop.f32.mrb[0].mxu0
    %v1838 = vadd.f32 %v1734, %v1837
    %v1839 = vpop.f32.mrb[0].mxu0
    %1840 = vmatprep.mubr.f32.mxu0 0.0
    %1841 = vmatmul.mubr.f32.gmra.mrb[0].mxu0 %v1669
    %v1842 = vpop.f32.mrb[0].mxu0
    %v1843 = vadd.f32 %v1734, %v1842
    %v1844 = vpop.f32.mrb[0].mxu0
    %1845 = vmatprep.mubr.f32.mxu0 0.0
    %1846 = vmatmul.mubr.f32.gmra.mrb[0].mxu0 %v1670
    %v1847 = vpop.f32.mrb[0].mxu0
    %v1848 = vadd.f32 %v1734, %v1847
    %v1849 = vpop.f32.mrb[0].mxu0
    %1850 = vmatprep.mubr.f32.mxu0 0.0
    %1851 = vmatmul.mubr.f32.gmra.mrb[0].mxu0 %v1671
    %v1852 = vpop.f32.mrb[0].mxu0
    %v1853 = vadd.f32 %v1734, %v1852
    %v1854 = vpop.f32.mrb[0].mxu0
    %1855 = vmatprep.mubr.f32.mxu0 0.0
    %1856 = vmatmul.mubr.f32.gmra.mrb[0].mxu0 %v1672
    %v1857 = vpop.f32.mrb[0].mxu0
    %v1858 = vadd.f32 %v1734, %v1857
    %v1859 = vpop.f32.mrb[0].mxu0
    %1860 = vmatprep.mubr.f32.mxu0 0.0
    %1861 = vmatmul.mubr.f32.gmra.mrb[0].mxu0 %v1673
    %v1862 = vpop.f32.mrb[0].mxu0
    %v1863 = vadd.f32 %v1734, %v1862
    %v1864 = vpop.f32.mrb[0].mxu0
    %1865 = vmatprep.mubr.f32.mxu0 0.0
    %1866 = vmatmul.mubr.f32.gmra.mrb[0].mxu0 %v1674
    %v1867 = vpop.f32.mrb[0].mxu0
    %v1868 = vadd.f32 %v1734, %v1867
    %v1869 = vpop.f32.mrb[0].mxu0
    %1870 = vmatprep.mubr.f32.mxu0 0.0
    %1871 = vmatmul.mubr.f32.gmra.mrb[0].mxu0 %v1675
    %v1872 = vpop.f32.mrb[0].mxu0
    %v1873 = vadd.f32 %v1734, %v1872
    %v1874 = vpop.f32.mrb[0].mxu0
    %1875 = vmatprep.mubr.f32.mxu0 0.0
    %1876 = vmatmul.mubr.f32.gmra.mrb[0].mxu0 %v1676
    %v1877 = vpop.f32.mrb[0].mxu0
    %v1878 = vadd.f32 %v1734, %v1877
    %v1879 = vpop.f32.mrb[0].mxu0
    %1880 = vmatprep.mubr.f32.mxu0 0.0
    %1881 = vmatmul.mubr.f32.gmra.mrb[0].mxu0 %v1677
    %v1882 = vpop.f32.mrb[0].mxu0
    %v1883 = vadd.f32 %v1734, %v1882
    %v1884 = vpop.f32.mrb[0].mxu0
    %1885 = vmatprep.mubr.f32.mxu0 0.0
    %1886 = vmatmul.mubr.f32.gmra.mrb[0].mxu0 %v1678
    %v1887 = vpop.f32.mrb[0].mxu0
    %v1888 = vadd.f32 %v1734, %v1887
    %v1889 = vpop.f32.mrb[0].mxu0
    %1890 = vmatprep.mubr.f32.mxu0 0.0
    %1891 = vmatmul.mubr.f32.gmra.mrb[0].mxu0 %v1679
    %v1892 = vpop.f32.mrb[0].mxu0
    %v1893 = vadd.f32 %v1734, %v1892
    %v1894 = vpop.f32.mrb[0].mxu0
    %1895 = vmatprep.mubr.f32.mxu0 0.0
    %1896 = vmatmul.mubr.f32.gmra.mrb[0].mxu0 %v1680
    %v1897 = vpop.f32.mrb[0].mxu0
    %v1898 = vadd.f32 %v1734, %v1897
    %v1899 = vpop.f32.mrb[0].mxu0
    %1900 = vmatprep.mubr.f32.mxu0 0.0
    %1901 = vmatmul.mubr.f32.gmra.mrb[0].mxu0 %v1681
    %v1902 = vpop.f32.mrb[0].mxu0
    %v1903 = vadd.f32 %v1734, %v1902
    %v1904 = vpop.f32.mrb[0].mxu0
    %1905 = vmatprep.mubr.f32.mxu0 0.0
    %1906 = vmatmul.mubr.f32.gmra.mrb[0].mxu0 %v1682
    %v1907 = vpop.f32.mrb[0].mxu0
    %v1908 = vadd.f32 %v1734, %v1907
    %v1909 = vpop.f32.mrb[0].mxu0
    %1910 = vmatprep.mubr.f32.mxu0 0.0
    %1911 = vmatmul.mubr.f32.gmra.mrb[0].mxu0 %v1683
    %v1912 = vpop.f32.mrb[0].mxu0
    %v1913 = vadd.f32 %v1734, %v1912
    %v1914 = vpop.f32.mrb[0].mxu0
    %1915 = vmatprep.mubr.f32.mxu0 0.0
    %1916 = vmatmul.mubr.f32.gmra.mrb[0].mxu0 %v1684
    %v1917 = vpop.f32.mrb[0].mxu0
    %v1918 = vadd.f32 %v1734, %v1917
    %v1919 = vpop.f32.mrb[0].mxu0
    %1920 = vmatprep.mubr.f32.mxu0 0.0
    %1921 = vmatmul.mubr.f32.gmra.mrb[0].mxu0 %v1685
    %v1922 = vpop.f32.mrb[0].mxu0
    %v1923 = vadd.f32 %v1734, %v1922
    %v1924 = vpop.f32.mrb[0].mxu0
    %1925 = vmatprep.mubr.f32.mxu0 0.0
    %1926 = vmatmul.mubr.f32.gmra.mrb[0].mxu0 %v1686
    %v1927 = vpop.f32.mrb[0].mxu0
    %v1928 = vadd.f32 %v1734, %v1927
    %v1929 = vpop.f32.mrb[0].mxu0
    %1930 = vmatprep.mubr.f32.mxu0 0.0
    %1931 = vmatmul.mubr.f32.gmra.mrb[0].mxu0 %v1687
    %v1932 = vpop.f32.mrb[0].mxu0
    %v1933 = vadd.f32 %v1734, %v1932
    %v1934 = vpop.f32.mrb[0].mxu0
    %1935 = vmatprep.mubr.f32.mxu0 0.0
    %1936 = vmatmul.mubr.f32.gmra.mrb[0].mxu0 %v1688
    %v1937 = vpop.f32.mrb[0].mxu0
    %v1938 = vadd.f32 %v1734, %v1937
    %v1939 = vpop.f32.mrb[0].mxu0
    %1940 = vmatprep.mubr.f32.mxu0 0.0
    %1941 = vmatmul.mubr.f32.gmra.mrb[0].mxu0 %v1689
    %v1942 = vpop.f32.mrb[0].mxu0
    %v1943 = vadd.f32 %v1734, %v1942
    %v1944 = vpop.f32.mrb[0].mxu0
    %1945 = vmatprep.mubr.f32.mxu0 0.0
    %1946 = vmatmul.mubr.f32.gmra.mrb[0].mxu0 %v1690
    %v1947 = vpop.f32.mrb[0].mxu0
    %v1948 = vadd.f32 %v1734, %v1947
    %v1949 = vpop.f32.mrb[0].mxu0
    %1950 = vmatprep.mubr.f32.mxu0 0.0
    %1951 = vmatmul.mubr.f32.gmra.mrb[0].mxu0 %v1691
    %v1952 = vpop.f32.mrb[0].mxu0
    %v1953 = vadd.f32 %v1734, %v1952
    %v1954 = vpop.f32.mrb[0].mxu0
    %1955 = vmatprep.mubr.f32.mxu0 0.0
    %1956 = vmatmul.mubr.f32.gmra.mrb[0].mxu0 %v1692
    %v1957 = vpop.f32.mrb[0].mxu0
    %v1958 = vadd.f32 %v1734, %v1957
    %v1959 = vpop.f32.mrb[0].mxu0
    %1960 = vmatprep.mubr.f32.mxu0 0.0
    %1961 = vmatmul.mubr.f32.gmra.mrb[0].mxu0 %v1693
    %v1962 = vpop.f32.mrb[0].mxu0
    %v1963 = vadd.f32 %v1734, %v1962
    %v1964 = vpop.f32.mrb[0].mxu0
    %1965 = vmatprep.mubr.f32.mxu0 0.0
    %1966 = vmatmul.mubr.f32.gmra.mrb[0].mxu0 %v1694
    %v1967 = vpop.f32.mrb[0].mxu0
    %v1968 = vadd.f32 %v1734, %v1967
    %v1969 = vpop.f32.mrb[0].mxu0
    %1970 = vmatprep.mubr.f32.mxu0 0.0
    %1971 = vmatmul.mubr.f32.gmra.mrb[0].mxu0 %v1695
    %v1972 = vpop.f32.mrb[0].mxu0
    %v1973 = vadd.f32 %v1734, %v1972
    %v1974 = vpop.f32.mrb[0].mxu0
    %1975 = vmatprep.mubr.f32.mxu0 0.0
    %1976 = vmatmul.mubr.f32.gmra.mrb[0].mxu0 %v1696
    %v1977 = vpop.f32.mrb[0].mxu0
    %v1978 = vadd.f32 %v1734, %v1977
    %v1979 = vpop.f32.mrb[0].mxu0
    %1980 = vmatprep.mubr.f32.mxu0 0.0
    %1981 = vmatmul.mubr.f32.gmra.mrb[0].mxu0 %v1697
    %v1982 = vpop.f32.mrb[0].mxu0
    %v1983 = vadd.f32 %v1734, %v1982
    %v1984 = vpop.f32.mrb[0].mxu0
    %1985 = vmatprep.mubr.f32.mxu0 0.0
    %1986 = vmatmul.mubr.f32.gmra.mrb[0].mxu0 %v1698
    %v1987 = vpop.f32.mrb[0].mxu0
    %v1988 = vadd.f32 %v1734, %v1987
    %v1989 = vpop.f32.mrb[0].mxu0
    %1990 = vmatprep.mubr.f32.mxu0 0.0
    %1991 = vmatmul.mubr.f32.gmra.mrb[0].mxu0 %v1699
    %v1992 = vpop.f32.mrb[0].mxu0
    %v1993 = vadd.f32 %v1734, %v1992
    %v1994 = vpop.f32.mrb[0].mxu0
    %1995 = vmatprep.mubr.f32.mxu0 0.0
    %1996 = vmatmul.mubr.f32.gmra.mrb[0].mxu0 %v1700
    %v1997 = vpop.f32.mrb[0].mxu0
    %v1998 = vadd.f32 %v1734, %v1997
    %v1999 = vpop.f32.mrb[0].mxu0
    %2000 = vmatprep.mubr.f32.mxu0 0.0
    %2001 = vmatmul.mubr.f32.gmra.mrb[0].mxu0 %v1701
    %v2002 = vpop.f32.mrb[0].mxu0
    %v2003 = vadd.f32 %v1734, %v2002
    %v2004 = vpop.f32.mrb[0].mxu0
    %2005 = vmatprep.mubr.f32.mxu0 0.0
    %2006 = vmatmul.mubr.f32.gmra.mrb[0].mxu0 %v1702
    %v2007 = vpop.f32.mrb[0].mxu0
    %v2008 = vadd.f32 %v1734, %v2007
    %v2009 = vpop.f32.mrb[0].mxu0
    %2010 = vmatprep.mubr.f32.mxu0 0.0
    %2011 = vmatmul.mubr.f32.gmra.mrb[0].mxu0 %v1703
    %v2012 = vpop.f32.mrb[0].mxu0
    %v2013 = vadd.f32 %v1734, %v2012
    %v2014 = vpop.f32.mrb[0].mxu0
    %2015 = vmatprep.mubr.f32.mxu0 0.0
    %2016 = vmatmul.mubr.f32.gmra.mrb[0].mxu0 %v1704
    %v2017 = vpop.f32.mrb[0].mxu0
    %v2018 = vadd.f32 %v1734, %v2017
    %v2019 = vpop.f32.mrb[0].mxu0
    %2020 = vmatprep.mubr.f32.mxu0 0.0
    %2021 = vmatmul.mubr.f32.gmra.mrb[0].mxu0 %v1705
    %v2022 = vpop.f32.mrb[0].mxu0
    %v2023 = vadd.f32 %v1734, %v2022
    %v2024 = vpop.f32.mrb[0].mxu0
    %2025 = vmatprep.mubr.f32.mxu0 0.0
    %2026 = vmatmul.mubr.f32.gmra.mrb[0].mxu0 %v1706
    %v2027 = vpop.f32.mrb[0].mxu0
    %v2028 = vadd.f32 %v1734, %v2027
    %v2029 = vpop.f32.mrb[0].mxu0
    %2030 = vmatprep.mubr.f32.mxu0 0.0
    %2031 = vmatmul.mubr.f32.gmra.mrb[0].mxu0 %v1707
    %v2032 = vpop.f32.mrb[0].mxu0
    %v2033 = vadd.f32 %v1734, %v2032
    %v2034 = vpop.f32.mrb[0].mxu0
    %2035 = vmatprep.mubr.f32.mxu0 0.0
    %2036 = vmatmul.mubr.f32.gmra.mrb[0].mxu0 %v1708
    %v2037 = vpop.f32.mrb[0].mxu0
    %v2038 = vadd.f32 %v1734, %v2037
    %v2039 = vpop.f32.mrb[0].mxu0
    %2040 = vmatprep.mubr.f32.mxu0 0.0
    %2041 = vmatmul.mubr.f32.gmra.mrb[0].mxu0 %v1709
    %v2042 = vpop.f32.mrb[0].mxu0
    %v2043 = vadd.f32 %v1734, %v2042
    %v2044 = vpop.f32.mrb[0].mxu0
    %2045 = vmatprep.mubr.f32.mxu0 0.0
    %2046 = vmatmul.mubr.f32.gmra.mrb[0].mxu0 %v1710
    %v2047 = vpop.f32.mrb[0].mxu0
    %v2048 = vadd.f32 %v1734, %v2047
    %v2049 = vpop.f32.mrb[0].mxu0
    %2050 = vmatprep.mubr.f32.mxu0 0.0
    %2051 = vmatmul.mubr.f32.gmra.mrb[0].mxu0 %v1711
    %v2052 = vpop.f32.mrb[0].mxu0
    %v2053 = vadd.f32 %v1734, %v2052
    %v2054 = vpop.f32.mrb[0].mxu0
    %2055 = vmatprep.mubr.f32.mxu0 0.0
    %2056 = vmatmul.mubr.f32.gmra.mrb[0].mxu0 %v1712
    %v2057 = vpop.f32.mrb[0].mxu0
    %v2058 = vadd.f32 %v1734, %v2057
    %v2059 = vpop.f32.mrb[0].mxu0
    %2060 = vdwg.mxu0
    %v2061 = vmax.f32 %v1803, 0.0
    %v2062 = vmax.f32 %v1808, 0.0
    %v2063 = vmax.f32 %v1813, 0.0
    %v2064 = vmax.f32 %v1818, 0.0
    %v2065 = vmax.f32 %v1823, 0.0
    %v2066 = vmax.f32 %v1828, 0.0
    %v2067 = vmax.f32 %v1833, 0.0
    %v2068 = vmax.f32 %v1838, 0.0
    %v2069 = vmax.f32 %v1843, 0.0
    %v2070 = vmax.f32 %v1848, 0.0
    %v2071 = vmax.f32 %v1853, 0.0
    %v2072 = vmax.f32 %v1858, 0.0
    %v2073 = vmax.f32 %v1863, 0.0
    %v2074 = vmax.f32 %v1868, 0.0
    %v2075 = vmax.f32 %v1873, 0.0
    %v2076 = vmax.f32 %v1878, 0.0
    %v2077 = vmax.f32 %v1883, 0.0
    %v2078 = vmax.f32 %v1888, 0.0
    %v2079 = vmax.f32 %v1893, 0.0
    %v2080 = vmax.f32 %v1898, 0.0
    %v2081 = vmax.f32 %v1903, 0.0
    %v2082 = vmax.f32 %v1908, 0.0
    %v2083 = vmax.f32 %v1913, 0.0
    %v2084 = vmax.f32 %v1918, 0.0
    %v2085 = vmax.f32 %v1923, 0.0
    %v2086 = vmax.f32 %v1928, 0.0
    %v2087 = vmax.f32 %v1933, 0.0
    %v2088 = vmax.f32 %v1938, 0.0
    %v2089 = vmax.f32 %v1943, 0.0
    %v2090 = vmax.f32 %v1948, 0.0
    %v2091 = vmax.f32 %v1953, 0.0
    %v2092 = vmax.f32 %v1958, 0.0
    %v2093 = vmax.f32 %v1963, 0.0
    %v2094 = vmax.f32 %v1968, 0.0
    %v2095 = vmax.f32 %v1973, 0.0
    %v2096 = vmax.f32 %v1978, 0.0
    %v2097 = vmax.f32 %v1983, 0.0
    %v2098 = vmax.f32 %v1988, 0.0
    %v2099 = vmax.f32 %v1993, 0.0
    %v2100 = vmax.f32 %v1998, 0.0
    %v2101 = vmax.f32 %v2003, 0.0
    %v2102 = vmax.f32 %v2008, 0.0
    %v2103 = vmax.f32 %v2013, 0.0
    %v2104 = vmax.f32 %v2018, 0.0
    %v2105 = vmax.f32 %v2023, 0.0
    %v2106 = vmax.f32 %v2028, 0.0
    %v2107 = vmax.f32 %v2033, 0.0
    %v2108 = vmax.f32 %v2038, 0.0
    %v2109 = vmax.f32 %v2043, 0.0
    %v2110 = vmax.f32 %v2048, 0.0
    %v2111 = vmax.f32 %v2053, 0.0
    %v2112 = vmax.f32 %v2058, 0.0
    %v2113 = vrot.slane %v2061, 1
    %v2114 = vrot.slane %v2062, 1
    %v2115 = vrot.slane %v2063, 1
    %v2116 = vrot.slane %v2064, 1
    %v2117 = vrot.slane %v2065, 1
    %v2118 = vrot.slane %v2066, 1
    %v2119 = vrot.slane %v2067, 1
    %v2120 = vrot.slane %v2068, 1
    %v2121 = vrot.slane %v2069, 1
    %v2122 = vrot.slane %v2070, 1
    %v2123 = vrot.slane %v2071, 1
    %v2124 = vrot.slane %v2072, 1
    %v2125 = vrot.slane %v2073, 1
    %v2126 = vrot.slane %v2074, 1
    %v2127 = vrot.slane %v2075, 1
    %v2128 = vrot.slane %v2076, 1
    %v2129 = vrot.slane %v2077, 1
    %v2130 = vrot.slane %v2078, 1
    %v2131 = vrot.slane %v2079, 1
    %v2132 = vrot.slane %v2080, 1
    %v2133 = vrot.slane %v2081, 1
    %v2134 = vrot.slane %v2082, 1
    %v2135 = vrot.slane %v2083, 1
    %v2136 = vrot.slane %v2084, 1
    %v2137 = vrot.slane %v2085, 1
    %v2138 = vrot.slane %v2086, 1
    %v2139 = vrot.slane %v2087, 1
    %v2140 = vrot.slane %v2088, 1
    %v2141 = vrot.slane %v2089, 1
    %v2142 = vrot.slane %v2090, 1
    %v2143 = vrot.slane %v2091, 1
    %v2144 = vrot.slane %v2092, 1
    %v2145 = vrot.slane %v2093, 1
    %v2146 = vrot.slane %v2094, 1
    %v2147 = vrot.slane %v2095, 1
    %v2148 = vrot.slane %v2096, 1
    %v2149 = vrot.slane %v2097, 1
    %v2150 = vrot.slane %v2098, 1
    %v2151 = vrot.slane %v2099, 1
    %v2152 = vrot.slane %v2100, 1
    %v2153 = vrot.slane %v2101, 1
    %v2154 = vrot.slane %v2102, 1
    %v2155 = vrot.slane %v2103, 1
    %v2156 = vrot.slane %v2104, 1
    %v2157 = vrot.slane %v2105, 1
    %v2158 = vrot.slane %v2106, 1
    %v2159 = vrot.slane %v2107, 1
    %v2160 = vrot.slane %v2108, 1
    %v2161 = vrot.slane %v2109, 1
    %v2162 = vrot.slane %v2110, 1
    %v2163 = vrot.slane %v2111, 1
    %v2164 = vrot.slane %v2112, 1
    %v2165 = vsel %vm667, %v2163, %v2164
    %v2166 = vsel %vm667, %v2162, %v2163
    %v2167 = vsel %vm667, %v2161, %v2162
    %v2168 = vsel %vm667, %v2160, %v2161
    %v2169 = vsel %vm667, %v2159, %v2160
    %v2170 = vsel %vm667, %v2158, %v2159
    %v2171 = vsel %vm667, %v2157, %v2158
    %v2172 = vsel %vm667, %v2156, %v2157
    %v2173 = vsel %vm667, %v2155, %v2156
    %v2174 = vsel %vm667, %v2154, %v2155
    %v2175 = vsel %vm667, %v2153, %v2154
    %v2176 = vsel %vm667, %v2152, %v2153
    %v2177 = vsel %vm667, %v2151, %v2152
    %v2178 = vsel %vm667, %v2150, %v2151
    %v2179 = vsel %vm667, %v2149, %v2150
    %v2180 = vsel %vm667, %v2148, %v2149
    %v2181 = vsel %vm667, %v2147, %v2148
    %v2182 = vsel %vm667, %v2146, %v2147
    %v2183 = vsel %vm667, %v2145, %v2146
    %v2184 = vsel %vm667, %v2144, %v2145
    %v2185 = vsel %vm667, %v2143, %v2144
    %v2186 = vsel %vm667, %v2142, %v2143
    %v2187 = vsel %vm667, %v2141, %v2142
    %v2188 = vsel %vm667, %v2140, %v2141
    %v2189 = vsel %vm667, %v2139, %v2140
    %v2190 = vsel %vm667, %v2138, %v2139
    %v2191 = vsel %vm667, %v2137, %v2138
    %v2192 = vsel %vm667, %v2136, %v2137
    %v2193 = vsel %vm667, %v2135, %v2136
    %v2194 = vsel %vm667, %v2134, %v2135
    %v2195 = vsel %vm667, %v2133, %v2134
    %v2196 = vsel %vm667, %v2132, %v2133
    %v2197 = vsel %vm667, %v2131, %v2132
    %v2198 = vsel %vm667, %v2130, %v2131
    %v2199 = vsel %vm667, %v2129, %v2130
    %v2200 = vsel %vm667, %v2128, %v2129
    %v2201 = vsel %vm667, %v2127, %v2128
    %v2202 = vsel %vm667, %v2126, %v2127
    %v2203 = vsel %vm667, %v2125, %v2126
    %v2204 = vsel %vm667, %v2124, %v2125
    %v2205 = vsel %vm667, %v2123, %v2124
    %v2206 = vsel %vm667, %v2122, %v2123
    %v2207 = vsel %vm667, %v2121, %v2122
    %v2208 = vsel %vm667, %v2120, %v2121
    %v2209 = vsel %vm667, %v2119, %v2120
    %v2210 = vsel %vm667, %v2118, %v2119
    %v2211 = vsel %vm667, %v2117, %v2118
    %v2212 = vsel %vm667, %v2116, %v2117
    %v2213 = vsel %vm667, %v2115, %v2116
    %v2214 = vsel %vm667, %v2114, %v2115
    %v2215 = vsel %vm667, %v2113, %v2114
    %v2216 = vsel %vm667, %v2164, %v2113
    %v2217 = vmax.f32 %v2061, %v2215
    %v2218 = vmax.f32 %v2062, %v2214
    %v2219 = vmax.f32 %v2063, %v2213
    %v2220 = vmax.f32 %v2064, %v2212
    %v2221 = vmax.f32 %v2065, %v2211
    %v2222 = vmax.f32 %v2066, %v2210
    %v2223 = vmax.f32 %v2067, %v2209
    %v2224 = vmax.f32 %v2068, %v2208
    %v2225 = vmax.f32 %v2069, %v2207
    %v2226 = vmax.f32 %v2070, %v2206
    %v2227 = vmax.f32 %v2071, %v2205
    %v2228 = vmax.f32 %v2072, %v2204
    %v2229 = vmax.f32 %v2073, %v2203
    %v2230 = vmax.f32 %v2074, %v2202
    %v2231 = vmax.f32 %v2075, %v2201
    %v2232 = vmax.f32 %v2076, %v2200
    %v2233 = vmax.f32 %v2077, %v2199
    %v2234 = vmax.f32 %v2078, %v2198
    %v2235 = vmax.f32 %v2079, %v2197
    %v2236 = vmax.f32 %v2080, %v2196
    %v2237 = vmax.f32 %v2081, %v2195
    %v2238 = vmax.f32 %v2082, %v2194
    %v2239 = vmax.f32 %v2083, %v2193
    %v2240 = vmax.f32 %v2084, %v2192
    %v2241 = vmax.f32 %v2085, %v2191
    %v2242 = vmax.f32 %v2086, %v2190
    %v2243 = vmax.f32 %v2087, %v2189
    %v2244 = vmax.f32 %v2088, %v2188
    %v2245 = vmax.f32 %v2089, %v2187
    %v2246 = vmax.f32 %v2090, %v2186
    %v2247 = vmax.f32 %v2091, %v2185
    %v2248 = vmax.f32 %v2092, %v2184
    %v2249 = vmax.f32 %v2093, %v2183
    %v2250 = vmax.f32 %v2094, %v2182
    %v2251 = vmax.f32 %v2095, %v2181
    %v2252 = vmax.f32 %v2096, %v2180
    %v2253 = vmax.f32 %v2097, %v2179
    %v2254 = vmax.f32 %v2098, %v2178
    %v2255 = vmax.f32 %v2099, %v2177
    %v2256 = vmax.f32 %v2100, %v2176
    %v2257 = vmax.f32 %v2101, %v2175
    %v2258 = vmax.f32 %v2102, %v2174
    %v2259 = vmax.f32 %v2103, %v2173
    %v2260 = vmax.f32 %v2104, %v2172
    %v2261 = vmax.f32 %v2105, %v2171
    %v2262 = vmax.f32 %v2106, %v2170
    %v2263 = vmax.f32 %v2107, %v2169
    %v2264 = vmax.f32 %v2108, %v2168
    %v2265 = vmax.f32 %v2109, %v2167
    %v2266 = vmax.f32 %v2110, %v2166
    %v2267 = vmax.f32 %v2111, %v2165
    %v2268 = vmax.f32 %v2112, %v2216
    %v2269 = vld [vmem:[%s3] sm:$0xff]
    %v2270 = vld [vmem:[%s3 + $0x8] sm:$0xff]
    %v2271 = vld [vmem:[%s3 + $0x10] sm:$0xff]
    %v2272 = vld [vmem:[%s3 + $0x18] sm:$0xff]
    %v2273 = vld [vmem:[%s3 + $0x20] sm:$0xff]
    %v2274 = vld [vmem:[%s3 + $0x28] sm:$0xff]
    %v2275 = vld [vmem:[%s3 + $0x30] sm:$0xff]
    %v2276 = vld [vmem:[%s3 + $0x38] sm:$0xff]
    %v2277 = vld [vmem:[%s3 + $0x40] sm:$0xff]
    %v2278 = vld [vmem:[%s3 + $0x48] sm:$0xff]
    %v2279 = vld [vmem:[%s3 + $0x50] sm:$0xff]
    %v2280 = vld [vmem:[%s3 + $0x58] sm:$0xff]
    %v2281 = vld [vmem:[%s3 + $0x60] sm:$0xff]
    %v2282 = vld [vmem:[%s3 + $0x68] sm:$0xff]
    %v2283 = vld [vmem:[%s3 + $0x70] sm:$0xff]
    %v2284 = vld [vmem:[%s3 + $0x78] sm:$0xff]
    %v2285 = vld [vmem:[%s3 + $0x80] sm:$0xff]
    %v2286 = vld [vmem:[%s3 + $0x88] sm:$0xff]
    %v2287 = vld [vmem:[%s3 + $0x90] sm:$0xff]
    %v2288 = vld [vmem:[%s3 + $0x98] sm:$0xff]
    %v2289 = vld [vmem:[%s3 + $0xa0] sm:$0xff]
    %v2290 = vld [vmem:[%s3 + $0xa8] sm:$0xff]
    %v2291 = vld [vmem:[%s3 + $0xb0] sm:$0xff]
    %v2292 = vld [vmem:[%s3 + $0xb8] sm:$0xff]
    %v2293 = vld [vmem:[%s3 + $0xc0] sm:$0xff]
    %v2294 = vld [vmem:[%s3 + $0xc8] sm:$0xff]
    %v2295 = vld [vmem:[%s3 + $0xd0] sm:$0xff]
    %v2296 = vld [vmem:[%s3 + $0xd8] sm:$0xff]
    %v2297 = vld [vmem:[%s3 + $0xe0] sm:$0xff]
    %v2298 = vld [vmem:[%s3 + $0xe8] sm:$0xff]
    %v2299 = vld [vmem:[%s3 + $0xf0] sm:$0xff]
    %v2300 = vld [vmem:[%s3 + $0xf8] sm:$0xff]
    %v2301 = vld [vmem:[%s3 + $0x100] sm:$0xff]
    %v2302 = vld [vmem:[%s3 + $0x108] sm:$0xff]
    %v2303 = vld [vmem:[%s3 + $0x110] sm:$0xff]
    %v2304 = vld [vmem:[%s3 + $0x118] sm:$0xff]
    %v2305 = vld [vmem:[%s3 + $0x120] sm:$0xff]
    %v2306 = vld [vmem:[%s3 + $0x128] sm:$0xff]
    %v2307 = vld [vmem:[%s3 + $0x130] sm:$0xff]
    %v2308 = vld [vmem:[%s3 + $0x138] sm:$0xff]
    %v2309 = vld [vmem:[%s3 + $0x140] sm:$0xff]
    %v2310 = vld [vmem:[%s3 + $0x148] sm:$0xff]
    %v2311 = vld [vmem:[%s3 + $0x150] sm:$0xff]
    %v2312 = vld [vmem:[%s3 + $0x158] sm:$0xff]
    %v2313 = vld [vmem:[%s3 + $0x160] sm:$0xff]
    %v2314 = vld [vmem:[%s3 + $0x168] sm:$0xff]
    %v2315 = vld [vmem:[%s3 + $0x170] sm:$0xff]
    %v2316 = vld [vmem:[%s3 + $0x178] sm:$0xff]
    %v2317 = vld [vmem:[%s3 + $0x180] sm:$0xff]
    %v2318 = vld [vmem:[%s3 + $0x188] sm:$0xff]
    %v2319 = vld [vmem:[%s3 + $0x190] sm:$0xff]
    %v2320 = vld [vmem:[%s3 + $0x198] sm:$0xff]
    %v2321 = vld [vmem:[%s3 + $0x1a0] sm:$0xff]
    %v2322 = vld [vmem:[%s3 + $0x1a8] sm:$0xff]
    %v2323 = vld [vmem:[%s3 + $0x1b0] sm:$0xff]
    %v2324 = vld [vmem:[%s3 + $0x1b8] sm:$0xff]
    %v2325 = vld [vmem:[%s3 + $0x1c0] sm:$0xff]
    %v2326 = vld [vmem:[%s3 + $0x1c8] sm:$0xff]
    %v2327 = vld [vmem:[%s3 + $0x1d0] sm:$0xff]
    %v2328 = vld [vmem:[%s3 + $0x1d8] sm:$0xff]
    %v2329 = vld [vmem:[%s3 + $0x1e0] sm:$0xff]
    %v2330 = vld [vmem:[%s3 + $0x1e8] sm:$0xff]
    %v2331 = vld [vmem:[%s3 + $0x1f0] sm:$0xff]
    %v2332 = vld [vmem:[%s3 + $0x1f8] sm:$0xff]
    %v2333 = vld [vmem:[%s3 + $0x200] sm:$0xff]
    %v2334 = vld [vmem:[%s3 + $0x208] sm:$0xff]
    %v2335 = vld [vmem:[%s3 + $0x210] sm:$0xff]
    %v2336 = vld [vmem:[%s3 + $0x218] sm:$0xff]
    %v2337 = vld [vmem:[%s3 + $0x220] sm:$0xff]
    %v2338 = vld [vmem:[%s3 + $0x228] sm:$0xff]
    %v2339 = vld [vmem:[%s3 + $0x230] sm:$0xff]
    %v2340 = vld [vmem:[%s3 + $0x238] sm:$0xff]
    %v2341 = vld [vmem:[%s3 + $0x240] sm:$0xff]
    %v2342 = vld [vmem:[%s3 + $0x248] sm:$0xff]
    %v2343 = vld [vmem:[%s3 + $0x250] sm:$0xff]
    %v2344 = vld [vmem:[%s3 + $0x258] sm:$0xff]
    %v2345 = vld [vmem:[%s3 + $0x260] sm:$0xff]
    %v2346 = vld [vmem:[%s3 + $0x268] sm:$0xff]
    %v2347 = vld [vmem:[%s3 + $0x270] sm:$0xff]
    %v2348 = vld [vmem:[%s3 + $0x278] sm:$0xff]
    %v2349 = vld [vmem:[%s3 + $0x280] sm:$0xff]
    %v2350 = vld [vmem:[%s3 + $0x288] sm:$0xff]
    %v2351 = vld [vmem:[%s3 + $0x290] sm:$0xff]
    %v2352 = vld [vmem:[%s3 + $0x298] sm:$0xff]
    %v2353 = vld [vmem:[%s3 + $0x2a0] sm:$0xff]
    %v2354 = vld [vmem:[%s3 + $0x2a8] sm:$0xff]
    %v2355 = vld [vmem:[%s3 + $0x2b0] sm:$0xff]
    %v2356 = vld [vmem:[%s3 + $0x2b8] sm:$0xff]
    %v2357 = vld [vmem:[%s3 + $0x2c0] sm:$0xff]
    %v2358 = vld [vmem:[%s3 + $0x2c8] sm:$0xff]
    %v2359 = vld [vmem:[%s3 + $0x2d0] sm:$0xff]
    %v2360 = vld [vmem:[%s3 + $0x2d8] sm:$0xff]
    %v2361 = vld [vmem:[%s3 + $0x2e0] sm:$0xff]
    %v2362 = vld [vmem:[%s3 + $0x2e8] sm:$0xff]
    %v2363 = vld [vmem:[%s3 + $0x2f0] sm:$0xff]
    %v2364 = vld [vmem:[%s3 + $0x2f8] sm:$0xff]
    %v2366 = vsel %vm1554, %v2272, 0
    %v2369 = vsel %vm1554, %v2276, 0
    %v2372 = vsel %vm1554, %v2280, 0
    %v2375 = vsel %vm1554, %v2284, 0
    %v2378 = vsel %vm1554, %v2288, 0
    %v2381 = vsel %vm1554, %v2292, 0
    %v2384 = vsel %vm1554, %v2296, 0
    %v2387 = vsel %vm1554, %v2300, 0
    %v2390 = vsel %vm1554, %v2304, 0
    %v2393 = vsel %vm1554, %v2308, 0
    %v2396 = vsel %vm1554, %v2312, 0
    %v2399 = vsel %vm1554, %v2316, 0
    %v2402 = vsel %vm1554, %v2320, 0
    %v2405 = vsel %vm1554, %v2324, 0
    %v2408 = vsel %vm1554, %v2328, 0
    %v2411 = vsel %vm1554, %v2332, 0
    %v2414 = vsel %vm1554, %v2336, 0
    %v2417 = vsel %vm1554, %v2340, 0
    %v2420 = vsel %vm1554, %v2344, 0
    %v2423 = vsel %vm1554, %v2348, 0
    %v2426 = vsel %vm1554, %v2352, 0
    %v2429 = vsel %vm1554, %v2356, 0
    %v2432 = vsel %vm1554, %v2360, 0
    %v2435 = vsel %vm1554, %v2364, 0
    %2437 = vmatprep.subr.mxu0 0.0
    %2438 = vmatpush1.msra.mxu0 %v2217
    %2439 = vmatprep.subr.mxu0 0.0
    %2440 = vmatpush1.msra.mxu0 %v2218
    %2441 = vmatprep.subr.mxu0 0.0
    %2442 = vmatpush1.msra.mxu0 %v2219
    %2443 = vmatprep.subr.mxu0 0.0
    %2444 = vmatpush1.msra.mxu0 %v2220
    %2445 = vmatprep.subr.mxu0 0.0
    %2446 = vmatpush1.msra.mxu0 %v2221
    %2447 = vmatprep.subr.mxu0 0.0
    %2448 = vmatpush1.msra.mxu0 %v2222
    %2449 = vmatprep.subr.mxu0 0.0
    %2450 = vmatpush1.msra.mxu0 %v2223
    %2451 = vmatprep.subr.mxu0 0.0
    %2452 = vmatpush1.msra.mxu0 %v2224
    %2453 = vmatprep.subr.mxu0 0.0
    %2454 = vmatpush1.msra.mxu0 %v2225
    %2455 = vmatprep.subr.mxu0 0.0
    %2456 = vmatpush1.msra.mxu0 %v2226
    %2457 = vmatprep.subr.mxu0 0.0
    %2458 = vmatpush1.msra.mxu0 %v2227
    %2459 = vmatprep.subr.mxu0 0.0
    %2460 = vmatpush1.msra.mxu0 %v2228
    %2461 = vmatprep.subr.mxu0 0.0
    %2462 = vmatpush1.msra.mxu0 %v2229
    %2463 = vmatprep.subr.mxu0 0.0
    %2464 = vmatpush1.msra.mxu0 %v2230
    %2465 = vmatprep.subr.mxu0 0.0
    %2466 = vmatpush1.msra.mxu0 %v2231
    %2467 = vmatprep.subr.mxu0 0.0
    %2468 = vmatpush1.msra.mxu0 %v2232
    %2469 = vmatprep.subr.mxu0 0.0
    %2470 = vmatpush1.msra.mxu0 %v2233
    %2471 = vmatprep.subr.mxu0 0.0
    %2472 = vmatpush1.msra.mxu0 %v2234
    %2473 = vmatprep.subr.mxu0 0.0
    %2474 = vmatpush1.msra.mxu0 %v2235
    %2475 = vmatprep.subr.mxu0 0.0
    %2476 = vmatpush1.msra.mxu0 %v2236
    %2477 = vmatprep.subr.mxu0 0.0
    %2478 = vmatpush1.msra.mxu0 %v2237
    %2479 = vmatprep.subr.mxu0 0.0
    %2480 = vmatpush1.msra.mxu0 %v2238
    %2481 = vmatprep.subr.mxu0 0.0
    %2482 = vmatpush1.msra.mxu0 %v2239
    %2483 = vmatprep.subr.mxu0 0.0
    %2484 = vmatpush1.msra.mxu0 %v2240
    %2485 = vmatprep.subr.mxu0 0.0
    %2486 = vmatpush1.msra.mxu0 %v2241
    %2487 = vmatprep.subr.mxu0 0.0
    %2488 = vmatpush1.msra.mxu0 %v2242
    %2489 = vmatprep.subr.mxu0 0.0
    %2490 = vmatpush1.msra.mxu0 %v2243
    %2491 = vmatprep.subr.mxu0 0.0
    %2492 = vmatpush1.msra.mxu0 %v2244
    %2493 = vmatprep.subr.mxu0 0.0
    %2494 = vmatpush1.msra.mxu0 %v2245
    %2495 = vmatprep.subr.mxu0 0.0
    %2496 = vmatpush1.msra.mxu0 %v2246
    %2497 = vmatprep.subr.mxu0 0.0
    %2498 = vmatpush1.msra.mxu0 %v2247
    %2499 = vmatprep.subr.mxu0 0.0
    %2500 = vmatpush1.msra.mxu0 %v2248
    %2501 = vmatprep.mubr.f32.mxu0 %v2270
    %2502 = vmatmul.mubr.f32.gmra.mrb[0].mxu0 %v2269
    %v2503 = vpop.f32.mrb[0].mxu0
    %v2504 = vadd.f32 0.0, %v2503
    %v2505 = vpop.f32.mrb[0].mxu0
    %2506 = vmatprep.mubr.f32.mxu0 %v2274
    %2507 = vmatmul.mubr.f32.gmra.mrb[0].mxu0 %v2273
    %v2508 = vpop.f32.mrb[0].mxu0
    %v2509 = vadd.f32 0.0, %v2508
    %v2510 = vpop.f32.mrb[0].mxu0
    %2511 = vmatprep.mubr.f32.mxu0 %v2278
    %2512 = vmatmul.mubr.f32.gmra.mrb[0].mxu0 %v2277
    %v2513 = vpop.f32.mrb[0].mxu0
    %v2514 = vadd.f32 0.0, %v2513
    %v2515 = vpop.f32.mrb[0].mxu0
    %2516 = vmatprep.mubr.f32.mxu0 %v2282
    %2517 = vmatmul.mubr.f32.gmra.mrb[0].mxu0 %v2281
    %v2518 = vpop.f32.mrb[0].mxu0
    %v2519 = vadd.f32 0.0, %v2518
    %v2520 = vpop.f32.mrb[0].mxu0
    %2521 = vmatprep.mubr.f32.mxu0 %v2286
    %2522 = vmatmul.mubr.f32.gmra.mrb[0].mxu0 %v2285
    %v2523 = vpop.f32.mrb[0].mxu0
    %v2524 = vadd.f32 0.0, %v2523
    %v2525 = vpop.f32.mrb[0].mxu0
    %2526 = vmatprep.mubr.f32.mxu0 %v2290
    %2527 = vmatmul.mubr.f32.gmra.mrb[0].mxu0 %v2289
    %v2528 = vpop.f32.mrb[0].mxu0
    %v2529 = vadd.f32 0.0, %v2528
    %v2530 = vpop.f32.mrb[0].mxu0
    %2531 = vmatprep.mubr.f32.mxu0 %v2294
    %2532 = vmatmul.mubr.f32.gmra.mrb[0].mxu0 %v2293
    %v2533 = vpop.f32.mrb[0].mxu0
    %v2534 = vadd.f32 0.0, %v2533
    %v2535 = vpop.f32.mrb[0].mxu0
    %2536 = vmatprep.mubr.f32.mxu0 %v2298
    %2537 = vmatmul.mubr.f32.gmra.mrb[0].mxu0 %v2297
    %v2538 = vpop.f32.mrb[0].mxu0
    %v2539 = vadd.f32 0.0, %v2538
    %v2540 = vpop.f32.mrb[0].mxu0
    %2541 = vmatprep.mubr.f32.mxu0 %v2302
    %2542 = vmatmul.mubr.f32.gmra.mrb[0].mxu0 %v2301
    %v2543 = vpop.f32.mrb[0].mxu0
    %v2544 = vadd.f32 0.0, %v2543
    %v2545 = vpop.f32.mrb[0].mxu0
    %2546 = vmatprep.mubr.f32.mxu0 %v2306
    %2547 = vmatmul.mubr.f32.gmra.mrb[0].mxu0 %v2305
    %v2548 = vpop.f32.mrb[0].mxu0
    %v2549 = vadd.f32 0.0, %v2548
    %v2550 = vpop.f32.mrb[0].mxu0
    %2551 = vmatprep.mubr.f32.mxu0 %v2310
    %2552 = vmatmul.mubr.f32.gmra.mrb[0].mxu0 %v2309
    %v2553 = vpop.f32.mrb[0].mxu0
    %v2554 = vadd.f32 0.0, %v2553
    %v2555 = vpop.f32.mrb[0].mxu0
    %2556 = vmatprep.mubr.f32.mxu0 %v2314
    %2557 = vmatmul.mubr.f32.gmra.mrb[0].mxu0 %v2313
    %v2558 = vpop.f32.mrb[0].mxu0
    %v2559 = vadd.f32 0.0, %v2558
    %v2560 = vpop.f32.mrb[0].mxu0
    %2561 = vmatprep.mubr.f32.mxu0 %v2318
    %2562 = vmatmul.mubr.f32.gmra.mrb[0].mxu0 %v2317
    %v2563 = vpop.f32.mrb[0].mxu0
    %v2564 = vadd.f32 0.0, %v2563
    %v2565 = vpop.f32.mrb[0].mxu0
    %2566 = vmatprep.mubr.f32.mxu0 %v2322
    %2567 = vmatmul.mubr.f32.gmra.mrb[0].mxu0 %v2321
    %v2568 = vpop.f32.mrb[0].mxu0
    %v2569 = vadd.f32 0.0, %v2568
    %v2570 = vpop.f32.mrb[0].mxu0
    %2571 = vmatprep.mubr.f32.mxu0 %v2326
    %2572 = vmatmul.mubr.f32.gmra.mrb[0].mxu0 %v2325
    %v2573 = vpop.f32.mrb[0].mxu0
    %v2574 = vadd.f32 0.0, %v2573
    %v2575 = vpop.f32.mrb[0].mxu0
    %2576 = vmatprep.mubr.f32.mxu0 %v2330
    %2577 = vmatmul.mubr.f32.gmra.mrb[0].mxu0 %v2329
    %v2578 = vpop.f32.mrb[0].mxu0
    %v2579 = vadd.f32 0.0, %v2578
    %v2580 = vpop.f32.mrb[0].mxu0
    %2581 = vmatprep.mubr.f32.mxu0 %v2334
    %2582 = vmatmul.mubr.f32.gmra.mrb[0].mxu0 %v2333
    %v2583 = vpop.f32.mrb[0].mxu0
    %v2584 = vadd.f32 0.0, %v2583
    %v2585 = vpop.f32.mrb[0].mxu0
    %2586 = vmatprep.mubr.f32.mxu0 %v2338
    %2587 = vmatmul.mubr.f32.gmra.mrb[0].mxu0 %v2337
    %v2588 = vpop.f32.mrb[0].mxu0
    %v2589 = vadd.f32 0.0, %v2588
    %v2590 = vpop.f32.mrb[0].mxu0
    %2591 = vmatprep.mubr.f32.mxu0 %v2342
    %2592 = vmatmul.mubr.f32.gmra.mrb[0].mxu0 %v2341
    %v2593 = vpop.f32.mrb[0].mxu0
    %v2594 = vadd.f32 0.0, %v2593
    %v2595 = vpop.f32.mrb[0].mxu0
    %2596 = vmatprep.mubr.f32.mxu0 %v2346
    %2597 = vmatmul.mubr.f32.gmra.mrb[0].mxu0 %v2345
    %v2598 = vpop.f32.mrb[0].mxu0
    %v2599 = vadd.f32 0.0, %v2598
    %v2600 = vpop.f32.mrb[0].mxu0
    %2601 = vmatprep.mubr.f32.mxu0 %v2350
    %2602 = vmatmul.mubr.f32.gmra.mrb[0].mxu0 %v2349
    %v2603 = vpop.f32.mrb[0].mxu0
    %v2604 = vadd.f32 0.0, %v2603
    %v2605 = vpop.f32.mrb[0].mxu0
    %2606 = vmatprep.mubr.f32.mxu0 %v2354
    %2607 = vmatmul.mubr.f32.gmra.mrb[0].mxu0 %v2353
    %v2608 = vpop.f32.mrb[0].mxu0
    %v2609 = vadd.f32 0.0, %v2608
    %v2610 = vpop.f32.mrb[0].mxu0
    %2611 = vmatprep.mubr.f32.mxu0 %v2358
    %2612 = vmatmul.mubr.f32.gmra.mrb[0].mxu0 %v2357
    %v2613 = vpop.f32.mrb[0].mxu0
    %v2614 = vadd.f32 0.0, %v2613
    %v2615 = vpop.f32.mrb[0].mxu0
    %2616 = vmatprep.mubr.f32.mxu0 %v2362
    %2617 = vmatmul.mubr.f32.gmra.mrb[0].mxu0 %v2361
    %v2618 = vpop.f32.mrb[0].mxu0
    %v2619 = vadd.f32 0.0, %v2618
    %v2620 = vpop.f32.mrb[0].mxu0
    %2621 = vdwg.mxu0
    %2622 = vmatprep.subr.mxu0 0.0
    %2623 = vmatpush1.msra.mxu0 %v2249
    %2624 = vmatprep.subr.mxu0 0.0
    %2625 = vmatpush1.msra.mxu0 %v2250
    %2626 = vmatprep.subr.mxu0 0.0
    %2627 = vmatpush1.msra.mxu0 %v2251
    %2628 = vmatprep.subr.mxu0 0.0
    %2629 = vmatpush1.msra.mxu0 %v2252
    %2630 = vmatprep.subr.mxu0 0.0
    %2631 = vmatpush1.msra.mxu0 %v2253
    %2632 = vmatprep.subr.mxu0 0.0
    %2633 = vmatpush1.msra.mxu0 %v2254
    %2634 = vmatprep.subr.mxu0 0.0
    %2635 = vmatpush1.msra.mxu0 %v2255
    %2636 = vmatprep.subr.mxu0 0.0
    %2637 = vmatpush1.msra.mxu0 %v2256
    %2638 = vmatprep.subr.mxu0 0.0
    %2639 = vmatpush1.msra.mxu0 %v2257
    %2640 = vmatprep.subr.mxu0 0.0
    %2641 = vmatpush1.msra.mxu0 %v2258
    %2642 = vmatprep.subr.mxu0 0.0
    %2643 = vmatpush1.msra.mxu0 %v2259
    %2644 = vmatprep.subr.mxu0 0.0
    %2645 = vmatpush1.msra.mxu0 %v2260
    %2646 = vmatprep.subr.mxu0 0.0
    %2647 = vmatpush1.msra.mxu0 %v2261
    %2648 = vmatprep.subr.mxu0 0.0
    %2649 = vmatpush1.msra.mxu0 %v2262
    %2650 = vmatprep.subr.mxu0 0.0
    %2651 = vmatpush1.msra.mxu0 %v2263
    %2652 = vmatprep.subr.mxu0 0.0
    %2653 = vmatpush1.msra.mxu0 %v2264
    %2654 = vmatprep.subr.mxu0 0.0
    %2655 = vmatpush1.msra.mxu0 %v2265
    %2656 = vmatprep.subr.mxu0 0.0
    %2657 = vmatpush1.msra.mxu0 %v2266
    %2658 = vmatprep.subr.mxu0 0.0
    %2659 = vmatpush1.msra.mxu0 %v2267
    %2660 = vmatprep.subr.mxu0 0.0
    %2661 = vmatpush1.msra.mxu0 %v2268
    %2662 = vmatprep.subr.mxu0 0.0
    %2663 = vmatpush1.msra.mxu0 0.0
    %2664 = vmatprep.subr.mxu0 0.0
    %2665 = vmatpush1.msra.mxu0 0.0
    %2666 = vmatprep.subr.mxu0 0.0
    %2667 = vmatpush1.msra.mxu0 0.0
    %2668 = vmatprep.subr.mxu0 0.0
    %2669 = vmatpush1.msra.mxu0 0.0
    %2670 = vmatprep.subr.mxu0 0.0
    %2671 = vmatpush1.msra.mxu0 0.0
    %2672 = vmatprep.subr.mxu0 0.0
    %2673 = vmatpush1.msra.mxu0 0.0
    %2674 = vmatprep.subr.mxu0 0.0
    %2675 = vmatpush1.msra.mxu0 0.0
    %2676 = vmatprep.subr.mxu0 0.0
    %2677 = vmatpush1.msra.mxu0 0.0
    %2678 = vmatprep.subr.mxu0 0.0
    %2679 = vmatpush1.msra.mxu0 0.0
    %2680 = vmatprep.subr.mxu0 0.0
    %2681 = vmatpush1.msra.mxu0 0.0
    %2682 = vmatprep.subr.mxu0 0.0
    %2683 = vmatpush1.msra.mxu0 0.0
    %2684 = vmatprep.subr.mxu0 0.0
    %2685 = vmatpush1.msra.mxu0 0.0
    %2686 = vmatprep.mubr.f32.mxu0 %v2366
    %2687 = vmatmul.mubr.f32.gmra.mrb[0].mxu0 %v2271
    %v2688 = vpop.f32.mrb[0].mxu0
    %v2689 = vadd.f32 %v2504, %v2688
    %v2690 = vpop.f32.mrb[0].mxu0
    %2691 = vmatprep.mubr.f32.mxu0 %v2369
    %2692 = vmatmul.mubr.f32.gmra.mrb[0].mxu0 %v2275
    %v2693 = vpop.f32.mrb[0].mxu0
    %v2694 = vadd.f32 %v2509, %v2693
    %v2695 = vpop.f32.mrb[0].mxu0
    %2696 = vmatprep.mubr.f32.mxu0 %v2372
    %2697 = vmatmul.mubr.f32.gmra.mrb[0].mxu0 %v2279
    %v2698 = vpop.f32.mrb[0].mxu0
    %v2699 = vadd.f32 %v2514, %v2698
    %v2700 = vpop.f32.mrb[0].mxu0
    %2701 = vmatprep.mubr.f32.mxu0 %v2375
    %2702 = vmatmul.mubr.f32.gmra.mrb[0].mxu0 %v2283
    %v2703 = vpop.f32.mrb[0].mxu0
    %v2704 = vadd.f32 %v2519, %v2703
    %v2705 = vpop.f32.mrb[0].mxu0
    %2706 = vmatprep.mubr.f32.mxu0 %v2378
    %2707 = vmatmul.mubr.f32.gmra.mrb[0].mxu0 %v2287
    %v2708 = vpop.f32.mrb[0].mxu0
    %v2709 = vadd.f32 %v2524, %v2708
    %v2710 = vpop.f32.mrb[0].mxu0
    %2711 = vmatprep.mubr.f32.mxu0 %v2381
    %2712 = vmatmul.mubr.f32.gmra.mrb[0].mxu0 %v2291
    %v2713 = vpop.f32.mrb[0].mxu0
    %v2714 = vadd.f32 %v2529, %v2713
    %v2715 = vpop.f32.mrb[0].mxu0
    %2716 = vmatprep.mubr.f32.mxu0 %v2384
    %2717 = vmatmul.mubr.f32.gmra.mrb[0].mxu0 %v2295
    %v2718 = vpop.f32.mrb[0].mxu0
    %v2719 = vadd.f32 %v2534, %v2718
    %v2720 = vpop.f32.mrb[0].mxu0
    %2721 = vmatprep.mubr.f32.mxu0 %v2387
    %2722 = vmatmul.mubr.f32.gmra.mrb[0].mxu0 %v2299
    %v2723 = vpop.f32.mrb[0].mxu0
    %v2724 = vadd.f32 %v2539, %v2723
    %v2725 = vpop.f32.mrb[0].mxu0
    %2726 = vmatprep.mubr.f32.mxu0 %v2390
    %2727 = vmatmul.mubr.f32.gmra.mrb[0].mxu0 %v2303
    %v2728 = vpop.f32.mrb[0].mxu0
    %v2729 = vadd.f32 %v2544, %v2728
    %v2730 = vpop.f32.mrb[0].mxu0
    %2731 = vmatprep.mubr.f32.mxu0 %v2393
    %2732 = vmatmul.mubr.f32.gmra.mrb[0].mxu0 %v2307
    %v2733 = vpop.f32.mrb[0].mxu0
    %v2734 = vadd.f32 %v2549, %v2733
    %v2735 = vpop.f32.mrb[0].mxu0
    %2736 = vmatprep.mubr.f32.mxu0 %v2396
    %2737 = vmatmul.mubr.f32.gmra.mrb[0].mxu0 %v2311
    %v2738 = vpop.f32.mrb[0].mxu0
    %v2739 = vadd.f32 %v2554, %v2738
    %v2740 = vpop.f32.mrb[0].mxu0
    %2741 = vmatprep.mubr.f32.mxu0 %v2399
    %2742 = vmatmul.mubr.f32.gmra.mrb[0].mxu0 %v2315
    %v2743 = vpop.f32.mrb[0].mxu0
    %v2744 = vadd.f32 %v2559, %v2743
    %v2745 = vpop.f32.mrb[0].mxu0
    %2746 = vmatprep.mubr.f32.mxu0 %v2402
    %2747 = vmatmul.mubr.f32.gmra.mrb[0].mxu0 %v2319
    %v2748 = vpop.f32.mrb[0].mxu0
    %v2749 = vadd.f32 %v2564, %v2748
    %v2750 = vpop.f32.mrb[0].mxu0
    %2751 = vmatprep.mubr.f32.mxu0 %v2405
    %2752 = vmatmul.mubr.f32.gmra.mrb[0].mxu0 %v2323
    %v2753 = vpop.f32.mrb[0].mxu0
    %v2754 = vadd.f32 %v2569, %v2753
    %v2755 = vpop.f32.mrb[0].mxu0
    %2756 = vmatprep.mubr.f32.mxu0 %v2408
    %2757 = vmatmul.mubr.f32.gmra.mrb[0].mxu0 %v2327
    %v2758 = vpop.f32.mrb[0].mxu0
    %v2759 = vadd.f32 %v2574, %v2758
    %v2760 = vpop.f32.mrb[0].mxu0
    %2761 = vmatprep.mubr.f32.mxu0 %v2411
    %2762 = vmatmul.mubr.f32.gmra.mrb[0].mxu0 %v2331
    %v2763 = vpop.f32.mrb[0].mxu0
    %v2764 = vadd.f32 %v2579, %v2763
    %v2765 = vpop.f32.mrb[0].mxu0
    %2766 = vmatprep.mubr.f32.mxu0 %v2414
    %2767 = vmatmul.mubr.f32.gmra.mrb[0].mxu0 %v2335
    %v2768 = vpop.f32.mrb[0].mxu0
    %v2769 = vadd.f32 %v2584, %v2768
    %v2770 = vpop.f32.mrb[0].mxu0
    %2771 = vmatprep.mubr.f32.mxu0 %v2417
    %2772 = vmatmul.mubr.f32.gmra.mrb[0].mxu0 %v2339
    %v2773 = vpop.f32.mrb[0].mxu0
    %v2774 = vadd.f32 %v2589, %v2773
    %v2775 = vpop.f32.mrb[0].mxu0
    %2776 = vmatprep.mubr.f32.mxu0 %v2420
    %2777 = vmatmul.mubr.f32.gmra.mrb[0].mxu0 %v2343
    %v2778 = vpop.f32.mrb[0].mxu0
    %v2779 = vadd.f32 %v2594, %v2778
    %v2780 = vpop.f32.mrb[0].mxu0
    %2781 = vmatprep.mubr.f32.mxu0 %v2423
    %2782 = vmatmul.mubr.f32.gmra.mrb[0].mxu0 %v2347
    %v2783 = vpop.f32.mrb[0].mxu0
    %v2784 = vadd.f32 %v2599, %v2783
    %v2785 = vpop.f32.mrb[0].mxu0
    %2786 = vmatprep.mubr.f32.mxu0 %v2426
    %2787 = vmatmul.mubr.f32.gmra.mrb[0].mxu0 %v2351
    %v2788 = vpop.f32.mrb[0].mxu0
    %v2789 = vadd.f32 %v2604, %v2788
    %v2790 = vpop.f32.mrb[0].mxu0
    %2791 = vmatprep.mubr.f32.mxu0 %v2429
    %2792 = vmatmul.mubr.f32.gmra.mrb[0].mxu0 %v2355
    %v2793 = vpop.f32.mrb[0].mxu0
    %v2794 = vadd.f32 %v2609, %v2793
    %v2795 = vpop.f32.mrb[0].mxu0
    %2796 = vmatprep.mubr.f32.mxu0 %v2432
    %2797 = vmatmul.mubr.f32.gmra.mrb[0].mxu0 %v2359
    %v2798 = vpop.f32.mrb[0].mxu0
    %v2799 = vadd.f32 %v2614, %v2798
    %v2800 = vpop.f32.mrb[0].mxu0
    %2801 = vmatprep.mubr.f32.mxu0 %v2435
    %2802 = vmatmul.mubr.f32.gmra.mrb[0].mxu0 %v2363
    %v2803 = vpop.f32.mrb[0].mxu0
    %v2804 = vadd.f32 %v2619, %v2803
    %v2805 = vpop.f32.mrb[0].mxu0
    %2806 = vdwg.mxu0
    %v2807 = vrot.slane %v2689, 1
    %v2808 = vrot.slane %v2694, 1
    %v2809 = vrot.slane %v2699, 1
    %v2810 = vrot.slane %v2704, 1
    %v2811 = vrot.slane %v2709, 1
    %v2812 = vrot.slane %v2714, 1
    %v2813 = vrot.slane %v2719, 1
    %v2814 = vrot.slane %v2724, 1
    %v2815 = vrot.slane %v2729, 1
    %v2816 = vrot.slane %v2734, 1
    %v2817 = vrot.slane %v2739, 1
    %v2818 = vrot.slane %v2744, 1
    %v2819 = vrot.slane %v2749, 1
    %v2820 = vrot.slane %v2754, 1
    %v2821 = vrot.slane %v2759, 1
    %v2822 = vrot.slane %v2764, 1
    %v2823 = vrot.slane %v2769, 1
    %v2824 = vrot.slane %v2774, 1
    %v2825 = vrot.slane %v2779, 1
    %v2826 = vrot.slane %v2784, 1
    %v2827 = vrot.slane %v2789, 1
    %v2828 = vrot.slane %v2794, 1
    %v2829 = vrot.slane %v2799, 1
    %v2830 = vrot.slane %v2804, 1
    %v2831 = vsel %vm667, %v2829, %v2830
    %v2832 = vsel %vm667, %v2828, %v2829
    %v2833 = vsel %vm667, %v2827, %v2828
    %v2834 = vsel %vm667, %v2826, %v2827
    %v2835 = vsel %vm667, %v2825, %v2826
    %v2836 = vsel %vm667, %v2824, %v2825
    %v2837 = vsel %vm667, %v2823, %v2824
    %v2838 = vsel %vm667, %v2822, %v2823
    %v2839 = vsel %vm667, %v2821, %v2822
    %v2840 = vsel %vm667, %v2820, %v2821
    %v2841 = vsel %vm667, %v2819, %v2820
    %v2842 = vsel %vm667, %v2818, %v2819
    %v2843 = vsel %vm667, %v2817, %v2818
    %v2844 = vsel %vm667, %v2816, %v2817
    %v2845 = vsel %vm667, %v2815, %v2816
    %v2846 = vsel %vm667, %v2814, %v2815
    %v2847 = vsel %vm667, %v2813, %v2814
    %v2848 = vsel %vm667, %v2812, %v2813
    %v2849 = vsel %vm667, %v2811, %v2812
    %v2850 = vsel %vm667, %v2810, %v2811
    %v2851 = vsel %vm667, %v2809, %v2810
    %v2852 = vsel %vm667, %v2808, %v2809
    %v2853 = vsel %vm667, %v2807, %v2808
    %v2854 = vsel %vm667, %v2830, %v2807
    %v2855 = vrot.slane %v2689, 2
    %v2856 = vrot.slane %v2694, 2
    %v2857 = vrot.slane %v2699, 2
    %v2858 = vrot.slane %v2704, 2
    %v2859 = vrot.slane %v2709, 2
    %v2860 = vrot.slane %v2714, 2
    %v2861 = vrot.slane %v2719, 2
    %v2862 = vrot.slane %v2724, 2
    %v2863 = vrot.slane %v2729, 2
    %v2864 = vrot.slane %v2734, 2
    %v2865 = vrot.slane %v2739, 2
    %v2866 = vrot.slane %v2744, 2
    %v2867 = vrot.slane %v2749, 2
    %v2868 = vrot.slane %v2754, 2
    %v2869 = vrot.slane %v2759, 2
    %v2870 = vrot.slane %v2764, 2
    %v2871 = vrot.slane %v2769, 2
    %v2872 = vrot.slane %v2774, 2
    %v2873 = vrot.slane %v2779, 2
    %v2874 = vrot.slane %v2784, 2
    %v2875 = vrot.slane %v2789, 2
    %v2876 = vrot.slane %v2794, 2
    %v2877 = vrot.slane %v2799, 2
    %v2878 = vrot.slane %v2804, 2
    %v2879 = vsel %vm772, %v2877, %v2878
    %v2880 = vsel %vm772, %v2876, %v2877
    %v2881 = vsel %vm772, %v2875, %v2876
    %v2882 = vsel %vm772, %v2874, %v2875
    %v2883 = vsel %vm772, %v2873, %v2874
    %v2884 = vsel %vm772, %v2872, %v2873
    %v2885 = vsel %vm772, %v2871, %v2872
    %v2886 = vsel %vm772, %v2870, %v2871
    %v2887 = vsel %vm772, %v2869, %v2870
    %v2888 = vsel %vm772, %v2868, %v2869
    %v2889 = vsel %vm772, %v2867, %v2868
    %v2890 = vsel %vm772, %v2866, %v2867
    %v2891 = vsel %vm772, %v2865, %v2866
    %v2892 = vsel %vm772, %v2864, %v2865
    %v2893 = vsel %vm772, %v2863, %v2864
    %v2894 = vsel %vm772, %v2862, %v2863
    %v2895 = vsel %vm772, %v2861, %v2862
    %v2896 = vsel %vm772, %v2860, %v2861
    %v2897 = vsel %vm772, %v2859, %v2860
    %v2898 = vsel %vm772, %v2858, %v2859
    %v2899 = vsel %vm772, %v2857, %v2858
    %v2900 = vsel %vm772, %v2856, %v2857
    %v2901 = vsel %vm772, %v2855, %v2856
    %v2902 = vsel %vm772, %v2878, %v2855
    %v2903 = vrot.slane %v2689, 3
    %v2904 = vrot.slane %v2694, 3
    %v2905 = vrot.slane %v2699, 3
    %v2906 = vrot.slane %v2704, 3
    %v2907 = vrot.slane %v2709, 3
    %v2908 = vrot.slane %v2714, 3
    %v2909 = vrot.slane %v2719, 3
    %v2910 = vrot.slane %v2724, 3
    %v2911 = vrot.slane %v2729, 3
    %v2912 = vrot.slane %v2734, 3
    %v2913 = vrot.slane %v2739, 3
    %v2914 = vrot.slane %v2744, 3
    %v2915 = vrot.slane %v2749, 3
    %v2916 = vrot.slane %v2754, 3
    %v2917 = vrot.slane %v2759, 3
    %v2918 = vrot.slane %v2764, 3
    %v2919 = vrot.slane %v2769, 3
    %v2920 = vrot.slane %v2774, 3
    %v2921 = vrot.slane %v2779, 3
    %v2922 = vrot.slane %v2784, 3
    %v2923 = vrot.slane %v2789, 3
    %v2924 = vrot.slane %v2794, 3
    %v2925 = vrot.slane %v2799, 3
    %v2926 = vrot.slane %v2804, 3
    %v2927 = vsel %vm877, %v2925, %v2926
    %v2928 = vsel %vm877, %v2924, %v2925
    %v2929 = vsel %vm877, %v2923, %v2924
    %v2930 = vsel %vm877, %v2922, %v2923
    %v2931 = vsel %vm877, %v2921, %v2922
    %v2932 = vsel %vm877, %v2920, %v2921
    %v2933 = vsel %vm877, %v2919, %v2920
    %v2934 = vsel %vm877, %v2918, %v2919
    %v2935 = vsel %vm877, %v2917, %v2918
    %v2936 = vsel %vm877, %v2916, %v2917
    %v2937 = vsel %vm877, %v2915, %v2916
    %v2938 = vsel %vm877, %v2914, %v2915
    %v2939 = vsel %vm877, %v2913, %v2914
    %v2940 = vsel %vm877, %v2912, %v2913
    %v2941 = vsel %vm877, %v2911, %v2912
    %v2942 = vsel %vm877, %v2910, %v2911
    %v2943 = vsel %vm877, %v2909, %v2910
    %v2944 = vsel %vm877, %v2908, %v2909
    %v2945 = vsel %vm877, %v2907, %v2908
    %v2946 = vsel %vm877, %v2906, %v2907
    %v2947 = vsel %vm877, %v2905, %v2906
    %v2948 = vsel %vm877, %v2904, %v2905
    %v2949 = vsel %vm877, %v2903, %v2904
    %v2950 = vsel %vm877, %v2926, %v2903
    %2975 = vrot.lane.b32.xlu0 %v2853, 32
    %v2976 = vpop.permute.xlu0 %2975
    %2977 = vrot.lane.b32.xlu0 %v2852, 32
    %v2978 = vpop.permute.xlu0 %2977
    %2979 = vrot.lane.b32.xlu0 %v2851, 32
    %v2980 = vpop.permute.xlu0 %2979
    %2981 = vrot.lane.b32.xlu0 %v2850, 32
    %v2982 = vpop.permute.xlu0 %2981
    %2983 = vrot.lane.b32.xlu0 %v2849, 32
    %v2984 = vpop.permute.xlu0 %2983
    %2985 = vrot.lane.b32.xlu0 %v2848, 32
    %v2986 = vpop.permute.xlu0 %2985
    %2987 = vrot.lane.b32.xlu0 %v2847, 32
    %v2988 = vpop.permute.xlu0 %2987
    %2989 = vrot.lane.b32.xlu0 %v2846, 32
    %v2990 = vpop.permute.xlu0 %2989
    %2991 = vrot.lane.b32.xlu0 %v2845, 32
    %v2992 = vpop.permute.xlu0 %2991
    %2993 = vrot.lane.b32.xlu0 %v2844, 32
    %v2994 = vpop.permute.xlu0 %2993
    %2995 = vrot.lane.b32.xlu0 %v2843, 32
    %v2996 = vpop.permute.xlu0 %2995
    %2997 = vrot.lane.b32.xlu0 %v2842, 32
    %v2998 = vpop.permute.xlu0 %2997
    %2999 = vrot.lane.b32.xlu0 %v2841, 32
    %v3000 = vpop.permute.xlu0 %2999
    %3001 = vrot.lane.b32.xlu0 %v2840, 32
    %v3002 = vpop.permute.xlu0 %3001
    %3003 = vrot.lane.b32.xlu0 %v2839, 32
    %v3004 = vpop.permute.xlu0 %3003
    %3005 = vrot.lane.b32.xlu0 %v2838, 32
    %v3006 = vpop.permute.xlu0 %3005
    %3007 = vrot.lane.b32.xlu0 %v2837, 32
    %v3008 = vpop.permute.xlu0 %3007
    %3009 = vrot.lane.b32.xlu0 %v2836, 32
    %v3010 = vpop.permute.xlu0 %3009
    %3011 = vrot.lane.b32.xlu0 %v2835, 32
    %v3012 = vpop.permute.xlu0 %3011
    %3013 = vrot.lane.b32.xlu0 %v2834, 32
    %v3014 = vpop.permute.xlu0 %3013
    %3015 = vrot.lane.b32.xlu0 %v2833, 32
    %v3016 = vpop.permute.xlu0 %3015
    %3017 = vrot.lane.b32.xlu0 %v2832, 32
    %v3018 = vpop.permute.xlu0 %3017
    %3019 = vrot.lane.b32.xlu0 %v2831, 32
    %v3020 = vpop.permute.xlu0 %3019
    %3021 = vrot.lane.b32.xlu0 %v2854, 32
    %v3022 = vpop.permute.xlu0 %3021
    %3071 = vrot.lane.b32.xlu0 %v2901, 64
    %v3072 = vpop.permute.xlu0 %3071
    %3073 = vrot.lane.b32.xlu0 %v2900, 64
    %v3074 = vpop.permute.xlu0 %3073
    %3075 = vrot.lane.b32.xlu0 %v2899, 64
    %v3076 = vpop.permute.xlu0 %3075
    %3077 = vrot.lane.b32.xlu0 %v2898, 64
    %v3078 = vpop.permute.xlu0 %3077
    %3079 = vrot.lane.b32.xlu0 %v2897, 64
    %v3080 = vpop.permute.xlu0 %3079
    %3081 = vrot.lane.b32.xlu0 %v2896, 64
    %v3082 = vpop.permute.xlu0 %3081
    %3083 = vrot.lane.b32.xlu0 %v2895, 64
    %v3084 = vpop.permute.xlu0 %3083
    %3085 = vrot.lane.b32.xlu0 %v2894, 64
    %v3086 = vpop.permute.xlu0 %3085
    %3087 = vrot.lane.b32.xlu0 %v2893, 64
    %v3088 = vpop.permute.xlu0 %3087
    %3089 = vrot.lane.b32.xlu0 %v2892, 64
    %v3090 = vpop.permute.xlu0 %3089
    %3091 = vrot.lane.b32.xlu0 %v2891, 64
    %v3092 = vpop.permute.xlu0 %3091
    %3093 = vrot.lane.b32.xlu0 %v2890, 64
    %v3094 = vpop.permute.xlu0 %3093
    %3095 = vrot.lane.b32.xlu0 %v2889, 64
    %v3096 = vpop.permute.xlu0 %3095
    %3097 = vrot.lane.b32.xlu0 %v2888, 64
    %v3098 = vpop.permute.xlu0 %3097
    %3099 = vrot.lane.b32.xlu0 %v2887, 64
    %v3100 = vpop.permute.xlu0 %3099
    %3101 = vrot.lane.b32.xlu0 %v2886, 64
    %v3102 = vpop.permute.xlu0 %3101
    %3103 = vrot.lane.b32.xlu0 %v2885, 64
    %v3104 = vpop.permute.xlu0 %3103
    %3105 = vrot.lane.b32.xlu0 %v2884, 64
    %v3106 = vpop.permute.xlu0 %3105
    %3107 = vrot.lane.b32.xlu0 %v2883, 64
    %v3108 = vpop.permute.xlu0 %3107
    %3109 = vrot.lane.b32.xlu0 %v2882, 64
    %v3110 = vpop.permute.xlu0 %3109
    %3111 = vrot.lane.b32.xlu0 %v2881, 64
    %v3112 = vpop.permute.xlu0 %3111
    %3113 = vrot.lane.b32.xlu0 %v2880, 64
    %v3114 = vpop.permute.xlu0 %3113
    %3115 = vrot.lane.b32.xlu0 %v2879, 64
    %v3116 = vpop.permute.xlu0 %3115
    %3117 = vrot.lane.b32.xlu0 %v2902, 64
    %v3118 = vpop.permute.xlu0 %3117
    %3167 = vrot.lane.b32.xlu0 %v2949, 96
    %v3168 = vpop.permute.xlu0 %3167
    %3169 = vrot.lane.b32.xlu0 %v2948, 96
    %v3170 = vpop.permute.xlu0 %3169
    %3171 = vrot.lane.b32.xlu0 %v2947, 96
    %v3172 = vpop.permute.xlu0 %3171
    %3173 = vrot.lane.b32.xlu0 %v2946, 96
    %v3174 = vpop.permute.xlu0 %3173
    %3175 = vrot.lane.b32.xlu0 %v2945, 96
    %v3176 = vpop.permute.xlu0 %3175
    %3177 = vrot.lane.b32.xlu0 %v2944, 96
    %v3178 = vpop.permute.xlu0 %3177
    %3179 = vrot.lane.b32.xlu0 %v2943, 96
    %v3180 = vpop.permute.xlu0 %3179
    %3181 = vrot.lane.b32.xlu0 %v2942, 96
    %v3182 = vpop.permute.xlu0 %3181
    %3183 = vrot.lane.b32.xlu0 %v2941, 96
    %v3184 = vpop.permute.xlu0 %3183
    %3185 = vrot.lane.b32.xlu0 %v2940, 96
    %v3186 = vpop.permute.xlu0 %3185
    %3187 = vrot.lane.b32.xlu0 %v2939, 96
    %v3188 = vpop.permute.xlu0 %3187
    %3189 = vrot.lane.b32.xlu0 %v2938, 96
    %v3190 = vpop.permute.xlu0 %3189
    %3191 = vrot.lane.b32.xlu0 %v2937, 96
    %v3192 = vpop.permute.xlu0 %3191
    %3193 = vrot.lane.b32.xlu0 %v2936, 96
    %v3194 = vpop.permute.xlu0 %3193
    %3195 = vrot.lane.b32.xlu0 %v2935, 96
    %v3196 = vpop.permute.xlu0 %3195
    %3197 = vrot.lane.b32.xlu0 %v2934, 96
    %v3198 = vpop.permute.xlu0 %3197
    %3199 = vrot.lane.b32.xlu0 %v2933, 96
    %v3200 = vpop.permute.xlu0 %3199
    %3201 = vrot.lane.b32.xlu0 %v2932, 96
    %v3202 = vpop.permute.xlu0 %3201
    %3203 = vrot.lane.b32.xlu0 %v2931, 96
    %v3204 = vpop.permute.xlu0 %3203
    %3205 = vrot.lane.b32.xlu0 %v2930, 96
    %v3206 = vpop.permute.xlu0 %3205
    %3207 = vrot.lane.b32.xlu0 %v2929, 96
    %v3208 = vpop.permute.xlu0 %3207
    %3209 = vrot.lane.b32.xlu0 %v2928, 96
    %v3210 = vpop.permute.xlu0 %3209
    %3211 = vrot.lane.b32.xlu0 %v2927, 96
    %v3212 = vpop.permute.xlu0 %3211
    %3213 = vrot.lane.b32.xlu0 %v2950, 96
    %v3214 = vpop.permute.xlu0 %3213
    %v3239 = vsel %vm1554, %v2689, %v2976
    %v3240 = vsel %vm1554, %v2694, %v2978
    %v3241 = vsel %vm1554, %v2699, %v2980
    %v3242 = vsel %vm1554, %v2704, %v2982
    %v3243 = vsel %vm1554, %v2709, %v2984
    %v3244 = vsel %vm1554, %v2714, %v2986
    %v3245 = vsel %vm1554, %v2719, %v2988
    %v3246 = vsel %vm1554, %v2724, %v2990
    %v3247 = vsel %vm1554, %v2729, %v2992
    %v3248 = vsel %vm1554, %v2734, %v2994
    %v3249 = vsel %vm1554, %v2739, %v2996
    %v3250 = vsel %vm1554, %v2744, %v2998
    %v3251 = vsel %vm1554, %v2749, %v3000
    %v3252 = vsel %vm1554, %v2754, %v3002
    %v3253 = vsel %vm1554, %v2759, %v3004
    %v3254 = vsel %vm1554, %v2764, %v3006
    %v3255 = vsel %vm1554, %v2769, %v3008
    %v3256 = vsel %vm1554, %v2774, %v3010
    %v3257 = vsel %vm1554, %v2779, %v3012
    %v3258 = vsel %vm1554, %v2784, %v3014
    %v3259 = vsel %vm1554, %v2789, %v3016
    %v3260 = vsel %vm1554, %v2794, %v3018
    %v3261 = vsel %vm1554, %v2799, %v3020
    %v3262 = vsel %vm1554, %v2804, %v3022
    %v3263 = vsel %vm1607, %v3239, %v3072
    %v3264 = vsel %vm1607, %v3240, %v3074
    %v3265 = vsel %vm1607, %v3241, %v3076
    %v3266 = vsel %vm1607, %v3242, %v3078
    %v3267 = vsel %vm1607, %v3243, %v3080
    %v3268 = vsel %vm1607, %v3244, %v3082
    %v3269 = vsel %vm1607, %v3245, %v3084
    %v3270 = vsel %vm1607, %v3246, %v3086
    %v3271 = vsel %vm1607, %v3247, %v3088
    %v3272 = vsel %vm1607, %v3248, %v3090
    %v3273 = vsel %vm1607, %v3249, %v3092
    %v3274 = vsel %vm1607, %v3250, %v3094
    %v3275 = vsel %vm1607, %v3251, %v3096
    %v3276 = vsel %vm1607, %v3252, %v3098
    %v3277 = vsel %vm1607, %v3253, %v3100
    %v3278 = vsel %vm1607, %v3254, %v3102
    %v3279 = vsel %vm1607, %v3255, %v3104
    %v3280 = vsel %vm1607, %v3256, %v3106
    %v3281 = vsel %vm1607, %v3257, %v3108
    %v3282 = vsel %vm1607, %v3258, %v3110
    %v3283 = vsel %vm1607, %v3259, %v3112
    %v3284 = vsel %vm1607, %v3260, %v3114
    %v3285 = vsel %vm1607, %v3261, %v3116
    %v3286 = vsel %vm1607, %v3262, %v3118
    %v3287 = vsel %vm1660, %v3263, %v3168
    %v3288 = vsel %vm1660, %v3264, %v3170
    %v3289 = vsel %vm1660, %v3265, %v3172
    %v3290 = vsel %vm1660, %v3266, %v3174
    %v3291 = vsel %vm1660, %v3267, %v3176
    %v3292 = vsel %vm1660, %v3268, %v3178
    %v3293 = vsel %vm1660, %v3269, %v3180
    %v3294 = vsel %vm1660, %v3270, %v3182
    %v3295 = vsel %vm1660, %v3271, %v3184
    %v3296 = vsel %vm1660, %v3272, %v3186
    %v3297 = vsel %vm1660, %v3273, %v3188
    %v3298 = vsel %vm1660, %v3274, %v3190
    %v3299 = vsel %vm1660, %v3275, %v3192
    %v3300 = vsel %vm1660, %v3276, %v3194
    %v3301 = vsel %vm1660, %v3277, %v3196
    %v3302 = vsel %vm1660, %v3278, %v3198
    %v3303 = vsel %vm1660, %v3279, %v3200
    %v3304 = vsel %vm1660, %v3280, %v3202
    %v3305 = vsel %vm1660, %v3281, %v3204
    %v3306 = vsel %vm1660, %v3282, %v3206
    %v3307 = vsel %vm1660, %v3283, %v3208
    %v3308 = vsel %vm1660, %v3284, %v3210
    %v3309 = vsel %vm1660, %v3285, %v3212
    %v3310 = vsel %vm1660, %v3286, %v3214
    %v3311 = vld [vmem:[%s7] sm:$0xff]
    %v3312 = vld [vmem:[%s7 + $0x8] sm:$0xff]
    %v3313 = vld [vmem:[%s7 + $0x10] sm:$0xff]
    %v3314 = vld [vmem:[%s7 + $0x18] sm:$0xff]
    %v3315 = vld [vmem:[%s7 + $0x20] sm:$0xff]
    %v3316 = vld [vmem:[%s7 + $0x28] sm:$0xff]
    %v3317 = vld [vmem:[%s7 + $0x30] sm:$0xff]
    %v3318 = vld [vmem:[%s7 + $0x38] sm:$0xff]
    %v3319 = vld [vmem:[%s7 + $0x40] sm:$0xff]
    %v3320 = vld [vmem:[%s7 + $0x48] sm:$0xff]
    %v3321 = vld [vmem:[%s7 + $0x50] sm:$0xff]
    %v3322 = vld [vmem:[%s7 + $0x58] sm:$0xff]
    %v3323 = vld [vmem:[%s7 + $0x60] sm:$0xff]
    %v3324 = vld [vmem:[%s7 + $0x68] sm:$0xff]
    %v3325 = vld [vmem:[%s7 + $0x70] sm:$0xff]
    %v3326 = vld [vmem:[%s7 + $0x78] sm:$0xff]
    %v3327 = vld [vmem:[%s8] sm:$0x1]
    %v3329 = vlaneseq
    %v3330 = vshrl.u32 %v3329, 7
    %v3331 = vsub.s32 0, %v3330
    %v3332 = vrot.slane %v3327, %v3331
    %3334 = vmatprep.subr.mxu0 0.0
    %3335 = vmatpush1.msra.mxu0 %v3311
    %3336 = vmatprep.subr.mxu0 0.0
    %3337 = vmatpush1.msra.mxu0 %v3312
    %3338 = vmatprep.subr.mxu0 0.0
    %3339 = vmatpush1.msra.mxu0 %v3313
    %3340 = vmatprep.subr.mxu0 0.0
    %3341 = vmatpush1.msra.mxu0 %v3314
    %3342 = vmatprep.subr.mxu0 0.0
    %3343 = vmatpush1.msra.mxu0 %v3315
    %3344 = vmatprep.subr.mxu0 0.0
    %3345 = vmatpush1.msra.mxu0 %v3316
    %3346 = vmatprep.subr.mxu0 0.0
    %3347 = vmatpush1.msra.mxu0 %v3317
    %3348 = vmatprep.subr.mxu0 0.0
    %3349 = vmatpush1.msra.mxu0 %v3318
    %3350 = vmatprep.subr.mxu0 0.0
    %3351 = vmatpush1.msra.mxu0 %v3319
    %3352 = vmatprep.subr.mxu0 0.0
    %3353 = vmatpush1.msra.mxu0 %v3320
    %3354 = vmatprep.subr.mxu0 0.0
    %3355 = vmatpush1.msra.mxu0 %v3321
    %3356 = vmatprep.subr.mxu0 0.0
    %3357 = vmatpush1.msra.mxu0 %v3322
    %3358 = vmatprep.subr.mxu0 0.0
    %3359 = vmatpush1.msra.mxu0 %v3323
    %3360 = vmatprep.subr.mxu0 0.0
    %3361 = vmatpush1.msra.mxu0 %v3324
    %3362 = vmatprep.subr.mxu0 0.0
    %3363 = vmatpush1.msra.mxu0 %v3325
    %3364 = vmatprep.subr.mxu0 0.0
    %3365 = vmatpush1.msra.mxu0 %v3326
    %3366 = vmatprep.subr.mxu0 0.0
    %3367 = vmatpush1.msra.mxu0 0.0
    %3368 = vmatprep.subr.mxu0 0.0
    %3369 = vmatpush1.msra.mxu0 0.0
    %3370 = vmatprep.subr.mxu0 0.0
    %3371 = vmatpush1.msra.mxu0 0.0
    %3372 = vmatprep.subr.mxu0 0.0
    %3373 = vmatpush1.msra.mxu0 0.0
    %3374 = vmatprep.subr.mxu0 0.0
    %3375 = vmatpush1.msra.mxu0 0.0
    %3376 = vmatprep.subr.mxu0 0.0
    %3377 = vmatpush1.msra.mxu0 0.0
    %3378 = vmatprep.subr.mxu0 0.0
    %3379 = vmatpush1.msra.mxu0 0.0
    %3380 = vmatprep.subr.mxu0 0.0
    %3381 = vmatpush1.msra.mxu0 0.0
    %3382 = vmatprep.subr.mxu0 0.0
    %3383 = vmatpush1.msra.mxu0 0.0
    %3384 = vmatprep.subr.mxu0 0.0
    %3385 = vmatpush1.msra.mxu0 0.0
    %3386 = vmatprep.subr.mxu0 0.0
    %3387 = vmatpush1.msra.mxu0 0.0
    %3388 = vmatprep.subr.mxu0 0.0
    %3389 = vmatpush1.msra.mxu0 0.0
    %3390 = vmatprep.subr.mxu0 0.0
    %3391 = vmatpush1.msra.mxu0 0.0
    %3392 = vmatprep.subr.mxu0 0.0
    %3393 = vmatpush1.msra.mxu0 0.0
    %3394 = vmatprep.subr.mxu0 0.0
    %3395 = vmatpush1.msra.mxu0 0.0
    %3396 = vmatprep.subr.mxu0 0.0
    %3397 = vmatpush1.msra.mxu0 0.0
    %3398 = vmatprep.mubr.f32.mxu0 0.0
    %3399 = vmatmul.mubr.f32.gmra.mrb[0].mxu0 %v3287
    %v3400 = vpop.f32.mrb[0].mxu0
    %v3401 = vadd.f32 %v3332, %v3400
    %v3402 = vpop.f32.mrb[0].mxu0
    %3403 = vmatprep.mubr.f32.mxu0 0.0
    %3404 = vmatmul.mubr.f32.gmra.mrb[0].mxu0 %v3288
    %v3405 = vpop.f32.mrb[0].mxu0
    %v3406 = vadd.f32 %v3332, %v3405
    %v3407 = vpop.f32.mrb[0].mxu0
    %3408 = vmatprep.mubr.f32.mxu0 0.0
    %3409 = vmatmul.mubr.f32.gmra.mrb[0].mxu0 %v3289
    %v3410 = vpop.f32.mrb[0].mxu0
    %v3411 = vadd.f32 %v3332, %v3410
    %v3412 = vpop.f32.mrb[0].mxu0
    %3413 = vmatprep.mubr.f32.mxu0 0.0
    %3414 = vmatmul.mubr.f32.gmra.mrb[0].mxu0 %v3290
    %v3415 = vpop.f32.mrb[0].mxu0
    %v3416 = vadd.f32 %v3332, %v3415
    %v3417 = vpop.f32.mrb[0].mxu0
    %3418 = vmatprep.mubr.f32.mxu0 0.0
    %3419 = vmatmul.mubr.f32.gmra.mrb[0].mxu0 %v3291
    %v3420 = vpop.f32.mrb[0].mxu0
    %v3421 = vadd.f32 %v3332, %v3420
    %v3422 = vpop.f32.mrb[0].mxu0
    %3423 = vmatprep.mubr.f32.mxu0 0.0
    %3424 = vmatmul.mubr.f32.gmra.mrb[0].mxu0 %v3292
    %v3425 = vpop.f32.mrb[0].mxu0
    %v3426 = vadd.f32 %v3332, %v3425
    %v3427 = vpop.f32.mrb[0].mxu0
    %3428 = vmatprep.mubr.f32.mxu0 0.0
    %3429 = vmatmul.mubr.f32.gmra.mrb[0].mxu0 %v3293
    %v3430 = vpop.f32.mrb[0].mxu0
    %v3431 = vadd.f32 %v3332, %v3430
    %v3432 = vpop.f32.mrb[0].mxu0
    %3433 = vmatprep.mubr.f32.mxu0 0.0
    %3434 = vmatmul.mubr.f32.gmra.mrb[0].mxu0 %v3294
    %v3435 = vpop.f32.mrb[0].mxu0
    %v3436 = vadd.f32 %v3332, %v3435
    %v3437 = vpop.f32.mrb[0].mxu0
    %3438 = vmatprep.mubr.f32.mxu0 0.0
    %3439 = vmatmul.mubr.f32.gmra.mrb[0].mxu0 %v3295
    %v3440 = vpop.f32.mrb[0].mxu0
    %v3441 = vadd.f32 %v3332, %v3440
    %v3442 = vpop.f32.mrb[0].mxu0
    %3443 = vmatprep.mubr.f32.mxu0 0.0
    %3444 = vmatmul.mubr.f32.gmra.mrb[0].mxu0 %v3296
    %v3445 = vpop.f32.mrb[0].mxu0
    %v3446 = vadd.f32 %v3332, %v3445
    %v3447 = vpop.f32.mrb[0].mxu0
    %3448 = vmatprep.mubr.f32.mxu0 0.0
    %3449 = vmatmul.mubr.f32.gmra.mrb[0].mxu0 %v3297
    %v3450 = vpop.f32.mrb[0].mxu0
    %v3451 = vadd.f32 %v3332, %v3450
    %v3452 = vpop.f32.mrb[0].mxu0
    %3453 = vmatprep.mubr.f32.mxu0 0.0
    %3454 = vmatmul.mubr.f32.gmra.mrb[0].mxu0 %v3298
    %v3455 = vpop.f32.mrb[0].mxu0
    %v3456 = vadd.f32 %v3332, %v3455
    %v3457 = vpop.f32.mrb[0].mxu0
    %3458 = vmatprep.mubr.f32.mxu0 0.0
    %3459 = vmatmul.mubr.f32.gmra.mrb[0].mxu0 %v3299
    %v3460 = vpop.f32.mrb[0].mxu0
    %v3461 = vadd.f32 %v3332, %v3460
    %v3462 = vpop.f32.mrb[0].mxu0
    %3463 = vmatprep.mubr.f32.mxu0 0.0
    %3464 = vmatmul.mubr.f32.gmra.mrb[0].mxu0 %v3300
    %v3465 = vpop.f32.mrb[0].mxu0
    %v3466 = vadd.f32 %v3332, %v3465
    %v3467 = vpop.f32.mrb[0].mxu0
    %3468 = vmatprep.mubr.f32.mxu0 0.0
    %3469 = vmatmul.mubr.f32.gmra.mrb[0].mxu0 %v3301
    %v3470 = vpop.f32.mrb[0].mxu0
    %v3471 = vadd.f32 %v3332, %v3470
    %v3472 = vpop.f32.mrb[0].mxu0
    %3473 = vmatprep.mubr.f32.mxu0 0.0
    %3474 = vmatmul.mubr.f32.gmra.mrb[0].mxu0 %v3302
    %v3475 = vpop.f32.mrb[0].mxu0
    %v3476 = vadd.f32 %v3332, %v3475
    %v3477 = vpop.f32.mrb[0].mxu0
    %3478 = vmatprep.mubr.f32.mxu0 0.0
    %3479 = vmatmul.mubr.f32.gmra.mrb[0].mxu0 %v3303
    %v3480 = vpop.f32.mrb[0].mxu0
    %v3481 = vadd.f32 %v3332, %v3480
    %v3482 = vpop.f32.mrb[0].mxu0
    %3483 = vmatprep.mubr.f32.mxu0 0.0
    %3484 = vmatmul.mubr.f32.gmra.mrb[0].mxu0 %v3304
    %v3485 = vpop.f32.mrb[0].mxu0
    %v3486 = vadd.f32 %v3332, %v3485
    %v3487 = vpop.f32.mrb[0].mxu0
    %3488 = vmatprep.mubr.f32.mxu0 0.0
    %3489 = vmatmul.mubr.f32.gmra.mrb[0].mxu0 %v3305
    %v3490 = vpop.f32.mrb[0].mxu0
    %v3491 = vadd.f32 %v3332, %v3490
    %v3492 = vpop.f32.mrb[0].mxu0
    %3493 = vmatprep.mubr.f32.mxu0 0.0
    %3494 = vmatmul.mubr.f32.gmra.mrb[0].mxu0 %v3306
    %v3495 = vpop.f32.mrb[0].mxu0
    %v3496 = vadd.f32 %v3332, %v3495
    %v3497 = vpop.f32.mrb[0].mxu0
    %3498 = vmatprep.mubr.f32.mxu0 0.0
    %3499 = vmatmul.mubr.f32.gmra.mrb[0].mxu0 %v3307
    %v3500 = vpop.f32.mrb[0].mxu0
    %v3501 = vadd.f32 %v3332, %v3500
    %v3502 = vpop.f32.mrb[0].mxu0
    %3503 = vmatprep.mubr.f32.mxu0 0.0
    %3504 = vmatmul.mubr.f32.gmra.mrb[0].mxu0 %v3308
    %v3505 = vpop.f32.mrb[0].mxu0
    %v3506 = vadd.f32 %v3332, %v3505
    %v3507 = vpop.f32.mrb[0].mxu0
    %3508 = vmatprep.mubr.f32.mxu0 0.0
    %3509 = vmatmul.mubr.f32.gmra.mrb[0].mxu0 %v3309
    %v3510 = vpop.f32.mrb[0].mxu0
    %v3511 = vadd.f32 %v3332, %v3510
    %v3512 = vpop.f32.mrb[0].mxu0
    %3513 = vmatprep.mubr.f32.mxu0 0.0
    %3514 = vmatmul.mubr.f32.gmra.mrb[0].mxu0 %v3310
    %v3515 = vpop.f32.mrb[0].mxu0
    %v3516 = vadd.f32 %v3332, %v3515
    %v3517 = vpop.f32.mrb[0].mxu0
    %3518 = vdwg.mxu0
    %v3519 = vmax.f32 %v3401, 0.0
    %v3520 = vmax.f32 %v3406, 0.0
    %v3521 = vmax.f32 %v3411, 0.0
    %v3522 = vmax.f32 %v3416, 0.0
    %v3523 = vmax.f32 %v3421, 0.0
    %v3524 = vmax.f32 %v3426, 0.0
    %v3525 = vmax.f32 %v3431, 0.0
    %v3526 = vmax.f32 %v3436, 0.0
    %v3527 = vmax.f32 %v3441, 0.0
    %v3528 = vmax.f32 %v3446, 0.0
    %v3529 = vmax.f32 %v3451, 0.0
    %v3530 = vmax.f32 %v3456, 0.0
    %v3531 = vmax.f32 %v3461, 0.0
    %v3532 = vmax.f32 %v3466, 0.0
    %v3533 = vmax.f32 %v3471, 0.0
    %v3534 = vmax.f32 %v3476, 0.0
    %v3535 = vmax.f32 %v3481, 0.0
    %v3536 = vmax.f32 %v3486, 0.0
    %v3537 = vmax.f32 %v3491, 0.0
    %v3538 = vmax.f32 %v3496, 0.0
    %v3539 = vmax.f32 %v3501, 0.0
    %v3540 = vmax.f32 %v3506, 0.0
    %v3541 = vmax.f32 %v3511, 0.0
    %v3542 = vmax.f32 %v3516, 0.0
    %v3543 = vrot.slane %v3519, 1
    %v3544 = vrot.slane %v3520, 1
    %v3545 = vrot.slane %v3521, 1
    %v3546 = vrot.slane %v3522, 1
    %v3547 = vrot.slane %v3523, 1
    %v3548 = vrot.slane %v3524, 1
    %v3549 = vrot.slane %v3525, 1
    %v3550 = vrot.slane %v3526, 1
    %v3551 = vrot.slane %v3527, 1
    %v3552 = vrot.slane %v3528, 1
    %v3553 = vrot.slane %v3529, 1
    %v3554 = vrot.slane %v3530, 1
    %v3555 = vrot.slane %v3531, 1
    %v3556 = vrot.slane %v3532, 1
    %v3557 = vrot.slane %v3533, 1
    %v3558 = vrot.slane %v3534, 1
    %v3559 = vrot.slane %v3535, 1
    %v3560 = vrot.slane %v3536, 1
    %v3561 = vrot.slane %v3537, 1
    %v3562 = vrot.slane %v3538, 1
    %v3563 = vrot.slane %v3539, 1
    %v3564 = vrot.slane %v3540, 1
    %v3565 = vrot.slane %v3541, 1
    %v3566 = vrot.slane %v3542, 1
    %v3567 = vsel %vm667, %v3565, %v3566
    %v3568 = vsel %vm667, %v3564, %v3565
    %v3569 = vsel %vm667, %v3563, %v3564
    %v3570 = vsel %vm667, %v3562, %v3563
    %v3571 = vsel %vm667, %v3561, %v3562
    %v3572 = vsel %vm667, %v3560, %v3561
    %v3573 = vsel %vm667, %v3559, %v3560
    %v3574 = vsel %vm667, %v3558, %v3559
    %v3575 = vsel %vm667, %v3557, %v3558
    %v3576 = vsel %vm667, %v3556, %v3557
    %v3577 = vsel %vm667, %v3555, %v3556
    %v3578 = vsel %vm667, %v3554, %v3555
    %v3579 = vsel %vm667, %v3553, %v3554
    %v3580 = vsel %vm667, %v3552, %v3553
    %v3581 = vsel %vm667, %v3551, %v3552
    %v3582 = vsel %vm667, %v3550, %v3551
    %v3583 = vsel %vm667, %v3549, %v3550
    %v3584 = vsel %vm667, %v3548, %v3549
    %v3585 = vsel %vm667, %v3547, %v3548
    %v3586 = vsel %vm667, %v3546, %v3547
    %v3587 = vsel %vm667, %v3545, %v3546
    %v3588 = vsel %vm667, %v3544, %v3545
    %v3589 = vsel %vm667, %v3543, %v3544
    %v3590 = vsel %vm667, %v3566, %v3543
    %v3591 = vmax.f32 %v3519, %v3589
    %v3592 = vmax.f32 %v3520, %v3588
    %v3593 = vmax.f32 %v3521, %v3587
    %v3594 = vmax.f32 %v3522, %v3586
    %v3595 = vmax.f32 %v3523, %v3585
    %v3596 = vmax.f32 %v3524, %v3584
    %v3597 = vmax.f32 %v3525, %v3583
    %v3598 = vmax.f32 %v3526, %v3582
    %v3599 = vmax.f32 %v3527, %v3581
    %v3600 = vmax.f32 %v3528, %v3580
    %v3601 = vmax.f32 %v3529, %v3579
    %v3602 = vmax.f32 %v3530, %v3578
    %v3603 = vmax.f32 %v3531, %v3577
    %v3604 = vmax.f32 %v3532, %v3576
    %v3605 = vmax.f32 %v3533, %v3575
    %v3606 = vmax.f32 %v3534, %v3574
    %v3607 = vmax.f32 %v3535, %v3573
    %v3608 = vmax.f32 %v3536, %v3572
    %v3609 = vmax.f32 %v3537, %v3571
    %v3610 = vmax.f32 %v3538, %v3570
    %v3611 = vmax.f32 %v3539, %v3569
    %v3612 = vmax.f32 %v3540, %v3568
    %v3613 = vmax.f32 %v3541, %v3567
    %v3614 = vmax.f32 %v3542, %v3590
    %v3615 = vld [vmem:[%s4] sm:$0xff]
    %v3616 = vld [vmem:[%s4 + $0x8] sm:$0xff]
    %v3618 = vsel %vm1607, %v3616, 0
    %3620 = vmatprep.subr.mxu0 0.0
    %3621 = vmatpush1.msra.mxu0 %v3591
    %3622 = vmatprep.subr.mxu0 0.0
    %3623 = vmatpush1.msra.mxu0 %v3592
    %3624 = vmatprep.subr.mxu0 0.0
    %3625 = vmatpush1.msra.mxu0 %v3593
    %3626 = vmatprep.subr.mxu0 0.0
    %3627 = vmatpush1.msra.mxu0 %v3594
    %3628 = vmatprep.subr.mxu0 0.0
    %3629 = vmatpush1.msra.mxu0 %v3595
    %3630 = vmatprep.subr.mxu0 0.0
    %3631 = vmatpush1.msra.mxu0 %v3596
    %3632 = vmatprep.subr.mxu0 0.0
    %3633 = vmatpush1.msra.mxu0 %v3597
    %3634 = vmatprep.subr.mxu0 0.0
    %3635 = vmatpush1.msra.mxu0 %v3598
    %3636 = vmatprep.subr.mxu0 0.0
    %3637 = vmatpush1.msra.mxu0 %v3599
    %3638 = vmatprep.subr.mxu0 0.0
    %3639 = vmatpush1.msra.mxu0 %v3600
    %3640 = vmatprep.subr.mxu0 0.0
    %3641 = vmatpush1.msra.mxu0 %v3601
    %3642 = vmatprep.subr.mxu0 0.0
    %3643 = vmatpush1.msra.mxu0 %v3602
    %3644 = vmatprep.subr.mxu0 0.0
    %3645 = vmatpush1.msra.mxu0 %v3603
    %3646 = vmatprep.subr.mxu0 0.0
    %3647 = vmatpush1.msra.mxu0 %v3604
    %3648 = vmatprep.subr.mxu0 0.0
    %3649 = vmatpush1.msra.mxu0 %v3605
    %3650 = vmatprep.subr.mxu0 0.0
    %3651 = vmatpush1.msra.mxu0 %v3606
    %3652 = vmatprep.subr.mxu0 0.0
    %3653 = vmatpush1.msra.mxu0 %v3607
    %3654 = vmatprep.subr.mxu0 0.0
    %3655 = vmatpush1.msra.mxu0 %v3608
    %3656 = vmatprep.subr.mxu0 0.0
    %3657 = vmatpush1.msra.mxu0 %v3609
    %3658 = vmatprep.subr.mxu0 0.0
    %3659 = vmatpush1.msra.mxu0 %v3610
    %3660 = vmatprep.subr.mxu0 0.0
    %3661 = vmatpush1.msra.mxu0 %v3611
    %3662 = vmatprep.subr.mxu0 0.0
    %3663 = vmatpush1.msra.mxu0 %v3612
    %3664 = vmatprep.subr.mxu0 0.0
    %3665 = vmatpush1.msra.mxu0 %v3613
    %3666 = vmatprep.subr.mxu0 0.0
    %3667 = vmatpush1.msra.mxu0 %v3614
    %3668 = vmatprep.subr.mxu0 0.0
    %3669 = vmatpush1.msra.mxu0 0.0
    %3670 = vmatprep.subr.mxu0 0.0
    %3671 = vmatpush1.msra.mxu0 0.0
    %3672 = vmatprep.subr.mxu0 0.0
    %3673 = vmatpush1.msra.mxu0 0.0
    %3674 = vmatprep.subr.mxu0 0.0
    %3675 = vmatpush1.msra.mxu0 0.0
    %3676 = vmatprep.subr.mxu0 0.0
    %3677 = vmatpush1.msra.mxu0 0.0
    %3678 = vmatprep.subr.mxu0 0.0
    %3679 = vmatpush1.msra.mxu0 0.0
    %3680 = vmatprep.subr.mxu0 0.0
    %3681 = vmatpush1.msra.mxu0 0.0
    %3682 = vmatprep.subr.mxu0 0.0
    %3683 = vmatpush1.msra.mxu0 0.0
    %3684 = vmatprep.mubr.f32.mxu0 %v3618
    %3685 = vmatmul.mubr.f32.gmra.mrb[0].mxu0 %v3615
    %v3686 = vpop.f32.mrb[0].mxu0
    %v3687 = vadd.f32 0.0, %v3686
    %v3688 = vpop.f32.mrb[0].mxu0
    %3689 = vdwg.mxu0
    %v3690 = vld [vmem:[%s9] sm:$0xff]
    %v3691 = vld [vmem:[%s9 + $0x8] sm:$0xff]
    %v3692 = vld [vmem:[%s9 + $0x10] sm:$0xff]
    %v3693 = vld [vmem:[%s9 + $0x18] sm:$0xff]
    %v3694 = vld [vmem:[%s9 + $0x20] sm:$0xff]
    %v3695 = vld [vmem:[%s10] sm:$0x1]
    %v3697 = vlaneseq
    %v3698 = vshrl.u32 %v3697, 7
    %v3699 = vsub.s32 0, %v3698
    %v3700 = vrot.slane %v3695, %v3699
    %vm3702 = vcmask 326656
    %v3704 = vsel %vm3702, %v3687, 0
    %3706 = vmatprep.subr.mxu0 0.0
    %3707 = vmatpush1.msra.mxu0 %v3690
    %3708 = vmatprep.subr.mxu0 0.0
    %3709 = vmatpush1.msra.mxu0 %v3691
    %3710 = vmatprep.subr.mxu0 0.0
    %3711 = vmatpush1.msra.mxu0 %v3692
    %3712 = vmatprep.subr.mxu0 0.0
    %3713 = vmatpush1.msra.mxu0 %v3693
    %3714 = vmatprep.subr.mxu0 0.0
    %3715 = vmatpush1.msra.mxu0 %v3694
    %3716 = vmatprep.subr.mxu0 0.0
    %3717 = vmatpush1.msra.mxu0 0.0
    %3718 = vmatprep.subr.mxu0 0.0
    %3719 = vmatpush1.msra.mxu0 0.0
    %3720 = vmatprep.subr.mxu0 0.0
    %3721 = vmatpush1.msra.mxu0 0.0
    %3722 = vmatprep.subr.mxu0 0.0
    %3723 = vmatpush1.msra.mxu0 0.0
    %3724 = vmatprep.subr.mxu0 0.0
    %3725 = vmatpush1.msra.mxu0 0.0
    %3726 = vmatprep.subr.mxu0 0.0
    %3727 = vmatpush1.msra.mxu0 0.0
    %3728 = vmatprep.subr.mxu0 0.0
    %3729 = vmatpush1.msra.mxu0 0.0
    %3730 = vmatprep.subr.mxu0 0.0
    %3731 = vmatpush1.msra.mxu0 0.0
    %3732 = vmatprep.subr.mxu0 0.0
    %3733 = vmatpush1.msra.mxu0 0.0
    %3734 = vmatprep.subr.mxu0 0.0
    %3735 = vmatpush1.msra.mxu0 0.0
    %3736 = vmatprep.subr.mxu0 0.0
    %3737 = vmatpush1.msra.mxu0 0.0
    %3738 = vmatprep.subr.mxu0 0.0
    %3739 = vmatpush1.msra.mxu0 0.0
    %3740 = vmatprep.subr.mxu0 0.0
    %3741 = vmatpush1.msra.mxu0 0.0
    %3742 = vmatprep.subr.mxu0 0.0
    %3743 = vmatpush1.msra.mxu0 0.0
    %3744 = vmatprep.subr.mxu0 0.0
    %3745 = vmatpush1.msra.mxu0 0.0
    %3746 = vmatprep.subr.mxu0 0.0
    %3747 = vmatpush1.msra.mxu0 0.0
    %3748 = vmatprep.subr.mxu0 0.0
    %3749 = vmatpush1.msra.mxu0 0.0
    %3750 = vmatprep.subr.mxu0 0.0
    %3751 = vmatpush1.msra.mxu0 0.0
    %3752 = vmatprep.subr.mxu0 0.0
    %3753 = vmatpush1.msra.mxu0 0.0
    %3754 = vmatprep.subr.mxu0 0.0
    %3755 = vmatpush1.msra.mxu0 0.0
    %3756 = vmatprep.subr.mxu0 0.0
    %3757 = vmatpush1.msra.mxu0 0.0
    %3758 = vmatprep.subr.mxu0 0.0
    %3759 = vmatpush1.msra.mxu0 0.0
    %3760 = vmatprep.subr.mxu0 0.0
    %3761 = vmatpush1.msra.mxu0 0.0
    %3762 = vmatprep.subr.mxu0 0.0
    %3763 = vmatpush1.msra.mxu0 0.0
    %3764 = vmatprep.subr.mxu0 0.0
    %3765 = vmatpush1.msra.mxu0 0.0
    %3766 = vmatprep.subr.mxu0 0.0
    %3767 = vmatpush1.msra.mxu0 0.0
    %3768 = vmatprep.subr.mxu0 0.0
    %3769 = vmatpush1.msra.mxu0 0.0
    %3770 = vmatprep.mubr.f32.mxu0 0.0
    %3771 = vmatmul.mubr.f32.gmra.mrb[0].mxu0 %v3704
    %v3772 = vpop.f32.mrb[0].mxu0
    %v3773 = vadd.f32 %v3700, %v3772
    %v3774 = vpop.f32.mrb[0].mxu0
    %3775 = vdwg.mxu0
    %v3776 = vmax.f32 %v3773, 0.0
    %s3777 = sld [smem:[#allocation2]]
    %s3778 = sld [smem:[#allocation2 + $0x1]]
    %s3779 = sld [smem:[#allocation2 + $0x2]]
    %s3780 = sld [smem:[#allocation2 + $0x3]]
    %v3781 = vstv %s3777
    %v3782 = vmul.f32 %v3781, %v3776
    %v3783 = vstv %s3778
    %v3784 = vmul.f32 %v3783, %v3776
    %v3786 = vrot.slane %v3784, 2
    %v3788 = vadd.f32 %v3782, %v3786
    %v3789 = vstv %s3779
    %v3790 = vmul.f32 %v3789, %v3776
    %v3792 = vrot.slane %v3790, 4
    %v3794 = vadd.f32 %v3788, %v3792
    %v3795 = vstv %s3780
    %v3796 = vmul.f32 %v3795, %v3776
    %v3798 = vrot.slane %v3796, 6
    %v3800 = vadd.f32 %v3794, %v3798
    %v3801 = vld [vmem:[%s11] sm:$0xff]
    %v3802 = vld [vmem:[%s11 + $0x8] sm:$0xff]
    %v3803 = vld [vmem:[%s11 + $0x10] sm:$0xff]
    %v3804 = vld [vmem:[%s11 + $0x18] sm:$0xff]
    %v3805 = vld [vmem:[%s11 + $0x20] sm:$0xff]
    %s3806 = sadd.f32 %s3777, %s3778
    %s3807 = sadd.f32 %s3806, %s3779
    %s3808 = sadd.f32 %s3807, %s3780
    %v3809 = vld [vmem:[%s12] sm:$0x1]
    %v3810 = vstv %s3808
    %v3811 = vmul.f32 %v3810, %v3809
    %v3813 = vlaneseq
    %v3814 = vshrl.u32 %v3813, 7
    %v3815 = vsub.s32 0, %v3814
    %v3816 = vrot.slane %v3811, %v3815
    %v3819 = vsel %vm3702, %v3800, 0
    %3821 = vmatprep.subr.mxu0 0.0
    %3822 = vmatpush1.msra.mxu0 %v3801
    %3823 = vmatprep.subr.mxu0 0.0
    %3824 = vmatpush1.msra.mxu0 %v3802
    %3825 = vmatprep.subr.mxu0 0.0
    %3826 = vmatpush1.msra.mxu0 %v3803
    %3827 = vmatprep.subr.mxu0 0.0
    %3828 = vmatpush1.msra.mxu0 %v3804
    %3829 = vmatprep.subr.mxu0 0.0
    %3830 = vmatpush1.msra.mxu0 %v3805
    %3831 = vmatprep.subr.mxu0 0.0
    %3832 = vmatpush1.msra.mxu0 0.0
    %3833 = vmatprep.subr.mxu0 0.0
    %3834 = vmatpush1.msra.mxu0 0.0
    %3835 = vmatprep.subr.mxu0 0.0
    %3836 = vmatpush1.msra.mxu0 0.0
    %3837 = vmatprep.subr.mxu0 0.0
    %3838 = vmatpush1.msra.mxu0 0.0
    %3839 = vmatprep.subr.mxu0 0.0
    %3840 = vmatpush1.msra.mxu0 0.0
    %3841 = vmatprep.subr.mxu0 0.0
    %3842 = vmatpush1.msra.mxu0 0.0
    %3843 = vmatprep.subr.mxu0 0.0
    %3844 = vmatpush1.msra.mxu0 0.0
    %3845 = vmatprep.subr.mxu0 0.0
    %3846 = vmatpush1.msra.mxu0 0.0
    %3847 = vmatprep.subr.mxu0 0.0
    %3848 = vmatpush1.msra.mxu0 0.0
    %3849 = vmatprep.subr.mxu0 0.0
    %3850 = vmatpush1.msra.mxu0 0.0
    %3851 = vmatprep.subr.mxu0 0.0
    %3852 = vmatpush1.msra.mxu0 0.0
    %3853 = vmatprep.subr.mxu0 0.0
    %3854 = vmatpush1.msra.mxu0 0.0
    %3855 = vmatprep.subr.mxu0 0.0
    %3856 = vmatpush1.msra.mxu0 0.0
    %3857 = vmatprep.subr.mxu0 0.0
    %3858 = vmatpush1.msra.mxu0 0.0
    %3859 = vmatprep.subr.mxu0 0.0
    %3860 = vmatpush1.msra.mxu0 0.0
    %3861 = vmatprep.subr.mxu0 0.0
    %3862 = vmatpush1.msra.mxu0 0.0
    %3863 = vmatprep.subr.mxu0 0.0
    %3864 = vmatpush1.msra.mxu0 0.0
    %3865 = vmatprep.subr.mxu0 0.0
    %3866 = vmatpush1.msra.mxu0 0.0
    %3867 = vmatprep.subr.mxu0 0.0
    %3868 = vmatpush1.msra.mxu0 0.0
    %3869 = vmatprep.subr.mxu0 0.0
    %3870 = vmatpush1.msra.mxu0 0.0
    %3871 = vmatprep.subr.mxu0 0.0
    %3872 = vmatpush1.msra.mxu0 0.0
    %3873 = vmatprep.subr.mxu0 0.0
    %3874 = vmatpush1.msra.mxu0 0.0
    %3875 = vmatprep.subr.mxu0 0.0
    %3876 = vmatpush1.msra.mxu0 0.0
    %3877 = vmatprep.subr.mxu0 0.0
    %3878 = vmatpush1.msra.mxu0 0.0
    %3879 = vmatprep.subr.mxu0 0.0
    %3880 = vmatpush1.msra.mxu0 0.0
    %3881 = vmatprep.subr.mxu0 0.0
    %3882 = vmatpush1.msra.mxu0 0.0
    %3883 = vmatprep.subr.mxu0 0.0
    %3884 = vmatpush1.msra.mxu0 0.0
    %3885 = vmatprep.mubr.f32.mxu0 0.0
    %3886 = vmatmul.mubr.f32.gmra.mrb[0].mxu0 %v3819
    %v3887 = vpop.f32.mrb[0].mxu0
    %v3888 = vadd.f32 %v3816, %v3887
    %v3889 = vpop.f32.mrb[0].mxu0
    %3890 = vdwg.mxu0
    %vm3891 = vcmask 254976
    %3892 = vst.msk [vmem:[#allocation5] sm:$0x3] %vm3891, %v3888
    %v3893 = vld [vmem:[%s13] sm:$0xff]
    %v3894 = vld [vmem:[%s13 + $0x8] sm:$0xff]
    %v3895 = vld [vmem:[%s13 + $0x10] sm:$0xff]
    %v3896 = vld [vmem:[%s13 + $0x18] sm:$0xff]
    %v3897 = vld [vmem:[%s14] sm:$0x1]
    %v3899 = vlaneseq
    %v3900 = vshrl.u32 %v3899, 7
    %v3901 = vsub.s32 0, %v3900
    %v3902 = vrot.slane %v3897, %v3901
    %v3905 = vsel %vm1554, %v3888, 0
    %3907 = vmatprep.subr.mxu0 0.0
    %3908 = vmatpush1.msra.mxu0 %v3893
    %3909 = vmatprep.subr.mxu0 0.0
    %3910 = vmatpush1.msra.mxu0 %v3894
    %3911 = vmatprep.subr.mxu0 0.0
    %3912 = vmatpush1.msra.mxu0 %v3895
    %3913 = vmatprep.subr.mxu0 0.0
    %3914 = vmatpush1.msra.mxu0 %v3896
    %3915 = vmatprep.subr.mxu0 0.0
    %3916 = vmatpush1.msra.mxu0 0.0
    %3917 = vmatprep.subr.mxu0 0.0
    %3918 = vmatpush1.msra.mxu0 0.0
    %3919 = vmatprep.subr.mxu0 0.0
    %3920 = vmatpush1.msra.mxu0 0.0
    %3921 = vmatprep.subr.mxu0 0.0
    %3922 = vmatpush1.msra.mxu0 0.0
    %3923 = vmatprep.subr.mxu0 0.0
    %3924 = vmatpush1.msra.mxu0 0.0
    %3925 = vmatprep.subr.mxu0 0.0
    %3926 = vmatpush1.msra.mxu0 0.0
    %3927 = vmatprep.subr.mxu0 0.0
    %3928 = vmatpush1.msra.mxu0 0.0
    %3929 = vmatprep.subr.mxu0 0.0
    %3930 = vmatpush1.msra.mxu0 0.0
    %3931 = vmatprep.subr.mxu0 0.0
    %3932 = vmatpush1.msra.mxu0 0.0
    %3933 = vmatprep.subr.mxu0 0.0
    %3934 = vmatpush1.msra.mxu0 0.0
    %3935 = vmatprep.subr.mxu0 0.0
    %3936 = vmatpush1.msra.mxu0 0.0
    %3937 = vmatprep.subr.mxu0 0.0
    %3938 = vmatpush1.msra.mxu0 0.0
    %3939 = vmatprep.subr.mxu0 0.0
    %3940 = vmatpush1.msra.mxu0 0.0
    %3941 = vmatprep.subr.mxu0 0.0
    %3942 = vmatpush1.msra.mxu0 0.0
    %3943 = vmatprep.subr.mxu0 0.0
    %3944 = vmatpush1.msra.mxu0 0.0
    %3945 = vmatprep.subr.mxu0 0.0
    %3946 = vmatpush1.msra.mxu0 0.0
    %3947 = vmatprep.subr.mxu0 0.0
    %3948 = vmatpush1.msra.mxu0 0.0
    %3949 = vmatprep.subr.mxu0 0.0
    %3950 = vmatpush1.msra.mxu0 0.0
    %3951 = vmatprep.subr.mxu0 0.0
    %3952 = vmatpush1.msra.mxu0 0.0
    %3953 = vmatprep.subr.mxu0 0.0
    %3954 = vmatpush1.msra.mxu0 0.0
    %3955 = vmatprep.subr.mxu0 0.0
    %3956 = vmatpush1.msra.mxu0 0.0
    %3957 = vmatprep.subr.mxu0 0.0
    %3958 = vmatpush1.msra.mxu0 0.0
    %3959 = vmatprep.subr.mxu0 0.0
    %3960 = vmatpush1.msra.mxu0 0.0
    %3961 = vmatprep.subr.mxu0 0.0
    %3962 = vmatpush1.msra.mxu0 0.0
    %3963 = vmatprep.subr.mxu0 0.0
    %3964 = vmatpush1.msra.mxu0 0.0
    %3965 = vmatprep.subr.mxu0 0.0
    %3966 = vmatpush1.msra.mxu0 0.0
    %3967 = vmatprep.subr.mxu0 0.0
    %3968 = vmatpush1.msra.mxu0 0.0
    %3969 = vmatprep.subr.mxu0 0.0
    %3970 = vmatpush1.msra.mxu0 0.0
    %3971 = vmatprep.mubr.f32.mxu0 0.0
    %3972 = vmatmul.mubr.f32.gmra.mrb[0].mxu0 %v3905
    %v3973 = vpop.f32.mrb[0].mxu0
    %v3974 = vadd.f32 %v3902, %v3973
    %v3975 = vpop.f32.mrb[0].mxu0
    %3976 = vdwg.mxu0
    %v3977 = vmul.f32 %v3974, %v3974
    %v3978 = vmul.f32 %v3974, %v3977
    %v3979 = vmul.f32 %v3978, 0.044715
    %v3980 = vadd.f32 %v3974, %v3979
    %v3981 = vmul.f32 %v3980, 0.7978846
    %v3982 = vtanh.pop %v3981
    %v3983 = vadd.f32 %v3982, 1.0
    %v3984 = vmul.f32 %v3983, 0.5
    %v3985 = vmul.f32 %v3974, %v3984
    %v3986 = vld [vmem:[%s15] sm:$0xff]
    %v3987 = vld [vmem:[%s15 + $0x8] sm:$0xff]
    %v3988 = vld [vmem:[%s15 + $0x10] sm:$0xff]
    %v3989 = vld [vmem:[%s15 + $0x18] sm:$0xff]
    %v3990 = vld [vmem:[%s16] sm:$0x1]
    %v3992 = vlaneseq
    %v3993 = vshrl.u32 %v3992, 7
    %v3994 = vsub.s32 0, %v3993
    %v3995 = vrot.slane %v3990, %v3994
    %v3998 = vsel %vm1554, %v3985, 0
    %4000 = vmatprep.subr.mxu0 0.0
    %4001 = vmatpush1.msra.mxu0 %v3986
    %4002 = vmatprep.subr.mxu0 0.0
    %4003 = vmatpush1.msra.mxu0 %v3987
    %4004 = vmatprep.subr.mxu0 0.0
    %4005 = vmatpush1.msra.mxu0 %v3988
    %4006 = vmatprep.subr.mxu0 0.0
    %4007 = vmatpush1.msra.mxu0 %v3989
    %4008 = vmatprep.subr.mxu0 0.0
    %4009 = vmatpush1.msra.mxu0 0.0
    %4010 = vmatprep.subr.mxu0 0.0
    %4011 = vmatpush1.msra.mxu0 0.0
    %4012 = vmatprep.subr.mxu0 0.0
    %4013 = vmatpush1.msra.mxu0 0.0
    %4014 = vmatprep.subr.mxu0 0.0
    %4015 = vmatpush1.msra.mxu0 0.0
    %4016 = vmatprep.subr.mxu0 0.0
    %4017 = vmatpush1.msra.mxu0 0.0
    %4018 = vmatprep.subr.mxu0 0.0
    %4019 = vmatpush1.msra.mxu0 0.0
    %4020 = vmatprep.subr.mxu0 0.0
    %4021 = vmatpush1.msra.mxu0 0.0
    %4022 = vmatprep.subr.mxu0 0.0
    %4023 = vmatpush1.msra.mxu0 0.0
    %4024 = vmatprep.subr.mxu0 0.0
    %4025 = vmatpush1.msra.mxu0 0.0
    %4026 = vmatprep.subr.mxu0 0.0
    %4027 = vmatpush1.msra.mxu0 0.0
    %4028 = vmatprep.subr.mxu0 0.0
    %4029 = vmatpush1.msra.mxu0 0.0
    %4030 = vmatprep.subr.mxu0 0.0
    %4031 = vmatpush1.msra.mxu0 0.0
    %4032 = vmatprep.subr.mxu0 0.0
    %4033 = vmatpush1.msra.mxu0 0.0
    %4034 = vmatprep.subr.mxu0 0.0
    %4035 = vmatpush1.msra.mxu0 0.0
    %4036 = vmatprep.subr.mxu0 0.0
    %4037 = vmatpush1.msra.mxu0 0.0
    %4038 = vmatprep.subr.mxu0 0.0
    %4039 = vmatpush1.msra.mxu0 0.0
    %4040 = vmatprep.subr.mxu0 0.0
    %4041 = vmatpush1.msra.mxu0 0.0
    %4042 = vmatprep.subr.mxu0 0.0
    %4043 = vmatpush1.msra.mxu0 0.0
    %4044 = vmatprep.subr.mxu0 0.0
    %4045 = vmatpush1.msra.mxu0 0.0
    %4046 = vmatprep.subr.mxu0 0.0
    %4047 = vmatpush1.msra.mxu0 0.0
    %4048 = vmatprep.subr.mxu0 0.0
    %4049 = vmatpush1.msra.mxu0 0.0
    %4050 = vmatprep.subr.mxu0 0.0
    %4051 = vmatpush1.msra.mxu0 0.0
    %4052 = vmatprep.subr.mxu0 0.0
    %4053 = vmatpush1.msra.mxu0 0.0
    %4054 = vmatprep.subr.mxu0 0.0
    %4055 = vmatpush1.msra.mxu0 0.0
    %4056 = vmatprep.subr.mxu0 0.0
    %4057 = vmatpush1.msra.mxu0 0.0
    %4058 = vmatprep.subr.mxu0 0.0
    %4059 = vmatpush1.msra.mxu0 0.0
    %4060 = vmatprep.subr.mxu0 0.0
    %4061 = vmatpush1.msra.mxu0 0.0
    %4062 = vmatprep.subr.mxu0 0.0
    %4063 = vmatpush1.msra.mxu0 0.0
    %4064 = vmatprep.mubr.f32.mxu0 0.0
    %4065 = vmatmul.mubr.f32.gmra.mrb[0].mxu0 %v3998
    %v4066 = vpop.f32.mrb[0].mxu0
    %v4067 = vadd.f32 %v3995, %v4066
    %v4068 = vpop.f32.mrb[0].mxu0
    %4069 = vdwg.mxu0
    %v4070 = vxor.u32 %v4067, 2147483648
    %v4071 = vmul.f32 %v4070, 1.442695
    %v4072 = vpow.pop %v4071
    %v4073 = vadd.f32 %v4072, 1.0
    %v4074 = vrcp.pop %v4073
    %v4075 = vmul.f32 1.0, %v4074
    %4076 = vst.msk [vmem:[#allocation6] sm:$0x3] %vm3891, %v4075
    // Predicated region
    $region74: #{tem_enc_forward.4} parent=1 // pred_check
      _
    $region75: #{tem_enc_forward.4} parent=1 // pred_check_branch
      %4078 = sbr.rel (0) target = $region77
    $region76: #{tem_enc_forward.4} parent=1 // pred_region
      %s4080 = ssub.s32 32, 32
      %4081 = vsyncadd [#allocation3], %s4080
      %s4083 = sshll.u32 [#allocation5], 4
      %s4084 = int_to_ptr.vmem [resolvable:$true] %s4083
      %4086 = dma.vmem_to_hbm [thread:$0]  %s4084, 32, %s17, [#allocation3]
    $region77: #{tem_enc_forward.4} parent=1 // pred_fallthru
      _
    // Predicated region
    $region78: #{tem_enc_forward.4} parent=1 // pred_check
      _
    $region79: #{tem_enc_forward.4} parent=1 // pred_check_branch
      %4088 = sbr.rel (0) target = $region81
    $region80: #{tem_enc_forward.4} parent=1 // pred_region
      %s4090 = ssub.s32 32, 32
      %4091 = vsyncadd [#allocation7], %s4090
      %s4093 = sshll.u32 [#allocation6], 4
      %s4094 = int_to_ptr.vmem [resolvable:$true] %s4093
      %4096 = dma.vmem_to_hbm [thread:$0]  %s4094, 32, %s18, [#allocation7]
    $region81: #{tem_enc_forward.4} parent=1 // pred_fallthru
      _
    // Predicated region
    $region82: #{tem_enc_forward.4} parent=1 // pred_check
      _
    $region83: #{tem_enc_forward.4} parent=1 // pred_check_branch
      %4098 = sbr.rel (0) target = $region85
    $region84: #{tem_enc_forward.4} parent=1 // pred_region
      %4099 = dma.done [#allocation3], 32
    $region85: #{tem_enc_forward.4} parent=1 // pred_fallthru
      _
    // Predicated region
    $region86: #{tem_enc_forward.4} parent=1 // pred_check
      _
    $region87: #{tem_enc_forward.4} parent=1 // pred_check_branch
      %4101 = sbr.rel (0) target = $region89
    $region88: #{tem_enc_forward.4} parent=1 // pred_region
      %4102 = dma.done [#allocation7], 32
    $region89: #{tem_enc_forward.4} parent=1 // pred_fallthru
      _
    %4103 = vsyncpa [#allocation3], 1
    %4104 = vsyncpa [#allocation7], 1
    %4105 = vsyncpa [#allocation4], 1

// kernel: tem_enc_forward.5
$region0: #{tem_enc_forward.5}
  #allocation0 [shape = 'u32[]', space=smem, size = 0x4, offset = 0x4, fixed_abs, tag = 'smem constant byte address 0x4 - core index']
  #allocation1 [shape = 'u32[144,128]{1,0:T(1,128)}', space=vmem, size = 0x12000, scoped, tag = 'internal scratch']
  %s0 = inlined_call_operand.vmem [shape: f32[4], index: 0, kind: input, shape index: {}]
  %s1 = inlined_call_operand.vmem [shape: f32[64,4], index: 1, kind: input, shape index: {}]
  %s2 = inlined_call_operand.vmem [shape: f32[416,64], index: 2, kind: input, shape index: {}]
  %s3 = inlined_call_operand.vmem [shape: f32[192,416], index: 3, kind: input, shape index: {}]
  %s4 = inlined_call_operand.vmem [shape: f32[8,192], index: 4, kind: input, shape index: {}]
  %s5 = inlined_call_operand.vmem [shape: f32[16,32], index: 5, kind: input, shape index: {}]
  %s6 = inlined_call_operand.vmem [shape: f32[1,32], index: 6, kind: input, shape index: {}]
  %s7 = inlined_call_operand.vmem [shape: f32[128,40], index: 7, kind: input, shape index: {}]
  %s8 = inlined_call_operand.vmem [shape: f32[1,40], index: 8, kind: input, shape index: {}]
  %s9 = inlined_call_operand.vmem [shape: f32[40,40], index: 9, kind: input, shape index: {}]
  %s10 = inlined_call_operand.vmem [shape: f32[1,40], index: 10, kind: input, shape index: {}]
  %s11 = inlined_call_operand.vmem [shape: f32[40,4], index: 11, kind: input, shape index: {}]
  %s12 = inlined_call_operand.vmem [shape: f32[1,4], index: 12, kind: input, shape index: {}]
  %s13 = inlined_call_operand.hbm [shape: f32[2,4], index: 13, kind: output, shape index: {}]
  %s14 = sld [smem:[#allocation0]]
  $region66: #{tem_enc_forward.5} parent=0
    _
  %s16 = ssub.s32 1, %s14
  %s17 = scalar_select 0, %s16, %s14
  $region1: #{tem_enc_forward.5} parent=0
    #allocation2 [shape = 'u8[512]{0}', space=smem, size = 0x200, scoped, tag = 'input window, operand 0, single buffered']
    #allocation3 [shape = 's32[1]{0}', space=sflag, size = 0x4, scoped, tag = 'scoped memory for tem_enc_forward.5']
    #allocation4 [shape = 's32[1]{0}', space=sflag, size = 0x4, scoped, tag = 'scoped memory for tem_enc_forward.5']
    #allocation5 [shape = 'u8[1024]{0}', space=vmem, size = 0x400, scoped, tag = 'output window, operand 0, single buffered']
    %18 = vsyncpa [#allocation4], 0
    %19 = vsyncpa [#allocation3], 0
    // Predicated region
    $region2: #{tem_enc_forward.5} parent=1 // pred_check
      _
    $region3: #{tem_enc_forward.5} parent=1 // pred_check_branch
      %21 = sbr.rel (0) target = $region5
    $region4: #{tem_enc_forward.5} parent=1 // pred_region
      %s23 = ssub.s32 16, 16
      %24 = vsyncadd [#allocation4], %s23
      %s26 = sshll.u32 %s0, 4
      %s27 = int_to_ptr.vmem [resolvable:$true] %s26
      %29 = dma.vmem_to_smem %s27, 16, [#allocation2], [#allocation4]
    $region5: #{tem_enc_forward.5} parent=1 // pred_fallthru
      _
    // Predicated region
    $region6: #{tem_enc_forward.5} parent=1 // pred_check
      _
    $region7: #{tem_enc_forward.5} parent=1 // pred_check_branch
      %31 = sbr.rel (0) target = $region9
    $region8: #{tem_enc_forward.5} parent=1 // pred_region
      _
    $region9: #{tem_enc_forward.5} parent=1 // pred_fallthru
      _
    // Predicated region
    $region10: #{tem_enc_forward.5} parent=1 // pred_check
      _
    $region11: #{tem_enc_forward.5} parent=1 // pred_check_branch
      %33 = sbr.rel (0) target = $region13
    $region12: #{tem_enc_forward.5} parent=1 // pred_region
      _
    $region13: #{tem_enc_forward.5} parent=1 // pred_fallthru
      _
    // Predicated region
    $region14: #{tem_enc_forward.5} parent=1 // pred_check
      _
    $region15: #{tem_enc_forward.5} parent=1 // pred_check_branch
      %35 = sbr.rel (0) target = $region17
    $region16: #{tem_enc_forward.5} parent=1 // pred_region
      _
    $region17: #{tem_enc_forward.5} parent=1 // pred_fallthru
      _
    // Predicated region
    $region18: #{tem_enc_forward.5} parent=1 // pred_check
      _
    $region19: #{tem_enc_forward.5} parent=1 // pred_check_branch
      %37 = sbr.rel (0) target = $region21
    $region20: #{tem_enc_forward.5} parent=1 // pred_region
      _
    $region21: #{tem_enc_forward.5} parent=1 // pred_fallthru
      _
    // Predicated region
    $region22: #{tem_enc_forward.5} parent=1 // pred_check
      _
    $region23: #{tem_enc_forward.5} parent=1 // pred_check_branch
      %39 = sbr.rel (0) target = $region25
    $region24: #{tem_enc_forward.5} parent=1 // pred_region
      _
    $region25: #{tem_enc_forward.5} parent=1 // pred_fallthru
      _
    // Predicated region
    $region26: #{tem_enc_forward.5} parent=1 // pred_check
      _
    $region27: #{tem_enc_forward.5} parent=1 // pred_check_branch
      %41 = sbr.rel (0) target = $region29
    $region28: #{tem_enc_forward.5} parent=1 // pred_region
      _
    $region29: #{tem_enc_forward.5} parent=1 // pred_fallthru
      _
    // Predicated region
    $region30: #{tem_enc_forward.5} parent=1 // pred_check
      _
    $region31: #{tem_enc_forward.5} parent=1 // pred_check_branch
      %43 = sbr.rel (0) target = $region33
    $region32: #{tem_enc_forward.5} parent=1 // pred_region
      _
    $region33: #{tem_enc_forward.5} parent=1 // pred_fallthru
      _
    // Predicated region
    $region34: #{tem_enc_forward.5} parent=1 // pred_check
      _
    $region35: #{tem_enc_forward.5} parent=1 // pred_check_branch
      %45 = sbr.rel (0) target = $region37
    $region36: #{tem_enc_forward.5} parent=1 // pred_region
      _
    $region37: #{tem_enc_forward.5} parent=1 // pred_fallthru
      _
    // Predicated region
    $region38: #{tem_enc_forward.5} parent=1 // pred_check
      _
    $region39: #{tem_enc_forward.5} parent=1 // pred_check_branch
      %47 = sbr.rel (0) target = $region41
    $region40: #{tem_enc_forward.5} parent=1 // pred_region
      _
    $region41: #{tem_enc_forward.5} parent=1 // pred_fallthru
      _
    // Predicated region
    $region42: #{tem_enc_forward.5} parent=1 // pred_check
      _
    $region43: #{tem_enc_forward.5} parent=1 // pred_check_branch
      %49 = sbr.rel (0) target = $region45
    $region44: #{tem_enc_forward.5} parent=1 // pred_region
      _
    $region45: #{tem_enc_forward.5} parent=1 // pred_fallthru
      _
    // Predicated region
    $region46: #{tem_enc_forward.5} parent=1 // pred_check
      _
    $region47: #{tem_enc_forward.5} parent=1 // pred_check_branch
      %51 = sbr.rel (0) target = $region49
    $region48: #{tem_enc_forward.5} parent=1 // pred_region
      _
    $region49: #{tem_enc_forward.5} parent=1 // pred_fallthru
      _
    // Predicated region
    $region50: #{tem_enc_forward.5} parent=1 // pred_check
      _
    $region51: #{tem_enc_forward.5} parent=1 // pred_check_branch
      %53 = sbr.rel (0) target = $region53
    $region52: #{tem_enc_forward.5} parent=1 // pred_region
      _
    $region53: #{tem_enc_forward.5} parent=1 // pred_fallthru
      _
    // Predicated region
    $region54: #{tem_enc_forward.5} parent=1 // pred_check
      _
    $region55: #{tem_enc_forward.5} parent=1 // pred_check_branch
      %55 = sbr.rel (0) target = $region57
    $region56: #{tem_enc_forward.5} parent=1 // pred_region
      %56 = dma.done [#allocation4], 16
    $region57: #{tem_enc_forward.5} parent=1 // pred_fallthru
      _
    %57 = sfence
    %v58 = vld [vmem:[%s2] sm:$0xff]
    %v59 = vld [vmem:[%s2 + $0x8] sm:$0xff]
    %v60 = vld [vmem:[%s2 + $0x10] sm:$0xff]
    %v61 = vld [vmem:[%s2 + $0x18] sm:$0xff]
    %v62 = vld [vmem:[%s2 + $0x20] sm:$0xff]
    %v63 = vld [vmem:[%s2 + $0x28] sm:$0xff]
    %v64 = vld [vmem:[%s2 + $0x30] sm:$0xff]
    %v65 = vld [vmem:[%s2 + $0x38] sm:$0xff]
    %v66 = vld [vmem:[%s2 + $0x40] sm:$0xff]
    %v67 = vld [vmem:[%s2 + $0x48] sm:$0xff]
    %v68 = vld [vmem:[%s2 + $0x50] sm:$0xff]
    %v69 = vld [vmem:[%s2 + $0x58] sm:$0xff]
    %v70 = vld [vmem:[%s2 + $0x60] sm:$0xff]
    %v71 = vld [vmem:[%s2 + $0x68] sm:$0xff]
    %v72 = vld [vmem:[%s2 + $0x70] sm:$0xff]
    %v73 = vld [vmem:[%s2 + $0x78] sm:$0xff]
    %v74 = vld [vmem:[%s2 + $0x80] sm:$0xff]
    %v75 = vld [vmem:[%s2 + $0x88] sm:$0xff]
    %v76 = vld [vmem:[%s2 + $0x90] sm:$0xff]
    %v77 = vld [vmem:[%s2 + $0x98] sm:$0xff]
    %v78 = vld [vmem:[%s2 + $0xa0] sm:$0xff]
    %v79 = vld [vmem:[%s2 + $0xa8] sm:$0xff]
    %v80 = vld [vmem:[%s2 + $0xb0] sm:$0xff]
    %v81 = vld [vmem:[%s2 + $0xb8] sm:$0xff]
    %v82 = vld [vmem:[%s2 + $0xc0] sm:$0xff]
    %v83 = vld [vmem:[%s2 + $0xc8] sm:$0xff]
    %v84 = vld [vmem:[%s2 + $0xd0] sm:$0xff]
    %v85 = vld [vmem:[%s2 + $0xd8] sm:$0xff]
    %v86 = vld [vmem:[%s2 + $0xe0] sm:$0xff]
    %v87 = vld [vmem:[%s2 + $0xe8] sm:$0xff]
    %v88 = vld [vmem:[%s2 + $0xf0] sm:$0xff]
    %v89 = vld [vmem:[%s2 + $0xf8] sm:$0xff]
    %v90 = vld [vmem:[%s2 + $0x100] sm:$0xff]
    %v91 = vld [vmem:[%s2 + $0x108] sm:$0xff]
    %v92 = vld [vmem:[%s2 + $0x110] sm:$0xff]
    %v93 = vld [vmem:[%s2 + $0x118] sm:$0xff]
    %v94 = vld [vmem:[%s2 + $0x120] sm:$0xff]
    %v95 = vld [vmem:[%s2 + $0x128] sm:$0xff]
    %v96 = vld [vmem:[%s2 + $0x130] sm:$0xff]
    %v97 = vld [vmem:[%s2 + $0x138] sm:$0xff]
    %v98 = vld [vmem:[%s2 + $0x140] sm:$0xff]
    %v99 = vld [vmem:[%s2 + $0x148] sm:$0xff]
    %v100 = vld [vmem:[%s2 + $0x150] sm:$0xff]
    %v101 = vld [vmem:[%s2 + $0x158] sm:$0xff]
    %v102 = vld [vmem:[%s2 + $0x160] sm:$0xff]
    %v103 = vld [vmem:[%s2 + $0x168] sm:$0xff]
    %v104 = vld [vmem:[%s2 + $0x170] sm:$0xff]
    %v105 = vld [vmem:[%s2 + $0x178] sm:$0xff]
    %v106 = vld [vmem:[%s2 + $0x180] sm:$0xff]
    %v107 = vld [vmem:[%s2 + $0x188] sm:$0xff]
    %v108 = vld [vmem:[%s2 + $0x190] sm:$0xff]
    %v109 = vld [vmem:[%s2 + $0x198] sm:$0xff]
    %v110 = vld [vmem:[%s1] sm:$0xff]
    %v111 = vld [vmem:[%s1 + $0x8] sm:$0xff]
    %v112 = vld [vmem:[%s1 + $0x10] sm:$0xff]
    %v113 = vld [vmem:[%s1 + $0x18] sm:$0xff]
    %v114 = vld [vmem:[%s1 + $0x20] sm:$0xff]
    %v115 = vld [vmem:[%s1 + $0x28] sm:$0xff]
    %v116 = vld [vmem:[%s1 + $0x30] sm:$0xff]
    %v117 = vld [vmem:[%s1 + $0x38] sm:$0xff]
    %vm118 = vcmask 523264
    %v120 = vsel %vm118, %v58, 0
    %v123 = vsel %vm118, %v59, 0
    %v126 = vsel %vm118, %v60, 0
    %v129 = vsel %vm118, %v61, 0
    %v132 = vsel %vm118, %v62, 0
    %v135 = vsel %vm118, %v63, 0
    %v138 = vsel %vm118, %v64, 0
    %v141 = vsel %vm118, %v65, 0
    %v144 = vsel %vm118, %v66, 0
    %v147 = vsel %vm118, %v67, 0
    %v150 = vsel %vm118, %v68, 0
    %v153 = vsel %vm118, %v69, 0
    %v156 = vsel %vm118, %v70, 0
    %v159 = vsel %vm118, %v71, 0
    %v162 = vsel %vm118, %v72, 0
    %v165 = vsel %vm118, %v73, 0
    %v168 = vsel %vm118, %v74, 0
    %v171 = vsel %vm118, %v75, 0
    %v174 = vsel %vm118, %v76, 0
    %v177 = vsel %vm118, %v77, 0
    %v180 = vsel %vm118, %v78, 0
    %v183 = vsel %vm118, %v79, 0
    %v186 = vsel %vm118, %v80, 0
    %v189 = vsel %vm118, %v81, 0
    %v192 = vsel %vm118, %v82, 0
    %v195 = vsel %vm118, %v83, 0
    %v198 = vsel %vm118, %v84, 0
    %v201 = vsel %vm118, %v85, 0
    %v204 = vsel %vm118, %v86, 0
    %v207 = vsel %vm118, %v87, 0
    %v210 = vsel %vm118, %v88, 0
    %v213 = vsel %vm118, %v89, 0
    %v216 = vsel %vm118, %v90, 0
    %v219 = vsel %vm118, %v91, 0
    %v222 = vsel %vm118, %v92, 0
    %v225 = vsel %vm118, %v93, 0
    %v228 = vsel %vm118, %v94, 0
    %v231 = vsel %vm118, %v95, 0
    %v234 = vsel %vm118, %v96, 0
    %v237 = vsel %vm118, %v97, 0
    %v240 = vsel %vm118, %v98, 0
    %v243 = vsel %vm118, %v99, 0
    %v246 = vsel %vm118, %v100, 0
    %v249 = vsel %vm118, %v101, 0
    %v252 = vsel %vm118, %v102, 0
    %v255 = vsel %vm118, %v103, 0
    %v258 = vsel %vm118, %v104, 0
    %v261 = vsel %vm118, %v105, 0
    %v264 = vsel %vm118, %v106, 0
    %v267 = vsel %vm118, %v107, 0
    %v270 = vsel %vm118, %v108, 0
    %v273 = vsel %vm118, %v109, 0
    %275 = vmatprep.subr.mxu0 0.0
    %276 = vmatpush1.msra.mxu0 %v110
    %277 = vmatprep.subr.mxu0 0.0
    %278 = vmatpush1.msra.mxu0 %v111
    %279 = vmatprep.subr.mxu0 0.0
    %280 = vmatpush1.msra.mxu0 %v112
    %281 = vmatprep.subr.mxu0 0.0
    %282 = vmatpush1.msra.mxu0 %v113
    %283 = vmatprep.subr.mxu0 0.0
    %284 = vmatpush1.msra.mxu0 %v114
    %285 = vmatprep.subr.mxu0 0.0
    %286 = vmatpush1.msra.mxu0 %v115
    %287 = vmatprep.subr.mxu0 0.0
    %288 = vmatpush1.msra.mxu0 %v116
    %289 = vmatprep.subr.mxu0 0.0
    %290 = vmatpush1.msra.mxu0 %v117
    %291 = vmatprep.subr.mxu0 0.0
    %292 = vmatpush1.msra.mxu0 0.0
    %293 = vmatprep.subr.mxu0 0.0
    %294 = vmatpush1.msra.mxu0 0.0
    %295 = vmatprep.subr.mxu0 0.0
    %296 = vmatpush1.msra.mxu0 0.0
    %297 = vmatprep.subr.mxu0 0.0
    %298 = vmatpush1.msra.mxu0 0.0
    %299 = vmatprep.subr.mxu0 0.0
    %300 = vmatpush1.msra.mxu0 0.0
    %301 = vmatprep.subr.mxu0 0.0
    %302 = vmatpush1.msra.mxu0 0.0
    %303 = vmatprep.subr.mxu0 0.0
    %304 = vmatpush1.msra.mxu0 0.0
    %305 = vmatprep.subr.mxu0 0.0
    %306 = vmatpush1.msra.mxu0 0.0
    %307 = vmatprep.subr.mxu0 0.0
    %308 = vmatpush1.msra.mxu0 0.0
    %309 = vmatprep.subr.mxu0 0.0
    %310 = vmatpush1.msra.mxu0 0.0
    %311 = vmatprep.subr.mxu0 0.0
    %312 = vmatpush1.msra.mxu0 0.0
    %313 = vmatprep.subr.mxu0 0.0
    %314 = vmatpush1.msra.mxu0 0.0
    %315 = vmatprep.subr.mxu0 0.0
    %316 = vmatpush1.msra.mxu0 0.0
    %317 = vmatprep.subr.mxu0 0.0
    %318 = vmatpush1.msra.mxu0 0.0
    %319 = vmatprep.subr.mxu0 0.0
    %320 = vmatpush1.msra.mxu0 0.0
    %321 = vmatprep.subr.mxu0 0.0
    %322 = vmatpush1.msra.mxu0 0.0
    %323 = vmatprep.subr.mxu0 0.0
    %324 = vmatpush1.msra.mxu0 0.0
    %325 = vmatprep.subr.mxu0 0.0
    %326 = vmatpush1.msra.mxu0 0.0
    %327 = vmatprep.subr.mxu0 0.0
    %328 = vmatpush1.msra.mxu0 0.0
    %329 = vmatprep.subr.mxu0 0.0
    %330 = vmatpush1.msra.mxu0 0.0
    %331 = vmatprep.subr.mxu0 0.0
    %332 = vmatpush1.msra.mxu0 0.0
    %333 = vmatprep.subr.mxu0 0.0
    %334 = vmatpush1.msra.mxu0 0.0
    %335 = vmatprep.subr.mxu0 0.0
    %336 = vmatpush1.msra.mxu0 0.0
    %337 = vmatprep.subr.mxu0 0.0
    %338 = vmatpush1.msra.mxu0 0.0
    %339 = vmatprep.mubr.f32.mxu0 0.0
    %340 = vmatmul.mubr.f32.gmra.mrb[0].mxu0 %v120
    %v341 = vpop.f32.mrb[0].mxu0
    %v342 = vadd.f32 0.0, %v341
    %v343 = vpop.f32.mrb[0].mxu0
    %344 = vmatprep.mubr.f32.mxu0 0.0
    %345 = vmatmul.mubr.f32.gmra.mrb[0].mxu0 %v123
    %v346 = vpop.f32.mrb[0].mxu0
    %v347 = vadd.f32 0.0, %v346
    %v348 = vpop.f32.mrb[0].mxu0
    %349 = vmatprep.mubr.f32.mxu0 0.0
    %350 = vmatmul.mubr.f32.gmra.mrb[0].mxu0 %v126
    %v351 = vpop.f32.mrb[0].mxu0
    %v352 = vadd.f32 0.0, %v351
    %v353 = vpop.f32.mrb[0].mxu0
    %354 = vmatprep.mubr.f32.mxu0 0.0
    %355 = vmatmul.mubr.f32.gmra.mrb[0].mxu0 %v129
    %v356 = vpop.f32.mrb[0].mxu0
    %v357 = vadd.f32 0.0, %v356
    %v358 = vpop.f32.mrb[0].mxu0
    %359 = vmatprep.mubr.f32.mxu0 0.0
    %360 = vmatmul.mubr.f32.gmra.mrb[0].mxu0 %v132
    %v361 = vpop.f32.mrb[0].mxu0
    %v362 = vadd.f32 0.0, %v361
    %v363 = vpop.f32.mrb[0].mxu0
    %364 = vmatprep.mubr.f32.mxu0 0.0
    %365 = vmatmul.mubr.f32.gmra.mrb[0].mxu0 %v135
    %v366 = vpop.f32.mrb[0].mxu0
    %v367 = vadd.f32 0.0, %v366
    %v368 = vpop.f32.mrb[0].mxu0
    %369 = vmatprep.mubr.f32.mxu0 0.0
    %370 = vmatmul.mubr.f32.gmra.mrb[0].mxu0 %v138
    %v371 = vpop.f32.mrb[0].mxu0
    %v372 = vadd.f32 0.0, %v371
    %v373 = vpop.f32.mrb[0].mxu0
    %374 = vmatprep.mubr.f32.mxu0 0.0
    %375 = vmatmul.mubr.f32.gmra.mrb[0].mxu0 %v141
    %v376 = vpop.f32.mrb[0].mxu0
    %v377 = vadd.f32 0.0, %v376
    %v378 = vpop.f32.mrb[0].mxu0
    %379 = vmatprep.mubr.f32.mxu0 0.0
    %380 = vmatmul.mubr.f32.gmra.mrb[0].mxu0 %v144
    %v381 = vpop.f32.mrb[0].mxu0
    %v382 = vadd.f32 0.0, %v381
    %v383 = vpop.f32.mrb[0].mxu0
    %384 = vmatprep.mubr.f32.mxu0 0.0
    %385 = vmatmul.mubr.f32.gmra.mrb[0].mxu0 %v147
    %v386 = vpop.f32.mrb[0].mxu0
    %v387 = vadd.f32 0.0, %v386
    %v388 = vpop.f32.mrb[0].mxu0
    %389 = vmatprep.mubr.f32.mxu0 0.0
    %390 = vmatmul.mubr.f32.gmra.mrb[0].mxu0 %v150
    %v391 = vpop.f32.mrb[0].mxu0
    %v392 = vadd.f32 0.0, %v391
    %v393 = vpop.f32.mrb[0].mxu0
    %394 = vmatprep.mubr.f32.mxu0 0.0
    %395 = vmatmul.mubr.f32.gmra.mrb[0].mxu0 %v153
    %v396 = vpop.f32.mrb[0].mxu0
    %v397 = vadd.f32 0.0, %v396
    %v398 = vpop.f32.mrb[0].mxu0
    %399 = vmatprep.mubr.f32.mxu0 0.0
    %400 = vmatmul.mubr.f32.gmra.mrb[0].mxu0 %v156
    %v401 = vpop.f32.mrb[0].mxu0
    %v402 = vadd.f32 0.0, %v401
    %v403 = vpop.f32.mrb[0].mxu0
    %404 = vmatprep.mubr.f32.mxu0 0.0
    %405 = vmatmul.mubr.f32.gmra.mrb[0].mxu0 %v159
    %v406 = vpop.f32.mrb[0].mxu0
    %v407 = vadd.f32 0.0, %v406
    %v408 = vpop.f32.mrb[0].mxu0
    %409 = vmatprep.mubr.f32.mxu0 0.0
    %410 = vmatmul.mubr.f32.gmra.mrb[0].mxu0 %v162
    %v411 = vpop.f32.mrb[0].mxu0
    %v412 = vadd.f32 0.0, %v411
    %v413 = vpop.f32.mrb[0].mxu0
    %414 = vmatprep.mubr.f32.mxu0 0.0
    %415 = vmatmul.mubr.f32.gmra.mrb[0].mxu0 %v165
    %v416 = vpop.f32.mrb[0].mxu0
    %v417 = vadd.f32 0.0, %v416
    %v418 = vpop.f32.mrb[0].mxu0
    %419 = vmatprep.mubr.f32.mxu0 0.0
    %420 = vmatmul.mubr.f32.gmra.mrb[0].mxu0 %v168
    %v421 = vpop.f32.mrb[0].mxu0
    %v422 = vadd.f32 0.0, %v421
    %v423 = vpop.f32.mrb[0].mxu0
    %424 = vmatprep.mubr.f32.mxu0 0.0
    %425 = vmatmul.mubr.f32.gmra.mrb[0].mxu0 %v171
    %v426 = vpop.f32.mrb[0].mxu0
    %v427 = vadd.f32 0.0, %v426
    %v428 = vpop.f32.mrb[0].mxu0
    %429 = vmatprep.mubr.f32.mxu0 0.0
    %430 = vmatmul.mubr.f32.gmra.mrb[0].mxu0 %v174
    %v431 = vpop.f32.mrb[0].mxu0
    %v432 = vadd.f32 0.0, %v431
    %v433 = vpop.f32.mrb[0].mxu0
    %434 = vmatprep.mubr.f32.mxu0 0.0
    %435 = vmatmul.mubr.f32.gmra.mrb[0].mxu0 %v177
    %v436 = vpop.f32.mrb[0].mxu0
    %v437 = vadd.f32 0.0, %v436
    %v438 = vpop.f32.mrb[0].mxu0
    %439 = vmatprep.mubr.f32.mxu0 0.0
    %440 = vmatmul.mubr.f32.gmra.mrb[0].mxu0 %v180
    %v441 = vpop.f32.mrb[0].mxu0
    %v442 = vadd.f32 0.0, %v441
    %v443 = vpop.f32.mrb[0].mxu0
    %444 = vmatprep.mubr.f32.mxu0 0.0
    %445 = vmatmul.mubr.f32.gmra.mrb[0].mxu0 %v183
    %v446 = vpop.f32.mrb[0].mxu0
    %v447 = vadd.f32 0.0, %v446
    %v448 = vpop.f32.mrb[0].mxu0
    %449 = vmatprep.mubr.f32.mxu0 0.0
    %450 = vmatmul.mubr.f32.gmra.mrb[0].mxu0 %v186
    %v451 = vpop.f32.mrb[0].mxu0
    %v452 = vadd.f32 0.0, %v451
    %v453 = vpop.f32.mrb[0].mxu0
    %454 = vmatprep.mubr.f32.mxu0 0.0
    %455 = vmatmul.mubr.f32.gmra.mrb[0].mxu0 %v189
    %v456 = vpop.f32.mrb[0].mxu0
    %v457 = vadd.f32 0.0, %v456
    %v458 = vpop.f32.mrb[0].mxu0
    %459 = vmatprep.mubr.f32.mxu0 0.0
    %460 = vmatmul.mubr.f32.gmra.mrb[0].mxu0 %v192
    %v461 = vpop.f32.mrb[0].mxu0
    %v462 = vadd.f32 0.0, %v461
    %v463 = vpop.f32.mrb[0].mxu0
    %464 = vmatprep.mubr.f32.mxu0 0.0
    %465 = vmatmul.mubr.f32.gmra.mrb[0].mxu0 %v195
    %v466 = vpop.f32.mrb[0].mxu0
    %v467 = vadd.f32 0.0, %v466
    %v468 = vpop.f32.mrb[0].mxu0
    %469 = vmatprep.mubr.f32.mxu0 0.0
    %470 = vmatmul.mubr.f32.gmra.mrb[0].mxu0 %v198
    %v471 = vpop.f32.mrb[0].mxu0
    %v472 = vadd.f32 0.0, %v471
    %v473 = vpop.f32.mrb[0].mxu0
    %474 = vmatprep.mubr.f32.mxu0 0.0
    %475 = vmatmul.mubr.f32.gmra.mrb[0].mxu0 %v201
    %v476 = vpop.f32.mrb[0].mxu0
    %v477 = vadd.f32 0.0, %v476
    %v478 = vpop.f32.mrb[0].mxu0
    %479 = vmatprep.mubr.f32.mxu0 0.0
    %480 = vmatmul.mubr.f32.gmra.mrb[0].mxu0 %v204
    %v481 = vpop.f32.mrb[0].mxu0
    %v482 = vadd.f32 0.0, %v481
    %v483 = vpop.f32.mrb[0].mxu0
    %484 = vmatprep.mubr.f32.mxu0 0.0
    %485 = vmatmul.mubr.f32.gmra.mrb[0].mxu0 %v207
    %v486 = vpop.f32.mrb[0].mxu0
    %v487 = vadd.f32 0.0, %v486
    %v488 = vpop.f32.mrb[0].mxu0
    %489 = vmatprep.mubr.f32.mxu0 0.0
    %490 = vmatmul.mubr.f32.gmra.mrb[0].mxu0 %v210
    %v491 = vpop.f32.mrb[0].mxu0
    %v492 = vadd.f32 0.0, %v491
    %v493 = vpop.f32.mrb[0].mxu0
    %494 = vmatprep.mubr.f32.mxu0 0.0
    %495 = vmatmul.mubr.f32.gmra.mrb[0].mxu0 %v213
    %v496 = vpop.f32.mrb[0].mxu0
    %v497 = vadd.f32 0.0, %v496
    %v498 = vpop.f32.mrb[0].mxu0
    %499 = vmatprep.mubr.f32.mxu0 0.0
    %500 = vmatmul.mubr.f32.gmra.mrb[0].mxu0 %v216
    %v501 = vpop.f32.mrb[0].mxu0
    %v502 = vadd.f32 0.0, %v501
    %v503 = vpop.f32.mrb[0].mxu0
    %504 = vmatprep.mubr.f32.mxu0 0.0
    %505 = vmatmul.mubr.f32.gmra.mrb[0].mxu0 %v219
    %v506 = vpop.f32.mrb[0].mxu0
    %v507 = vadd.f32 0.0, %v506
    %v508 = vpop.f32.mrb[0].mxu0
    %509 = vmatprep.mubr.f32.mxu0 0.0
    %510 = vmatmul.mubr.f32.gmra.mrb[0].mxu0 %v222
    %v511 = vpop.f32.mrb[0].mxu0
    %v512 = vadd.f32 0.0, %v511
    %v513 = vpop.f32.mrb[0].mxu0
    %514 = vmatprep.mubr.f32.mxu0 0.0
    %515 = vmatmul.mubr.f32.gmra.mrb[0].mxu0 %v225
    %v516 = vpop.f32.mrb[0].mxu0
    %v517 = vadd.f32 0.0, %v516
    %v518 = vpop.f32.mrb[0].mxu0
    %519 = vmatprep.mubr.f32.mxu0 0.0
    %520 = vmatmul.mubr.f32.gmra.mrb[0].mxu0 %v228
    %v521 = vpop.f32.mrb[0].mxu0
    %v522 = vadd.f32 0.0, %v521
    %v523 = vpop.f32.mrb[0].mxu0
    %524 = vmatprep.mubr.f32.mxu0 0.0
    %525 = vmatmul.mubr.f32.gmra.mrb[0].mxu0 %v231
    %v526 = vpop.f32.mrb[0].mxu0
    %v527 = vadd.f32 0.0, %v526
    %v528 = vpop.f32.mrb[0].mxu0
    %529 = vmatprep.mubr.f32.mxu0 0.0
    %530 = vmatmul.mubr.f32.gmra.mrb[0].mxu0 %v234
    %v531 = vpop.f32.mrb[0].mxu0
    %v532 = vadd.f32 0.0, %v531
    %v533 = vpop.f32.mrb[0].mxu0
    %534 = vmatprep.mubr.f32.mxu0 0.0
    %535 = vmatmul.mubr.f32.gmra.mrb[0].mxu0 %v237
    %v536 = vpop.f32.mrb[0].mxu0
    %v537 = vadd.f32 0.0, %v536
    %v538 = vpop.f32.mrb[0].mxu0
    %539 = vmatprep.mubr.f32.mxu0 0.0
    %540 = vmatmul.mubr.f32.gmra.mrb[0].mxu0 %v240
    %v541 = vpop.f32.mrb[0].mxu0
    %v542 = vadd.f32 0.0, %v541
    %v543 = vpop.f32.mrb[0].mxu0
    %544 = vmatprep.mubr.f32.mxu0 0.0
    %545 = vmatmul.mubr.f32.gmra.mrb[0].mxu0 %v243
    %v546 = vpop.f32.mrb[0].mxu0
    %v547 = vadd.f32 0.0, %v546
    %v548 = vpop.f32.mrb[0].mxu0
    %549 = vmatprep.mubr.f32.mxu0 0.0
    %550 = vmatmul.mubr.f32.gmra.mrb[0].mxu0 %v246
    %v551 = vpop.f32.mrb[0].mxu0
    %v552 = vadd.f32 0.0, %v551
    %v553 = vpop.f32.mrb[0].mxu0
    %554 = vmatprep.mubr.f32.mxu0 0.0
    %555 = vmatmul.mubr.f32.gmra.mrb[0].mxu0 %v249
    %v556 = vpop.f32.mrb[0].mxu0
    %v557 = vadd.f32 0.0, %v556
    %v558 = vpop.f32.mrb[0].mxu0
    %559 = vmatprep.mubr.f32.mxu0 0.0
    %560 = vmatmul.mubr.f32.gmra.mrb[0].mxu0 %v252
    %v561 = vpop.f32.mrb[0].mxu0
    %v562 = vadd.f32 0.0, %v561
    %v563 = vpop.f32.mrb[0].mxu0
    %564 = vmatprep.mubr.f32.mxu0 0.0
    %565 = vmatmul.mubr.f32.gmra.mrb[0].mxu0 %v255
    %v566 = vpop.f32.mrb[0].mxu0
    %v567 = vadd.f32 0.0, %v566
    %v568 = vpop.f32.mrb[0].mxu0
    %569 = vmatprep.mubr.f32.mxu0 0.0
    %570 = vmatmul.mubr.f32.gmra.mrb[0].mxu0 %v258
    %v571 = vpop.f32.mrb[0].mxu0
    %v572 = vadd.f32 0.0, %v571
    %v573 = vpop.f32.mrb[0].mxu0
    %574 = vmatprep.mubr.f32.mxu0 0.0
    %575 = vmatmul.mubr.f32.gmra.mrb[0].mxu0 %v261
    %v576 = vpop.f32.mrb[0].mxu0
    %v577 = vadd.f32 0.0, %v576
    %v578 = vpop.f32.mrb[0].mxu0
    %579 = vmatprep.mubr.f32.mxu0 0.0
    %580 = vmatmul.mubr.f32.gmra.mrb[0].mxu0 %v264
    %v581 = vpop.f32.mrb[0].mxu0
    %v582 = vadd.f32 0.0, %v581
    %v583 = vpop.f32.mrb[0].mxu0
    %584 = vmatprep.mubr.f32.mxu0 0.0
    %585 = vmatmul.mubr.f32.gmra.mrb[0].mxu0 %v267
    %v586 = vpop.f32.mrb[0].mxu0
    %v587 = vadd.f32 0.0, %v586
    %v588 = vpop.f32.mrb[0].mxu0
    %589 = vmatprep.mubr.f32.mxu0 0.0
    %590 = vmatmul.mubr.f32.gmra.mrb[0].mxu0 %v270
    %v591 = vpop.f32.mrb[0].mxu0
    %v592 = vadd.f32 0.0, %v591
    %v593 = vpop.f32.mrb[0].mxu0
    %594 = vmatprep.mubr.f32.mxu0 0.0
    %595 = vmatmul.mubr.f32.gmra.mrb[0].mxu0 %v273
    %v596 = vpop.f32.mrb[0].mxu0
    %v597 = vadd.f32 0.0, %v596
    %v598 = vpop.f32.mrb[0].mxu0
    %599 = vdwg.mxu0
    %v600 = vrot.slane %v342, 1
    %v601 = vrot.slane %v347, 1
    %v602 = vrot.slane %v352, 1
    %v603 = vrot.slane %v357, 1
    %v604 = vrot.slane %v362, 1
    %v605 = vrot.slane %v367, 1
    %v606 = vrot.slane %v372, 1
    %v607 = vrot.slane %v377, 1
    %v608 = vrot.slane %v382, 1
    %v609 = vrot.slane %v387, 1
    %v610 = vrot.slane %v392, 1
    %v611 = vrot.slane %v397, 1
    %v612 = vrot.slane %v402, 1
    %v613 = vrot.slane %v407, 1
    %v614 = vrot.slane %v412, 1
    %v615 = vrot.slane %v417, 1
    %v616 = vrot.slane %v422, 1
    %v617 = vrot.slane %v427, 1
    %v618 = vrot.slane %v432, 1
    %v619 = vrot.slane %v437, 1
    %v620 = vrot.slane %v442, 1
    %v621 = vrot.slane %v447, 1
    %v622 = vrot.slane %v452, 1
    %v623 = vrot.slane %v457, 1
    %v624 = vrot.slane %v462, 1
    %v625 = vrot.slane %v467, 1
    %v626 = vrot.slane %v472, 1
    %v627 = vrot.slane %v477, 1
    %v628 = vrot.slane %v482, 1
    %v629 = vrot.slane %v487, 1
    %v630 = vrot.slane %v492, 1
    %v631 = vrot.slane %v497, 1
    %v632 = vrot.slane %v502, 1
    %v633 = vrot.slane %v507, 1
    %v634 = vrot.slane %v512, 1
    %v635 = vrot.slane %v517, 1
    %v636 = vrot.slane %v522, 1
    %v637 = vrot.slane %v527, 1
    %v638 = vrot.slane %v532, 1
    %v639 = vrot.slane %v537, 1
    %v640 = vrot.slane %v542, 1
    %v641 = vrot.slane %v547, 1
    %v642 = vrot.slane %v552, 1
    %v643 = vrot.slane %v557, 1
    %v644 = vrot.slane %v562, 1
    %v645 = vrot.slane %v567, 1
    %v646 = vrot.slane %v572, 1
    %v647 = vrot.slane %v577, 1
    %v648 = vrot.slane %v582, 1
    %v649 = vrot.slane %v587, 1
    %v650 = vrot.slane %v592, 1
    %v651 = vrot.slane %v597, 1
    %v652 = vlaneseq
    %v653 = vshrl.u32 %v652, 7
    %vm654 = vcmp.lt.s32.totalorder %v653, 7
    %v655 = vsel %vm654, %v650, %v651
    %v656 = vsel %vm654, %v649, %v650
    %v657 = vsel %vm654, %v648, %v649
    %v658 = vsel %vm654, %v647, %v648
    %v659 = vsel %vm654, %v646, %v647
    %v660 = vsel %vm654, %v645, %v646
    %v661 = vsel %vm654, %v644, %v645
    %v662 = vsel %vm654, %v643, %v644
    %v663 = vsel %vm654, %v642, %v643
    %v664 = vsel %vm654, %v641, %v642
    %v665 = vsel %vm654, %v640, %v641
    %v666 = vsel %vm654, %v639, %v640
    %v667 = vsel %vm654, %v638, %v639
    %v668 = vsel %vm654, %v637, %v638
    %v669 = vsel %vm654, %v636, %v637
    %v670 = vsel %vm654, %v635, %v636
    %v671 = vsel %vm654, %v634, %v635
    %v672 = vsel %vm654, %v633, %v634
    %v673 = vsel %vm654, %v632, %v633
    %v674 = vsel %vm654, %v631, %v632
    %v675 = vsel %vm654, %v630, %v631
    %v676 = vsel %vm654, %v629, %v630
    %v677 = vsel %vm654, %v628, %v629
    %v678 = vsel %vm654, %v627, %v628
    %v679 = vsel %vm654, %v626, %v627
    %v680 = vsel %vm654, %v625, %v626
    %v681 = vsel %vm654, %v624, %v625
    %v682 = vsel %vm654, %v623, %v624
    %v683 = vsel %vm654, %v622, %v623
    %v684 = vsel %vm654, %v621, %v622
    %v685 = vsel %vm654, %v620, %v621
    %v686 = vsel %vm654, %v619, %v620
    %v687 = vsel %vm654, %v618, %v619
    %v688 = vsel %vm654, %v617, %v618
    %v689 = vsel %vm654, %v616, %v617
    %v690 = vsel %vm654, %v615, %v616
    %v691 = vsel %vm654, %v614, %v615
    %v692 = vsel %vm654, %v613, %v614
    %v693 = vsel %vm654, %v612, %v613
    %v694 = vsel %vm654, %v611, %v612
    %v695 = vsel %vm654, %v610, %v611
    %v696 = vsel %vm654, %v609, %v610
    %v697 = vsel %vm654, %v608, %v609
    %v698 = vsel %vm654, %v607, %v608
    %v699 = vsel %vm654, %v606, %v607
    %v700 = vsel %vm654, %v605, %v606
    %v701 = vsel %vm654, %v604, %v605
    %v702 = vsel %vm654, %v603, %v604
    %v703 = vsel %vm654, %v602, %v603
    %v704 = vsel %vm654, %v601, %v602
    %v705 = vsel %vm654, %v600, %v601
    %v706 = vsel %vm654, %v651, %v600
    %v707 = vrot.slane %v342, 2
    %v708 = vrot.slane %v347, 2
    %v709 = vrot.slane %v352, 2
    %v710 = vrot.slane %v357, 2
    %v711 = vrot.slane %v362, 2
    %v712 = vrot.slane %v367, 2
    %v713 = vrot.slane %v372, 2
    %v714 = vrot.slane %v377, 2
    %v715 = vrot.slane %v382, 2
    %v716 = vrot.slane %v387, 2
    %v717 = vrot.slane %v392, 2
    %v718 = vrot.slane %v397, 2
    %v719 = vrot.slane %v402, 2
    %v720 = vrot.slane %v407, 2
    %v721 = vrot.slane %v412, 2
    %v722 = vrot.slane %v417, 2
    %v723 = vrot.slane %v422, 2
    %v724 = vrot.slane %v427, 2
    %v725 = vrot.slane %v432, 2
    %v726 = vrot.slane %v437, 2
    %v727 = vrot.slane %v442, 2
    %v728 = vrot.slane %v447, 2
    %v729 = vrot.slane %v452, 2
    %v730 = vrot.slane %v457, 2
    %v731 = vrot.slane %v462, 2
    %v732 = vrot.slane %v467, 2
    %v733 = vrot.slane %v472, 2
    %v734 = vrot.slane %v477, 2
    %v735 = vrot.slane %v482, 2
    %v736 = vrot.slane %v487, 2
    %v737 = vrot.slane %v492, 2
    %v738 = vrot.slane %v497, 2
    %v739 = vrot.slane %v502, 2
    %v740 = vrot.slane %v507, 2
    %v741 = vrot.slane %v512, 2
    %v742 = vrot.slane %v517, 2
    %v743 = vrot.slane %v522, 2
    %v744 = vrot.slane %v527, 2
    %v745 = vrot.slane %v532, 2
    %v746 = vrot.slane %v537, 2
    %v747 = vrot.slane %v542, 2
    %v748 = vrot.slane %v547, 2
    %v749 = vrot.slane %v552, 2
    %v750 = vrot.slane %v557, 2
    %v751 = vrot.slane %v562, 2
    %v752 = vrot.slane %v567, 2
    %v753 = vrot.slane %v572, 2
    %v754 = vrot.slane %v577, 2
    %v755 = vrot.slane %v582, 2
    %v756 = vrot.slane %v587, 2
    %v757 = vrot.slane %v592, 2
    %v758 = vrot.slane %v597, 2
    %vm759 = vcmp.lt.s32.totalorder %v653, 6
    %v760 = vsel %vm759, %v757, %v758
    %v761 = vsel %vm759, %v756, %v757
    %v762 = vsel %vm759, %v755, %v756
    %v763 = vsel %vm759, %v754, %v755
    %v764 = vsel %vm759, %v753, %v754
    %v765 = vsel %vm759, %v752, %v753
    %v766 = vsel %vm759, %v751, %v752
    %v767 = vsel %vm759, %v750, %v751
    %v768 = vsel %vm759, %v749, %v750
    %v769 = vsel %vm759, %v748, %v749
    %v770 = vsel %vm759, %v747, %v748
    %v771 = vsel %vm759, %v746, %v747
    %v772 = vsel %vm759, %v745, %v746
    %v773 = vsel %vm759, %v744, %v745
    %v774 = vsel %vm759, %v743, %v744
    %v775 = vsel %vm759, %v742, %v743
    %v776 = vsel %vm759, %v741, %v742
    %v777 = vsel %vm759, %v740, %v741
    %v778 = vsel %vm759, %v739, %v740
    %v779 = vsel %vm759, %v738, %v739
    %v780 = vsel %vm759, %v737, %v738
    %v781 = vsel %vm759, %v736, %v737
    %v782 = vsel %vm759, %v735, %v736
    %v783 = vsel %vm759, %v734, %v735
    %v784 = vsel %vm759, %v733, %v734
    %v785 = vsel %vm759, %v732, %v733
    %v786 = vsel %vm759, %v731, %v732
    %v787 = vsel %vm759, %v730, %v731
    %v788 = vsel %vm759, %v729, %v730
    %v789 = vsel %vm759, %v728, %v729
    %v790 = vsel %vm759, %v727, %v728
    %v791 = vsel %vm759, %v726, %v727
    %v792 = vsel %vm759, %v725, %v726
    %v793 = vsel %vm759, %v724, %v725
    %v794 = vsel %vm759, %v723, %v724
    %v795 = vsel %vm759, %v722, %v723
    %v796 = vsel %vm759, %v721, %v722
    %v797 = vsel %vm759, %v720, %v721
    %v798 = vsel %vm759, %v719, %v720
    %v799 = vsel %vm759, %v718, %v719
    %v800 = vsel %vm759, %v717, %v718
    %v801 = vsel %vm759, %v716, %v717
    %v802 = vsel %vm759, %v715, %v716
    %v803 = vsel %vm759, %v714, %v715
    %v804 = vsel %vm759, %v713, %v714
    %v805 = vsel %vm759, %v712, %v713
    %v806 = vsel %vm759, %v711, %v712
    %v807 = vsel %vm759, %v710, %v711
    %v808 = vsel %vm759, %v709, %v710
    %v809 = vsel %vm759, %v708, %v709
    %v810 = vsel %vm759, %v707, %v708
    %v811 = vsel %vm759, %v758, %v707
    %v812 = vrot.slane %v342, 3
    %v813 = vrot.slane %v347, 3
    %v814 = vrot.slane %v352, 3
    %v815 = vrot.slane %v357, 3
    %v816 = vrot.slane %v362, 3
    %v817 = vrot.slane %v367, 3
    %v818 = vrot.slane %v372, 3
    %v819 = vrot.slane %v377, 3
    %v820 = vrot.slane %v382, 3
    %v821 = vrot.slane %v387, 3
    %v822 = vrot.slane %v392, 3
    %v823 = vrot.slane %v397, 3
    %v824 = vrot.slane %v402, 3
    %v825 = vrot.slane %v407, 3
    %v826 = vrot.slane %v412, 3
    %v827 = vrot.slane %v417, 3
    %v828 = vrot.slane %v422, 3
    %v829 = vrot.slane %v427, 3
    %v830 = vrot.slane %v432, 3
    %v831 = vrot.slane %v437, 3
    %v832 = vrot.slane %v442, 3
    %v833 = vrot.slane %v447, 3
    %v834 = vrot.slane %v452, 3
    %v835 = vrot.slane %v457, 3
    %v836 = vrot.slane %v462, 3
    %v837 = vrot.slane %v467, 3
    %v838 = vrot.slane %v472, 3
    %v839 = vrot.slane %v477, 3
    %v840 = vrot.slane %v482, 3
    %v841 = vrot.slane %v487, 3
    %v842 = vrot.slane %v492, 3
    %v843 = vrot.slane %v497, 3
    %v844 = vrot.slane %v502, 3
    %v845 = vrot.slane %v507, 3
    %v846 = vrot.slane %v512, 3
    %v847 = vrot.slane %v517, 3
    %v848 = vrot.slane %v522, 3
    %v849 = vrot.slane %v527, 3
    %v850 = vrot.slane %v532, 3
    %v851 = vrot.slane %v537, 3
    %v852 = vrot.slane %v542, 3
    %v853 = vrot.slane %v547, 3
    %v854 = vrot.slane %v552, 3
    %v855 = vrot.slane %v557, 3
    %v856 = vrot.slane %v562, 3
    %v857 = vrot.slane %v567, 3
    %v858 = vrot.slane %v572, 3
    %v859 = vrot.slane %v577, 3
    %v860 = vrot.slane %v582, 3
    %v861 = vrot.slane %v587, 3
    %v862 = vrot.slane %v592, 3
    %v863 = vrot.slane %v597, 3
    %vm864 = vcmp.lt.s32.totalorder %v653, 5
    %v865 = vsel %vm864, %v862, %v863
    %v866 = vsel %vm864, %v861, %v862
    %v867 = vsel %vm864, %v860, %v861
    %v868 = vsel %vm864, %v859, %v860
    %v869 = vsel %vm864, %v858, %v859
    %v870 = vsel %vm864, %v857, %v858
    %v871 = vsel %vm864, %v856, %v857
    %v872 = vsel %vm864, %v855, %v856
    %v873 = vsel %vm864, %v854, %v855
    %v874 = vsel %vm864, %v853, %v854
    %v875 = vsel %vm864, %v852, %v853
    %v876 = vsel %vm864, %v851, %v852
    %v877 = vsel %vm864, %v850, %v851
    %v878 = vsel %vm864, %v849, %v850
    %v879 = vsel %vm864, %v848, %v849
    %v880 = vsel %vm864, %v847, %v848
    %v881 = vsel %vm864, %v846, %v847
    %v882 = vsel %vm864, %v845, %v846
    %v883 = vsel %vm864, %v844, %v845
    %v884 = vsel %vm864, %v843, %v844
    %v885 = vsel %vm864, %v842, %v843
    %v886 = vsel %vm864, %v841, %v842
    %v887 = vsel %vm864, %v840, %v841
    %v888 = vsel %vm864, %v839, %v840
    %v889 = vsel %vm864, %v838, %v839
    %v890 = vsel %vm864, %v837, %v838
    %v891 = vsel %vm864, %v836, %v837
    %v892 = vsel %vm864, %v835, %v836
    %v893 = vsel %vm864, %v834, %v835
    %v894 = vsel %vm864, %v833, %v834
    %v895 = vsel %vm864, %v832, %v833
    %v896 = vsel %vm864, %v831, %v832
    %v897 = vsel %vm864, %v830, %v831
    %v898 = vsel %vm864, %v829, %v830
    %v899 = vsel %vm864, %v828, %v829
    %v900 = vsel %vm864, %v827, %v828
    %v901 = vsel %vm864, %v826, %v827
    %v902 = vsel %vm864, %v825, %v826
    %v903 = vsel %vm864, %v824, %v825
    %v904 = vsel %vm864, %v823, %v824
    %v905 = vsel %vm864, %v822, %v823
    %v906 = vsel %vm864, %v821, %v822
    %v907 = vsel %vm864, %v820, %v821
    %v908 = vsel %vm864, %v819, %v820
    %v909 = vsel %vm864, %v818, %v819
    %v910 = vsel %vm864, %v817, %v818
    %v911 = vsel %vm864, %v816, %v817
    %v912 = vsel %vm864, %v815, %v816
    %v913 = vsel %vm864, %v814, %v815
    %v914 = vsel %vm864, %v813, %v814
    %v915 = vsel %vm864, %v812, %v813
    %v916 = vsel %vm864, %v863, %v812
    %969 = vrot.lane.b32.xlu0 %v705, 4
    %v970 = vpop.permute.xlu0 %969
    %971 = vrot.lane.b32.xlu0 %v704, 4
    %v972 = vpop.permute.xlu0 %971
    %973 = vrot.lane.b32.xlu0 %v703, 4
    %v974 = vpop.permute.xlu0 %973
    %975 = vrot.lane.b32.xlu0 %v702, 4
    %v976 = vpop.permute.xlu0 %975
    %977 = vrot.lane.b32.xlu0 %v701, 4
    %v978 = vpop.permute.xlu0 %977
    %979 = vrot.lane.b32.xlu0 %v700, 4
    %v980 = vpop.permute.xlu0 %979
    %981 = vrot.lane.b32.xlu0 %v699, 4
    %v982 = vpop.permute.xlu0 %981
    %983 = vrot.lane.b32.xlu0 %v698, 4
    %v984 = vpop.permute.xlu0 %983
    %985 = vrot.lane.b32.xlu0 %v697, 4
    %v986 = vpop.permute.xlu0 %985
    %987 = vrot.lane.b32.xlu0 %v696, 4
    %v988 = vpop.permute.xlu0 %987
    %989 = vrot.lane.b32.xlu0 %v695, 4
    %v990 = vpop.permute.xlu0 %989
    %991 = vrot.lane.b32.xlu0 %v694, 4
    %v992 = vpop.permute.xlu0 %991
    %993 = vrot.lane.b32.xlu0 %v693, 4
    %v994 = vpop.permute.xlu0 %993
    %995 = vrot.lane.b32.xlu0 %v692, 4
    %v996 = vpop.permute.xlu0 %995
    %997 = vrot.lane.b32.xlu0 %v691, 4
    %v998 = vpop.permute.xlu0 %997
    %999 = vrot.lane.b32.xlu0 %v690, 4
    %v1000 = vpop.permute.xlu0 %999
    %1001 = vrot.lane.b32.xlu0 %v689, 4
    %v1002 = vpop.permute.xlu0 %1001
    %1003 = vrot.lane.b32.xlu0 %v688, 4
    %v1004 = vpop.permute.xlu0 %1003
    %1005 = vrot.lane.b32.xlu0 %v687, 4
    %v1006 = vpop.permute.xlu0 %1005
    %1007 = vrot.lane.b32.xlu0 %v686, 4
    %v1008 = vpop.permute.xlu0 %1007
    %1009 = vrot.lane.b32.xlu0 %v685, 4
    %v1010 = vpop.permute.xlu0 %1009
    %1011 = vrot.lane.b32.xlu0 %v684, 4
    %v1012 = vpop.permute.xlu0 %1011
    %1013 = vrot.lane.b32.xlu0 %v683, 4
    %v1014 = vpop.permute.xlu0 %1013
    %1015 = vrot.lane.b32.xlu0 %v682, 4
    %v1016 = vpop.permute.xlu0 %1015
    %1017 = vrot.lane.b32.xlu0 %v681, 4
    %v1018 = vpop.permute.xlu0 %1017
    %1019 = vrot.lane.b32.xlu0 %v680, 4
    %v1020 = vpop.permute.xlu0 %1019
    %1021 = vrot.lane.b32.xlu0 %v679, 4
    %v1022 = vpop.permute.xlu0 %1021
    %1023 = vrot.lane.b32.xlu0 %v678, 4
    %v1024 = vpop.permute.xlu0 %1023
    %1025 = vrot.lane.b32.xlu0 %v677, 4
    %v1026 = vpop.permute.xlu0 %1025
    %1027 = vrot.lane.b32.xlu0 %v676, 4
    %v1028 = vpop.permute.xlu0 %1027
    %1029 = vrot.lane.b32.xlu0 %v675, 4
    %v1030 = vpop.permute.xlu0 %1029
    %1031 = vrot.lane.b32.xlu0 %v674, 4
    %v1032 = vpop.permute.xlu0 %1031
    %1033 = vrot.lane.b32.xlu0 %v673, 4
    %v1034 = vpop.permute.xlu0 %1033
    %1035 = vrot.lane.b32.xlu0 %v672, 4
    %v1036 = vpop.permute.xlu0 %1035
    %1037 = vrot.lane.b32.xlu0 %v671, 4
    %v1038 = vpop.permute.xlu0 %1037
    %1039 = vrot.lane.b32.xlu0 %v670, 4
    %v1040 = vpop.permute.xlu0 %1039
    %1041 = vrot.lane.b32.xlu0 %v669, 4
    %v1042 = vpop.permute.xlu0 %1041
    %1043 = vrot.lane.b32.xlu0 %v668, 4
    %v1044 = vpop.permute.xlu0 %1043
    %1045 = vrot.lane.b32.xlu0 %v667, 4
    %v1046 = vpop.permute.xlu0 %1045
    %1047 = vrot.lane.b32.xlu0 %v666, 4
    %v1048 = vpop.permute.xlu0 %1047
    %1049 = vrot.lane.b32.xlu0 %v665, 4
    %v1050 = vpop.permute.xlu0 %1049
    %1051 = vrot.lane.b32.xlu0 %v664, 4
    %v1052 = vpop.permute.xlu0 %1051
    %1053 = vrot.lane.b32.xlu0 %v663, 4
    %v1054 = vpop.permute.xlu0 %1053
    %1055 = vrot.lane.b32.xlu0 %v662, 4
    %v1056 = vpop.permute.xlu0 %1055
    %1057 = vrot.lane.b32.xlu0 %v661, 4
    %v1058 = vpop.permute.xlu0 %1057
    %1059 = vrot.lane.b32.xlu0 %v660, 4
    %v1060 = vpop.permute.xlu0 %1059
    %1061 = vrot.lane.b32.xlu0 %v659, 4
    %v1062 = vpop.permute.xlu0 %1061
    %1063 = vrot.lane.b32.xlu0 %v658, 4
    %v1064 = vpop.permute.xlu0 %1063
    %1065 = vrot.lane.b32.xlu0 %v657, 4
    %v1066 = vpop.permute.xlu0 %1065
    %1067 = vrot.lane.b32.xlu0 %v656, 4
    %v1068 = vpop.permute.xlu0 %1067
    %1069 = vrot.lane.b32.xlu0 %v655, 4
    %v1070 = vpop.permute.xlu0 %1069
    %1071 = vrot.lane.b32.xlu0 %v706, 4
    %v1072 = vpop.permute.xlu0 %1071
    %1177 = vrot.lane.b32.xlu0 %v810, 8
    %v1178 = vpop.permute.xlu0 %1177
    %1179 = vrot.lane.b32.xlu0 %v809, 8
    %v1180 = vpop.permute.xlu0 %1179
    %1181 = vrot.lane.b32.xlu0 %v808, 8
    %v1182 = vpop.permute.xlu0 %1181
    %1183 = vrot.lane.b32.xlu0 %v807, 8
    %v1184 = vpop.permute.xlu0 %1183
    %1185 = vrot.lane.b32.xlu0 %v806, 8
    %v1186 = vpop.permute.xlu0 %1185
    %1187 = vrot.lane.b32.xlu0 %v805, 8
    %v1188 = vpop.permute.xlu0 %1187
    %1189 = vrot.lane.b32.xlu0 %v804, 8
    %v1190 = vpop.permute.xlu0 %1189
    %1191 = vrot.lane.b32.xlu0 %v803, 8
    %v1192 = vpop.permute.xlu0 %1191
    %1193 = vrot.lane.b32.xlu0 %v802, 8
    %v1194 = vpop.permute.xlu0 %1193
    %1195 = vrot.lane.b32.xlu0 %v801, 8
    %v1196 = vpop.permute.xlu0 %1195
    %1197 = vrot.lane.b32.xlu0 %v800, 8
    %v1198 = vpop.permute.xlu0 %1197
    %1199 = vrot.lane.b32.xlu0 %v799, 8
    %v1200 = vpop.permute.xlu0 %1199
    %1201 = vrot.lane.b32.xlu0 %v798, 8
    %v1202 = vpop.permute.xlu0 %1201
    %1203 = vrot.lane.b32.xlu0 %v797, 8
    %v1204 = vpop.permute.xlu0 %1203
    %1205 = vrot.lane.b32.xlu0 %v796, 8
    %v1206 = vpop.permute.xlu0 %1205
    %1207 = vrot.lane.b32.xlu0 %v795, 8
    %v1208 = vpop.permute.xlu0 %1207
    %1209 = vrot.lane.b32.xlu0 %v794, 8
    %v1210 = vpop.permute.xlu0 %1209
    %1211 = vrot.lane.b32.xlu0 %v793, 8
    %v1212 = vpop.permute.xlu0 %1211
    %1213 = vrot.lane.b32.xlu0 %v792, 8
    %v1214 = vpop.permute.xlu0 %1213
    %1215 = vrot.lane.b32.xlu0 %v791, 8
    %v1216 = vpop.permute.xlu0 %1215
    %1217 = vrot.lane.b32.xlu0 %v790, 8
    %v1218 = vpop.permute.xlu0 %1217
    %1219 = vrot.lane.b32.xlu0 %v789, 8
    %v1220 = vpop.permute.xlu0 %1219
    %1221 = vrot.lane.b32.xlu0 %v788, 8
    %v1222 = vpop.permute.xlu0 %1221
    %1223 = vrot.lane.b32.xlu0 %v787, 8
    %v1224 = vpop.permute.xlu0 %1223
    %1225 = vrot.lane.b32.xlu0 %v786, 8
    %v1226 = vpop.permute.xlu0 %1225
    %1227 = vrot.lane.b32.xlu0 %v785, 8
    %v1228 = vpop.permute.xlu0 %1227
    %1229 = vrot.lane.b32.xlu0 %v784, 8
    %v1230 = vpop.permute.xlu0 %1229
    %1231 = vrot.lane.b32.xlu0 %v783, 8
    %v1232 = vpop.permute.xlu0 %1231
    %1233 = vrot.lane.b32.xlu0 %v782, 8
    %v1234 = vpop.permute.xlu0 %1233
    %1235 = vrot.lane.b32.xlu0 %v781, 8
    %v1236 = vpop.permute.xlu0 %1235
    %1237 = vrot.lane.b32.xlu0 %v780, 8
    %v1238 = vpop.permute.xlu0 %1237
    %1239 = vrot.lane.b32.xlu0 %v779, 8
    %v1240 = vpop.permute.xlu0 %1239
    %1241 = vrot.lane.b32.xlu0 %v778, 8
    %v1242 = vpop.permute.xlu0 %1241
    %1243 = vrot.lane.b32.xlu0 %v777, 8
    %v1244 = vpop.permute.xlu0 %1243
    %1245 = vrot.lane.b32.xlu0 %v776, 8
    %v1246 = vpop.permute.xlu0 %1245
    %1247 = vrot.lane.b32.xlu0 %v775, 8
    %v1248 = vpop.permute.xlu0 %1247
    %1249 = vrot.lane.b32.xlu0 %v774, 8
    %v1250 = vpop.permute.xlu0 %1249
    %1251 = vrot.lane.b32.xlu0 %v773, 8
    %v1252 = vpop.permute.xlu0 %1251
    %1253 = vrot.lane.b32.xlu0 %v772, 8
    %v1254 = vpop.permute.xlu0 %1253
    %1255 = vrot.lane.b32.xlu0 %v771, 8
    %v1256 = vpop.permute.xlu0 %1255
    %1257 = vrot.lane.b32.xlu0 %v770, 8
    %v1258 = vpop.permute.xlu0 %1257
    %1259 = vrot.lane.b32.xlu0 %v769, 8
    %v1260 = vpop.permute.xlu0 %1259
    %1261 = vrot.lane.b32.xlu0 %v768, 8
    %v1262 = vpop.permute.xlu0 %1261
    %1263 = vrot.lane.b32.xlu0 %v767, 8
    %v1264 = vpop.permute.xlu0 %1263
    %1265 = vrot.lane.b32.xlu0 %v766, 8
    %v1266 = vpop.permute.xlu0 %1265
    %1267 = vrot.lane.b32.xlu0 %v765, 8
    %v1268 = vpop.permute.xlu0 %1267
    %1269 = vrot.lane.b32.xlu0 %v764, 8
    %v1270 = vpop.permute.xlu0 %1269
    %1271 = vrot.lane.b32.xlu0 %v763, 8
    %v1272 = vpop.permute.xlu0 %1271
    %1273 = vrot.lane.b32.xlu0 %v762, 8
    %v1274 = vpop.permute.xlu0 %1273
    %1275 = vrot.lane.b32.xlu0 %v761, 8
    %v1276 = vpop.permute.xlu0 %1275
    %1277 = vrot.lane.b32.xlu0 %v760, 8
    %v1278 = vpop.permute.xlu0 %1277
    %1279 = vrot.lane.b32.xlu0 %v811, 8
    %v1280 = vpop.permute.xlu0 %1279
    %1385 = vrot.lane.b32.xlu0 %v915, 12
    %v1386 = vpop.permute.xlu0 %1385
    %1387 = vrot.lane.b32.xlu0 %v914, 12
    %v1388 = vpop.permute.xlu0 %1387
    %1389 = vrot.lane.b32.xlu0 %v913, 12
    %v1390 = vpop.permute.xlu0 %1389
    %1391 = vrot.lane.b32.xlu0 %v912, 12
    %v1392 = vpop.permute.xlu0 %1391
    %1393 = vrot.lane.b32.xlu0 %v911, 12
    %v1394 = vpop.permute.xlu0 %1393
    %1395 = vrot.lane.b32.xlu0 %v910, 12
    %v1396 = vpop.permute.xlu0 %1395
    %1397 = vrot.lane.b32.xlu0 %v909, 12
    %v1398 = vpop.permute.xlu0 %1397
    %1399 = vrot.lane.b32.xlu0 %v908, 12
    %v1400 = vpop.permute.xlu0 %1399
    %1401 = vrot.lane.b32.xlu0 %v907, 12
    %v1402 = vpop.permute.xlu0 %1401
    %1403 = vrot.lane.b32.xlu0 %v906, 12
    %v1404 = vpop.permute.xlu0 %1403
    %1405 = vrot.lane.b32.xlu0 %v905, 12
    %v1406 = vpop.permute.xlu0 %1405
    %1407 = vrot.lane.b32.xlu0 %v904, 12
    %v1408 = vpop.permute.xlu0 %1407
    %1409 = vrot.lane.b32.xlu0 %v903, 12
    %v1410 = vpop.permute.xlu0 %1409
    %1411 = vrot.lane.b32.xlu0 %v902, 12
    %v1412 = vpop.permute.xlu0 %1411
    %1413 = vrot.lane.b32.xlu0 %v901, 12
    %v1414 = vpop.permute.xlu0 %1413
    %1415 = vrot.lane.b32.xlu0 %v900, 12
    %v1416 = vpop.permute.xlu0 %1415
    %1417 = vrot.lane.b32.xlu0 %v899, 12
    %v1418 = vpop.permute.xlu0 %1417
    %1419 = vrot.lane.b32.xlu0 %v898, 12
    %v1420 = vpop.permute.xlu0 %1419
    %1421 = vrot.lane.b32.xlu0 %v897, 12
    %v1422 = vpop.permute.xlu0 %1421
    %1423 = vrot.lane.b32.xlu0 %v896, 12
    %v1424 = vpop.permute.xlu0 %1423
    %1425 = vrot.lane.b32.xlu0 %v895, 12
    %v1426 = vpop.permute.xlu0 %1425
    %1427 = vrot.lane.b32.xlu0 %v894, 12
    %v1428 = vpop.permute.xlu0 %1427
    %1429 = vrot.lane.b32.xlu0 %v893, 12
    %v1430 = vpop.permute.xlu0 %1429
    %1431 = vrot.lane.b32.xlu0 %v892, 12
    %v1432 = vpop.permute.xlu0 %1431
    %1433 = vrot.lane.b32.xlu0 %v891, 12
    %v1434 = vpop.permute.xlu0 %1433
    %1435 = vrot.lane.b32.xlu0 %v890, 12
    %v1436 = vpop.permute.xlu0 %1435
    %1437 = vrot.lane.b32.xlu0 %v889, 12
    %v1438 = vpop.permute.xlu0 %1437
    %1439 = vrot.lane.b32.xlu0 %v888, 12
    %v1440 = vpop.permute.xlu0 %1439
    %1441 = vrot.lane.b32.xlu0 %v887, 12
    %v1442 = vpop.permute.xlu0 %1441
    %1443 = vrot.lane.b32.xlu0 %v886, 12
    %v1444 = vpop.permute.xlu0 %1443
    %1445 = vrot.lane.b32.xlu0 %v885, 12
    %v1446 = vpop.permute.xlu0 %1445
    %1447 = vrot.lane.b32.xlu0 %v884, 12
    %v1448 = vpop.permute.xlu0 %1447
    %1449 = vrot.lane.b32.xlu0 %v883, 12
    %v1450 = vpop.permute.xlu0 %1449
    %1451 = vrot.lane.b32.xlu0 %v882, 12
    %v1452 = vpop.permute.xlu0 %1451
    %1453 = vrot.lane.b32.xlu0 %v881, 12
    %v1454 = vpop.permute.xlu0 %1453
    %1455 = vrot.lane.b32.xlu0 %v880, 12
    %v1456 = vpop.permute.xlu0 %1455
    %1457 = vrot.lane.b32.xlu0 %v879, 12
    %v1458 = vpop.permute.xlu0 %1457
    %1459 = vrot.lane.b32.xlu0 %v878, 12
    %v1460 = vpop.permute.xlu0 %1459
    %1461 = vrot.lane.b32.xlu0 %v877, 12
    %v1462 = vpop.permute.xlu0 %1461
    %1463 = vrot.lane.b32.xlu0 %v876, 12
    %v1464 = vpop.permute.xlu0 %1463
    %1465 = vrot.lane.b32.xlu0 %v875, 12
    %v1466 = vpop.permute.xlu0 %1465
    %1467 = vrot.lane.b32.xlu0 %v874, 12
    %v1468 = vpop.permute.xlu0 %1467
    %1469 = vrot.lane.b32.xlu0 %v873, 12
    %v1470 = vpop.permute.xlu0 %1469
    %1471 = vrot.lane.b32.xlu0 %v872, 12
    %v1472 = vpop.permute.xlu0 %1471
    %1473 = vrot.lane.b32.xlu0 %v871, 12
    %v1474 = vpop.permute.xlu0 %1473
    %1475 = vrot.lane.b32.xlu0 %v870, 12
    %v1476 = vpop.permute.xlu0 %1475
    %1477 = vrot.lane.b32.xlu0 %v869, 12
    %v1478 = vpop.permute.xlu0 %1477
    %1479 = vrot.lane.b32.xlu0 %v868, 12
    %v1480 = vpop.permute.xlu0 %1479
    %1481 = vrot.lane.b32.xlu0 %v867, 12
    %v1482 = vpop.permute.xlu0 %1481
    %1483 = vrot.lane.b32.xlu0 %v866, 12
    %v1484 = vpop.permute.xlu0 %1483
    %1485 = vrot.lane.b32.xlu0 %v865, 12
    %v1486 = vpop.permute.xlu0 %1485
    %1487 = vrot.lane.b32.xlu0 %v916, 12
    %v1488 = vpop.permute.xlu0 %1487
    %vm1541 = vcmask 31744
    %v1542 = vsel %vm1541, %v342, %v970
    %v1543 = vsel %vm1541, %v347, %v972
    %v1544 = vsel %vm1541, %v352, %v974
    %v1545 = vsel %vm1541, %v357, %v976
    %v1546 = vsel %vm1541, %v362, %v978
    %v1547 = vsel %vm1541, %v367, %v980
    %v1548 = vsel %vm1541, %v372, %v982
    %v1549 = vsel %vm1541, %v377, %v984
    %v1550 = vsel %vm1541, %v382, %v986
    %v1551 = vsel %vm1541, %v387, %v988
    %v1552 = vsel %vm1541, %v392, %v990
    %v1553 = vsel %vm1541, %v397, %v992
    %v1554 = vsel %vm1541, %v402, %v994
    %v1555 = vsel %vm1541, %v407, %v996
    %v1556 = vsel %vm1541, %v412, %v998
    %v1557 = vsel %vm1541, %v417, %v1000
    %v1558 = vsel %vm1541, %v422, %v1002
    %v1559 = vsel %vm1541, %v427, %v1004
    %v1560 = vsel %vm1541, %v432, %v1006
    %v1561 = vsel %vm1541, %v437, %v1008
    %v1562 = vsel %vm1541, %v442, %v1010
    %v1563 = vsel %vm1541, %v447, %v1012
    %v1564 = vsel %vm1541, %v452, %v1014
    %v1565 = vsel %vm1541, %v457, %v1016
    %v1566 = vsel %vm1541, %v462, %v1018
    %v1567 = vsel %vm1541, %v467, %v1020
    %v1568 = vsel %vm1541, %v472, %v1022
    %v1569 = vsel %vm1541, %v477, %v1024
    %v1570 = vsel %vm1541, %v482, %v1026
    %v1571 = vsel %vm1541, %v487, %v1028
    %v1572 = vsel %vm1541, %v492, %v1030
    %v1573 = vsel %vm1541, %v497, %v1032
    %v1574 = vsel %vm1541, %v502, %v1034
    %v1575 = vsel %vm1541, %v507, %v1036
    %v1576 = vsel %vm1541, %v512, %v1038
    %v1577 = vsel %vm1541, %v517, %v1040
    %v1578 = vsel %vm1541, %v522, %v1042
    %v1579 = vsel %vm1541, %v527, %v1044
    %v1580 = vsel %vm1541, %v532, %v1046
    %v1581 = vsel %vm1541, %v537, %v1048
    %v1582 = vsel %vm1541, %v542, %v1050
    %v1583 = vsel %vm1541, %v547, %v1052
    %v1584 = vsel %vm1541, %v552, %v1054
    %v1585 = vsel %vm1541, %v557, %v1056
    %v1586 = vsel %vm1541, %v562, %v1058
    %v1587 = vsel %vm1541, %v567, %v1060
    %v1588 = vsel %vm1541, %v572, %v1062
    %v1589 = vsel %vm1541, %v577, %v1064
    %v1590 = vsel %vm1541, %v582, %v1066
    %v1591 = vsel %vm1541, %v587, %v1068
    %v1592 = vsel %vm1541, %v592, %v1070
    %v1593 = vsel %vm1541, %v597, %v1072
    %vm1594 = vcmask 64512
    %v1595 = vsel %vm1594, %v1542, %v1178
    %v1596 = vsel %vm1594, %v1543, %v1180
    %v1597 = vsel %vm1594, %v1544, %v1182
    %v1598 = vsel %vm1594, %v1545, %v1184
    %v1599 = vsel %vm1594, %v1546, %v1186
    %v1600 = vsel %vm1594, %v1547, %v1188
    %v1601 = vsel %vm1594, %v1548, %v1190
    %v1602 = vsel %vm1594, %v1549, %v1192
    %v1603 = vsel %vm1594, %v1550, %v1194
    %v1604 = vsel %vm1594, %v1551, %v1196
    %v1605 = vsel %vm1594, %v1552, %v1198
    %v1606 = vsel %vm1594, %v1553, %v1200
    %v1607 = vsel %vm1594, %v1554, %v1202
    %v1608 = vsel %vm1594, %v1555, %v1204
    %v1609 = vsel %vm1594, %v1556, %v1206
    %v1610 = vsel %vm1594, %v1557, %v1208
    %v1611 = vsel %vm1594, %v1558, %v1210
    %v1612 = vsel %vm1594, %v1559, %v1212
    %v1613 = vsel %vm1594, %v1560, %v1214
    %v1614 = vsel %vm1594, %v1561, %v1216
    %v1615 = vsel %vm1594, %v1562, %v1218
    %v1616 = vsel %vm1594, %v1563, %v1220
    %v1617 = vsel %vm1594, %v1564, %v1222
    %v1618 = vsel %vm1594, %v1565, %v1224
    %v1619 = vsel %vm1594, %v1566, %v1226
    %v1620 = vsel %vm1594, %v1567, %v1228
    %v1621 = vsel %vm1594, %v1568, %v1230
    %v1622 = vsel %vm1594, %v1569, %v1232
    %v1623 = vsel %vm1594, %v1570, %v1234
    %v1624 = vsel %vm1594, %v1571, %v1236
    %v1625 = vsel %vm1594, %v1572, %v1238
    %v1626 = vsel %vm1594, %v1573, %v1240
    %v1627 = vsel %vm1594, %v1574, %v1242
    %v1628 = vsel %vm1594, %v1575, %v1244
    %v1629 = vsel %vm1594, %v1576, %v1246
    %v1630 = vsel %vm1594, %v1577, %v1248
    %v1631 = vsel %vm1594, %v1578, %v1250
    %v1632 = vsel %vm1594, %v1579, %v1252
    %v1633 = vsel %vm1594, %v1580, %v1254
    %v1634 = vsel %vm1594, %v1581, %v1256
    %v1635 = vsel %vm1594, %v1582, %v1258
    %v1636 = vsel %vm1594, %v1583, %v1260
    %v1637 = vsel %vm1594, %v1584, %v1262
    %v1638 = vsel %vm1594, %v1585, %v1264
    %v1639 = vsel %vm1594, %v1586, %v1266
    %v1640 = vsel %vm1594, %v1587, %v1268
    %v1641 = vsel %vm1594, %v1588, %v1270
    %v1642 = vsel %vm1594, %v1589, %v1272
    %v1643 = vsel %vm1594, %v1590, %v1274
    %v1644 = vsel %vm1594, %v1591, %v1276
    %v1645 = vsel %vm1594, %v1592, %v1278
    %v1646 = vsel %vm1594, %v1593, %v1280
    %vm1647 = vcmask 97280
    %v1648 = vsel %vm1647, %v1595, %v1386
    %v1649 = vsel %vm1647, %v1596, %v1388
    %v1650 = vsel %vm1647, %v1597, %v1390
    %v1651 = vsel %vm1647, %v1598, %v1392
    %v1652 = vsel %vm1647, %v1599, %v1394
    %v1653 = vsel %vm1647, %v1600, %v1396
    %v1654 = vsel %vm1647, %v1601, %v1398
    %v1655 = vsel %vm1647, %v1602, %v1400
    %v1656 = vsel %vm1647, %v1603, %v1402
    %v1657 = vsel %vm1647, %v1604, %v1404
    %v1658 = vsel %vm1647, %v1605, %v1406
    %v1659 = vsel %vm1647, %v1606, %v1408
    %v1660 = vsel %vm1647, %v1607, %v1410
    %v1661 = vsel %vm1647, %v1608, %v1412
    %v1662 = vsel %vm1647, %v1609, %v1414
    %v1663 = vsel %vm1647, %v1610, %v1416
    %v1664 = vsel %vm1647, %v1611, %v1418
    %v1665 = vsel %vm1647, %v1612, %v1420
    %v1666 = vsel %vm1647, %v1613, %v1422
    %v1667 = vsel %vm1647, %v1614, %v1424
    %v1668 = vsel %vm1647, %v1615, %v1426
    %v1669 = vsel %vm1647, %v1616, %v1428
    %v1670 = vsel %vm1647, %v1617, %v1430
    %v1671 = vsel %vm1647, %v1618, %v1432
    %v1672 = vsel %vm1647, %v1619, %v1434
    %v1673 = vsel %vm1647, %v1620, %v1436
    %v1674 = vsel %vm1647, %v1621, %v1438
    %v1675 = vsel %vm1647, %v1622, %v1440
    %v1676 = vsel %vm1647, %v1623, %v1442
    %v1677 = vsel %vm1647, %v1624, %v1444
    %v1678 = vsel %vm1647, %v1625, %v1446
    %v1679 = vsel %vm1647, %v1626, %v1448
    %v1680 = vsel %vm1647, %v1627, %v1450
    %v1681 = vsel %vm1647, %v1628, %v1452
    %v1682 = vsel %vm1647, %v1629, %v1454
    %v1683 = vsel %vm1647, %v1630, %v1456
    %v1684 = vsel %vm1647, %v1631, %v1458
    %v1685 = vsel %vm1647, %v1632, %v1460
    %v1686 = vsel %vm1647, %v1633, %v1462
    %v1687 = vsel %vm1647, %v1634, %v1464
    %v1688 = vsel %vm1647, %v1635, %v1466
    %v1689 = vsel %vm1647, %v1636, %v1468
    %v1690 = vsel %vm1647, %v1637, %v1470
    %v1691 = vsel %vm1647, %v1638, %v1472
    %v1692 = vsel %vm1647, %v1639, %v1474
    %v1693 = vsel %vm1647, %v1640, %v1476
    %v1694 = vsel %vm1647, %v1641, %v1478
    %v1695 = vsel %vm1647, %v1642, %v1480
    %v1696 = vsel %vm1647, %v1643, %v1482
    %v1697 = vsel %vm1647, %v1644, %v1484
    %v1698 = vsel %vm1647, %v1645, %v1486
    %v1699 = vsel %vm1647, %v1646, %v1488
    %v1700 = vld [vmem:[%s5] sm:$0xff]
    %v1701 = vld [vmem:[%s5 + $0x8] sm:$0xff]
    %v1702 = vld [vmem:[%s6] sm:$0x1]
    %v1704 = vlaneseq
    %v1705 = vshrl.u32 %v1704, 7
    %v1706 = vsub.s32 0, %v1705
    %v1707 = vrot.slane %v1702, %v1706
    %vm1709 = vcmask 130048
    %v1711 = vsel %vm1709, %v1648, 0
    %v1714 = vsel %vm1709, %v1649, 0
    %v1717 = vsel %vm1709, %v1650, 0
    %v1720 = vsel %vm1709, %v1651, 0
    %v1723 = vsel %vm1709, %v1652, 0
    %v1726 = vsel %vm1709, %v1653, 0
    %v1729 = vsel %vm1709, %v1654, 0
    %v1732 = vsel %vm1709, %v1655, 0
    %v1735 = vsel %vm1709, %v1656, 0
    %v1738 = vsel %vm1709, %v1657, 0
    %v1741 = vsel %vm1709, %v1658, 0
    %v1744 = vsel %vm1709, %v1659, 0
    %v1747 = vsel %vm1709, %v1660, 0
    %v1750 = vsel %vm1709, %v1661, 0
    %v1753 = vsel %vm1709, %v1662, 0
    %v1756 = vsel %vm1709, %v1663, 0
    %v1759 = vsel %vm1709, %v1664, 0
    %v1762 = vsel %vm1709, %v1665, 0
    %v1765 = vsel %vm1709, %v1666, 0
    %v1768 = vsel %vm1709, %v1667, 0
    %v1771 = vsel %vm1709, %v1668, 0
    %v1774 = vsel %vm1709, %v1669, 0
    %v1777 = vsel %vm1709, %v1670, 0
    %v1780 = vsel %vm1709, %v1671, 0
    %v1783 = vsel %vm1709, %v1672, 0
    %v1786 = vsel %vm1709, %v1673, 0
    %v1789 = vsel %vm1709, %v1674, 0
    %v1792 = vsel %vm1709, %v1675, 0
    %v1795 = vsel %vm1709, %v1676, 0
    %v1798 = vsel %vm1709, %v1677, 0
    %v1801 = vsel %vm1709, %v1678, 0
    %v1804 = vsel %vm1709, %v1679, 0
    %v1807 = vsel %vm1709, %v1680, 0
    %v1810 = vsel %vm1709, %v1681, 0
    %v1813 = vsel %vm1709, %v1682, 0
    %v1816 = vsel %vm1709, %v1683, 0
    %v1819 = vsel %vm1709, %v1684, 0
    %v1822 = vsel %vm1709, %v1685, 0
    %v1825 = vsel %vm1709, %v1686, 0
    %v1828 = vsel %vm1709, %v1687, 0
    %v1831 = vsel %vm1709, %v1688, 0
    %v1834 = vsel %vm1709, %v1689, 0
    %v1837 = vsel %vm1709, %v1690, 0
    %v1840 = vsel %vm1709, %v1691, 0
    %v1843 = vsel %vm1709, %v1692, 0
    %v1846 = vsel %vm1709, %v1693, 0
    %v1849 = vsel %vm1709, %v1694, 0
    %v1852 = vsel %vm1709, %v1695, 0
    %v1855 = vsel %vm1709, %v1696, 0
    %v1858 = vsel %vm1709, %v1697, 0
    %v1861 = vsel %vm1709, %v1698, 0
    %v1864 = vsel %vm1709, %v1699, 0
    %1866 = vmatprep.subr.mxu0 0.0
    %1867 = vmatpush1.msra.mxu0 %v1700
    %1868 = vmatprep.subr.mxu0 0.0
    %1869 = vmatpush1.msra.mxu0 %v1701
    %1870 = vmatprep.subr.mxu0 0.0
    %1871 = vmatpush1.msra.mxu0 0.0
    %1872 = vmatprep.subr.mxu0 0.0
    %1873 = vmatpush1.msra.mxu0 0.0
    %1874 = vmatprep.subr.mxu0 0.0
    %1875 = vmatpush1.msra.mxu0 0.0
    %1876 = vmatprep.subr.mxu0 0.0
    %1877 = vmatpush1.msra.mxu0 0.0
    %1878 = vmatprep.subr.mxu0 0.0
    %1879 = vmatpush1.msra.mxu0 0.0
    %1880 = vmatprep.subr.mxu0 0.0
    %1881 = vmatpush1.msra.mxu0 0.0
    %1882 = vmatprep.subr.mxu0 0.0
    %1883 = vmatpush1.msra.mxu0 0.0
    %1884 = vmatprep.subr.mxu0 0.0
    %1885 = vmatpush1.msra.mxu0 0.0
    %1886 = vmatprep.subr.mxu0 0.0
    %1887 = vmatpush1.msra.mxu0 0.0
    %1888 = vmatprep.subr.mxu0 0.0
    %1889 = vmatpush1.msra.mxu0 0.0
    %1890 = vmatprep.subr.mxu0 0.0
    %1891 = vmatpush1.msra.mxu0 0.0
    %1892 = vmatprep.subr.mxu0 0.0
    %1893 = vmatpush1.msra.mxu0 0.0
    %1894 = vmatprep.subr.mxu0 0.0
    %1895 = vmatpush1.msra.mxu0 0.0
    %1896 = vmatprep.subr.mxu0 0.0
    %1897 = vmatpush1.msra.mxu0 0.0
    %1898 = vmatprep.subr.mxu0 0.0
    %1899 = vmatpush1.msra.mxu0 0.0
    %1900 = vmatprep.subr.mxu0 0.0
    %1901 = vmatpush1.msra.mxu0 0.0
    %1902 = vmatprep.subr.mxu0 0.0
    %1903 = vmatpush1.msra.mxu0 0.0
    %1904 = vmatprep.subr.mxu0 0.0
    %1905 = vmatpush1.msra.mxu0 0.0
    %1906 = vmatprep.subr.mxu0 0.0
    %1907 = vmatpush1.msra.mxu0 0.0
    %1908 = vmatprep.subr.mxu0 0.0
    %1909 = vmatpush1.msra.mxu0 0.0
    %1910 = vmatprep.subr.mxu0 0.0
    %1911 = vmatpush1.msra.mxu0 0.0
    %1912 = vmatprep.subr.mxu0 0.0
    %1913 = vmatpush1.msra.mxu0 0.0
    %1914 = vmatprep.subr.mxu0 0.0
    %1915 = vmatpush1.msra.mxu0 0.0
    %1916 = vmatprep.subr.mxu0 0.0
    %1917 = vmatpush1.msra.mxu0 0.0
    %1918 = vmatprep.subr.mxu0 0.0
    %1919 = vmatpush1.msra.mxu0 0.0
    %1920 = vmatprep.subr.mxu0 0.0
    %1921 = vmatpush1.msra.mxu0 0.0
    %1922 = vmatprep.subr.mxu0 0.0
    %1923 = vmatpush1.msra.mxu0 0.0
    %1924 = vmatprep.subr.mxu0 0.0
    %1925 = vmatpush1.msra.mxu0 0.0
    %1926 = vmatprep.subr.mxu0 0.0
    %1927 = vmatpush1.msra.mxu0 0.0
    %1928 = vmatprep.subr.mxu0 0.0
    %1929 = vmatpush1.msra.mxu0 0.0
    %1930 = vmatprep.mubr.f32.mxu0 0.0
    %1931 = vmatmul.mubr.f32.gmra.mrb[0].mxu0 %v1711
    %v1932 = vpop.f32.mrb[0].mxu0
    %v1933 = vadd.f32 %v1707, %v1932
    %v1934 = vpop.f32.mrb[0].mxu0
    %1935 = vmatprep.mubr.f32.mxu0 0.0
    %1936 = vmatmul.mubr.f32.gmra.mrb[0].mxu0 %v1714
    %v1937 = vpop.f32.mrb[0].mxu0
    %v1938 = vadd.f32 %v1707, %v1937
    %v1939 = vpop.f32.mrb[0].mxu0
    %1940 = vmatprep.mubr.f32.mxu0 0.0
    %1941 = vmatmul.mubr.f32.gmra.mrb[0].mxu0 %v1717
    %v1942 = vpop.f32.mrb[0].mxu0
    %v1943 = vadd.f32 %v1707, %v1942
    %v1944 = vpop.f32.mrb[0].mxu0
    %1945 = vmatprep.mubr.f32.mxu0 0.0
    %1946 = vmatmul.mubr.f32.gmra.mrb[0].mxu0 %v1720
    %v1947 = vpop.f32.mrb[0].mxu0
    %v1948 = vadd.f32 %v1707, %v1947
    %v1949 = vpop.f32.mrb[0].mxu0
    %1950 = vmatprep.mubr.f32.mxu0 0.0
    %1951 = vmatmul.mubr.f32.gmra.mrb[0].mxu0 %v1723
    %v1952 = vpop.f32.mrb[0].mxu0
    %v1953 = vadd.f32 %v1707, %v1952
    %v1954 = vpop.f32.mrb[0].mxu0
    %1955 = vmatprep.mubr.f32.mxu0 0.0
    %1956 = vmatmul.mubr.f32.gmra.mrb[0].mxu0 %v1726
    %v1957 = vpop.f32.mrb[0].mxu0
    %v1958 = vadd.f32 %v1707, %v1957
    %v1959 = vpop.f32.mrb[0].mxu0
    %1960 = vmatprep.mubr.f32.mxu0 0.0
    %1961 = vmatmul.mubr.f32.gmra.mrb[0].mxu0 %v1729
    %v1962 = vpop.f32.mrb[0].mxu0
    %v1963 = vadd.f32 %v1707, %v1962
    %v1964 = vpop.f32.mrb[0].mxu0
    %1965 = vmatprep.mubr.f32.mxu0 0.0
    %1966 = vmatmul.mubr.f32.gmra.mrb[0].mxu0 %v1732
    %v1967 = vpop.f32.mrb[0].mxu0
    %v1968 = vadd.f32 %v1707, %v1967
    %v1969 = vpop.f32.mrb[0].mxu0
    %1970 = vmatprep.mubr.f32.mxu0 0.0
    %1971 = vmatmul.mubr.f32.gmra.mrb[0].mxu0 %v1735
    %v1972 = vpop.f32.mrb[0].mxu0
    %v1973 = vadd.f32 %v1707, %v1972
    %v1974 = vpop.f32.mrb[0].mxu0
    %1975 = vmatprep.mubr.f32.mxu0 0.0
    %1976 = vmatmul.mubr.f32.gmra.mrb[0].mxu0 %v1738
    %v1977 = vpop.f32.mrb[0].mxu0
    %v1978 = vadd.f32 %v1707, %v1977
    %v1979 = vpop.f32.mrb[0].mxu0
    %1980 = vmatprep.mubr.f32.mxu0 0.0
    %1981 = vmatmul.mubr.f32.gmra.mrb[0].mxu0 %v1741
    %v1982 = vpop.f32.mrb[0].mxu0
    %v1983 = vadd.f32 %v1707, %v1982
    %v1984 = vpop.f32.mrb[0].mxu0
    %1985 = vmatprep.mubr.f32.mxu0 0.0
    %1986 = vmatmul.mubr.f32.gmra.mrb[0].mxu0 %v1744
    %v1987 = vpop.f32.mrb[0].mxu0
    %v1988 = vadd.f32 %v1707, %v1987
    %v1989 = vpop.f32.mrb[0].mxu0
    %1990 = vmatprep.mubr.f32.mxu0 0.0
    %1991 = vmatmul.mubr.f32.gmra.mrb[0].mxu0 %v1747
    %v1992 = vpop.f32.mrb[0].mxu0
    %v1993 = vadd.f32 %v1707, %v1992
    %v1994 = vpop.f32.mrb[0].mxu0
    %1995 = vmatprep.mubr.f32.mxu0 0.0
    %1996 = vmatmul.mubr.f32.gmra.mrb[0].mxu0 %v1750
    %v1997 = vpop.f32.mrb[0].mxu0
    %v1998 = vadd.f32 %v1707, %v1997
    %v1999 = vpop.f32.mrb[0].mxu0
    %2000 = vmatprep.mubr.f32.mxu0 0.0
    %2001 = vmatmul.mubr.f32.gmra.mrb[0].mxu0 %v1753
    %v2002 = vpop.f32.mrb[0].mxu0
    %v2003 = vadd.f32 %v1707, %v2002
    %v2004 = vpop.f32.mrb[0].mxu0
    %2005 = vmatprep.mubr.f32.mxu0 0.0
    %2006 = vmatmul.mubr.f32.gmra.mrb[0].mxu0 %v1756
    %v2007 = vpop.f32.mrb[0].mxu0
    %v2008 = vadd.f32 %v1707, %v2007
    %v2009 = vpop.f32.mrb[0].mxu0
    %2010 = vmatprep.mubr.f32.mxu0 0.0
    %2011 = vmatmul.mubr.f32.gmra.mrb[0].mxu0 %v1759
    %v2012 = vpop.f32.mrb[0].mxu0
    %v2013 = vadd.f32 %v1707, %v2012
    %v2014 = vpop.f32.mrb[0].mxu0
    %2015 = vmatprep.mubr.f32.mxu0 0.0
    %2016 = vmatmul.mubr.f32.gmra.mrb[0].mxu0 %v1762
    %v2017 = vpop.f32.mrb[0].mxu0
    %v2018 = vadd.f32 %v1707, %v2017
    %v2019 = vpop.f32.mrb[0].mxu0
    %2020 = vmatprep.mubr.f32.mxu0 0.0
    %2021 = vmatmul.mubr.f32.gmra.mrb[0].mxu0 %v1765
    %v2022 = vpop.f32.mrb[0].mxu0
    %v2023 = vadd.f32 %v1707, %v2022
    %v2024 = vpop.f32.mrb[0].mxu0
    %2025 = vmatprep.mubr.f32.mxu0 0.0
    %2026 = vmatmul.mubr.f32.gmra.mrb[0].mxu0 %v1768
    %v2027 = vpop.f32.mrb[0].mxu0
    %v2028 = vadd.f32 %v1707, %v2027
    %v2029 = vpop.f32.mrb[0].mxu0
    %2030 = vmatprep.mubr.f32.mxu0 0.0
    %2031 = vmatmul.mubr.f32.gmra.mrb[0].mxu0 %v1771
    %v2032 = vpop.f32.mrb[0].mxu0
    %v2033 = vadd.f32 %v1707, %v2032
    %v2034 = vpop.f32.mrb[0].mxu0
    %2035 = vmatprep.mubr.f32.mxu0 0.0
    %2036 = vmatmul.mubr.f32.gmra.mrb[0].mxu0 %v1774
    %v2037 = vpop.f32.mrb[0].mxu0
    %v2038 = vadd.f32 %v1707, %v2037
    %v2039 = vpop.f32.mrb[0].mxu0
    %2040 = vmatprep.mubr.f32.mxu0 0.0
    %2041 = vmatmul.mubr.f32.gmra.mrb[0].mxu0 %v1777
    %v2042 = vpop.f32.mrb[0].mxu0
    %v2043 = vadd.f32 %v1707, %v2042
    %v2044 = vpop.f32.mrb[0].mxu0
    %2045 = vmatprep.mubr.f32.mxu0 0.0
    %2046 = vmatmul.mubr.f32.gmra.mrb[0].mxu0 %v1780
    %v2047 = vpop.f32.mrb[0].mxu0
    %v2048 = vadd.f32 %v1707, %v2047
    %v2049 = vpop.f32.mrb[0].mxu0
    %2050 = vmatprep.mubr.f32.mxu0 0.0
    %2051 = vmatmul.mubr.f32.gmra.mrb[0].mxu0 %v1783
    %v2052 = vpop.f32.mrb[0].mxu0
    %v2053 = vadd.f32 %v1707, %v2052
    %v2054 = vpop.f32.mrb[0].mxu0
    %2055 = vmatprep.mubr.f32.mxu0 0.0
    %2056 = vmatmul.mubr.f32.gmra.mrb[0].mxu0 %v1786
    %v2057 = vpop.f32.mrb[0].mxu0
    %v2058 = vadd.f32 %v1707, %v2057
    %v2059 = vpop.f32.mrb[0].mxu0
    %2060 = vmatprep.mubr.f32.mxu0 0.0
    %2061 = vmatmul.mubr.f32.gmra.mrb[0].mxu0 %v1789
    %v2062 = vpop.f32.mrb[0].mxu0
    %v2063 = vadd.f32 %v1707, %v2062
    %v2064 = vpop.f32.mrb[0].mxu0
    %2065 = vmatprep.mubr.f32.mxu0 0.0
    %2066 = vmatmul.mubr.f32.gmra.mrb[0].mxu0 %v1792
    %v2067 = vpop.f32.mrb[0].mxu0
    %v2068 = vadd.f32 %v1707, %v2067
    %v2069 = vpop.f32.mrb[0].mxu0
    %2070 = vmatprep.mubr.f32.mxu0 0.0
    %2071 = vmatmul.mubr.f32.gmra.mrb[0].mxu0 %v1795
    %v2072 = vpop.f32.mrb[0].mxu0
    %v2073 = vadd.f32 %v1707, %v2072
    %v2074 = vpop.f32.mrb[0].mxu0
    %2075 = vmatprep.mubr.f32.mxu0 0.0
    %2076 = vmatmul.mubr.f32.gmra.mrb[0].mxu0 %v1798
    %v2077 = vpop.f32.mrb[0].mxu0
    %v2078 = vadd.f32 %v1707, %v2077
    %v2079 = vpop.f32.mrb[0].mxu0
    %2080 = vmatprep.mubr.f32.mxu0 0.0
    %2081 = vmatmul.mubr.f32.gmra.mrb[0].mxu0 %v1801
    %v2082 = vpop.f32.mrb[0].mxu0
    %v2083 = vadd.f32 %v1707, %v2082
    %v2084 = vpop.f32.mrb[0].mxu0
    %2085 = vmatprep.mubr.f32.mxu0 0.0
    %2086 = vmatmul.mubr.f32.gmra.mrb[0].mxu0 %v1804
    %v2087 = vpop.f32.mrb[0].mxu0
    %v2088 = vadd.f32 %v1707, %v2087
    %v2089 = vpop.f32.mrb[0].mxu0
    %2090 = vmatprep.mubr.f32.mxu0 0.0
    %2091 = vmatmul.mubr.f32.gmra.mrb[0].mxu0 %v1807
    %v2092 = vpop.f32.mrb[0].mxu0
    %v2093 = vadd.f32 %v1707, %v2092
    %v2094 = vpop.f32.mrb[0].mxu0
    %2095 = vmatprep.mubr.f32.mxu0 0.0
    %2096 = vmatmul.mubr.f32.gmra.mrb[0].mxu0 %v1810
    %v2097 = vpop.f32.mrb[0].mxu0
    %v2098 = vadd.f32 %v1707, %v2097
    %v2099 = vpop.f32.mrb[0].mxu0
    %2100 = vmatprep.mubr.f32.mxu0 0.0
    %2101 = vmatmul.mubr.f32.gmra.mrb[0].mxu0 %v1813
    %v2102 = vpop.f32.mrb[0].mxu0
    %v2103 = vadd.f32 %v1707, %v2102
    %v2104 = vpop.f32.mrb[0].mxu0
    %2105 = vmatprep.mubr.f32.mxu0 0.0
    %2106 = vmatmul.mubr.f32.gmra.mrb[0].mxu0 %v1816
    %v2107 = vpop.f32.mrb[0].mxu0
    %v2108 = vadd.f32 %v1707, %v2107
    %v2109 = vpop.f32.mrb[0].mxu0
    %2110 = vmatprep.mubr.f32.mxu0 0.0
    %2111 = vmatmul.mubr.f32.gmra.mrb[0].mxu0 %v1819
    %v2112 = vpop.f32.mrb[0].mxu0
    %v2113 = vadd.f32 %v1707, %v2112
    %v2114 = vpop.f32.mrb[0].mxu0
    %2115 = vmatprep.mubr.f32.mxu0 0.0
    %2116 = vmatmul.mubr.f32.gmra.mrb[0].mxu0 %v1822
    %v2117 = vpop.f32.mrb[0].mxu0
    %v2118 = vadd.f32 %v1707, %v2117
    %v2119 = vpop.f32.mrb[0].mxu0
    %2120 = vmatprep.mubr.f32.mxu0 0.0
    %2121 = vmatmul.mubr.f32.gmra.mrb[0].mxu0 %v1825
    %v2122 = vpop.f32.mrb[0].mxu0
    %v2123 = vadd.f32 %v1707, %v2122
    %v2124 = vpop.f32.mrb[0].mxu0
    %2125 = vmatprep.mubr.f32.mxu0 0.0
    %2126 = vmatmul.mubr.f32.gmra.mrb[0].mxu0 %v1828
    %v2127 = vpop.f32.mrb[0].mxu0
    %v2128 = vadd.f32 %v1707, %v2127
    %v2129 = vpop.f32.mrb[0].mxu0
    %2130 = vmatprep.mubr.f32.mxu0 0.0
    %2131 = vmatmul.mubr.f32.gmra.mrb[0].mxu0 %v1831
    %v2132 = vpop.f32.mrb[0].mxu0
    %v2133 = vadd.f32 %v1707, %v2132
    %v2134 = vpop.f32.mrb[0].mxu0
    %2135 = vmatprep.mubr.f32.mxu0 0.0
    %2136 = vmatmul.mubr.f32.gmra.mrb[0].mxu0 %v1834
    %v2137 = vpop.f32.mrb[0].mxu0
    %v2138 = vadd.f32 %v1707, %v2137
    %v2139 = vpop.f32.mrb[0].mxu0
    %2140 = vmatprep.mubr.f32.mxu0 0.0
    %2141 = vmatmul.mubr.f32.gmra.mrb[0].mxu0 %v1837
    %v2142 = vpop.f32.mrb[0].mxu0
    %v2143 = vadd.f32 %v1707, %v2142
    %v2144 = vpop.f32.mrb[0].mxu0
    %2145 = vmatprep.mubr.f32.mxu0 0.0
    %2146 = vmatmul.mubr.f32.gmra.mrb[0].mxu0 %v1840
    %v2147 = vpop.f32.mrb[0].mxu0
    %v2148 = vadd.f32 %v1707, %v2147
    %v2149 = vpop.f32.mrb[0].mxu0
    %2150 = vmatprep.mubr.f32.mxu0 0.0
    %2151 = vmatmul.mubr.f32.gmra.mrb[0].mxu0 %v1843
    %v2152 = vpop.f32.mrb[0].mxu0
    %v2153 = vadd.f32 %v1707, %v2152
    %v2154 = vpop.f32.mrb[0].mxu0
    %2155 = vmatprep.mubr.f32.mxu0 0.0
    %2156 = vmatmul.mubr.f32.gmra.mrb[0].mxu0 %v1846
    %v2157 = vpop.f32.mrb[0].mxu0
    %v2158 = vadd.f32 %v1707, %v2157
    %v2159 = vpop.f32.mrb[0].mxu0
    %2160 = vmatprep.mubr.f32.mxu0 0.0
    %2161 = vmatmul.mubr.f32.gmra.mrb[0].mxu0 %v1849
    %v2162 = vpop.f32.mrb[0].mxu0
    %v2163 = vadd.f32 %v1707, %v2162
    %v2164 = vpop.f32.mrb[0].mxu0
    %2165 = vmatprep.mubr.f32.mxu0 0.0
    %2166 = vmatmul.mubr.f32.gmra.mrb[0].mxu0 %v1852
    %v2167 = vpop.f32.mrb[0].mxu0
    %v2168 = vadd.f32 %v1707, %v2167
    %v2169 = vpop.f32.mrb[0].mxu0
    %2170 = vmatprep.mubr.f32.mxu0 0.0
    %2171 = vmatmul.mubr.f32.gmra.mrb[0].mxu0 %v1855
    %v2172 = vpop.f32.mrb[0].mxu0
    %v2173 = vadd.f32 %v1707, %v2172
    %v2174 = vpop.f32.mrb[0].mxu0
    %2175 = vmatprep.mubr.f32.mxu0 0.0
    %2176 = vmatmul.mubr.f32.gmra.mrb[0].mxu0 %v1858
    %v2177 = vpop.f32.mrb[0].mxu0
    %v2178 = vadd.f32 %v1707, %v2177
    %v2179 = vpop.f32.mrb[0].mxu0
    %2180 = vmatprep.mubr.f32.mxu0 0.0
    %2181 = vmatmul.mubr.f32.gmra.mrb[0].mxu0 %v1861
    %v2182 = vpop.f32.mrb[0].mxu0
    %v2183 = vadd.f32 %v1707, %v2182
    %v2184 = vpop.f32.mrb[0].mxu0
    %2185 = vmatprep.mubr.f32.mxu0 0.0
    %2186 = vmatmul.mubr.f32.gmra.mrb[0].mxu0 %v1864
    %v2187 = vpop.f32.mrb[0].mxu0
    %v2188 = vadd.f32 %v1707, %v2187
    %v2189 = vpop.f32.mrb[0].mxu0
    %2190 = vdwg.mxu0
    %v2191 = vmax.f32 %v1933, 0.0
    %v2192 = vmax.f32 %v1938, 0.0
    %v2193 = vmax.f32 %v1943, 0.0
    %v2194 = vmax.f32 %v1948, 0.0
    %v2195 = vmax.f32 %v1953, 0.0
    %v2196 = vmax.f32 %v1958, 0.0
    %v2197 = vmax.f32 %v1963, 0.0
    %v2198 = vmax.f32 %v1968, 0.0
    %v2199 = vmax.f32 %v1973, 0.0
    %v2200 = vmax.f32 %v1978, 0.0
    %v2201 = vmax.f32 %v1983, 0.0
    %v2202 = vmax.f32 %v1988, 0.0
    %v2203 = vmax.f32 %v1993, 0.0
    %v2204 = vmax.f32 %v1998, 0.0
    %v2205 = vmax.f32 %v2003, 0.0
    %v2206 = vmax.f32 %v2008, 0.0
    %v2207 = vmax.f32 %v2013, 0.0
    %v2208 = vmax.f32 %v2018, 0.0
    %v2209 = vmax.f32 %v2023, 0.0
    %v2210 = vmax.f32 %v2028, 0.0
    %v2211 = vmax.f32 %v2033, 0.0
    %v2212 = vmax.f32 %v2038, 0.0
    %v2213 = vmax.f32 %v2043, 0.0
    %v2214 = vmax.f32 %v2048, 0.0
    %v2215 = vmax.f32 %v2053, 0.0
    %v2216 = vmax.f32 %v2058, 0.0
    %v2217 = vmax.f32 %v2063, 0.0
    %v2218 = vmax.f32 %v2068, 0.0
    %v2219 = vmax.f32 %v2073, 0.0
    %v2220 = vmax.f32 %v2078, 0.0
    %v2221 = vmax.f32 %v2083, 0.0
    %v2222 = vmax.f32 %v2088, 0.0
    %v2223 = vmax.f32 %v2093, 0.0
    %v2224 = vmax.f32 %v2098, 0.0
    %v2225 = vmax.f32 %v2103, 0.0
    %v2226 = vmax.f32 %v2108, 0.0
    %v2227 = vmax.f32 %v2113, 0.0
    %v2228 = vmax.f32 %v2118, 0.0
    %v2229 = vmax.f32 %v2123, 0.0
    %v2230 = vmax.f32 %v2128, 0.0
    %v2231 = vmax.f32 %v2133, 0.0
    %v2232 = vmax.f32 %v2138, 0.0
    %v2233 = vmax.f32 %v2143, 0.0
    %v2234 = vmax.f32 %v2148, 0.0
    %v2235 = vmax.f32 %v2153, 0.0
    %v2236 = vmax.f32 %v2158, 0.0
    %v2237 = vmax.f32 %v2163, 0.0
    %v2238 = vmax.f32 %v2168, 0.0
    %v2239 = vmax.f32 %v2173, 0.0
    %v2240 = vmax.f32 %v2178, 0.0
    %v2241 = vmax.f32 %v2183, 0.0
    %v2242 = vmax.f32 %v2188, 0.0
    %v2243 = vrot.slane %v2191, 1
    %v2244 = vrot.slane %v2192, 1
    %v2245 = vrot.slane %v2193, 1
    %v2246 = vrot.slane %v2194, 1
    %v2247 = vrot.slane %v2195, 1
    %v2248 = vrot.slane %v2196, 1
    %v2249 = vrot.slane %v2197, 1
    %v2250 = vrot.slane %v2198, 1
    %v2251 = vrot.slane %v2199, 1
    %v2252 = vrot.slane %v2200, 1
    %v2253 = vrot.slane %v2201, 1
    %v2254 = vrot.slane %v2202, 1
    %v2255 = vrot.slane %v2203, 1
    %v2256 = vrot.slane %v2204, 1
    %v2257 = vrot.slane %v2205, 1
    %v2258 = vrot.slane %v2206, 1
    %v2259 = vrot.slane %v2207, 1
    %v2260 = vrot.slane %v2208, 1
    %v2261 = vrot.slane %v2209, 1
    %v2262 = vrot.slane %v2210, 1
    %v2263 = vrot.slane %v2211, 1
    %v2264 = vrot.slane %v2212, 1
    %v2265 = vrot.slane %v2213, 1
    %v2266 = vrot.slane %v2214, 1
    %v2267 = vrot.slane %v2215, 1
    %v2268 = vrot.slane %v2216, 1
    %v2269 = vrot.slane %v2217, 1
    %v2270 = vrot.slane %v2218, 1
    %v2271 = vrot.slane %v2219, 1
    %v2272 = vrot.slane %v2220, 1
    %v2273 = vrot.slane %v2221, 1
    %v2274 = vrot.slane %v2222, 1
    %v2275 = vrot.slane %v2223, 1
    %v2276 = vrot.slane %v2224, 1
    %v2277 = vrot.slane %v2225, 1
    %v2278 = vrot.slane %v2226, 1
    %v2279 = vrot.slane %v2227, 1
    %v2280 = vrot.slane %v2228, 1
    %v2281 = vrot.slane %v2229, 1
    %v2282 = vrot.slane %v2230, 1
    %v2283 = vrot.slane %v2231, 1
    %v2284 = vrot.slane %v2232, 1
    %v2285 = vrot.slane %v2233, 1
    %v2286 = vrot.slane %v2234, 1
    %v2287 = vrot.slane %v2235, 1
    %v2288 = vrot.slane %v2236, 1
    %v2289 = vrot.slane %v2237, 1
    %v2290 = vrot.slane %v2238, 1
    %v2291 = vrot.slane %v2239, 1
    %v2292 = vrot.slane %v2240, 1
    %v2293 = vrot.slane %v2241, 1
    %v2294 = vrot.slane %v2242, 1
    %v2295 = vsel %vm654, %v2293, %v2294
    %v2296 = vsel %vm654, %v2292, %v2293
    %v2297 = vsel %vm654, %v2291, %v2292
    %v2298 = vsel %vm654, %v2290, %v2291
    %v2299 = vsel %vm654, %v2289, %v2290
    %v2300 = vsel %vm654, %v2288, %v2289
    %v2301 = vsel %vm654, %v2287, %v2288
    %v2302 = vsel %vm654, %v2286, %v2287
    %v2303 = vsel %vm654, %v2285, %v2286
    %v2304 = vsel %vm654, %v2284, %v2285
    %v2305 = vsel %vm654, %v2283, %v2284
    %v2306 = vsel %vm654, %v2282, %v2283
    %v2307 = vsel %vm654, %v2281, %v2282
    %v2308 = vsel %vm654, %v2280, %v2281
    %v2309 = vsel %vm654, %v2279, %v2280
    %v2310 = vsel %vm654, %v2278, %v2279
    %v2311 = vsel %vm654, %v2277, %v2278
    %v2312 = vsel %vm654, %v2276, %v2277
    %v2313 = vsel %vm654, %v2275, %v2276
    %v2314 = vsel %vm654, %v2274, %v2275
    %v2315 = vsel %vm654, %v2273, %v2274
    %v2316 = vsel %vm654, %v2272, %v2273
    %v2317 = vsel %vm654, %v2271, %v2272
    %v2318 = vsel %vm654, %v2270, %v2271
    %v2319 = vsel %vm654, %v2269, %v2270
    %v2320 = vsel %vm654, %v2268, %v2269
    %v2321 = vsel %vm654, %v2267, %v2268
    %v2322 = vsel %vm654, %v2266, %v2267
    %v2323 = vsel %vm654, %v2265, %v2266
    %v2324 = vsel %vm654, %v2264, %v2265
    %v2325 = vsel %vm654, %v2263, %v2264
    %v2326 = vsel %vm654, %v2262, %v2263
    %v2327 = vsel %vm654, %v2261, %v2262
    %v2328 = vsel %vm654, %v2260, %v2261
    %v2329 = vsel %vm654, %v2259, %v2260
    %v2330 = vsel %vm654, %v2258, %v2259
    %v2331 = vsel %vm654, %v2257, %v2258
    %v2332 = vsel %vm654, %v2256, %v2257
    %v2333 = vsel %vm654, %v2255, %v2256
    %v2334 = vsel %vm654, %v2254, %v2255
    %v2335 = vsel %vm654, %v2253, %v2254
    %v2336 = vsel %vm654, %v2252, %v2253
    %v2337 = vsel %vm654, %v2251, %v2252
    %v2338 = vsel %vm654, %v2250, %v2251
    %v2339 = vsel %vm654, %v2249, %v2250
    %v2340 = vsel %vm654, %v2248, %v2249
    %v2341 = vsel %vm654, %v2247, %v2248
    %v2342 = vsel %vm654, %v2246, %v2247
    %v2343 = vsel %vm654, %v2245, %v2246
    %v2344 = vsel %vm654, %v2244, %v2245
    %v2345 = vsel %vm654, %v2243, %v2244
    %v2346 = vsel %vm654, %v2294, %v2243
    %v2347 = vmax.f32 %v2191, %v2345
    %v2348 = vmax.f32 %v2192, %v2344
    %v2349 = vmax.f32 %v2193, %v2343
    %v2350 = vmax.f32 %v2194, %v2342
    %v2351 = vmax.f32 %v2195, %v2341
    %v2352 = vmax.f32 %v2196, %v2340
    %v2353 = vmax.f32 %v2197, %v2339
    %v2354 = vmax.f32 %v2198, %v2338
    %v2355 = vmax.f32 %v2199, %v2337
    %v2356 = vmax.f32 %v2200, %v2336
    %v2357 = vmax.f32 %v2201, %v2335
    %v2358 = vmax.f32 %v2202, %v2334
    %v2359 = vmax.f32 %v2203, %v2333
    %v2360 = vmax.f32 %v2204, %v2332
    %v2361 = vmax.f32 %v2205, %v2331
    %v2362 = vmax.f32 %v2206, %v2330
    %v2363 = vmax.f32 %v2207, %v2329
    %v2364 = vmax.f32 %v2208, %v2328
    %v2365 = vmax.f32 %v2209, %v2327
    %v2366 = vmax.f32 %v2210, %v2326
    %v2367 = vmax.f32 %v2211, %v2325
    %v2368 = vmax.f32 %v2212, %v2324
    %v2369 = vmax.f32 %v2213, %v2323
    %v2370 = vmax.f32 %v2214, %v2322
    %v2371 = vmax.f32 %v2215, %v2321
    %v2372 = vmax.f32 %v2216, %v2320
    %v2373 = vmax.f32 %v2217, %v2319
    %v2374 = vmax.f32 %v2218, %v2318
    %v2375 = vmax.f32 %v2219, %v2317
    %v2376 = vmax.f32 %v2220, %v2316
    %v2377 = vmax.f32 %v2221, %v2315
    %v2378 = vmax.f32 %v2222, %v2314
    %v2379 = vmax.f32 %v2223, %v2313
    %v2380 = vmax.f32 %v2224, %v2312
    %v2381 = vmax.f32 %v2225, %v2311
    %v2382 = vmax.f32 %v2226, %v2310
    %v2383 = vmax.f32 %v2227, %v2309
    %v2384 = vmax.f32 %v2228, %v2308
    %v2385 = vmax.f32 %v2229, %v2307
    %v2386 = vmax.f32 %v2230, %v2306
    %v2387 = vmax.f32 %v2231, %v2305
    %v2388 = vmax.f32 %v2232, %v2304
    %v2389 = vmax.f32 %v2233, %v2303
    %v2390 = vmax.f32 %v2234, %v2302
    %v2391 = vmax.f32 %v2235, %v2301
    %v2392 = vmax.f32 %v2236, %v2300
    %v2393 = vmax.f32 %v2237, %v2299
    %v2394 = vmax.f32 %v2238, %v2298
    %v2395 = vmax.f32 %v2239, %v2297
    %v2396 = vmax.f32 %v2240, %v2296
    %v2397 = vmax.f32 %v2241, %v2295
    %v2398 = vmax.f32 %v2242, %v2346
    %v2399 = vld [vmem:[%s3] sm:$0xff]
    %v2400 = vld [vmem:[%s3 + $0x8] sm:$0xff]
    %v2401 = vld [vmem:[%s3 + $0x10] sm:$0xff]
    %v2402 = vld [vmem:[%s3 + $0x18] sm:$0xff]
    %v2403 = vld [vmem:[%s3 + $0x20] sm:$0xff]
    %v2404 = vld [vmem:[%s3 + $0x28] sm:$0xff]
    %v2405 = vld [vmem:[%s3 + $0x30] sm:$0xff]
    %v2406 = vld [vmem:[%s3 + $0x38] sm:$0xff]
    %v2407 = vld [vmem:[%s3 + $0x40] sm:$0xff]
    %v2408 = vld [vmem:[%s3 + $0x48] sm:$0xff]
    %v2409 = vld [vmem:[%s3 + $0x50] sm:$0xff]
    %v2410 = vld [vmem:[%s3 + $0x58] sm:$0xff]
    %v2411 = vld [vmem:[%s3 + $0x60] sm:$0xff]
    %v2412 = vld [vmem:[%s3 + $0x68] sm:$0xff]
    %v2413 = vld [vmem:[%s3 + $0x70] sm:$0xff]
    %v2414 = vld [vmem:[%s3 + $0x78] sm:$0xff]
    %v2415 = vld [vmem:[%s3 + $0x80] sm:$0xff]
    %v2416 = vld [vmem:[%s3 + $0x88] sm:$0xff]
    %v2417 = vld [vmem:[%s3 + $0x90] sm:$0xff]
    %v2418 = vld [vmem:[%s3 + $0x98] sm:$0xff]
    %v2419 = vld [vmem:[%s3 + $0xa0] sm:$0xff]
    %v2420 = vld [vmem:[%s3 + $0xa8] sm:$0xff]
    %v2421 = vld [vmem:[%s3 + $0xb0] sm:$0xff]
    %v2422 = vld [vmem:[%s3 + $0xb8] sm:$0xff]
    %v2423 = vld [vmem:[%s3 + $0xc0] sm:$0xff]
    %v2424 = vld [vmem:[%s3 + $0xc8] sm:$0xff]
    %v2425 = vld [vmem:[%s3 + $0xd0] sm:$0xff]
    %v2426 = vld [vmem:[%s3 + $0xd8] sm:$0xff]
    %v2427 = vld [vmem:[%s3 + $0xe0] sm:$0xff]
    %v2428 = vld [vmem:[%s3 + $0xe8] sm:$0xff]
    %v2429 = vld [vmem:[%s3 + $0xf0] sm:$0xff]
    %v2430 = vld [vmem:[%s3 + $0xf8] sm:$0xff]
    %v2431 = vld [vmem:[%s3 + $0x100] sm:$0xff]
    %v2432 = vld [vmem:[%s3 + $0x108] sm:$0xff]
    %v2433 = vld [vmem:[%s3 + $0x110] sm:$0xff]
    %v2434 = vld [vmem:[%s3 + $0x118] sm:$0xff]
    %v2435 = vld [vmem:[%s3 + $0x120] sm:$0xff]
    %v2436 = vld [vmem:[%s3 + $0x128] sm:$0xff]
    %v2437 = vld [vmem:[%s3 + $0x130] sm:$0xff]
    %v2438 = vld [vmem:[%s3 + $0x138] sm:$0xff]
    %v2439 = vld [vmem:[%s3 + $0x140] sm:$0xff]
    %v2440 = vld [vmem:[%s3 + $0x148] sm:$0xff]
    %v2441 = vld [vmem:[%s3 + $0x150] sm:$0xff]
    %v2442 = vld [vmem:[%s3 + $0x158] sm:$0xff]
    %v2443 = vld [vmem:[%s3 + $0x160] sm:$0xff]
    %v2444 = vld [vmem:[%s3 + $0x168] sm:$0xff]
    %v2445 = vld [vmem:[%s3 + $0x170] sm:$0xff]
    %v2446 = vld [vmem:[%s3 + $0x178] sm:$0xff]
    %v2447 = vld [vmem:[%s3 + $0x180] sm:$0xff]
    %v2448 = vld [vmem:[%s3 + $0x188] sm:$0xff]
    %v2449 = vld [vmem:[%s3 + $0x190] sm:$0xff]
    %v2450 = vld [vmem:[%s3 + $0x198] sm:$0xff]
    %v2451 = vld [vmem:[%s3 + $0x1a0] sm:$0xff]
    %v2452 = vld [vmem:[%s3 + $0x1a8] sm:$0xff]
    %v2453 = vld [vmem:[%s3 + $0x1b0] sm:$0xff]
    %v2454 = vld [vmem:[%s3 + $0x1b8] sm:$0xff]
    %v2455 = vld [vmem:[%s3 + $0x1c0] sm:$0xff]
    %v2456 = vld [vmem:[%s3 + $0x1c8] sm:$0xff]
    %v2457 = vld [vmem:[%s3 + $0x1d0] sm:$0xff]
    %v2458 = vld [vmem:[%s3 + $0x1d8] sm:$0xff]
    %v2459 = vld [vmem:[%s3 + $0x1e0] sm:$0xff]
    %v2460 = vld [vmem:[%s3 + $0x1e8] sm:$0xff]
    %v2461 = vld [vmem:[%s3 + $0x1f0] sm:$0xff]
    %v2462 = vld [vmem:[%s3 + $0x1f8] sm:$0xff]
    %v2463 = vld [vmem:[%s3 + $0x200] sm:$0xff]
    %v2464 = vld [vmem:[%s3 + $0x208] sm:$0xff]
    %v2465 = vld [vmem:[%s3 + $0x210] sm:$0xff]
    %v2466 = vld [vmem:[%s3 + $0x218] sm:$0xff]
    %v2467 = vld [vmem:[%s3 + $0x220] sm:$0xff]
    %v2468 = vld [vmem:[%s3 + $0x228] sm:$0xff]
    %v2469 = vld [vmem:[%s3 + $0x230] sm:$0xff]
    %v2470 = vld [vmem:[%s3 + $0x238] sm:$0xff]
    %v2471 = vld [vmem:[%s3 + $0x240] sm:$0xff]
    %v2472 = vld [vmem:[%s3 + $0x248] sm:$0xff]
    %v2473 = vld [vmem:[%s3 + $0x250] sm:$0xff]
    %v2474 = vld [vmem:[%s3 + $0x258] sm:$0xff]
    %v2475 = vld [vmem:[%s3 + $0x260] sm:$0xff]
    %v2476 = vld [vmem:[%s3 + $0x268] sm:$0xff]
    %v2477 = vld [vmem:[%s3 + $0x270] sm:$0xff]
    %v2478 = vld [vmem:[%s3 + $0x278] sm:$0xff]
    %v2479 = vld [vmem:[%s3 + $0x280] sm:$0xff]
    %v2480 = vld [vmem:[%s3 + $0x288] sm:$0xff]
    %v2481 = vld [vmem:[%s3 + $0x290] sm:$0xff]
    %v2482 = vld [vmem:[%s3 + $0x298] sm:$0xff]
    %v2483 = vld [vmem:[%s3 + $0x2a0] sm:$0xff]
    %v2484 = vld [vmem:[%s3 + $0x2a8] sm:$0xff]
    %v2485 = vld [vmem:[%s3 + $0x2b0] sm:$0xff]
    %v2486 = vld [vmem:[%s3 + $0x2b8] sm:$0xff]
    %v2487 = vld [vmem:[%s3 + $0x2c0] sm:$0xff]
    %v2488 = vld [vmem:[%s3 + $0x2c8] sm:$0xff]
    %v2489 = vld [vmem:[%s3 + $0x2d0] sm:$0xff]
    %v2490 = vld [vmem:[%s3 + $0x2d8] sm:$0xff]
    %v2491 = vld [vmem:[%s3 + $0x2e0] sm:$0xff]
    %v2492 = vld [vmem:[%s3 + $0x2e8] sm:$0xff]
    %v2493 = vld [vmem:[%s3 + $0x2f0] sm:$0xff]
    %v2494 = vld [vmem:[%s3 + $0x2f8] sm:$0xff]
    %vm2495 = vcmask 261120
    %v2497 = vsel %vm2495, %v2402, 0
    %v2500 = vsel %vm2495, %v2406, 0
    %v2503 = vsel %vm2495, %v2410, 0
    %v2506 = vsel %vm2495, %v2414, 0
    %v2509 = vsel %vm2495, %v2418, 0
    %v2512 = vsel %vm2495, %v2422, 0
    %v2515 = vsel %vm2495, %v2426, 0
    %v2518 = vsel %vm2495, %v2430, 0
    %v2521 = vsel %vm2495, %v2434, 0
    %v2524 = vsel %vm2495, %v2438, 0
    %v2527 = vsel %vm2495, %v2442, 0
    %v2530 = vsel %vm2495, %v2446, 0
    %v2533 = vsel %vm2495, %v2450, 0
    %v2536 = vsel %vm2495, %v2454, 0
    %v2539 = vsel %vm2495, %v2458, 0
    %v2542 = vsel %vm2495, %v2462, 0
    %v2545 = vsel %vm2495, %v2466, 0
    %v2548 = vsel %vm2495, %v2470, 0
    %v2551 = vsel %vm2495, %v2474, 0
    %v2554 = vsel %vm2495, %v2478, 0
    %v2557 = vsel %vm2495, %v2482, 0
    %v2560 = vsel %vm2495, %v2486, 0
    %v2563 = vsel %vm2495, %v2490, 0
    %v2566 = vsel %vm2495, %v2494, 0
    %2568 = vmatprep.subr.mxu0 0.0
    %2569 = vmatpush1.msra.mxu0 %v2347
    %2570 = vmatprep.subr.mxu0 0.0
    %2571 = vmatpush1.msra.mxu0 %v2348
    %2572 = vmatprep.subr.mxu0 0.0
    %2573 = vmatpush1.msra.mxu0 %v2349
    %2574 = vmatprep.subr.mxu0 0.0
    %2575 = vmatpush1.msra.mxu0 %v2350
    %2576 = vmatprep.subr.mxu0 0.0
    %2577 = vmatpush1.msra.mxu0 %v2351
    %2578 = vmatprep.subr.mxu0 0.0
    %2579 = vmatpush1.msra.mxu0 %v2352
    %2580 = vmatprep.subr.mxu0 0.0
    %2581 = vmatpush1.msra.mxu0 %v2353
    %2582 = vmatprep.subr.mxu0 0.0
    %2583 = vmatpush1.msra.mxu0 %v2354
    %2584 = vmatprep.subr.mxu0 0.0
    %2585 = vmatpush1.msra.mxu0 %v2355
    %2586 = vmatprep.subr.mxu0 0.0
    %2587 = vmatpush1.msra.mxu0 %v2356
    %2588 = vmatprep.subr.mxu0 0.0
    %2589 = vmatpush1.msra.mxu0 %v2357
    %2590 = vmatprep.subr.mxu0 0.0
    %2591 = vmatpush1.msra.mxu0 %v2358
    %2592 = vmatprep.subr.mxu0 0.0
    %2593 = vmatpush1.msra.mxu0 %v2359
    %2594 = vmatprep.subr.mxu0 0.0
    %2595 = vmatpush1.msra.mxu0 %v2360
    %2596 = vmatprep.subr.mxu0 0.0
    %2597 = vmatpush1.msra.mxu0 %v2361
    %2598 = vmatprep.subr.mxu0 0.0
    %2599 = vmatpush1.msra.mxu0 %v2362
    %2600 = vmatprep.subr.mxu0 0.0
    %2601 = vmatpush1.msra.mxu0 %v2363
    %2602 = vmatprep.subr.mxu0 0.0
    %2603 = vmatpush1.msra.mxu0 %v2364
    %2604 = vmatprep.subr.mxu0 0.0
    %2605 = vmatpush1.msra.mxu0 %v2365
    %2606 = vmatprep.subr.mxu0 0.0
    %2607 = vmatpush1.msra.mxu0 %v2366
    %2608 = vmatprep.subr.mxu0 0.0
    %2609 = vmatpush1.msra.mxu0 %v2367
    %2610 = vmatprep.subr.mxu0 0.0
    %2611 = vmatpush1.msra.mxu0 %v2368
    %2612 = vmatprep.subr.mxu0 0.0
    %2613 = vmatpush1.msra.mxu0 %v2369
    %2614 = vmatprep.subr.mxu0 0.0
    %2615 = vmatpush1.msra.mxu0 %v2370
    %2616 = vmatprep.subr.mxu0 0.0
    %2617 = vmatpush1.msra.mxu0 %v2371
    %2618 = vmatprep.subr.mxu0 0.0
    %2619 = vmatpush1.msra.mxu0 %v2372
    %2620 = vmatprep.subr.mxu0 0.0
    %2621 = vmatpush1.msra.mxu0 %v2373
    %2622 = vmatprep.subr.mxu0 0.0
    %2623 = vmatpush1.msra.mxu0 %v2374
    %2624 = vmatprep.subr.mxu0 0.0
    %2625 = vmatpush1.msra.mxu0 %v2375
    %2626 = vmatprep.subr.mxu0 0.0
    %2627 = vmatpush1.msra.mxu0 %v2376
    %2628 = vmatprep.subr.mxu0 0.0
    %2629 = vmatpush1.msra.mxu0 %v2377
    %2630 = vmatprep.subr.mxu0 0.0
    %2631 = vmatpush1.msra.mxu0 %v2378
    %2632 = vmatprep.mubr.f32.mxu0 %v2400
    %2633 = vmatmul.mubr.f32.gmra.mrb[0].mxu0 %v2399
    %v2634 = vpop.f32.mrb[0].mxu0
    %v2635 = vadd.f32 0.0, %v2634
    %v2636 = vpop.f32.mrb[0].mxu0
    %2637 = vmatprep.mubr.f32.mxu0 %v2404
    %2638 = vmatmul.mubr.f32.gmra.mrb[0].mxu0 %v2403
    %v2639 = vpop.f32.mrb[0].mxu0
    %v2640 = vadd.f32 0.0, %v2639
    %v2641 = vpop.f32.mrb[0].mxu0
    %2642 = vmatprep.mubr.f32.mxu0 %v2408
    %2643 = vmatmul.mubr.f32.gmra.mrb[0].mxu0 %v2407
    %v2644 = vpop.f32.mrb[0].mxu0
    %v2645 = vadd.f32 0.0, %v2644
    %v2646 = vpop.f32.mrb[0].mxu0
    %2647 = vmatprep.mubr.f32.mxu0 %v2412
    %2648 = vmatmul.mubr.f32.gmra.mrb[0].mxu0 %v2411
    %v2649 = vpop.f32.mrb[0].mxu0
    %v2650 = vadd.f32 0.0, %v2649
    %v2651 = vpop.f32.mrb[0].mxu0
    %2652 = vmatprep.mubr.f32.mxu0 %v2416
    %2653 = vmatmul.mubr.f32.gmra.mrb[0].mxu0 %v2415
    %v2654 = vpop.f32.mrb[0].mxu0
    %v2655 = vadd.f32 0.0, %v2654
    %v2656 = vpop.f32.mrb[0].mxu0
    %2657 = vmatprep.mubr.f32.mxu0 %v2420
    %2658 = vmatmul.mubr.f32.gmra.mrb[0].mxu0 %v2419
    %v2659 = vpop.f32.mrb[0].mxu0
    %v2660 = vadd.f32 0.0, %v2659
    %v2661 = vpop.f32.mrb[0].mxu0
    %2662 = vmatprep.mubr.f32.mxu0 %v2424
    %2663 = vmatmul.mubr.f32.gmra.mrb[0].mxu0 %v2423
    %v2664 = vpop.f32.mrb[0].mxu0
    %v2665 = vadd.f32 0.0, %v2664
    %v2666 = vpop.f32.mrb[0].mxu0
    %2667 = vmatprep.mubr.f32.mxu0 %v2428
    %2668 = vmatmul.mubr.f32.gmra.mrb[0].mxu0 %v2427
    %v2669 = vpop.f32.mrb[0].mxu0
    %v2670 = vadd.f32 0.0, %v2669
    %v2671 = vpop.f32.mrb[0].mxu0
    %2672 = vmatprep.mubr.f32.mxu0 %v2432
    %2673 = vmatmul.mubr.f32.gmra.mrb[0].mxu0 %v2431
    %v2674 = vpop.f32.mrb[0].mxu0
    %v2675 = vadd.f32 0.0, %v2674
    %v2676 = vpop.f32.mrb[0].mxu0
    %2677 = vmatprep.mubr.f32.mxu0 %v2436
    %2678 = vmatmul.mubr.f32.gmra.mrb[0].mxu0 %v2435
    %v2679 = vpop.f32.mrb[0].mxu0
    %v2680 = vadd.f32 0.0, %v2679
    %v2681 = vpop.f32.mrb[0].mxu0
    %2682 = vmatprep.mubr.f32.mxu0 %v2440
    %2683 = vmatmul.mubr.f32.gmra.mrb[0].mxu0 %v2439
    %v2684 = vpop.f32.mrb[0].mxu0
    %v2685 = vadd.f32 0.0, %v2684
    %v2686 = vpop.f32.mrb[0].mxu0
    %2687 = vmatprep.mubr.f32.mxu0 %v2444
    %2688 = vmatmul.mubr.f32.gmra.mrb[0].mxu0 %v2443
    %v2689 = vpop.f32.mrb[0].mxu0
    %v2690 = vadd.f32 0.0, %v2689
    %v2691 = vpop.f32.mrb[0].mxu0
    %2692 = vmatprep.mubr.f32.mxu0 %v2448
    %2693 = vmatmul.mubr.f32.gmra.mrb[0].mxu0 %v2447
    %v2694 = vpop.f32.mrb[0].mxu0
    %v2695 = vadd.f32 0.0, %v2694
    %v2696 = vpop.f32.mrb[0].mxu0
    %2697 = vmatprep.mubr.f32.mxu0 %v2452
    %2698 = vmatmul.mubr.f32.gmra.mrb[0].mxu0 %v2451
    %v2699 = vpop.f32.mrb[0].mxu0
    %v2700 = vadd.f32 0.0, %v2699
    %v2701 = vpop.f32.mrb[0].mxu0
    %2702 = vmatprep.mubr.f32.mxu0 %v2456
    %2703 = vmatmul.mubr.f32.gmra.mrb[0].mxu0 %v2455
    %v2704 = vpop.f32.mrb[0].mxu0
    %v2705 = vadd.f32 0.0, %v2704
    %v2706 = vpop.f32.mrb[0].mxu0
    %2707 = vmatprep.mubr.f32.mxu0 %v2460
    %2708 = vmatmul.mubr.f32.gmra.mrb[0].mxu0 %v2459
    %v2709 = vpop.f32.mrb[0].mxu0
    %v2710 = vadd.f32 0.0, %v2709
    %v2711 = vpop.f32.mrb[0].mxu0
    %2712 = vmatprep.mubr.f32.mxu0 %v2464
    %2713 = vmatmul.mubr.f32.gmra.mrb[0].mxu0 %v2463
    %v2714 = vpop.f32.mrb[0].mxu0
    %v2715 = vadd.f32 0.0, %v2714
    %v2716 = vpop.f32.mrb[0].mxu0
    %2717 = vmatprep.mubr.f32.mxu0 %v2468
    %2718 = vmatmul.mubr.f32.gmra.mrb[0].mxu0 %v2467
    %v2719 = vpop.f32.mrb[0].mxu0
    %v2720 = vadd.f32 0.0, %v2719
    %v2721 = vpop.f32.mrb[0].mxu0
    %2722 = vmatprep.mubr.f32.mxu0 %v2472
    %2723 = vmatmul.mubr.f32.gmra.mrb[0].mxu0 %v2471
    %v2724 = vpop.f32.mrb[0].mxu0
    %v2725 = vadd.f32 0.0, %v2724
    %v2726 = vpop.f32.mrb[0].mxu0
    %2727 = vmatprep.mubr.f32.mxu0 %v2476
    %2728 = vmatmul.mubr.f32.gmra.mrb[0].mxu0 %v2475
    %v2729 = vpop.f32.mrb[0].mxu0
    %v2730 = vadd.f32 0.0, %v2729
    %v2731 = vpop.f32.mrb[0].mxu0
    %2732 = vmatprep.mubr.f32.mxu0 %v2480
    %2733 = vmatmul.mubr.f32.gmra.mrb[0].mxu0 %v2479
    %v2734 = vpop.f32.mrb[0].mxu0
    %v2735 = vadd.f32 0.0, %v2734
    %v2736 = vpop.f32.mrb[0].mxu0
    %2737 = vmatprep.mubr.f32.mxu0 %v2484
    %2738 = vmatmul.mubr.f32.gmra.mrb[0].mxu0 %v2483
    %v2739 = vpop.f32.mrb[0].mxu0
    %v2740 = vadd.f32 0.0, %v2739
    %v2741 = vpop.f32.mrb[0].mxu0
    %2742 = vmatprep.mubr.f32.mxu0 %v2488
    %2743 = vmatmul.mubr.f32.gmra.mrb[0].mxu0 %v2487
    %v2744 = vpop.f32.mrb[0].mxu0
    %v2745 = vadd.f32 0.0, %v2744
    %v2746 = vpop.f32.mrb[0].mxu0
    %2747 = vmatprep.mubr.f32.mxu0 %v2492
    %2748 = vmatmul.mubr.f32.gmra.mrb[0].mxu0 %v2491
    %v2749 = vpop.f32.mrb[0].mxu0
    %v2750 = vadd.f32 0.0, %v2749
    %v2751 = vpop.f32.mrb[0].mxu0
    %2752 = vdwg.mxu0
    %2753 = vmatprep.subr.mxu0 0.0
    %2754 = vmatpush1.msra.mxu0 %v2379
    %2755 = vmatprep.subr.mxu0 0.0
    %2756 = vmatpush1.msra.mxu0 %v2380
    %2757 = vmatprep.subr.mxu0 0.0
    %2758 = vmatpush1.msra.mxu0 %v2381
    %2759 = vmatprep.subr.mxu0 0.0
    %2760 = vmatpush1.msra.mxu0 %v2382
    %2761 = vmatprep.subr.mxu0 0.0
    %2762 = vmatpush1.msra.mxu0 %v2383
    %2763 = vmatprep.subr.mxu0 0.0
    %2764 = vmatpush1.msra.mxu0 %v2384
    %2765 = vmatprep.subr.mxu0 0.0
    %2766 = vmatpush1.msra.mxu0 %v2385
    %2767 = vmatprep.subr.mxu0 0.0
    %2768 = vmatpush1.msra.mxu0 %v2386
    %2769 = vmatprep.subr.mxu0 0.0
    %2770 = vmatpush1.msra.mxu0 %v2387
    %2771 = vmatprep.subr.mxu0 0.0
    %2772 = vmatpush1.msra.mxu0 %v2388
    %2773 = vmatprep.subr.mxu0 0.0
    %2774 = vmatpush1.msra.mxu0 %v2389
    %2775 = vmatprep.subr.mxu0 0.0
    %2776 = vmatpush1.msra.mxu0 %v2390
    %2777 = vmatprep.subr.mxu0 0.0
    %2778 = vmatpush1.msra.mxu0 %v2391
    %2779 = vmatprep.subr.mxu0 0.0
    %2780 = vmatpush1.msra.mxu0 %v2392
    %2781 = vmatprep.subr.mxu0 0.0
    %2782 = vmatpush1.msra.mxu0 %v2393
    %2783 = vmatprep.subr.mxu0 0.0
    %2784 = vmatpush1.msra.mxu0 %v2394
    %2785 = vmatprep.subr.mxu0 0.0
    %2786 = vmatpush1.msra.mxu0 %v2395
    %2787 = vmatprep.subr.mxu0 0.0
    %2788 = vmatpush1.msra.mxu0 %v2396
    %2789 = vmatprep.subr.mxu0 0.0
    %2790 = vmatpush1.msra.mxu0 %v2397
    %2791 = vmatprep.subr.mxu0 0.0
    %2792 = vmatpush1.msra.mxu0 %v2398
    %2793 = vmatprep.subr.mxu0 0.0
    %2794 = vmatpush1.msra.mxu0 0.0
    %2795 = vmatprep.subr.mxu0 0.0
    %2796 = vmatpush1.msra.mxu0 0.0
    %2797 = vmatprep.subr.mxu0 0.0
    %2798 = vmatpush1.msra.mxu0 0.0
    %2799 = vmatprep.subr.mxu0 0.0
    %2800 = vmatpush1.msra.mxu0 0.0
    %2801 = vmatprep.subr.mxu0 0.0
    %2802 = vmatpush1.msra.mxu0 0.0
    %2803 = vmatprep.subr.mxu0 0.0
    %2804 = vmatpush1.msra.mxu0 0.0
    %2805 = vmatprep.subr.mxu0 0.0
    %2806 = vmatpush1.msra.mxu0 0.0
    %2807 = vmatprep.subr.mxu0 0.0
    %2808 = vmatpush1.msra.mxu0 0.0
    %2809 = vmatprep.subr.mxu0 0.0
    %2810 = vmatpush1.msra.mxu0 0.0
    %2811 = vmatprep.subr.mxu0 0.0
    %2812 = vmatpush1.msra.mxu0 0.0
    %2813 = vmatprep.subr.mxu0 0.0
    %2814 = vmatpush1.msra.mxu0 0.0
    %2815 = vmatprep.subr.mxu0 0.0
    %2816 = vmatpush1.msra.mxu0 0.0
    %2817 = vmatprep.mubr.f32.mxu0 %v2497
    %2818 = vmatmul.mubr.f32.gmra.mrb[0].mxu0 %v2401
    %v2819 = vpop.f32.mrb[0].mxu0
    %v2820 = vadd.f32 %v2635, %v2819
    %v2821 = vpop.f32.mrb[0].mxu0
    %2822 = vmatprep.mubr.f32.mxu0 %v2500
    %2823 = vmatmul.mubr.f32.gmra.mrb[0].mxu0 %v2405
    %v2824 = vpop.f32.mrb[0].mxu0
    %v2825 = vadd.f32 %v2640, %v2824
    %v2826 = vpop.f32.mrb[0].mxu0
    %2827 = vmatprep.mubr.f32.mxu0 %v2503
    %2828 = vmatmul.mubr.f32.gmra.mrb[0].mxu0 %v2409
    %v2829 = vpop.f32.mrb[0].mxu0
    %v2830 = vadd.f32 %v2645, %v2829
    %v2831 = vpop.f32.mrb[0].mxu0
    %2832 = vmatprep.mubr.f32.mxu0 %v2506
    %2833 = vmatmul.mubr.f32.gmra.mrb[0].mxu0 %v2413
    %v2834 = vpop.f32.mrb[0].mxu0
    %v2835 = vadd.f32 %v2650, %v2834
    %v2836 = vpop.f32.mrb[0].mxu0
    %2837 = vmatprep.mubr.f32.mxu0 %v2509
    %2838 = vmatmul.mubr.f32.gmra.mrb[0].mxu0 %v2417
    %v2839 = vpop.f32.mrb[0].mxu0
    %v2840 = vadd.f32 %v2655, %v2839
    %v2841 = vpop.f32.mrb[0].mxu0
    %2842 = vmatprep.mubr.f32.mxu0 %v2512
    %2843 = vmatmul.mubr.f32.gmra.mrb[0].mxu0 %v2421
    %v2844 = vpop.f32.mrb[0].mxu0
    %v2845 = vadd.f32 %v2660, %v2844
    %v2846 = vpop.f32.mrb[0].mxu0
    %2847 = vmatprep.mubr.f32.mxu0 %v2515
    %2848 = vmatmul.mubr.f32.gmra.mrb[0].mxu0 %v2425
    %v2849 = vpop.f32.mrb[0].mxu0
    %v2850 = vadd.f32 %v2665, %v2849
    %v2851 = vpop.f32.mrb[0].mxu0
    %2852 = vmatprep.mubr.f32.mxu0 %v2518
    %2853 = vmatmul.mubr.f32.gmra.mrb[0].mxu0 %v2429
    %v2854 = vpop.f32.mrb[0].mxu0
    %v2855 = vadd.f32 %v2670, %v2854
    %v2856 = vpop.f32.mrb[0].mxu0
    %2857 = vmatprep.mubr.f32.mxu0 %v2521
    %2858 = vmatmul.mubr.f32.gmra.mrb[0].mxu0 %v2433
    %v2859 = vpop.f32.mrb[0].mxu0
    %v2860 = vadd.f32 %v2675, %v2859
    %v2861 = vpop.f32.mrb[0].mxu0
    %2862 = vmatprep.mubr.f32.mxu0 %v2524
    %2863 = vmatmul.mubr.f32.gmra.mrb[0].mxu0 %v2437
    %v2864 = vpop.f32.mrb[0].mxu0
    %v2865 = vadd.f32 %v2680, %v2864
    %v2866 = vpop.f32.mrb[0].mxu0
    %2867 = vmatprep.mubr.f32.mxu0 %v2527
    %2868 = vmatmul.mubr.f32.gmra.mrb[0].mxu0 %v2441
    %v2869 = vpop.f32.mrb[0].mxu0
    %v2870 = vadd.f32 %v2685, %v2869
    %v2871 = vpop.f32.mrb[0].mxu0
    %2872 = vmatprep.mubr.f32.mxu0 %v2530
    %2873 = vmatmul.mubr.f32.gmra.mrb[0].mxu0 %v2445
    %v2874 = vpop.f32.mrb[0].mxu0
    %v2875 = vadd.f32 %v2690, %v2874
    %v2876 = vpop.f32.mrb[0].mxu0
    %2877 = vmatprep.mubr.f32.mxu0 %v2533
    %2878 = vmatmul.mubr.f32.gmra.mrb[0].mxu0 %v2449
    %v2879 = vpop.f32.mrb[0].mxu0
    %v2880 = vadd.f32 %v2695, %v2879
    %v2881 = vpop.f32.mrb[0].mxu0
    %2882 = vmatprep.mubr.f32.mxu0 %v2536
    %2883 = vmatmul.mubr.f32.gmra.mrb[0].mxu0 %v2453
    %v2884 = vpop.f32.mrb[0].mxu0
    %v2885 = vadd.f32 %v2700, %v2884
    %v2886 = vpop.f32.mrb[0].mxu0
    %2887 = vmatprep.mubr.f32.mxu0 %v2539
    %2888 = vmatmul.mubr.f32.gmra.mrb[0].mxu0 %v2457
    %v2889 = vpop.f32.mrb[0].mxu0
    %v2890 = vadd.f32 %v2705, %v2889
    %v2891 = vpop.f32.mrb[0].mxu0
    %2892 = vmatprep.mubr.f32.mxu0 %v2542
    %2893 = vmatmul.mubr.f32.gmra.mrb[0].mxu0 %v2461
    %v2894 = vpop.f32.mrb[0].mxu0
    %v2895 = vadd.f32 %v2710, %v2894
    %v2896 = vpop.f32.mrb[0].mxu0
    %2897 = vmatprep.mubr.f32.mxu0 %v2545
    %2898 = vmatmul.mubr.f32.gmra.mrb[0].mxu0 %v2465
    %v2899 = vpop.f32.mrb[0].mxu0
    %v2900 = vadd.f32 %v2715, %v2899
    %v2901 = vpop.f32.mrb[0].mxu0
    %2902 = vmatprep.mubr.f32.mxu0 %v2548
    %2903 = vmatmul.mubr.f32.gmra.mrb[0].mxu0 %v2469
    %v2904 = vpop.f32.mrb[0].mxu0
    %v2905 = vadd.f32 %v2720, %v2904
    %v2906 = vpop.f32.mrb[0].mxu0
    %2907 = vmatprep.mubr.f32.mxu0 %v2551
    %2908 = vmatmul.mubr.f32.gmra.mrb[0].mxu0 %v2473
    %v2909 = vpop.f32.mrb[0].mxu0
    %v2910 = vadd.f32 %v2725, %v2909
    %v2911 = vpop.f32.mrb[0].mxu0
    %2912 = vmatprep.mubr.f32.mxu0 %v2554
    %2913 = vmatmul.mubr.f32.gmra.mrb[0].mxu0 %v2477
    %v2914 = vpop.f32.mrb[0].mxu0
    %v2915 = vadd.f32 %v2730, %v2914
    %v2916 = vpop.f32.mrb[0].mxu0
    %2917 = vmatprep.mubr.f32.mxu0 %v2557
    %2918 = vmatmul.mubr.f32.gmra.mrb[0].mxu0 %v2481
    %v2919 = vpop.f32.mrb[0].mxu0
    %v2920 = vadd.f32 %v2735, %v2919
    %v2921 = vpop.f32.mrb[0].mxu0
    %2922 = vmatprep.mubr.f32.mxu0 %v2560
    %2923 = vmatmul.mubr.f32.gmra.mrb[0].mxu0 %v2485
    %v2924 = vpop.f32.mrb[0].mxu0
    %v2925 = vadd.f32 %v2740, %v2924
    %v2926 = vpop.f32.mrb[0].mxu0
    %2927 = vmatprep.mubr.f32.mxu0 %v2563
    %2928 = vmatmul.mubr.f32.gmra.mrb[0].mxu0 %v2489
    %v2929 = vpop.f32.mrb[0].mxu0
    %v2930 = vadd.f32 %v2745, %v2929
    %v2931 = vpop.f32.mrb[0].mxu0
    %2932 = vmatprep.mubr.f32.mxu0 %v2566
    %2933 = vmatmul.mubr.f32.gmra.mrb[0].mxu0 %v2493
    %v2934 = vpop.f32.mrb[0].mxu0
    %v2935 = vadd.f32 %v2750, %v2934
    %v2936 = vpop.f32.mrb[0].mxu0
    %2937 = vdwg.mxu0
    %v2938 = vrot.slane %v2820, 1
    %v2939 = vrot.slane %v2825, 1
    %v2940 = vrot.slane %v2830, 1
    %v2941 = vrot.slane %v2835, 1
    %v2942 = vrot.slane %v2840, 1
    %v2943 = vrot.slane %v2845, 1
    %v2944 = vrot.slane %v2850, 1
    %v2945 = vrot.slane %v2855, 1
    %v2946 = vrot.slane %v2860, 1
    %v2947 = vrot.slane %v2865, 1
    %v2948 = vrot.slane %v2870, 1
    %v2949 = vrot.slane %v2875, 1
    %v2950 = vrot.slane %v2880, 1
    %v2951 = vrot.slane %v2885, 1
    %v2952 = vrot.slane %v2890, 1
    %v2953 = vrot.slane %v2895, 1
    %v2954 = vrot.slane %v2900, 1
    %v2955 = vrot.slane %v2905, 1
    %v2956 = vrot.slane %v2910, 1
    %v2957 = vrot.slane %v2915, 1
    %v2958 = vrot.slane %v2920, 1
    %v2959 = vrot.slane %v2925, 1
    %v2960 = vrot.slane %v2930, 1
    %v2961 = vrot.slane %v2935, 1
    %v2962 = vsel %vm654, %v2960, %v2961
    %v2963 = vsel %vm654, %v2959, %v2960
    %v2964 = vsel %vm654, %v2958, %v2959
    %v2965 = vsel %vm654, %v2957, %v2958
    %v2966 = vsel %vm654, %v2956, %v2957
    %v2967 = vsel %vm654, %v2955, %v2956
    %v2968 = vsel %vm654, %v2954, %v2955
    %v2969 = vsel %vm654, %v2953, %v2954
    %v2970 = vsel %vm654, %v2952, %v2953
    %v2971 = vsel %vm654, %v2951, %v2952
    %v2972 = vsel %vm654, %v2950, %v2951
    %v2973 = vsel %vm654, %v2949, %v2950
    %v2974 = vsel %vm654, %v2948, %v2949
    %v2975 = vsel %vm654, %v2947, %v2948
    %v2976 = vsel %vm654, %v2946, %v2947
    %v2977 = vsel %vm654, %v2945, %v2946
    %v2978 = vsel %vm654, %v2944, %v2945
    %v2979 = vsel %vm654, %v2943, %v2944
    %v2980 = vsel %vm654, %v2942, %v2943
    %v2981 = vsel %vm654, %v2941, %v2942
    %v2982 = vsel %vm654, %v2940, %v2941
    %v2983 = vsel %vm654, %v2939, %v2940
    %v2984 = vsel %vm654, %v2938, %v2939
    %v2985 = vsel %vm654, %v2961, %v2938
    %v2986 = vrot.slane %v2820, 2
    %v2987 = vrot.slane %v2825, 2
    %v2988 = vrot.slane %v2830, 2
    %v2989 = vrot.slane %v2835, 2
    %v2990 = vrot.slane %v2840, 2
    %v2991 = vrot.slane %v2845, 2
    %v2992 = vrot.slane %v2850, 2
    %v2993 = vrot.slane %v2855, 2
    %v2994 = vrot.slane %v2860, 2
    %v2995 = vrot.slane %v2865, 2
    %v2996 = vrot.slane %v2870, 2
    %v2997 = vrot.slane %v2875, 2
    %v2998 = vrot.slane %v2880, 2
    %v2999 = vrot.slane %v2885, 2
    %v3000 = vrot.slane %v2890, 2
    %v3001 = vrot.slane %v2895, 2
    %v3002 = vrot.slane %v2900, 2
    %v3003 = vrot.slane %v2905, 2
    %v3004 = vrot.slane %v2910, 2
    %v3005 = vrot.slane %v2915, 2
    %v3006 = vrot.slane %v2920, 2
    %v3007 = vrot.slane %v2925, 2
    %v3008 = vrot.slane %v2930, 2
    %v3009 = vrot.slane %v2935, 2
    %v3010 = vsel %vm759, %v3008, %v3009
    %v3011 = vsel %vm759, %v3007, %v3008
    %v3012 = vsel %vm759, %v3006, %v3007
    %v3013 = vsel %vm759, %v3005, %v3006
    %v3014 = vsel %vm759, %v3004, %v3005
    %v3015 = vsel %vm759, %v3003, %v3004
    %v3016 = vsel %vm759, %v3002, %v3003
    %v3017 = vsel %vm759, %v3001, %v3002
    %v3018 = vsel %vm759, %v3000, %v3001
    %v3019 = vsel %vm759, %v2999, %v3000
    %v3020 = vsel %vm759, %v2998, %v2999
    %v3021 = vsel %vm759, %v2997, %v2998
    %v3022 = vsel %vm759, %v2996, %v2997
    %v3023 = vsel %vm759, %v2995, %v2996
    %v3024 = vsel %vm759, %v2994, %v2995
    %v3025 = vsel %vm759, %v2993, %v2994
    %v3026 = vsel %vm759, %v2992, %v2993
    %v3027 = vsel %vm759, %v2991, %v2992
    %v3028 = vsel %vm759, %v2990, %v2991
    %v3029 = vsel %vm759, %v2989, %v2990
    %v3030 = vsel %vm759, %v2988, %v2989
    %v3031 = vsel %vm759, %v2987, %v2988
    %v3032 = vsel %vm759, %v2986, %v2987
    %v3033 = vsel %vm759, %v3009, %v2986
    %v3034 = vrot.slane %v2820, 3
    %v3035 = vrot.slane %v2825, 3
    %v3036 = vrot.slane %v2830, 3
    %v3037 = vrot.slane %v2835, 3
    %v3038 = vrot.slane %v2840, 3
    %v3039 = vrot.slane %v2845, 3
    %v3040 = vrot.slane %v2850, 3
    %v3041 = vrot.slane %v2855, 3
    %v3042 = vrot.slane %v2860, 3
    %v3043 = vrot.slane %v2865, 3
    %v3044 = vrot.slane %v2870, 3
    %v3045 = vrot.slane %v2875, 3
    %v3046 = vrot.slane %v2880, 3
    %v3047 = vrot.slane %v2885, 3
    %v3048 = vrot.slane %v2890, 3
    %v3049 = vrot.slane %v2895, 3
    %v3050 = vrot.slane %v2900, 3
    %v3051 = vrot.slane %v2905, 3
    %v3052 = vrot.slane %v2910, 3
    %v3053 = vrot.slane %v2915, 3
    %v3054 = vrot.slane %v2920, 3
    %v3055 = vrot.slane %v2925, 3
    %v3056 = vrot.slane %v2930, 3
    %v3057 = vrot.slane %v2935, 3
    %v3058 = vsel %vm864, %v3056, %v3057
    %v3059 = vsel %vm864, %v3055, %v3056
    %v3060 = vsel %vm864, %v3054, %v3055
    %v3061 = vsel %vm864, %v3053, %v3054
    %v3062 = vsel %vm864, %v3052, %v3053
    %v3063 = vsel %vm864, %v3051, %v3052
    %v3064 = vsel %vm864, %v3050, %v3051
    %v3065 = vsel %vm864, %v3049, %v3050
    %v3066 = vsel %vm864, %v3048, %v3049
    %v3067 = vsel %vm864, %v3047, %v3048
    %v3068 = vsel %vm864, %v3046, %v3047
    %v3069 = vsel %vm864, %v3045, %v3046
    %v3070 = vsel %vm864, %v3044, %v3045
    %v3071 = vsel %vm864, %v3043, %v3044
    %v3072 = vsel %vm864, %v3042, %v3043
    %v3073 = vsel %vm864, %v3041, %v3042
    %v3074 = vsel %vm864, %v3040, %v3041
    %v3075 = vsel %vm864, %v3039, %v3040
    %v3076 = vsel %vm864, %v3038, %v3039
    %v3077 = vsel %vm864, %v3037, %v3038
    %v3078 = vsel %vm864, %v3036, %v3037
    %v3079 = vsel %vm864, %v3035, %v3036
    %v3080 = vsel %vm864, %v3034, %v3035
    %v3081 = vsel %vm864, %v3057, %v3034
    %3106 = vrot.lane.b32.xlu0 %v2984, 32
    %v3107 = vpop.permute.xlu0 %3106
    %3108 = vrot.lane.b32.xlu0 %v2983, 32
    %v3109 = vpop.permute.xlu0 %3108
    %3110 = vrot.lane.b32.xlu0 %v2982, 32
    %v3111 = vpop.permute.xlu0 %3110
    %3112 = vrot.lane.b32.xlu0 %v2981, 32
    %v3113 = vpop.permute.xlu0 %3112
    %3114 = vrot.lane.b32.xlu0 %v2980, 32
    %v3115 = vpop.permute.xlu0 %3114
    %3116 = vrot.lane.b32.xlu0 %v2979, 32
    %v3117 = vpop.permute.xlu0 %3116
    %3118 = vrot.lane.b32.xlu0 %v2978, 32
    %v3119 = vpop.permute.xlu0 %3118
    %3120 = vrot.lane.b32.xlu0 %v2977, 32
    %v3121 = vpop.permute.xlu0 %3120
    %3122 = vrot.lane.b32.xlu0 %v2976, 32
    %v3123 = vpop.permute.xlu0 %3122
    %3124 = vrot.lane.b32.xlu0 %v2975, 32
    %v3125 = vpop.permute.xlu0 %3124
    %3126 = vrot.lane.b32.xlu0 %v2974, 32
    %v3127 = vpop.permute.xlu0 %3126
    %3128 = vrot.lane.b32.xlu0 %v2973, 32
    %v3129 = vpop.permute.xlu0 %3128
    %3130 = vrot.lane.b32.xlu0 %v2972, 32
    %v3131 = vpop.permute.xlu0 %3130
    %3132 = vrot.lane.b32.xlu0 %v2971, 32
    %v3133 = vpop.permute.xlu0 %3132
    %3134 = vrot.lane.b32.xlu0 %v2970, 32
    %v3135 = vpop.permute.xlu0 %3134
    %3136 = vrot.lane.b32.xlu0 %v2969, 32
    %v3137 = vpop.permute.xlu0 %3136
    %3138 = vrot.lane.b32.xlu0 %v2968, 32
    %v3139 = vpop.permute.xlu0 %3138
    %3140 = vrot.lane.b32.xlu0 %v2967, 32
    %v3141 = vpop.permute.xlu0 %3140
    %3142 = vrot.lane.b32.xlu0 %v2966, 32
    %v3143 = vpop.permute.xlu0 %3142
    %3144 = vrot.lane.b32.xlu0 %v2965, 32
    %v3145 = vpop.permute.xlu0 %3144
    %3146 = vrot.lane.b32.xlu0 %v2964, 32
    %v3147 = vpop.permute.xlu0 %3146
    %3148 = vrot.lane.b32.xlu0 %v2963, 32
    %v3149 = vpop.permute.xlu0 %3148
    %3150 = vrot.lane.b32.xlu0 %v2962, 32
    %v3151 = vpop.permute.xlu0 %3150
    %3152 = vrot.lane.b32.xlu0 %v2985, 32
    %v3153 = vpop.permute.xlu0 %3152
    %3202 = vrot.lane.b32.xlu0 %v3032, 64
    %v3203 = vpop.permute.xlu0 %3202
    %3204 = vrot.lane.b32.xlu0 %v3031, 64
    %v3205 = vpop.permute.xlu0 %3204
    %3206 = vrot.lane.b32.xlu0 %v3030, 64
    %v3207 = vpop.permute.xlu0 %3206
    %3208 = vrot.lane.b32.xlu0 %v3029, 64
    %v3209 = vpop.permute.xlu0 %3208
    %3210 = vrot.lane.b32.xlu0 %v3028, 64
    %v3211 = vpop.permute.xlu0 %3210
    %3212 = vrot.lane.b32.xlu0 %v3027, 64
    %v3213 = vpop.permute.xlu0 %3212
    %3214 = vrot.lane.b32.xlu0 %v3026, 64
    %v3215 = vpop.permute.xlu0 %3214
    %3216 = vrot.lane.b32.xlu0 %v3025, 64
    %v3217 = vpop.permute.xlu0 %3216
    %3218 = vrot.lane.b32.xlu0 %v3024, 64
    %v3219 = vpop.permute.xlu0 %3218
    %3220 = vrot.lane.b32.xlu0 %v3023, 64
    %v3221 = vpop.permute.xlu0 %3220
    %3222 = vrot.lane.b32.xlu0 %v3022, 64
    %v3223 = vpop.permute.xlu0 %3222
    %3224 = vrot.lane.b32.xlu0 %v3021, 64
    %v3225 = vpop.permute.xlu0 %3224
    %3226 = vrot.lane.b32.xlu0 %v3020, 64
    %v3227 = vpop.permute.xlu0 %3226
    %3228 = vrot.lane.b32.xlu0 %v3019, 64
    %v3229 = vpop.permute.xlu0 %3228
    %3230 = vrot.lane.b32.xlu0 %v3018, 64
    %v3231 = vpop.permute.xlu0 %3230
    %3232 = vrot.lane.b32.xlu0 %v3017, 64
    %v3233 = vpop.permute.xlu0 %3232
    %3234 = vrot.lane.b32.xlu0 %v3016, 64
    %v3235 = vpop.permute.xlu0 %3234
    %3236 = vrot.lane.b32.xlu0 %v3015, 64
    %v3237 = vpop.permute.xlu0 %3236
    %3238 = vrot.lane.b32.xlu0 %v3014, 64
    %v3239 = vpop.permute.xlu0 %3238
    %3240 = vrot.lane.b32.xlu0 %v3013, 64
    %v3241 = vpop.permute.xlu0 %3240
    %3242 = vrot.lane.b32.xlu0 %v3012, 64
    %v3243 = vpop.permute.xlu0 %3242
    %3244 = vrot.lane.b32.xlu0 %v3011, 64
    %v3245 = vpop.permute.xlu0 %3244
    %3246 = vrot.lane.b32.xlu0 %v3010, 64
    %v3247 = vpop.permute.xlu0 %3246
    %3248 = vrot.lane.b32.xlu0 %v3033, 64
    %v3249 = vpop.permute.xlu0 %3248
    %3298 = vrot.lane.b32.xlu0 %v3080, 96
    %v3299 = vpop.permute.xlu0 %3298
    %3300 = vrot.lane.b32.xlu0 %v3079, 96
    %v3301 = vpop.permute.xlu0 %3300
    %3302 = vrot.lane.b32.xlu0 %v3078, 96
    %v3303 = vpop.permute.xlu0 %3302
    %3304 = vrot.lane.b32.xlu0 %v3077, 96
    %v3305 = vpop.permute.xlu0 %3304
    %3306 = vrot.lane.b32.xlu0 %v3076, 96
    %v3307 = vpop.permute.xlu0 %3306
    %3308 = vrot.lane.b32.xlu0 %v3075, 96
    %v3309 = vpop.permute.xlu0 %3308
    %3310 = vrot.lane.b32.xlu0 %v3074, 96
    %v3311 = vpop.permute.xlu0 %3310
    %3312 = vrot.lane.b32.xlu0 %v3073, 96
    %v3313 = vpop.permute.xlu0 %3312
    %3314 = vrot.lane.b32.xlu0 %v3072, 96
    %v3315 = vpop.permute.xlu0 %3314
    %3316 = vrot.lane.b32.xlu0 %v3071, 96
    %v3317 = vpop.permute.xlu0 %3316
    %3318 = vrot.lane.b32.xlu0 %v3070, 96
    %v3319 = vpop.permute.xlu0 %3318
    %3320 = vrot.lane.b32.xlu0 %v3069, 96
    %v3321 = vpop.permute.xlu0 %3320
    %3322 = vrot.lane.b32.xlu0 %v3068, 96
    %v3323 = vpop.permute.xlu0 %3322
    %3324 = vrot.lane.b32.xlu0 %v3067, 96
    %v3325 = vpop.permute.xlu0 %3324
    %3326 = vrot.lane.b32.xlu0 %v3066, 96
    %v3327 = vpop.permute.xlu0 %3326
    %3328 = vrot.lane.b32.xlu0 %v3065, 96
    %v3329 = vpop.permute.xlu0 %3328
    %3330 = vrot.lane.b32.xlu0 %v3064, 96
    %v3331 = vpop.permute.xlu0 %3330
    %3332 = vrot.lane.b32.xlu0 %v3063, 96
    %v3333 = vpop.permute.xlu0 %3332
    %3334 = vrot.lane.b32.xlu0 %v3062, 96
    %v3335 = vpop.permute.xlu0 %3334
    %3336 = vrot.lane.b32.xlu0 %v3061, 96
    %v3337 = vpop.permute.xlu0 %3336
    %3338 = vrot.lane.b32.xlu0 %v3060, 96
    %v3339 = vpop.permute.xlu0 %3338
    %3340 = vrot.lane.b32.xlu0 %v3059, 96
    %v3341 = vpop.permute.xlu0 %3340
    %3342 = vrot.lane.b32.xlu0 %v3058, 96
    %v3343 = vpop.permute.xlu0 %3342
    %3344 = vrot.lane.b32.xlu0 %v3081, 96
    %v3345 = vpop.permute.xlu0 %3344
    %v3370 = vsel %vm2495, %v2820, %v3107
    %v3371 = vsel %vm2495, %v2825, %v3109
    %v3372 = vsel %vm2495, %v2830, %v3111
    %v3373 = vsel %vm2495, %v2835, %v3113
    %v3374 = vsel %vm2495, %v2840, %v3115
    %v3375 = vsel %vm2495, %v2845, %v3117
    %v3376 = vsel %vm2495, %v2850, %v3119
    %v3377 = vsel %vm2495, %v2855, %v3121
    %v3378 = vsel %vm2495, %v2860, %v3123
    %v3379 = vsel %vm2495, %v2865, %v3125
    %v3380 = vsel %vm2495, %v2870, %v3127
    %v3381 = vsel %vm2495, %v2875, %v3129
    %v3382 = vsel %vm2495, %v2880, %v3131
    %v3383 = vsel %vm2495, %v2885, %v3133
    %v3384 = vsel %vm2495, %v2890, %v3135
    %v3385 = vsel %vm2495, %v2895, %v3137
    %v3386 = vsel %vm2495, %v2900, %v3139
    %v3387 = vsel %vm2495, %v2905, %v3141
    %v3388 = vsel %vm2495, %v2910, %v3143
    %v3389 = vsel %vm2495, %v2915, %v3145
    %v3390 = vsel %vm2495, %v2920, %v3147
    %v3391 = vsel %vm2495, %v2925, %v3149
    %v3392 = vsel %vm2495, %v2930, %v3151
    %v3393 = vsel %vm2495, %v2935, %v3153
    %v3394 = vsel %vm118, %v3370, %v3203
    %v3395 = vsel %vm118, %v3371, %v3205
    %v3396 = vsel %vm118, %v3372, %v3207
    %v3397 = vsel %vm118, %v3373, %v3209
    %v3398 = vsel %vm118, %v3374, %v3211
    %v3399 = vsel %vm118, %v3375, %v3213
    %v3400 = vsel %vm118, %v3376, %v3215
    %v3401 = vsel %vm118, %v3377, %v3217
    %v3402 = vsel %vm118, %v3378, %v3219
    %v3403 = vsel %vm118, %v3379, %v3221
    %v3404 = vsel %vm118, %v3380, %v3223
    %v3405 = vsel %vm118, %v3381, %v3225
    %v3406 = vsel %vm118, %v3382, %v3227
    %v3407 = vsel %vm118, %v3383, %v3229
    %v3408 = vsel %vm118, %v3384, %v3231
    %v3409 = vsel %vm118, %v3385, %v3233
    %v3410 = vsel %vm118, %v3386, %v3235
    %v3411 = vsel %vm118, %v3387, %v3237
    %v3412 = vsel %vm118, %v3388, %v3239
    %v3413 = vsel %vm118, %v3389, %v3241
    %v3414 = vsel %vm118, %v3390, %v3243
    %v3415 = vsel %vm118, %v3391, %v3245
    %v3416 = vsel %vm118, %v3392, %v3247
    %v3417 = vsel %vm118, %v3393, %v3249
    %vm3418 = vcmask 785408
    %v3419 = vsel %vm3418, %v3394, %v3299
    %v3420 = vsel %vm3418, %v3395, %v3301
    %v3421 = vsel %vm3418, %v3396, %v3303
    %v3422 = vsel %vm3418, %v3397, %v3305
    %v3423 = vsel %vm3418, %v3398, %v3307
    %v3424 = vsel %vm3418, %v3399, %v3309
    %v3425 = vsel %vm3418, %v3400, %v3311
    %v3426 = vsel %vm3418, %v3401, %v3313
    %v3427 = vsel %vm3418, %v3402, %v3315
    %v3428 = vsel %vm3418, %v3403, %v3317
    %v3429 = vsel %vm3418, %v3404, %v3319
    %v3430 = vsel %vm3418, %v3405, %v3321
    %v3431 = vsel %vm3418, %v3406, %v3323
    %v3432 = vsel %vm3418, %v3407, %v3325
    %v3433 = vsel %vm3418, %v3408, %v3327
    %v3434 = vsel %vm3418, %v3409, %v3329
    %v3435 = vsel %vm3418, %v3410, %v3331
    %v3436 = vsel %vm3418, %v3411, %v3333
    %v3437 = vsel %vm3418, %v3412, %v3335
    %v3438 = vsel %vm3418, %v3413, %v3337
    %v3439 = vsel %vm3418, %v3414, %v3339
    %v3440 = vsel %vm3418, %v3415, %v3341
    %v3441 = vsel %vm3418, %v3416, %v3343
    %v3442 = vsel %vm3418, %v3417, %v3345
    %v3443 = vld [vmem:[%s7] sm:$0xff]
    %v3444 = vld [vmem:[%s7 + $0x8] sm:$0xff]
    %v3445 = vld [vmem:[%s7 + $0x10] sm:$0xff]
    %v3446 = vld [vmem:[%s7 + $0x18] sm:$0xff]
    %v3447 = vld [vmem:[%s7 + $0x20] sm:$0xff]
    %v3448 = vld [vmem:[%s7 + $0x28] sm:$0xff]
    %v3449 = vld [vmem:[%s7 + $0x30] sm:$0xff]
    %v3450 = vld [vmem:[%s7 + $0x38] sm:$0xff]
    %v3451 = vld [vmem:[%s7 + $0x40] sm:$0xff]
    %v3452 = vld [vmem:[%s7 + $0x48] sm:$0xff]
    %v3453 = vld [vmem:[%s7 + $0x50] sm:$0xff]
    %v3454 = vld [vmem:[%s7 + $0x58] sm:$0xff]
    %v3455 = vld [vmem:[%s7 + $0x60] sm:$0xff]
    %v3456 = vld [vmem:[%s7 + $0x68] sm:$0xff]
    %v3457 = vld [vmem:[%s7 + $0x70] sm:$0xff]
    %v3458 = vld [vmem:[%s7 + $0x78] sm:$0xff]
    %v3459 = vld [vmem:[%s8] sm:$0x1]
    %v3461 = vlaneseq
    %v3462 = vshrl.u32 %v3461, 7
    %v3463 = vsub.s32 0, %v3462
    %v3464 = vrot.slane %v3459, %v3463
    %3466 = vmatprep.subr.mxu0 0.0
    %3467 = vmatpush1.msra.mxu0 %v3443
    %3468 = vmatprep.subr.mxu0 0.0
    %3469 = vmatpush1.msra.mxu0 %v3444
    %3470 = vmatprep.subr.mxu0 0.0
    %3471 = vmatpush1.msra.mxu0 %v3445
    %3472 = vmatprep.subr.mxu0 0.0
    %3473 = vmatpush1.msra.mxu0 %v3446
    %3474 = vmatprep.subr.mxu0 0.0
    %3475 = vmatpush1.msra.mxu0 %v3447
    %3476 = vmatprep.subr.mxu0 0.0
    %3477 = vmatpush1.msra.mxu0 %v3448
    %3478 = vmatprep.subr.mxu0 0.0
    %3479 = vmatpush1.msra.mxu0 %v3449
    %3480 = vmatprep.subr.mxu0 0.0
    %3481 = vmatpush1.msra.mxu0 %v3450
    %3482 = vmatprep.subr.mxu0 0.0
    %3483 = vmatpush1.msra.mxu0 %v3451
    %3484 = vmatprep.subr.mxu0 0.0
    %3485 = vmatpush1.msra.mxu0 %v3452
    %3486 = vmatprep.subr.mxu0 0.0
    %3487 = vmatpush1.msra.mxu0 %v3453
    %3488 = vmatprep.subr.mxu0 0.0
    %3489 = vmatpush1.msra.mxu0 %v3454
    %3490 = vmatprep.subr.mxu0 0.0
    %3491 = vmatpush1.msra.mxu0 %v3455
    %3492 = vmatprep.subr.mxu0 0.0
    %3493 = vmatpush1.msra.mxu0 %v3456
    %3494 = vmatprep.subr.mxu0 0.0
    %3495 = vmatpush1.msra.mxu0 %v3457
    %3496 = vmatprep.subr.mxu0 0.0
    %3497 = vmatpush1.msra.mxu0 %v3458
    %3498 = vmatprep.subr.mxu0 0.0
    %3499 = vmatpush1.msra.mxu0 0.0
    %3500 = vmatprep.subr.mxu0 0.0
    %3501 = vmatpush1.msra.mxu0 0.0
    %3502 = vmatprep.subr.mxu0 0.0
    %3503 = vmatpush1.msra.mxu0 0.0
    %3504 = vmatprep.subr.mxu0 0.0
    %3505 = vmatpush1.msra.mxu0 0.0
    %3506 = vmatprep.subr.mxu0 0.0
    %3507 = vmatpush1.msra.mxu0 0.0
    %3508 = vmatprep.subr.mxu0 0.0
    %3509 = vmatpush1.msra.mxu0 0.0
    %3510 = vmatprep.subr.mxu0 0.0
    %3511 = vmatpush1.msra.mxu0 0.0
    %3512 = vmatprep.subr.mxu0 0.0
    %3513 = vmatpush1.msra.mxu0 0.0
    %3514 = vmatprep.subr.mxu0 0.0
    %3515 = vmatpush1.msra.mxu0 0.0
    %3516 = vmatprep.subr.mxu0 0.0
    %3517 = vmatpush1.msra.mxu0 0.0
    %3518 = vmatprep.subr.mxu0 0.0
    %3519 = vmatpush1.msra.mxu0 0.0
    %3520 = vmatprep.subr.mxu0 0.0
    %3521 = vmatpush1.msra.mxu0 0.0
    %3522 = vmatprep.subr.mxu0 0.0
    %3523 = vmatpush1.msra.mxu0 0.0
    %3524 = vmatprep.subr.mxu0 0.0
    %3525 = vmatpush1.msra.mxu0 0.0
    %3526 = vmatprep.subr.mxu0 0.0
    %3527 = vmatpush1.msra.mxu0 0.0
    %3528 = vmatprep.subr.mxu0 0.0
    %3529 = vmatpush1.msra.mxu0 0.0
    %3530 = vmatprep.mubr.f32.mxu0 0.0
    %3531 = vmatmul.mubr.f32.gmra.mrb[0].mxu0 %v3419
    %v3532 = vpop.f32.mrb[0].mxu0
    %v3533 = vadd.f32 %v3464, %v3532
    %v3534 = vpop.f32.mrb[0].mxu0
    %3535 = vmatprep.mubr.f32.mxu0 0.0
    %3536 = vmatmul.mubr.f32.gmra.mrb[0].mxu0 %v3420
    %v3537 = vpop.f32.mrb[0].mxu0
    %v3538 = vadd.f32 %v3464, %v3537
    %v3539 = vpop.f32.mrb[0].mxu0
    %3540 = vmatprep.mubr.f32.mxu0 0.0
    %3541 = vmatmul.mubr.f32.gmra.mrb[0].mxu0 %v3421
    %v3542 = vpop.f32.mrb[0].mxu0
    %v3543 = vadd.f32 %v3464, %v3542
    %v3544 = vpop.f32.mrb[0].mxu0
    %3545 = vmatprep.mubr.f32.mxu0 0.0
    %3546 = vmatmul.mubr.f32.gmra.mrb[0].mxu0 %v3422
    %v3547 = vpop.f32.mrb[0].mxu0
    %v3548 = vadd.f32 %v3464, %v3547
    %v3549 = vpop.f32.mrb[0].mxu0
    %3550 = vmatprep.mubr.f32.mxu0 0.0
    %3551 = vmatmul.mubr.f32.gmra.mrb[0].mxu0 %v3423
    %v3552 = vpop.f32.mrb[0].mxu0
    %v3553 = vadd.f32 %v3464, %v3552
    %v3554 = vpop.f32.mrb[0].mxu0
    %3555 = vmatprep.mubr.f32.mxu0 0.0
    %3556 = vmatmul.mubr.f32.gmra.mrb[0].mxu0 %v3424
    %v3557 = vpop.f32.mrb[0].mxu0
    %v3558 = vadd.f32 %v3464, %v3557
    %v3559 = vpop.f32.mrb[0].mxu0
    %3560 = vmatprep.mubr.f32.mxu0 0.0
    %3561 = vmatmul.mubr.f32.gmra.mrb[0].mxu0 %v3425
    %v3562 = vpop.f32.mrb[0].mxu0
    %v3563 = vadd.f32 %v3464, %v3562
    %v3564 = vpop.f32.mrb[0].mxu0
    %3565 = vmatprep.mubr.f32.mxu0 0.0
    %3566 = vmatmul.mubr.f32.gmra.mrb[0].mxu0 %v3426
    %v3567 = vpop.f32.mrb[0].mxu0
    %v3568 = vadd.f32 %v3464, %v3567
    %v3569 = vpop.f32.mrb[0].mxu0
    %3570 = vmatprep.mubr.f32.mxu0 0.0
    %3571 = vmatmul.mubr.f32.gmra.mrb[0].mxu0 %v3427
    %v3572 = vpop.f32.mrb[0].mxu0
    %v3573 = vadd.f32 %v3464, %v3572
    %v3574 = vpop.f32.mrb[0].mxu0
    %3575 = vmatprep.mubr.f32.mxu0 0.0
    %3576 = vmatmul.mubr.f32.gmra.mrb[0].mxu0 %v3428
    %v3577 = vpop.f32.mrb[0].mxu0
    %v3578 = vadd.f32 %v3464, %v3577
    %v3579 = vpop.f32.mrb[0].mxu0
    %3580 = vmatprep.mubr.f32.mxu0 0.0
    %3581 = vmatmul.mubr.f32.gmra.mrb[0].mxu0 %v3429
    %v3582 = vpop.f32.mrb[0].mxu0
    %v3583 = vadd.f32 %v3464, %v3582
    %v3584 = vpop.f32.mrb[0].mxu0
    %3585 = vmatprep.mubr.f32.mxu0 0.0
    %3586 = vmatmul.mubr.f32.gmra.mrb[0].mxu0 %v3430
    %v3587 = vpop.f32.mrb[0].mxu0
    %v3588 = vadd.f32 %v3464, %v3587
    %v3589 = vpop.f32.mrb[0].mxu0
    %3590 = vmatprep.mubr.f32.mxu0 0.0
    %3591 = vmatmul.mubr.f32.gmra.mrb[0].mxu0 %v3431
    %v3592 = vpop.f32.mrb[0].mxu0
    %v3593 = vadd.f32 %v3464, %v3592
    %v3594 = vpop.f32.mrb[0].mxu0
    %3595 = vmatprep.mubr.f32.mxu0 0.0
    %3596 = vmatmul.mubr.f32.gmra.mrb[0].mxu0 %v3432
    %v3597 = vpop.f32.mrb[0].mxu0
    %v3598 = vadd.f32 %v3464, %v3597
    %v3599 = vpop.f32.mrb[0].mxu0
    %3600 = vmatprep.mubr.f32.mxu0 0.0
    %3601 = vmatmul.mubr.f32.gmra.mrb[0].mxu0 %v3433
    %v3602 = vpop.f32.mrb[0].mxu0
    %v3603 = vadd.f32 %v3464, %v3602
    %v3604 = vpop.f32.mrb[0].mxu0
    %3605 = vmatprep.mubr.f32.mxu0 0.0
    %3606 = vmatmul.mubr.f32.gmra.mrb[0].mxu0 %v3434
    %v3607 = vpop.f32.mrb[0].mxu0
    %v3608 = vadd.f32 %v3464, %v3607
    %v3609 = vpop.f32.mrb[0].mxu0
    %3610 = vmatprep.mubr.f32.mxu0 0.0
    %3611 = vmatmul.mubr.f32.gmra.mrb[0].mxu0 %v3435
    %v3612 = vpop.f32.mrb[0].mxu0
    %v3613 = vadd.f32 %v3464, %v3612
    %v3614 = vpop.f32.mrb[0].mxu0
    %3615 = vmatprep.mubr.f32.mxu0 0.0
    %3616 = vmatmul.mubr.f32.gmra.mrb[0].mxu0 %v3436
    %v3617 = vpop.f32.mrb[0].mxu0
    %v3618 = vadd.f32 %v3464, %v3617
    %v3619 = vpop.f32.mrb[0].mxu0
    %3620 = vmatprep.mubr.f32.mxu0 0.0
    %3621 = vmatmul.mubr.f32.gmra.mrb[0].mxu0 %v3437
    %v3622 = vpop.f32.mrb[0].mxu0
    %v3623 = vadd.f32 %v3464, %v3622
    %v3624 = vpop.f32.mrb[0].mxu0
    %3625 = vmatprep.mubr.f32.mxu0 0.0
    %3626 = vmatmul.mubr.f32.gmra.mrb[0].mxu0 %v3438
    %v3627 = vpop.f32.mrb[0].mxu0
    %v3628 = vadd.f32 %v3464, %v3627
    %v3629 = vpop.f32.mrb[0].mxu0
    %3630 = vmatprep.mubr.f32.mxu0 0.0
    %3631 = vmatmul.mubr.f32.gmra.mrb[0].mxu0 %v3439
    %v3632 = vpop.f32.mrb[0].mxu0
    %v3633 = vadd.f32 %v3464, %v3632
    %v3634 = vpop.f32.mrb[0].mxu0
    %3635 = vmatprep.mubr.f32.mxu0 0.0
    %3636 = vmatmul.mubr.f32.gmra.mrb[0].mxu0 %v3440
    %v3637 = vpop.f32.mrb[0].mxu0
    %v3638 = vadd.f32 %v3464, %v3637
    %v3639 = vpop.f32.mrb[0].mxu0
    %3640 = vmatprep.mubr.f32.mxu0 0.0
    %3641 = vmatmul.mubr.f32.gmra.mrb[0].mxu0 %v3441
    %v3642 = vpop.f32.mrb[0].mxu0
    %v3643 = vadd.f32 %v3464, %v3642
    %v3644 = vpop.f32.mrb[0].mxu0
    %3645 = vmatprep.mubr.f32.mxu0 0.0
    %3646 = vmatmul.mubr.f32.gmra.mrb[0].mxu0 %v3442
    %v3647 = vpop.f32.mrb[0].mxu0
    %v3648 = vadd.f32 %v3464, %v3647
    %v3649 = vpop.f32.mrb[0].mxu0
    %3650 = vdwg.mxu0
    %v3651 = vmax.f32 %v3533, 0.0
    %v3652 = vmax.f32 %v3538, 0.0
    %v3653 = vmax.f32 %v3543, 0.0
    %v3654 = vmax.f32 %v3548, 0.0
    %v3655 = vmax.f32 %v3553, 0.0
    %v3656 = vmax.f32 %v3558, 0.0
    %v3657 = vmax.f32 %v3563, 0.0
    %v3658 = vmax.f32 %v3568, 0.0
    %v3659 = vmax.f32 %v3573, 0.0
    %v3660 = vmax.f32 %v3578, 0.0
    %v3661 = vmax.f32 %v3583, 0.0
    %v3662 = vmax.f32 %v3588, 0.0
    %v3663 = vmax.f32 %v3593, 0.0
    %v3664 = vmax.f32 %v3598, 0.0
    %v3665 = vmax.f32 %v3603, 0.0
    %v3666 = vmax.f32 %v3608, 0.0
    %v3667 = vmax.f32 %v3613, 0.0
    %v3668 = vmax.f32 %v3618, 0.0
    %v3669 = vmax.f32 %v3623, 0.0
    %v3670 = vmax.f32 %v3628, 0.0
    %v3671 = vmax.f32 %v3633, 0.0
    %v3672 = vmax.f32 %v3638, 0.0
    %v3673 = vmax.f32 %v3643, 0.0
    %v3674 = vmax.f32 %v3648, 0.0
    %v3675 = vrot.slane %v3651, 1
    %v3676 = vrot.slane %v3652, 1
    %v3677 = vrot.slane %v3653, 1
    %v3678 = vrot.slane %v3654, 1
    %v3679 = vrot.slane %v3655, 1
    %v3680 = vrot.slane %v3656, 1
    %v3681 = vrot.slane %v3657, 1
    %v3682 = vrot.slane %v3658, 1
    %v3683 = vrot.slane %v3659, 1
    %v3684 = vrot.slane %v3660, 1
    %v3685 = vrot.slane %v3661, 1
    %v3686 = vrot.slane %v3662, 1
    %v3687 = vrot.slane %v3663, 1
    %v3688 = vrot.slane %v3664, 1
    %v3689 = vrot.slane %v3665, 1
    %v3690 = vrot.slane %v3666, 1
    %v3691 = vrot.slane %v3667, 1
    %v3692 = vrot.slane %v3668, 1
    %v3693 = vrot.slane %v3669, 1
    %v3694 = vrot.slane %v3670, 1
    %v3695 = vrot.slane %v3671, 1
    %v3696 = vrot.slane %v3672, 1
    %v3697 = vrot.slane %v3673, 1
    %v3698 = vrot.slane %v3674, 1
    %v3699 = vsel %vm654, %v3697, %v3698
    %v3700 = vsel %vm654, %v3696, %v3697
    %v3701 = vsel %vm654, %v3695, %v3696
    %v3702 = vsel %vm654, %v3694, %v3695
    %v3703 = vsel %vm654, %v3693, %v3694
    %v3704 = vsel %vm654, %v3692, %v3693
    %v3705 = vsel %vm654, %v3691, %v3692
    %v3706 = vsel %vm654, %v3690, %v3691
    %v3707 = vsel %vm654, %v3689, %v3690
    %v3708 = vsel %vm654, %v3688, %v3689
    %v3709 = vsel %vm654, %v3687, %v3688
    %v3710 = vsel %vm654, %v3686, %v3687
    %v3711 = vsel %vm654, %v3685, %v3686
    %v3712 = vsel %vm654, %v3684, %v3685
    %v3713 = vsel %vm654, %v3683, %v3684
    %v3714 = vsel %vm654, %v3682, %v3683
    %v3715 = vsel %vm654, %v3681, %v3682
    %v3716 = vsel %vm654, %v3680, %v3681
    %v3717 = vsel %vm654, %v3679, %v3680
    %v3718 = vsel %vm654, %v3678, %v3679
    %v3719 = vsel %vm654, %v3677, %v3678
    %v3720 = vsel %vm654, %v3676, %v3677
    %v3721 = vsel %vm654, %v3675, %v3676
    %v3722 = vsel %vm654, %v3698, %v3675
    %v3723 = vmax.f32 %v3651, %v3721
    %v3724 = vmax.f32 %v3652, %v3720
    %v3725 = vmax.f32 %v3653, %v3719
    %v3726 = vmax.f32 %v3654, %v3718
    %v3727 = vmax.f32 %v3655, %v3717
    %v3728 = vmax.f32 %v3656, %v3716
    %v3729 = vmax.f32 %v3657, %v3715
    %v3730 = vmax.f32 %v3658, %v3714
    %v3731 = vmax.f32 %v3659, %v3713
    %v3732 = vmax.f32 %v3660, %v3712
    %v3733 = vmax.f32 %v3661, %v3711
    %v3734 = vmax.f32 %v3662, %v3710
    %v3735 = vmax.f32 %v3663, %v3709
    %v3736 = vmax.f32 %v3664, %v3708
    %v3737 = vmax.f32 %v3665, %v3707
    %v3738 = vmax.f32 %v3666, %v3706
    %v3739 = vmax.f32 %v3667, %v3705
    %v3740 = vmax.f32 %v3668, %v3704
    %v3741 = vmax.f32 %v3669, %v3703
    %v3742 = vmax.f32 %v3670, %v3702
    %v3743 = vmax.f32 %v3671, %v3701
    %v3744 = vmax.f32 %v3672, %v3700
    %v3745 = vmax.f32 %v3673, %v3699
    %v3746 = vmax.f32 %v3674, %v3722
    %v3747 = vld [vmem:[%s4] sm:$0xff]
    %v3748 = vld [vmem:[%s4 + $0x8] sm:$0xff]
    %v3750 = vsel %vm118, %v3748, 0
    %3752 = vmatprep.subr.mxu0 0.0
    %3753 = vmatpush1.msra.mxu0 %v3723
    %3754 = vmatprep.subr.mxu0 0.0
    %3755 = vmatpush1.msra.mxu0 %v3724
    %3756 = vmatprep.subr.mxu0 0.0
    %3757 = vmatpush1.msra.mxu0 %v3725
    %3758 = vmatprep.subr.mxu0 0.0
    %3759 = vmatpush1.msra.mxu0 %v3726
    %3760 = vmatprep.subr.mxu0 0.0
    %3761 = vmatpush1.msra.mxu0 %v3727
    %3762 = vmatprep.subr.mxu0 0.0
    %3763 = vmatpush1.msra.mxu0 %v3728
    %3764 = vmatprep.subr.mxu0 0.0
    %3765 = vmatpush1.msra.mxu0 %v3729
    %3766 = vmatprep.subr.mxu0 0.0
    %3767 = vmatpush1.msra.mxu0 %v3730
    %3768 = vmatprep.subr.mxu0 0.0
    %3769 = vmatpush1.msra.mxu0 %v3731
    %3770 = vmatprep.subr.mxu0 0.0
    %3771 = vmatpush1.msra.mxu0 %v3732
    %3772 = vmatprep.subr.mxu0 0.0
    %3773 = vmatpush1.msra.mxu0 %v3733
    %3774 = vmatprep.subr.mxu0 0.0
    %3775 = vmatpush1.msra.mxu0 %v3734
    %3776 = vmatprep.subr.mxu0 0.0
    %3777 = vmatpush1.msra.mxu0 %v3735
    %3778 = vmatprep.subr.mxu0 0.0
    %3779 = vmatpush1.msra.mxu0 %v3736
    %3780 = vmatprep.subr.mxu0 0.0
    %3781 = vmatpush1.msra.mxu0 %v3737
    %3782 = vmatprep.subr.mxu0 0.0
    %3783 = vmatpush1.msra.mxu0 %v3738
    %3784 = vmatprep.subr.mxu0 0.0
    %3785 = vmatpush1.msra.mxu0 %v3739
    %3786 = vmatprep.subr.mxu0 0.0
    %3787 = vmatpush1.msra.mxu0 %v3740
    %3788 = vmatprep.subr.mxu0 0.0
    %3789 = vmatpush1.msra.mxu0 %v3741
    %3790 = vmatprep.subr.mxu0 0.0
    %3791 = vmatpush1.msra.mxu0 %v3742
    %3792 = vmatprep.subr.mxu0 0.0
    %3793 = vmatpush1.msra.mxu0 %v3743
    %3794 = vmatprep.subr.mxu0 0.0
    %3795 = vmatpush1.msra.mxu0 %v3744
    %3796 = vmatprep.subr.mxu0 0.0
    %3797 = vmatpush1.msra.mxu0 %v3745
    %3798 = vmatprep.subr.mxu0 0.0
    %3799 = vmatpush1.msra.mxu0 %v3746
    %3800 = vmatprep.subr.mxu0 0.0
    %3801 = vmatpush1.msra.mxu0 0.0
    %3802 = vmatprep.subr.mxu0 0.0
    %3803 = vmatpush1.msra.mxu0 0.0
    %3804 = vmatprep.subr.mxu0 0.0
    %3805 = vmatpush1.msra.mxu0 0.0
    %3806 = vmatprep.subr.mxu0 0.0
    %3807 = vmatpush1.msra.mxu0 0.0
    %3808 = vmatprep.subr.mxu0 0.0
    %3809 = vmatpush1.msra.mxu0 0.0
    %3810 = vmatprep.subr.mxu0 0.0
    %3811 = vmatpush1.msra.mxu0 0.0
    %3812 = vmatprep.subr.mxu0 0.0
    %3813 = vmatpush1.msra.mxu0 0.0
    %3814 = vmatprep.subr.mxu0 0.0
    %3815 = vmatpush1.msra.mxu0 0.0
    %3816 = vmatprep.mubr.f32.mxu0 %v3750
    %3817 = vmatmul.mubr.f32.gmra.mrb[0].mxu0 %v3747
    %v3818 = vpop.f32.mrb[0].mxu0
    %v3819 = vadd.f32 0.0, %v3818
    %v3820 = vpop.f32.mrb[0].mxu0
    %3821 = vdwg.mxu0
    %v3822 = vld [vmem:[%s9] sm:$0xff]
    %v3823 = vld [vmem:[%s9 + $0x8] sm:$0xff]
    %v3824 = vld [vmem:[%s9 + $0x10] sm:$0xff]
    %v3825 = vld [vmem:[%s9 + $0x18] sm:$0xff]
    %v3826 = vld [vmem:[%s9 + $0x20] sm:$0xff]
    %v3827 = vld [vmem:[%s10] sm:$0x1]
    %v3829 = vlaneseq
    %v3830 = vshrl.u32 %v3829, 7
    %v3831 = vsub.s32 0, %v3830
    %v3832 = vrot.slane %v3827, %v3831
    %vm3834 = vcmask 326656
    %v3836 = vsel %vm3834, %v3819, 0
    %3838 = vmatprep.subr.mxu0 0.0
    %3839 = vmatpush1.msra.mxu0 %v3822
    %3840 = vmatprep.subr.mxu0 0.0
    %3841 = vmatpush1.msra.mxu0 %v3823
    %3842 = vmatprep.subr.mxu0 0.0
    %3843 = vmatpush1.msra.mxu0 %v3824
    %3844 = vmatprep.subr.mxu0 0.0
    %3845 = vmatpush1.msra.mxu0 %v3825
    %3846 = vmatprep.subr.mxu0 0.0
    %3847 = vmatpush1.msra.mxu0 %v3826
    %3848 = vmatprep.subr.mxu0 0.0
    %3849 = vmatpush1.msra.mxu0 0.0
    %3850 = vmatprep.subr.mxu0 0.0
    %3851 = vmatpush1.msra.mxu0 0.0
    %3852 = vmatprep.subr.mxu0 0.0
    %3853 = vmatpush1.msra.mxu0 0.0
    %3854 = vmatprep.subr.mxu0 0.0
    %3855 = vmatpush1.msra.mxu0 0.0
    %3856 = vmatprep.subr.mxu0 0.0
    %3857 = vmatpush1.msra.mxu0 0.0
    %3858 = vmatprep.subr.mxu0 0.0
    %3859 = vmatpush1.msra.mxu0 0.0
    %3860 = vmatprep.subr.mxu0 0.0
    %3861 = vmatpush1.msra.mxu0 0.0
    %3862 = vmatprep.subr.mxu0 0.0
    %3863 = vmatpush1.msra.mxu0 0.0
    %3864 = vmatprep.subr.mxu0 0.0
    %3865 = vmatpush1.msra.mxu0 0.0
    %3866 = vmatprep.subr.mxu0 0.0
    %3867 = vmatpush1.msra.mxu0 0.0
    %3868 = vmatprep.subr.mxu0 0.0
    %3869 = vmatpush1.msra.mxu0 0.0
    %3870 = vmatprep.subr.mxu0 0.0
    %3871 = vmatpush1.msra.mxu0 0.0
    %3872 = vmatprep.subr.mxu0 0.0
    %3873 = vmatpush1.msra.mxu0 0.0
    %3874 = vmatprep.subr.mxu0 0.0
    %3875 = vmatpush1.msra.mxu0 0.0
    %3876 = vmatprep.subr.mxu0 0.0
    %3877 = vmatpush1.msra.mxu0 0.0
    %3878 = vmatprep.subr.mxu0 0.0
    %3879 = vmatpush1.msra.mxu0 0.0
    %3880 = vmatprep.subr.mxu0 0.0
    %3881 = vmatpush1.msra.mxu0 0.0
    %3882 = vmatprep.subr.mxu0 0.0
    %3883 = vmatpush1.msra.mxu0 0.0
    %3884 = vmatprep.subr.mxu0 0.0
    %3885 = vmatpush1.msra.mxu0 0.0
    %3886 = vmatprep.subr.mxu0 0.0
    %3887 = vmatpush1.msra.mxu0 0.0
    %3888 = vmatprep.subr.mxu0 0.0
    %3889 = vmatpush1.msra.mxu0 0.0
    %3890 = vmatprep.subr.mxu0 0.0
    %3891 = vmatpush1.msra.mxu0 0.0
    %3892 = vmatprep.subr.mxu0 0.0
    %3893 = vmatpush1.msra.mxu0 0.0
    %3894 = vmatprep.subr.mxu0 0.0
    %3895 = vmatpush1.msra.mxu0 0.0
    %3896 = vmatprep.subr.mxu0 0.0
    %3897 = vmatpush1.msra.mxu0 0.0
    %3898 = vmatprep.subr.mxu0 0.0
    %3899 = vmatpush1.msra.mxu0 0.0
    %3900 = vmatprep.subr.mxu0 0.0
    %3901 = vmatpush1.msra.mxu0 0.0
    %3902 = vmatprep.mubr.f32.mxu0 0.0
    %3903 = vmatmul.mubr.f32.gmra.mrb[0].mxu0 %v3836
    %v3904 = vpop.f32.mrb[0].mxu0
    %v3905 = vadd.f32 %v3832, %v3904
    %v3906 = vpop.f32.mrb[0].mxu0
    %3907 = vdwg.mxu0
    %v3908 = vmax.f32 %v3905, 0.0
    %s3909 = sld [smem:[#allocation2]]
    %s3910 = sld [smem:[#allocation2 + $0x1]]
    %s3911 = sld [smem:[#allocation2 + $0x2]]
    %s3912 = sld [smem:[#allocation2 + $0x3]]
    %v3913 = vstv %s3909
    %v3914 = vmul.f32 %v3913, %v3908
    %v3915 = vstv %s3910
    %v3916 = vmul.f32 %v3915, %v3908
    %v3918 = vrot.slane %v3916, 2
    %v3920 = vadd.f32 %v3914, %v3918
    %v3921 = vstv %s3911
    %v3922 = vmul.f32 %v3921, %v3908
    %v3924 = vrot.slane %v3922, 4
    %v3926 = vadd.f32 %v3920, %v3924
    %v3927 = vstv %s3912
    %v3928 = vmul.f32 %v3927, %v3908
    %v3930 = vrot.slane %v3928, 6
    %v3932 = vadd.f32 %v3926, %v3930
    %v3933 = vld [vmem:[%s11] sm:$0xff]
    %v3934 = vld [vmem:[%s11 + $0x8] sm:$0xff]
    %v3935 = vld [vmem:[%s11 + $0x10] sm:$0xff]
    %v3936 = vld [vmem:[%s11 + $0x18] sm:$0xff]
    %v3937 = vld [vmem:[%s11 + $0x20] sm:$0xff]
    %s3938 = sadd.f32 %s3909, %s3910
    %s3939 = sadd.f32 %s3938, %s3911
    %s3940 = sadd.f32 %s3939, %s3912
    %v3941 = vld [vmem:[%s12] sm:$0x1]
    %v3942 = vstv %s3940
    %v3943 = vmul.f32 %v3942, %v3941
    %v3945 = vlaneseq
    %v3946 = vshrl.u32 %v3945, 7
    %v3947 = vsub.s32 0, %v3946
    %v3948 = vrot.slane %v3943, %v3947
    %v3951 = vsel %vm3834, %v3932, 0
    %3953 = vmatprep.subr.mxu0 0.0
    %3954 = vmatpush1.msra.mxu0 %v3933
    %3955 = vmatprep.subr.mxu0 0.0
    %3956 = vmatpush1.msra.mxu0 %v3934
    %3957 = vmatprep.subr.mxu0 0.0
    %3958 = vmatpush1.msra.mxu0 %v3935
    %3959 = vmatprep.subr.mxu0 0.0
    %3960 = vmatpush1.msra.mxu0 %v3936
    %3961 = vmatprep.subr.mxu0 0.0
    %3962 = vmatpush1.msra.mxu0 %v3937
    %3963 = vmatprep.subr.mxu0 0.0
    %3964 = vmatpush1.msra.mxu0 0.0
    %3965 = vmatprep.subr.mxu0 0.0
    %3966 = vmatpush1.msra.mxu0 0.0
    %3967 = vmatprep.subr.mxu0 0.0
    %3968 = vmatpush1.msra.mxu0 0.0
    %3969 = vmatprep.subr.mxu0 0.0
    %3970 = vmatpush1.msra.mxu0 0.0
    %3971 = vmatprep.subr.mxu0 0.0
    %3972 = vmatpush1.msra.mxu0 0.0
    %3973 = vmatprep.subr.mxu0 0.0
    %3974 = vmatpush1.msra.mxu0 0.0
    %3975 = vmatprep.subr.mxu0 0.0
    %3976 = vmatpush1.msra.mxu0 0.0
    %3977 = vmatprep.subr.mxu0 0.0
    %3978 = vmatpush1.msra.mxu0 0.0
    %3979 = vmatprep.subr.mxu0 0.0
    %3980 = vmatpush1.msra.mxu0 0.0
    %3981 = vmatprep.subr.mxu0 0.0
    %3982 = vmatpush1.msra.mxu0 0.0
    %3983 = vmatprep.subr.mxu0 0.0
    %3984 = vmatpush1.msra.mxu0 0.0
    %3985 = vmatprep.subr.mxu0 0.0
    %3986 = vmatpush1.msra.mxu0 0.0
    %3987 = vmatprep.subr.mxu0 0.0
    %3988 = vmatpush1.msra.mxu0 0.0
    %3989 = vmatprep.subr.mxu0 0.0
    %3990 = vmatpush1.msra.mxu0 0.0
    %3991 = vmatprep.subr.mxu0 0.0
    %3992 = vmatpush1.msra.mxu0 0.0
    %3993 = vmatprep.subr.mxu0 0.0
    %3994 = vmatpush1.msra.mxu0 0.0
    %3995 = vmatprep.subr.mxu0 0.0
    %3996 = vmatpush1.msra.mxu0 0.0
    %3997 = vmatprep.subr.mxu0 0.0
    %3998 = vmatpush1.msra.mxu0 0.0
    %3999 = vmatprep.subr.mxu0 0.0
    %4000 = vmatpush1.msra.mxu0 0.0
    %4001 = vmatprep.subr.mxu0 0.0
    %4002 = vmatpush1.msra.mxu0 0.0
    %4003 = vmatprep.subr.mxu0 0.0
    %4004 = vmatpush1.msra.mxu0 0.0
    %4005 = vmatprep.subr.mxu0 0.0
    %4006 = vmatpush1.msra.mxu0 0.0
    %4007 = vmatprep.subr.mxu0 0.0
    %4008 = vmatpush1.msra.mxu0 0.0
    %4009 = vmatprep.subr.mxu0 0.0
    %4010 = vmatpush1.msra.mxu0 0.0
    %4011 = vmatprep.subr.mxu0 0.0
    %4012 = vmatpush1.msra.mxu0 0.0
    %4013 = vmatprep.subr.mxu0 0.0
    %4014 = vmatpush1.msra.mxu0 0.0
    %4015 = vmatprep.subr.mxu0 0.0
    %4016 = vmatpush1.msra.mxu0 0.0
    %4017 = vmatprep.mubr.f32.mxu0 0.0
    %4018 = vmatmul.mubr.f32.gmra.mrb[0].mxu0 %v3951
    %v4019 = vpop.f32.mrb[0].mxu0
    %v4020 = vadd.f32 %v3948, %v4019
    %v4021 = vpop.f32.mrb[0].mxu0
    %4022 = vdwg.mxu0
    %vm4023 = vcmask 25600
    %4024 = vst.msk [vmem:[#allocation5] sm:$0x3] %vm4023, %v4020
    // Predicated region
    $region58: #{tem_enc_forward.5} parent=1 // pred_check
      _
    $region59: #{tem_enc_forward.5} parent=1 // pred_check_branch
      %4026 = sbr.rel (0) target = $region61
    $region60: #{tem_enc_forward.5} parent=1 // pred_region
      %s4028 = ssub.s32 32, 32
      %4029 = vsyncadd [#allocation3], %s4028
      %s4031 = sshll.u32 [#allocation5], 4
      %s4032 = int_to_ptr.vmem [resolvable:$true] %s4031
      %4034 = dma.vmem_to_hbm [thread:$0]  %s4032, 32, %s13, [#allocation3]
    $region61: #{tem_enc_forward.5} parent=1 // pred_fallthru
      _
    // Predicated region
    $region62: #{tem_enc_forward.5} parent=1 // pred_check
      _
    $region63: #{tem_enc_forward.5} parent=1 // pred_check_branch
      %4036 = sbr.rel (0) target = $region65
    $region64: #{tem_enc_forward.5} parent=1 // pred_region
      %4037 = dma.done [#allocation3], 32
    $region65: #{tem_enc_forward.5} parent=1 // pred_fallthru
      _
    %4038 = vsyncpa [#allocation3], 1
    %4039 = vsyncpa [#allocation4], 1

</llo_original>
